<compile_context>
chip_gen: v7x
topology: tpu7x:2x2x1
jax: 0.10.0
libtpu: 0.0.40
codegen_flags: <defaults>
</compile_context>

<pallas_src>
from functools import partial

import jax
import jax.numpy as jnp
import numpy as np
from jax.experimental import pallas as pl
from jax.experimental.pallas import tpu as pltpu

# fixed architecture constants (from the PyTorch module)
K1, P1 = 5, 2
K2, P2 = 5, 2
K3, P3 = 3, 1
K4, P4 = 3, 1
C1, C2, C3, C4 = 128, 128, 256, 256
NCLS = 5
NCLS_PAD = 128      # FC output padded to a full lane width; sliced back to 5 outside


# ----------------------------------------------------------------------------
# Fused kernel: TB batch elements per grid step, everything in VMEM
# ----------------------------------------------------------------------------
def _fused_forward_kernel(x_ref, w1_ref, b1_ref, w2_ref, b2_ref,
                          w3_ref, b3_ref, w4_ref, b4_ref, wfc_ref, bfc_ref,
                          o_ref,
                          a1p, a2p, a3p):
    f32, bf16 = jnp.float32, jnp.bfloat16
    L, TB, KC1 = x_ref.shape            # (36, TB, K1*Cin)
    L2, L4 = L // 2, L // 4             # 18, 9

    # re-zero only the pad rows (tiny); interior rows are fully overwritten below
    a1p[0:P2, :, :] = jnp.zeros((P2, TB, C1), bf16)
    a1p[P2 + L:, :, :] = jnp.zeros((P2, TB, C1), bf16)
    a2p[0:P3, :, :] = jnp.zeros((P3, TB, C2), bf16)
    a2p[P3 + L2:, :, :] = jnp.zeros((P3, TB, C2), bf16)
    a3p[0:P4, :, :] = jnp.zeros((P4, TB, C3), bf16)
    a3p[P4 + L2:, :, :] = jnp.zeros((P4, TB, C3), bf16)

    # ---------------- layer 1: Conv1d(Cin->128, k=5, p=2) + ReLU ------------
    # x_ref is already im2col'd in the wrapper: (L, TB, K1*Cin)
    y1 = jnp.dot(x_ref[...].reshape(L * TB, KC1).astype(bf16), w1_ref[...],
                 preferred_element_type=f32)                       # (L*TB, C1)
    h1 = jnp.maximum(y1 + b1_ref[...], 0.0)
    a1p[P2:P2 + L, :, :] = h1.reshape(L, TB, C1).astype(bf16)

    # ---- layer 2: Conv1d(128->128, k=5, p=2) + Dropout(id) + ReLU + MaxPool(2,2)
    cols2 = jnp.concatenate([a1p[k:k + L, :, :] for k in range(K2)],
                            axis=-1)                               # (L, TB, 5*C1) bf16
    y2 = jnp.dot(cols2.reshape(L * TB, K2 * C1), w2_ref[...],
                 preferred_element_type=f32)                       # (L*TB, C2)
    h2f = jnp.maximum(y2 + b2_ref[...], 0.0).reshape(L2, 2, TB, C2)
    h2 = jnp.maximum(h2f[:, 0, :, :], h2f[:, 1, :, :])             # stride-2 max pool
    a2p[P3:P3 + L2, :, :] = h2.astype(bf16)

    # ---------------- layer 3: Conv1d(128->256, k=3, p=1) + ReLU ------------
    cols3 = jnp.concatenate([a2p[k:k + L2, :, :] for k in range(K3)],
                            axis=-1)                               # (L2, TB, 3*C2)
    y3 = jnp.dot(cols3.reshape(L2 * TB, K3 * C2), w3_ref[...],
                 preferred_element_type=f32)                       # (L2*TB, C3)
    h3 = jnp.maximum(y3 + b3_ref[...], 0.0)
    a3p[P4:P4 + L2, :, :] = h3.reshape(L2, TB, C3).astype(bf16)

    # ---- layer 4: Conv1d(256->256, k=3, p=1) + Dropout(id) + ReLU + MaxPool(2,2)
    cols4 = jnp.concatenate([a3p[k:k + L2, :, :] for k in range(K4)],
                            axis=-1)                               # (L2, TB, 3*C3)
    y4 = jnp.dot(cols4.reshape(L2 * TB, K4 * C3), w4_ref[...],
                 preferred_element_type=f32)                       # (L2*TB, C4)
    h4f = jnp.maximum(y4 + b4_ref[...], 0.0).reshape(L4, 2, TB, C4)
    h4 = jnp.maximum(h4f[:, 0, :, :], h4f[:, 1, :, :])             # (L4, TB, C4)

    # -------- classifier: Linear(2304 -> 5); flatten folded into wfc layout --
    flat = jnp.concatenate([h4[l] for l in range(L4)], axis=-1)    # (TB, L4*C4)
    out = jnp.dot(flat.astype(bf16), wfc_ref[...],
                  preferred_element_type=f32)                      # (TB, 128)
    o_ref[...] = (out + bfc_ref[...]).astype(o_ref.dtype)


# ----------------------------------------------------------------------------
# Wrappers
# ----------------------------------------------------------------------------
def prepare_params(p):
    """One-time weight prep: bf16 cast, im2col weight reshape, FC permute+pad."""
    bf16 = jnp.bfloat16
    nflat, ncls = p["wfc"].shape                    # (C4 * L4, 5)
    L4 = nflat // C4
    wfc = jnp.pad(p["wfc"], ((0, 0), (0, NCLS_PAD - ncls)))      # (2304, 128)
    # torch flatten is channel-major (row index = c*L4 + l); the kernel builds
    # the flat vector as (l, c) -> regroup FC weight rows to match.
    wfc_lc = (wfc.reshape(C4, L4, NCLS_PAD)
                 .transpose(1, 0, 2)
                 .reshape(L4 * C4, NCLS_PAD))                    # rows = l*C4 + c
    return {
        "w1": p["w1"].reshape(K1 * p["w1"].shape[1], C1).astype(bf16),  # (K1*Cin, C1)
        "b1": p["b1"],
        "w2": p["w2"].reshape(K2 * C1, C2).astype(bf16),
        "b2": p["b2"],
        "w3": p["w3"].reshape(K3 * C2, C3).astype(bf16),
        "b3": p["b3"],
        "w4": p["w4"].reshape(K4 * C3, C4).astype(bf16),
        "b4": p["b4"],
        "wfc": wfc_lc.astype(bf16),
        "bfc": jnp.pad(p["bfc"], ((0, 0), (0, NCLS_PAD - ncls))),
    }


def _forward_cols(cols1, pp, tb):
    """cols1: (L, Np, K1*Cin) im2col'd input, Np a multiple of tb."""
    L, Np, KC1 = cols1.shape
    L2, L4 = L // 2, L // 4
    out = pl.pallas_call(
        _fused_forward_kernel,
        out_shape=jax.ShapeDtypeStruct((Np, NCLS_PAD), jnp.float32),
        grid=(Np // tb,),
        in_specs=[
            pl.BlockSpec((L, tb, KC1), lambda n: (0, n, 0)),
            pl.BlockSpec((KC1, C1), lambda n: (0, 0)),
            pl.BlockSpec((1, C1), lambda n: (0, 0)),
            pl.BlockSpec((K2 * C1, C2), lambda n: (0, 0)),
            pl.BlockSpec((1, C2), lambda n: (0, 0)),
            pl.BlockSpec((K3 * C2, C3), lambda n: (0, 0)),
            pl.BlockSpec((1, C3), lambda n: (0, 0)),
            pl.BlockSpec((K4 * C3, C4), lambda n: (0, 0)),
            pl.BlockSpec((1, C4), lambda n: (0, 0)),
            pl.BlockSpec((L4 * C4, NCLS_PAD), lambda n: (0, 0)),
            pl.BlockSpec((1, NCLS_PAD), lambda n: (0, 0)),
        ],
        out_specs=pl.BlockSpec((tb, NCLS_PAD), lambda n: (n, 0)),
        scratch_shapes=[
            pltpu.VMEM((L + 2 * P2, tb, C1), jnp.bfloat16),    # padded conv1 out
            pltpu.VMEM((L2 + 2 * P3, tb, C2), jnp.bfloat16),   # padded pooled conv2 out
            pltpu.VMEM((L2 + 2 * P4, tb, C3), jnp.bfloat16),   # padded conv3 out
        ],
        compiler_params=pltpu.CompilerParams(
            dimension_semantics=("parallel",)),
    )(cols1, pp["w1"], pp["b1"], pp["w2"], pp["b2"], pp["w3"], pp["b3"],
      pp["w4"], pp["b4"], pp["wfc"], pp["bfc"])
    return out


@partial(jax.jit, static_argnames=("tb",))
def forward_pallas(x_ncl, pp, tb=16):
    """x_ncl: torch-convention (N, C, L) input."""
    N, Cin, L = x_ncl.shape
    # NCL -> (L, N, C), pad L for conv1 and N up to a multiple of tb (tiny tensor)
    x_lnc = jnp.transpose(x_ncl, (0, 2, 1)).transpose(1, 0, 2)        # (L, N, C)
    x_lnc = jnp.pad(x_lnc, ((P1, P1), (0, (-N) % tb), (0, 0)))
    # layer-1 im2col built once here (lane width K1*Cin=35 is not vreg aligned,
    # so building it in-kernel would cost narrow lane shuffles)
    cols1 = jnp.concatenate([x_lnc[k:k + L] for k in range(K1)], axis=-1)
    out = _forward_cols(cols1, pp, tb)
    return out[:N, :NCLS]


# ----------------------------------------------------------------------------
# Pure-JAX f32 reference (sanity check)
# ----------------------------------------------------------------------------
def ref_forward(x_nlc, p):
    def conv(x, w, b):
        P = (w.shape[0] - 1) // 2
        y = jax.lax.conv_general_dilated(
            x, w, window_strides=(1,), padding=[(P, P)],
            dimension_numbers=("NWC", "WIO", "NWC"))
        return jax.nn.relu(y + b)

    def pool(x):
        N, L, C = x.shape
        return x.reshape(N, L // 2, 2, C).max(axis=2)

    h = conv(x_nlc, p["w1"], p["b1"])
    h = pool(conv(h, p["w2"], p["b2"]))
    h = conv(h, p["w3"], p["b3"])
    h = pool(conv(h, p["w4"], p["b4"]))
    flat = jnp.transpose(h, (0, 2, 1)).reshape(h.shape[0], -1)
    return flat @ p["wfc"] + p["bfc"]


# ----------------------------------------------------------------------------
# main
# ----------------------------------------------------------------------------
if __name__ == "__main__":
    AXIS = 1                         # module arg -> in_channels = 7 * axis = 7
    N, CIN, L = 32, 7 * AXIS, 36     # L=36 required by classifier (256 * 9)
    TB = 16                          # samples per grid step -> 2 grid steps

    key = jax.random.PRNGKey(0)
    ks = jax.random.split(key, 12)

    def init(k, shape, fan_in):
        return (jax.random.normal(k, shape, jnp.float32)
                / np.float32(np.sqrt(fan_in)))

    params = {
        # conv weights stored as (K, Cin, Cout); biases as (1, Cout)
        "w1": init(ks[0], (K1, CIN, C1), K1 * CIN),
        "b1": init(ks[1], (1, C1), K1 * CIN),
        "w2": init(ks[2], (K2, C1, C2), K2 * C1),
        "b2": init(ks[3], (1, C2), K2 * C1),
        "w3": init(ks[4], (K3, C2, C3), K3 * C2),
        "b3": init(ks[5], (1, C3), K3 * C2),
        "w4": init(ks[6], (K4, C3, C4), K4 * C3),
        "b4": init(ks[7], (1, C4), K4 * C3),
        # classifier weight rows indexed channel-major (c * L4 + l), like torch
        "wfc": init(ks[8], (C4 * (L // 4), NCLS), C4 * (L // 4)),
        "bfc": init(ks[9], (1, NCLS), C4 * (L // 4)),
    }
    pp = prepare_params(params)

    # PyTorch-convention input: (N, C, L)
    x = jax.random.normal(ks[10], (N, CIN, L), jnp.float32)

    out = jax.block_until_ready(forward_pallas(x, pp, tb=TB))
    assert out.shape == (N, NCLS)

    ref = ref_forward(jnp.transpose(x, (0, 2, 1)), params)
    rel_err = float(jnp.max(jnp.abs(out - ref)) /
                    (jnp.max(jnp.abs(ref)) + 1e-6))
    assert np.isfinite(np.asarray(out)).all()
    assert rel_err < 5e-2, f"mismatch vs reference: rel err {rel_err}"

    print("KERNEL_OK")
</pallas_src>

<mosaic_0001>
module attributes {stable_mosaic.version = 11 : i64} {
  func.func @_fused_forward_kernel(%arg0: i32, %arg1: memref<36x16x35xf32, #tpu.memory_space<vmem>>, %arg2: memref<35x128xbf16, #tpu.memory_space<vmem>>, %arg3: memref<1x128xf32, #tpu.memory_space<vmem>>, %arg4: memref<640x128xbf16, #tpu.memory_space<vmem>>, %arg5: memref<1x128xf32, #tpu.memory_space<vmem>>, %arg6: memref<384x256xbf16, #tpu.memory_space<vmem>>, %arg7: memref<1x256xf32, #tpu.memory_space<vmem>>, %arg8: memref<768x256xbf16, #tpu.memory_space<vmem>>, %arg9: memref<1x256xf32, #tpu.memory_space<vmem>>, %arg10: memref<2304x128xbf16, #tpu.memory_space<vmem>>, %arg11: memref<1x128xf32, #tpu.memory_space<vmem>>, %arg12: memref<16x128xf32, #tpu.memory_space<vmem>>, %arg13: memref<40x16x128xbf16, #tpu.memory_space<vmem>>, %arg14: memref<20x16x128xbf16, #tpu.memory_space<vmem>>, %arg15: memref<20x16x256xbf16, #tpu.memory_space<vmem>>) attributes {dimension_semantics = [#tpu.dimension_semantics<parallel>], iteration_bounds = array<i64: 2>, scalar_prefetch = 0 : i64, scratch_operands = 3 : i64, tpu.core_type = #tpu.core_type<tc>, window_params = [{transform_indices = @transform_0, window_bounds = array<i64: 36, 16, 35>}, {pipeline_mode = #tpu.pipeline_mode<synchronous>, transform_indices = @transform_1, window_bounds = array<i64: 35, 128>}, {pipeline_mode = #tpu.pipeline_mode<synchronous>, transform_indices = @transform_2, window_bounds = array<i64: 1, 128>}, {pipeline_mode = #tpu.pipeline_mode<synchronous>, transform_indices = @transform_3, window_bounds = array<i64: 640, 128>}, {pipeline_mode = #tpu.pipeline_mode<synchronous>, transform_indices = @transform_4, window_bounds = array<i64: 1, 128>}, {pipeline_mode = #tpu.pipeline_mode<synchronous>, transform_indices = @transform_5, window_bounds = array<i64: 384, 256>}, {pipeline_mode = #tpu.pipeline_mode<synchronous>, transform_indices = @transform_6, window_bounds = array<i64: 1, 256>}, {pipeline_mode = #tpu.pipeline_mode<synchronous>, transform_indices = @transform_7, window_bounds = array<i64: 768, 256>}, {pipeline_mode = #tpu.pipeline_mode<synchronous>, transform_indices = @transform_8, window_bounds = array<i64: 1, 256>}, {pipeline_mode = #tpu.pipeline_mode<synchronous>, transform_indices = @transform_9, window_bounds = array<i64: 2304, 128>}, {pipeline_mode = #tpu.pipeline_mode<synchronous>, transform_indices = @transform_10, window_bounds = array<i64: 1, 128>}, {transform_indices = @transform_11, window_bounds = array<i64: 16, 128>}]} {
    %cst = arith.constant 0.000000e+00 : bf16
    %0 = vector.broadcast %cst : bf16 to vector<2x16x128xbf16>
    %c0 = arith.constant 0 : index
    %c0_0 = arith.constant 0 : index
    %c0_1 = arith.constant 0 : index
    %1 = vector.load %arg13[%c0, %c0_0, %c0_1] : memref<40x16x128xbf16, #tpu.memory_space<vmem>>, vector<2x16x128xbf16>
    tpu.vector_store %arg13[%c0, %c0_0, %c0_1], %0 {strides = array<i32>} : memref<40x16x128xbf16, #tpu.memory_space<vmem>>, vector<2x16x128xbf16>,
    %cst_2 = arith.constant 0.000000e+00 : bf16
    %2 = vector.broadcast %cst_2 : bf16 to vector<2x16x128xbf16>
    %c38 = arith.constant 38 : index
    %c0_3 = arith.constant 0 : index
    %c0_4 = arith.constant 0 : index
    %3 = vector.load %arg13[%c38, %c0_3, %c0_4] : memref<40x16x128xbf16, #tpu.memory_space<vmem>>, vector<2x16x128xbf16>
    tpu.vector_store %arg13[%c38, %c0_3, %c0_4], %2 {strides = array<i32>} : memref<40x16x128xbf16, #tpu.memory_space<vmem>>, vector<2x16x128xbf16>,
    %cst_5 = arith.constant 0.000000e+00 : bf16
    %4 = vector.broadcast %cst_5 : bf16 to vector<1x16x128xbf16>
    %c0_6 = arith.constant 0 : index
    %c0_7 = arith.constant 0 : index
    %c0_8 = arith.constant 0 : index
    %5 = vector.load %arg14[%c0_6, %c0_7, %c0_8] : memref<20x16x128xbf16, #tpu.memory_space<vmem>>, vector<1x16x128xbf16>
    tpu.vector_store %arg14[%c0_6, %c0_7, %c0_8], %4 {strides = array<i32>} : memref<20x16x128xbf16, #tpu.memory_space<vmem>>, vector<1x16x128xbf16>,
    %cst_9 = arith.constant 0.000000e+00 : bf16
    %6 = vector.broadcast %cst_9 : bf16 to vector<1x16x128xbf16>
    %c19 = arith.constant 19 : index
    %c0_10 = arith.constant 0 : index
    %c0_11 = arith.constant 0 : index
    %7 = vector.load %arg14[%c19, %c0_10, %c0_11] : memref<20x16x128xbf16, #tpu.memory_space<vmem>>, vector<1x16x128xbf16>
    tpu.vector_store %arg14[%c19, %c0_10, %c0_11], %6 {strides = array<i32>} : memref<20x16x128xbf16, #tpu.memory_space<vmem>>, vector<1x16x128xbf16>,
    %cst_12 = arith.constant 0.000000e+00 : bf16
    %8 = vector.broadcast %cst_12 : bf16 to vector<1x16x256xbf16>
    %c0_13 = arith.constant 0 : index
    %c0_14 = arith.constant 0 : index
    %c0_15 = arith.constant 0 : index
    %9 = vector.load %arg15[%c0_13, %c0_14, %c0_15] : memref<20x16x256xbf16, #tpu.memory_space<vmem>>, vector<1x16x256xbf16>
    tpu.vector_store %arg15[%c0_13, %c0_14, %c0_15], %8 {strides = array<i32>} : memref<20x16x256xbf16, #tpu.memory_space<vmem>>, vector<1x16x256xbf16>,
    %cst_16 = arith.constant 0.000000e+00 : bf16
    %10 = vector.broadcast %cst_16 : bf16 to vector<1x16x256xbf16>
    %c19_17 = arith.constant 19 : index
    %c0_18 = arith.constant 0 : index
    %c0_19 = arith.constant 0 : index
    %11 = vector.load %arg15[%c19_17, %c0_18, %c0_19] : memref<20x16x256xbf16, #tpu.memory_space<vmem>>, vector<1x16x256xbf16>
    tpu.vector_store %arg15[%c19_17, %c0_18, %c0_19], %10 {strides = array<i32>} : memref<20x16x256xbf16, #tpu.memory_space<vmem>>, vector<1x16x256xbf16>,
    %c0_20 = arith.constant 0 : index
    %c0_21 = arith.constant 0 : index
    %c0_22 = arith.constant 0 : index
    %12 = vector.load %arg1[%c0_20, %c0_21, %c0_22] : memref<36x16x35xf32, #tpu.memory_space<vmem>>, vector<36x16x35xf32>
    %13 = vector.shape_cast %12 : vector<36x16x35xf32> to vector<576x35xf32>
    %14 = arith.truncf %13 : vector<576x35xf32> to vector<576x35xbf16>
    %c0_23 = arith.constant 0 : index
    %c0_24 = arith.constant 0 : index
    %15 = vector.load %arg2[%c0_23, %c0_24] : memref<35x128xbf16, #tpu.memory_space<vmem>>, vector<35x128xbf16>
    %cst_25 = arith.constant dense<0.000000e+00> : vector<576x128xf32>
    %16 = tpu.matmul %14, %15, %cst_25 {dimension_numbers = #tpu.dot_dimension_numbers<[1], [0], [0], [1], [0, 0, 1, 1], [], []>} : vector<576x35xbf16>, vector<35x128xbf16>, vector<576x128xf32> -> vector<576x128xf32>
    %c0_26 = arith.constant 0 : index
    %c0_27 = arith.constant 0 : index
    %17 = vector.load %arg3[%c0_26, %c0_27] : memref<1x128xf32, #tpu.memory_space<vmem>>, vector<1x128xf32>
    %18 = vector.broadcast %17 : vector<1x128xf32> to vector<576x128xf32>
    %19 = arith.addf %16, %18 : vector<576x128xf32>
    %cst_28 = arith.constant 0.000000e+00 : f32
    %20 = vector.broadcast %cst_28 : f32 to vector<576x128xf32>
    %21 = arith.maximumf %19, %20 : vector<576x128xf32>
    %22 = vector.shape_cast %21 : vector<576x128xf32> to vector<36x16x128xf32>
    %23 = arith.truncf %22 : vector<36x16x128xf32> to vector<36x16x128xbf16>
    %c2 = arith.constant 2 : index
    %c0_29 = arith.constant 0 : index
    %c0_30 = arith.constant 0 : index
    %24 = vector.load %arg13[%c2, %c0_29, %c0_30] : memref<40x16x128xbf16, #tpu.memory_space<vmem>>, vector<36x16x128xbf16>
    tpu.vector_store %arg13[%c2, %c0_29, %c0_30], %23 {strides = array<i32>} : memref<40x16x128xbf16, #tpu.memory_space<vmem>>, vector<36x16x128xbf16>,
    %c0_31 = arith.constant 0 : index
    %c0_32 = arith.constant 0 : index
    %c0_33 = arith.constant 0 : index
    %25 = vector.load %arg13[%c0_31, %c0_32, %c0_33] : memref<40x16x128xbf16, #tpu.memory_space<vmem>>, vector<36x16x128xbf16>
    %c1 = arith.constant 1 : index
    %c0_34 = arith.constant 0 : index
    %c0_35 = arith.constant 0 : index
    %26 = vector.load %arg13[%c1, %c0_34, %c0_35] : memref<40x16x128xbf16, #tpu.memory_space<vmem>>, vector<36x16x128xbf16>
    %c2_36 = arith.constant 2 : index
    %c0_37 = arith.constant 0 : index
    %c0_38 = arith.constant 0 : index
    %27 = vector.load %arg13[%c2_36, %c0_37, %c0_38] : memref<40x16x128xbf16, #tpu.memory_space<vmem>>, vector<36x16x128xbf16>
    %c3 = arith.constant 3 : index
    %c0_39 = arith.constant 0 : index
    %c0_40 = arith.constant 0 : index
    %28 = vector.load %arg13[%c3, %c0_39, %c0_40] : memref<40x16x128xbf16, #tpu.memory_space<vmem>>, vector<36x16x128xbf16>
    %c4 = arith.constant 4 : index
    %c0_41 = arith.constant 0 : index
    %c0_42 = arith.constant 0 : index
    %29 = vector.load %arg13[%c4, %c0_41, %c0_42] : memref<40x16x128xbf16, #tpu.memory_space<vmem>>, vector<36x16x128xbf16>
    %30 = tpu.concatenate %25, %26, %27, %28, %29 in 2 : vector<36x16x128xbf16>, vector<36x16x128xbf16>, vector<36x16x128xbf16>, vector<36x16x128xbf16>, vector<36x16x128xbf16> -> vector<36x16x640xbf16>
    %31 = vector.shape_cast %30 : vector<36x16x640xbf16> to vector<576x640xbf16>
    %c0_43 = arith.constant 0 : index
    %c0_44 = arith.constant 0 : index
    %32 = vector.load %arg4[%c0_43, %c0_44] : memref<640x128xbf16, #tpu.memory_space<vmem>>, vector<640x128xbf16>
    %cst_45 = arith.constant dense<0.000000e+00> : vector<576x128xf32>
    %33 = tpu.matmul %31, %32, %cst_45 {dimension_numbers = #tpu.dot_dimension_numbers<[1], [0], [0], [1], [0, 0, 1, 1], [], []>} : vector<576x640xbf16>, vector<640x128xbf16>, vector<576x128xf32> -> vector<576x128xf32>
    %c0_46 = arith.constant 0 : index
    %c0_47 = arith.constant 0 : index
    %34 = vector.load %arg5[%c0_46, %c0_47] : memref<1x128xf32, #tpu.memory_space<vmem>>, vector<1x128xf32>
    %35 = vector.broadcast %34 : vector<1x128xf32> to vector<576x128xf32>
    %36 = arith.addf %33, %35 : vector<576x128xf32>
    %cst_48 = arith.constant 0.000000e+00 : f32
    %37 = vector.broadcast %cst_48 : f32 to vector<576x128xf32>
    %38 = arith.maximumf %36, %37 : vector<576x128xf32>
    %39 = vector.shape_cast %38 : vector<576x128xf32> to vector<18x2x16x128xf32>
    %40 = vector.extract_strided_slice %39 {offsets = [0, 0, 0, 0], sizes = [18, 1, 16, 128], strides = [1, 1, 1, 1]} : vector<18x2x16x128xf32> to vector<18x1x16x128xf32>
    %41 = vector.shape_cast %40 : vector<18x1x16x128xf32> to vector<18x16x128xf32>
    %42 = vector.extract_strided_slice %39 {offsets = [0, 1, 0, 0], sizes = [18, 1, 16, 128], strides = [1, 1, 1, 1]} : vector<18x2x16x128xf32> to vector<18x1x16x128xf32>
    %43 = vector.shape_cast %42 : vector<18x1x16x128xf32> to vector<18x16x128xf32>
    %44 = arith.maximumf %41, %43 : vector<18x16x128xf32>
    %45 = arith.truncf %44 : vector<18x16x128xf32> to vector<18x16x128xbf16>
    %c1_49 = arith.constant 1 : index
    %c0_50 = arith.constant 0 : index
    %c0_51 = arith.constant 0 : index
    %46 = vector.load %arg14[%c1_49, %c0_50, %c0_51] : memref<20x16x128xbf16, #tpu.memory_space<vmem>>, vector<18x16x128xbf16>
    tpu.vector_store %arg14[%c1_49, %c0_50, %c0_51], %45 {strides = array<i32>} : memref<20x16x128xbf16, #tpu.memory_space<vmem>>, vector<18x16x128xbf16>,
    %c0_52 = arith.constant 0 : index
    %c0_53 = arith.constant 0 : index
    %c0_54 = arith.constant 0 : index
    %47 = vector.load %arg14[%c0_52, %c0_53, %c0_54] : memref<20x16x128xbf16, #tpu.memory_space<vmem>>, vector<18x16x128xbf16>
    %c1_55 = arith.constant 1 : index
    %c0_56 = arith.constant 0 : index
    %c0_57 = arith.constant 0 : index
    %48 = vector.load %arg14[%c1_55, %c0_56, %c0_57] : memref<20x16x128xbf16, #tpu.memory_space<vmem>>, vector<18x16x128xbf16>
    %c2_58 = arith.constant 2 : index
    %c0_59 = arith.constant 0 : index
    %c0_60 = arith.constant 0 : index
    %49 = vector.load %arg14[%c2_58, %c0_59, %c0_60] : memref<20x16x128xbf16, #tpu.memory_space<vmem>>, vector<18x16x128xbf16>
    %50 = tpu.concatenate %47, %48, %49 in 2 : vector<18x16x128xbf16>, vector<18x16x128xbf16>, vector<18x16x128xbf16> -> vector<18x16x384xbf16>
    %51 = vector.shape_cast %50 : vector<18x16x384xbf16> to vector<288x384xbf16>
    %c0_61 = arith.constant 0 : index
    %c0_62 = arith.constant 0 : index
    %52 = vector.load %arg6[%c0_61, %c0_62] : memref<384x256xbf16, #tpu.memory_space<vmem>>, vector<384x256xbf16>
    %cst_63 = arith.constant dense<0.000000e+00> : vector<288x256xf32>
    %53 = tpu.matmul %51, %52, %cst_63 {dimension_numbers = #tpu.dot_dimension_numbers<[1], [0], [0], [1], [0, 0, 1, 1], [], []>} : vector<288x384xbf16>, vector<384x256xbf16>, vector<288x256xf32> -> vector<288x256xf32>
    %c0_64 = arith.constant 0 : index
    %c0_65 = arith.constant 0 : index
    %54 = vector.load %arg7[%c0_64, %c0_65] : memref<1x256xf32, #tpu.memory_space<vmem>>, vector<1x256xf32>
    %55 = vector.broadcast %54 : vector<1x256xf32> to vector<288x256xf32>
    %56 = arith.addf %53, %55 : vector<288x256xf32>
    %cst_66 = arith.constant 0.000000e+00 : f32
    %57 = vector.broadcast %cst_66 : f32 to vector<288x256xf32>
    %58 = arith.maximumf %56, %57 : vector<288x256xf32>
    %59 = vector.shape_cast %58 : vector<288x256xf32> to vector<18x16x256xf32>
    %60 = arith.truncf %59 : vector<18x16x256xf32> to vector<18x16x256xbf16>
    %c1_67 = arith.constant 1 : index
    %c0_68 = arith.constant 0 : index
    %c0_69 = arith.constant 0 : index
    %61 = vector.load %arg15[%c1_67, %c0_68, %c0_69] : memref<20x16x256xbf16, #tpu.memory_space<vmem>>, vector<18x16x256xbf16>
    tpu.vector_store %arg15[%c1_67, %c0_68, %c0_69], %60 {strides = array<i32>} : memref<20x16x256xbf16, #tpu.memory_space<vmem>>, vector<18x16x256xbf16>,
    %c0_70 = arith.constant 0 : index
    %c0_71 = arith.constant 0 : index
    %c0_72 = arith.constant 0 : index
    %62 = vector.load %arg15[%c0_70, %c0_71, %c0_72] : memref<20x16x256xbf16, #tpu.memory_space<vmem>>, vector<18x16x256xbf16>
    %c1_73 = arith.constant 1 : index
    %c0_74 = arith.constant 0 : index
    %c0_75 = arith.constant 0 : index
    %63 = vector.load %arg15[%c1_73, %c0_74, %c0_75] : memref<20x16x256xbf16, #tpu.memory_space<vmem>>, vector<18x16x256xbf16>
    %c2_76 = arith.constant 2 : index
    %c0_77 = arith.constant 0 : index
    %c0_78 = arith.constant 0 : index
    %64 = vector.load %arg15[%c2_76, %c0_77, %c0_78] : memref<20x16x256xbf16, #tpu.memory_space<vmem>>, vector<18x16x256xbf16>
    %65 = tpu.concatenate %62, %63, %64 in 2 : vector<18x16x256xbf16>, vector<18x16x256xbf16>, vector<18x16x256xbf16> -> vector<18x16x768xbf16>
    %66 = vector.shape_cast %65 : vector<18x16x768xbf16> to vector<288x768xbf16>
    %c0_79 = arith.constant 0 : index
    %c0_80 = arith.constant 0 : index
    %67 = vector.load %arg8[%c0_79, %c0_80] : memref<768x256xbf16, #tpu.memory_space<vmem>>, vector<768x256xbf16>
    %cst_81 = arith.constant dense<0.000000e+00> : vector<288x256xf32>
    %68 = tpu.matmul %66, %67, %cst_81 {dimension_numbers = #tpu.dot_dimension_numbers<[1], [0], [0], [1], [0, 0, 1, 1], [], []>} : vector<288x768xbf16>, vector<768x256xbf16>, vector<288x256xf32> -> vector<288x256xf32>
    %c0_82 = arith.constant 0 : index
    %c0_83 = arith.constant 0 : index
    %69 = vector.load %arg9[%c0_82, %c0_83] : memref<1x256xf32, #tpu.memory_space<vmem>>, vector<1x256xf32>
    %70 = vector.broadcast %69 : vector<1x256xf32> to vector<288x256xf32>
    %71 = arith.addf %68, %70 : vector<288x256xf32>
    %cst_84 = arith.constant 0.000000e+00 : f32
    %72 = vector.broadcast %cst_84 : f32 to vector<288x256xf32>
    %73 = arith.maximumf %71, %72 : vector<288x256xf32>
    %74 = vector.shape_cast %73 : vector<288x256xf32> to vector<9x2x16x256xf32>
    %75 = vector.extract_strided_slice %74 {offsets = [0, 0, 0, 0], sizes = [9, 1, 16, 256], strides = [1, 1, 1, 1]} : vector<9x2x16x256xf32> to vector<9x1x16x256xf32>
    %76 = vector.shape_cast %75 : vector<9x1x16x256xf32> to vector<9x16x256xf32>
    %77 = vector.extract_strided_slice %74 {offsets = [0, 1, 0, 0], sizes = [9, 1, 16, 256], strides = [1, 1, 1, 1]} : vector<9x2x16x256xf32> to vector<9x1x16x256xf32>
    %78 = vector.shape_cast %77 : vector<9x1x16x256xf32> to vector<9x16x256xf32>
    %79 = arith.maximumf %76, %78 : vector<9x16x256xf32>
    %80 = vector.extract_strided_slice %79 {offsets = [0, 0, 0], sizes = [1, 16, 256], strides = [1, 1, 1]} : vector<9x16x256xf32> to vector<1x16x256xf32>
    %81 = vector.shape_cast %80 : vector<1x16x256xf32> to vector<16x256xf32>
    %82 = vector.extract_strided_slice %79 {offsets = [1, 0, 0], sizes = [1, 16, 256], strides = [1, 1, 1]} : vector<9x16x256xf32> to vector<1x16x256xf32>
    %83 = vector.shape_cast %82 : vector<1x16x256xf32> to vector<16x256xf32>
    %84 = vector.extract_strided_slice %79 {offsets = [2, 0, 0], sizes = [1, 16, 256], strides = [1, 1, 1]} : vector<9x16x256xf32> to vector<1x16x256xf32>
    %85 = vector.shape_cast %84 : vector<1x16x256xf32> to vector<16x256xf32>
    %86 = vector.extract_strided_slice %79 {offsets = [3, 0, 0], sizes = [1, 16, 256], strides = [1, 1, 1]} : vector<9x16x256xf32> to vector<1x16x256xf32>
    %87 = vector.shape_cast %86 : vector<1x16x256xf32> to vector<16x256xf32>
    %88 = vector.extract_strided_slice %79 {offsets = [4, 0, 0], sizes = [1, 16, 256], strides = [1, 1, 1]} : vector<9x16x256xf32> to vector<1x16x256xf32>
    %89 = vector.shape_cast %88 : vector<1x16x256xf32> to vector<16x256xf32>
    %90 = vector.extract_strided_slice %79 {offsets = [5, 0, 0], sizes = [1, 16, 256], strides = [1, 1, 1]} : vector<9x16x256xf32> to vector<1x16x256xf32>
    %91 = vector.shape_cast %90 : vector<1x16x256xf32> to vector<16x256xf32>
    %92 = vector.extract_strided_slice %79 {offsets = [6, 0, 0], sizes = [1, 16, 256], strides = [1, 1, 1]} : vector<9x16x256xf32> to vector<1x16x256xf32>
    %93 = vector.shape_cast %92 : vector<1x16x256xf32> to vector<16x256xf32>
    %94 = vector.extract_strided_slice %79 {offsets = [7, 0, 0], sizes = [1, 16, 256], strides = [1, 1, 1]} : vector<9x16x256xf32> to vector<1x16x256xf32>
    %95 = vector.shape_cast %94 : vector<1x16x256xf32> to vector<16x256xf32>
    %96 = vector.extract_strided_slice %79 {offsets = [8, 0, 0], sizes = [1, 16, 256], strides = [1, 1, 1]} : vector<9x16x256xf32> to vector<1x16x256xf32>
    %97 = vector.shape_cast %96 : vector<1x16x256xf32> to vector<16x256xf32>
    %98 = tpu.concatenate %81, %83, %85, %87, %89, %91, %93, %95, %97 in 1 : vector<16x256xf32>, vector<16x256xf32>, vector<16x256xf32>, vector<16x256xf32>, vector<16x256xf32>, vector<16x256xf32>, vector<16x256xf32>, vector<16x256xf32>, vector<16x256xf32> -> vector<16x2304xf32>
    %99 = arith.truncf %98 : vector<16x2304xf32> to vector<16x2304xbf16>
    %c0_85 = arith.constant 0 : index
    %c0_86 = arith.constant 0 : index
    %100 = vector.load %arg10[%c0_85, %c0_86] : memref<2304x128xbf16, #tpu.memory_space<vmem>>, vector<2304x128xbf16>
    %cst_87 = arith.constant dense<0.000000e+00> : vector<16x128xf32>
    %101 = tpu.matmul %99, %100, %cst_87 {dimension_numbers = #tpu.dot_dimension_numbers<[1], [0], [0], [1], [0, 0, 1, 1], [], []>} : vector<16x2304xbf16>, vector<2304x128xbf16>, vector<16x128xf32> -> vector<16x128xf32>
    %c0_88 = arith.constant 0 : index
    %c0_89 = arith.constant 0 : index
    %102 = vector.load %arg11[%c0_88, %c0_89] : memref<1x128xf32, #tpu.memory_space<vmem>>, vector<1x128xf32>
    %103 = vector.broadcast %102 : vector<1x128xf32> to vector<16x128xf32>
    %104 = arith.addf %101, %103 : vector<16x128xf32>
    %c0_90 = arith.constant 0 : index
    %c0_91 = arith.constant 0 : index
    %105 = vector.load %arg12[%c0_90, %c0_91] : memref<16x128xf32, #tpu.memory_space<vmem>>, vector<16x128xf32>
    tpu.vector_store %arg12[%c0_90, %c0_91], %104 {strides = array<i32>} : memref<16x128xf32, #tpu.memory_space<vmem>>, vector<16x128xf32>,
    return
  }
  func.func @transform_0(%arg0: i32) -> (i32, i32, i32) {
    %c0_i32 = arith.constant 0 : i32
    %c0_i32_0 = arith.constant 0 : i32
    %c0_i32_1 = arith.constant 0 : i32
    return %c0_i32, %arg0, %c0_i32_0 : i32, i32, i32
  }
  func.func @transform_1(%arg0: i32) -> (i32, i32) {
    %c0_i32 = arith.constant 0 : i32
    %c0_i32_0 = arith.constant 0 : i32
    %c0_i32_1 = arith.constant 0 : i32
    return %c0_i32, %c0_i32_0 : i32, i32
  }
  func.func @transform_2(%arg0: i32) -> (i32, i32) {
    %c0_i32 = arith.constant 0 : i32
    %c0_i32_0 = arith.constant 0 : i32
    %c0_i32_1 = arith.constant 0 : i32
    return %c0_i32, %c0_i32_0 : i32, i32
  }
  func.func @transform_3(%arg0: i32) -> (i32, i32) {
    %c0_i32 = arith.constant 0 : i32
    %c0_i32_0 = arith.constant 0 : i32
    %c0_i32_1 = arith.constant 0 : i32
    return %c0_i32, %c0_i32_0 : i32, i32
  }
  func.func @transform_4(%arg0: i32) -> (i32, i32) {
    %c0_i32 = arith.constant 0 : i32
    %c0_i32_0 = arith.constant 0 : i32
    %c0_i32_1 = arith.constant 0 : i32
    return %c0_i32, %c0_i32_0 : i32, i32
  }
  func.func @transform_5(%arg0: i32) -> (i32, i32) {
    %c0_i32 = arith.constant 0 : i32
    %c0_i32_0 = arith.constant 0 : i32
    %c0_i32_1 = arith.constant 0 : i32
    return %c0_i32, %c0_i32_0 : i32, i32
  }
  func.func @transform_6(%arg0: i32) -> (i32, i32) {
    %c0_i32 = arith.constant 0 : i32
    %c0_i32_0 = arith.constant 0 : i32
    %c0_i32_1 = arith.constant 0 : i32
    return %c0_i32, %c0_i32_0 : i32, i32
  }
  func.func @transform_7(%arg0: i32) -> (i32, i32) {
    %c0_i32 = arith.constant 0 : i32
    %c0_i32_0 = arith.constant 0 : i32
    %c0_i32_1 = arith.constant 0 : i32
    return %c0_i32, %c0_i32_0 : i32, i32
  }
  func.func @transform_8(%arg0: i32) -> (i32, i32) {
    %c0_i32 = arith.constant 0 : i32
    %c0_i32_0 = arith.constant 0 : i32
    %c0_i32_1 = arith.constant 0 : i32
    return %c0_i32, %c0_i32_0 : i32, i32
  }
  func.func @transform_9(%arg0: i32) -> (i32, i32) {
    %c0_i32 = arith.constant 0 : i32
    %c0_i32_0 = arith.constant 0 : i32
    %c0_i32_1 = arith.constant 0 : i32
    return %c0_i32, %c0_i32_0 : i32, i32
  }
  func.func @transform_10(%arg0: i32) -> (i32, i32) {
    %c0_i32 = arith.constant 0 : i32
    %c0_i32_0 = arith.constant 0 : i32
    %c0_i32_1 = arith.constant 0 : i32
    return %c0_i32, %c0_i32_0 : i32, i32
  }
  func.func @transform_11(%arg0: i32) -> (i32, i32) {
    %c0_i32 = arith.constant 0 : i32
    %c0_i32_0 = arith.constant 0 : i32
    return %arg0, %c0_i32 : i32, i32
  }
}

</mosaic_0001>

<llo_original>
// kernel: forward_pallas.1
$region0: #{forward_pallas.1}
  #allocation0 [shape = 'u32[]', space=smem, size = 0x4, offset = 0x4, fixed_abs, tag = 'smem constant byte address 0x4 - core index']
  #allocation1 [shape = 'u32[144,128]{1,0:T(1,128)}', space=vmem, size = 0x12000, scoped, tag = 'internal scratch']
  #allocation2 [shape = 'bf16[40,16,128]{2,1,0:T(16,128)(2,1)}', space=vmem, size = 0x28000, scoped, tag = 'scratch operand']
  #allocation3 [shape = 'bf16[20,16,128]{2,1,0:T(16,128)(2,1)}', space=vmem, size = 0x14000, scoped, tag = 'scratch operand']
  #allocation4 [shape = 'bf16[20,16,256]{2,1,0:T(16,128)(2,1)}', space=vmem, size = 0x28000, scoped, tag = 'scratch operand']
  %s0 = inlined_call_operand.vmem [shape: f32[36,32,35], index: 0, kind: input, shape index: {}]
  %s1 = inlined_call_operand.vmem [shape: bf16[35,128], index: 1, kind: input, shape index: {}]
  %s2 = inlined_call_operand.vmem [shape: f32[1,128], index: 2, kind: input, shape index: {}]
  %s3 = inlined_call_operand.vmem [shape: bf16[640,128], index: 3, kind: input, shape index: {}]
  %s4 = inlined_call_operand.vmem [shape: f32[1,128], index: 4, kind: input, shape index: {}]
  %s5 = inlined_call_operand.vmem [shape: bf16[384,256], index: 5, kind: input, shape index: {}]
  %s6 = inlined_call_operand.vmem [shape: f32[1,256], index: 6, kind: input, shape index: {}]
  %s7 = inlined_call_operand.vmem [shape: bf16[768,256], index: 7, kind: input, shape index: {}]
  %s8 = inlined_call_operand.vmem [shape: f32[1,256], index: 8, kind: input, shape index: {}]
  %s9 = inlined_call_operand.vmem [shape: bf16[2304,128], index: 9, kind: input, shape index: {}]
  %s10 = inlined_call_operand.vmem [shape: f32[1,128], index: 10, kind: input, shape index: {}]
  %s11 = inlined_call_operand.vmem [shape: f32[32,128], index: 11, kind: output, shape index: {}]
  %s12 = sld [smem:[#allocation0]]
  $region115: #{forward_pallas.1} parent=0
    _
  %s14 = ssub.s32 1, %s12
  %s15 = scalar_select 0, %s14, %s12
  $region1: #{forward_pallas.1} parent=0
    #allocation5 [shape = 'u8[589824]{0}', space=vmem, size = 0x90000, scoped, tag = 'input window, operand 0']
    loop: start=0, step=1, limit=4
    $region2: #{forward_pallas.1} parent=1 // loop_pre_header
      _
    $region3: #{forward_pallas.1} parent=1 // loop_header
      %s17 = sphi 0, %s21
      %p18 = scmp.ge.s32.totalorder %s17, 4
      %s27 = sphi 0, %s29
      %s30 = sphi 0, %s27
      %s31 = sphi 0, %s30
      %s47 = sphi 0, %s31
      %s51 = sphi 0, %s51
      %s53 = sphi 0, %s51
      %s54 = sphi 0, %s53
      %s68 = sphi 0, %s54
      %s72 = sphi 0, %s72
      %s74 = sphi 0, %s72
      %s75 = sphi 0, %s74
      %s89 = sphi 0, %s75
      %s93 = sphi 0, %s93
      %s95 = sphi 0, %s93
      %s96 = sphi 0, %s95
      %s110 = sphi 0, %s96
      %s114 = sphi 0, %s114
      %s116 = sphi 0, %s114
      %s117 = sphi 0, %s116
      %s131 = sphi 0, %s117
      %s135 = sphi 0, %s135
      %s137 = sphi 0, %s135
      %s138 = sphi 0, %s137
      %s152 = sphi 0, %s138
      %s156 = sphi 0, %s156
      %s158 = sphi 0, %s156
      %s159 = sphi 0, %s158
      %s173 = sphi 0, %s159
      %s177 = sphi 0, %s177
      %s179 = sphi 0, %s177
      %s180 = sphi 0, %s179
      %s194 = sphi 0, %s180
      %s198 = sphi 0, %s198
      %s200 = sphi 0, %s198
      %s201 = sphi 0, %s200
      %s215 = sphi 0, %s201
      %s219 = sphi 0, %s219
      %s221 = sphi 0, %s219
      %s222 = sphi 0, %s221
      %s236 = sphi 0, %s222
      %s240 = sphi 0, %s240
      %s242 = sphi 0, %s240
      %s243 = sphi 0, %s242
      %s257 = sphi 0, %s243
      %s263 = sphi 0, %s265
      %s266 = sphi 0, %s263
      %s267 = sphi 0, %s266
      %s283 = sphi 0, %s267
    $region4: #{forward_pallas.1} parent=1 // loop_header_branch
      %20 = sbr.rel (%p18) target = $region8
    $region5: #{forward_pallas.1} parent=1 // loop_body
      %s22 = ssub.s32 %s17, 1
      %s23 = ssub.s32 %s17, 2
      %s24 = sadd.s32 %s17, 1
      %s25 = ssub.s32 %s17, %s24
      %p26 = scmp.eq.s32.totalorder %s25, 0
      %s28 = sadd.s32 %s27, 1
      %s29 = scalar_select %p26, %s27, %s28
      %p32 = pneg %p26
      %p33 = scmp.eq.s32.totalorder %s17, 1
      %p34 = por %p32, %p33
      %p35 = scmp.ne.s32.totalorder %s27, %s30
      %p36 = scmp.eq.s32.totalorder %s17, 0
      %p37 = por %p35, %p36
      %p38 = scmp.ne.s32.totalorder %s27, %s30
      %p39 = scmp.eq.s32.totalorder %s22, 1
      %p40 = por %p38, %p39
      %p41 = scmp.ne.s32.totalorder %s30, %s31
      %p42 = scmp.eq.s32.totalorder %s22, 0
      %p43 = por %p41, %p42
      %p44 = scmp.ne.s32.totalorder %s30, %s31
      %p45 = scmp.eq.s32.totalorder %s23, 1
      %p46 = por %p44, %p45
      %p48 = scmp.ne.s32.totalorder %s31, %s47
      %p49 = scmp.eq.s32.totalorder %s23, 0
      %p50 = por %p48, %p49
      %s52 = sadd.s32 %s51, 1
      %p55 = scmp.eq.s32.totalorder %s17, 1
      %p56 = scmp.ne.s32.totalorder %s51, %s53
      %p57 = scmp.eq.s32.totalorder %s17, 0
      %p58 = por %p56, %p57
      %p59 = scmp.ne.s32.totalorder %s51, %s53
      %p60 = scmp.eq.s32.totalorder %s22, 1
      %p61 = por %p59, %p60
      %p62 = scmp.ne.s32.totalorder %s53, %s54
      %p63 = scmp.eq.s32.totalorder %s22, 0
      %p64 = por %p62, %p63
      %p65 = scmp.ne.s32.totalorder %s53, %s54
      %p66 = scmp.eq.s32.totalorder %s23, 1
      %p67 = por %p65, %p66
      %p69 = scmp.ne.s32.totalorder %s54, %s68
      %p70 = scmp.eq.s32.totalorder %s23, 0
      %p71 = por %p69, %p70
      %s73 = sadd.s32 %s72, 1
      %p76 = scmp.eq.s32.totalorder %s17, 1
      %p77 = scmp.ne.s32.totalorder %s72, %s74
      %p78 = scmp.eq.s32.totalorder %s17, 0
      %p79 = por %p77, %p78
      %p80 = scmp.ne.s32.totalorder %s72, %s74
      %p81 = scmp.eq.s32.totalorder %s22, 1
      %p82 = por %p80, %p81
      %p83 = scmp.ne.s32.totalorder %s74, %s75
      %p84 = scmp.eq.s32.totalorder %s22, 0
      %p85 = por %p83, %p84
      %p86 = scmp.ne.s32.totalorder %s74, %s75
      %p87 = scmp.eq.s32.totalorder %s23, 1
      %p88 = por %p86, %p87
      %p90 = scmp.ne.s32.totalorder %s75, %s89
      %p91 = scmp.eq.s32.totalorder %s23, 0
      %p92 = por %p90, %p91
      %s94 = sadd.s32 %s93, 1
      %p97 = scmp.eq.s32.totalorder %s17, 1
      %p98 = scmp.ne.s32.totalorder %s93, %s95
      %p99 = scmp.eq.s32.totalorder %s17, 0
      %p100 = por %p98, %p99
      %p101 = scmp.ne.s32.totalorder %s93, %s95
      %p102 = scmp.eq.s32.totalorder %s22, 1
      %p103 = por %p101, %p102
      %p104 = scmp.ne.s32.totalorder %s95, %s96
      %p105 = scmp.eq.s32.totalorder %s22, 0
      %p106 = por %p104, %p105
      %p107 = scmp.ne.s32.totalorder %s95, %s96
      %p108 = scmp.eq.s32.totalorder %s23, 1
      %p109 = por %p107, %p108
      %p111 = scmp.ne.s32.totalorder %s96, %s110
      %p112 = scmp.eq.s32.totalorder %s23, 0
      %p113 = por %p111, %p112
      %s115 = sadd.s32 %s114, 1
      %p118 = scmp.eq.s32.totalorder %s17, 1
      %p119 = scmp.ne.s32.totalorder %s114, %s116
      %p120 = scmp.eq.s32.totalorder %s17, 0
      %p121 = por %p119, %p120
      %p122 = scmp.ne.s32.totalorder %s114, %s116
      %p123 = scmp.eq.s32.totalorder %s22, 1
      %p124 = por %p122, %p123
      %p125 = scmp.ne.s32.totalorder %s116, %s117
      %p126 = scmp.eq.s32.totalorder %s22, 0
      %p127 = por %p125, %p126
      %p128 = scmp.ne.s32.totalorder %s116, %s117
      %p129 = scmp.eq.s32.totalorder %s23, 1
      %p130 = por %p128, %p129
      %p132 = scmp.ne.s32.totalorder %s117, %s131
      %p133 = scmp.eq.s32.totalorder %s23, 0
      %p134 = por %p132, %p133
      %s136 = sadd.s32 %s135, 1
      %p139 = scmp.eq.s32.totalorder %s17, 1
      %p140 = scmp.ne.s32.totalorder %s135, %s137
      %p141 = scmp.eq.s32.totalorder %s17, 0
      %p142 = por %p140, %p141
      %p143 = scmp.ne.s32.totalorder %s135, %s137
      %p144 = scmp.eq.s32.totalorder %s22, 1
      %p145 = por %p143, %p144
      %p146 = scmp.ne.s32.totalorder %s137, %s138
      %p147 = scmp.eq.s32.totalorder %s22, 0
      %p148 = por %p146, %p147
      %p149 = scmp.ne.s32.totalorder %s137, %s138
      %p150 = scmp.eq.s32.totalorder %s23, 1
      %p151 = por %p149, %p150
      %p153 = scmp.ne.s32.totalorder %s138, %s152
      %p154 = scmp.eq.s32.totalorder %s23, 0
      %p155 = por %p153, %p154
      %s157 = sadd.s32 %s156, 1
      %p160 = scmp.eq.s32.totalorder %s17, 1
      %p161 = scmp.ne.s32.totalorder %s156, %s158
      %p162 = scmp.eq.s32.totalorder %s17, 0
      %p163 = por %p161, %p162
      %p164 = scmp.ne.s32.totalorder %s156, %s158
      %p165 = scmp.eq.s32.totalorder %s22, 1
      %p166 = por %p164, %p165
      %p167 = scmp.ne.s32.totalorder %s158, %s159
      %p168 = scmp.eq.s32.totalorder %s22, 0
      %p169 = por %p167, %p168
      %p170 = scmp.ne.s32.totalorder %s158, %s159
      %p171 = scmp.eq.s32.totalorder %s23, 1
      %p172 = por %p170, %p171
      %p174 = scmp.ne.s32.totalorder %s159, %s173
      %p175 = scmp.eq.s32.totalorder %s23, 0
      %p176 = por %p174, %p175
      %s178 = sadd.s32 %s177, 1
      %p181 = scmp.eq.s32.totalorder %s17, 1
      %p182 = scmp.ne.s32.totalorder %s177, %s179
      %p183 = scmp.eq.s32.totalorder %s17, 0
      %p184 = por %p182, %p183
      %p185 = scmp.ne.s32.totalorder %s177, %s179
      %p186 = scmp.eq.s32.totalorder %s22, 1
      %p187 = por %p185, %p186
      %p188 = scmp.ne.s32.totalorder %s179, %s180
      %p189 = scmp.eq.s32.totalorder %s22, 0
      %p190 = por %p188, %p189
      %p191 = scmp.ne.s32.totalorder %s179, %s180
      %p192 = scmp.eq.s32.totalorder %s23, 1
      %p193 = por %p191, %p192
      %p195 = scmp.ne.s32.totalorder %s180, %s194
      %p196 = scmp.eq.s32.totalorder %s23, 0
      %p197 = por %p195, %p196
      %s199 = sadd.s32 %s198, 1
      %p202 = scmp.eq.s32.totalorder %s17, 1
      %p203 = scmp.ne.s32.totalorder %s198, %s200
      %p204 = scmp.eq.s32.totalorder %s17, 0
      %p205 = por %p203, %p204
      %p206 = scmp.ne.s32.totalorder %s198, %s200
      %p207 = scmp.eq.s32.totalorder %s22, 1
      %p208 = por %p206, %p207
      %p209 = scmp.ne.s32.totalorder %s200, %s201
      %p210 = scmp.eq.s32.totalorder %s22, 0
      %p211 = por %p209, %p210
      %p212 = scmp.ne.s32.totalorder %s200, %s201
      %p213 = scmp.eq.s32.totalorder %s23, 1
      %p214 = por %p212, %p213
      %p216 = scmp.ne.s32.totalorder %s201, %s215
      %p217 = scmp.eq.s32.totalorder %s23, 0
      %p218 = por %p216, %p217
      %s220 = sadd.s32 %s219, 1
      %p223 = scmp.eq.s32.totalorder %s17, 1
      %p224 = scmp.ne.s32.totalorder %s219, %s221
      %p225 = scmp.eq.s32.totalorder %s17, 0
      %p226 = por %p224, %p225
      %p227 = scmp.ne.s32.totalorder %s219, %s221
      %p228 = scmp.eq.s32.totalorder %s22, 1
      %p229 = por %p227, %p228
      %p230 = scmp.ne.s32.totalorder %s221, %s222
      %p231 = scmp.eq.s32.totalorder %s22, 0
      %p232 = por %p230, %p231
      %p233 = scmp.ne.s32.totalorder %s221, %s222
      %p234 = scmp.eq.s32.totalorder %s23, 1
      %p235 = por %p233, %p234
      %p237 = scmp.ne.s32.totalorder %s222, %s236
      %p238 = scmp.eq.s32.totalorder %s23, 0
      %p239 = por %p237, %p238
      %s241 = sadd.s32 %s240, 1
      %p244 = scmp.eq.s32.totalorder %s17, 1
      %p245 = scmp.ne.s32.totalorder %s240, %s242
      %p246 = scmp.eq.s32.totalorder %s17, 0
      %p247 = por %p245, %p246
      %p248 = scmp.ne.s32.totalorder %s240, %s242
      %p249 = scmp.eq.s32.totalorder %s22, 1
      %p250 = por %p248, %p249
      %p251 = scmp.ne.s32.totalorder %s242, %s243
      %p252 = scmp.eq.s32.totalorder %s22, 0
      %p253 = por %p251, %p252
      %p254 = scmp.ne.s32.totalorder %s242, %s243
      %p255 = scmp.eq.s32.totalorder %s23, 1
      %p256 = por %p254, %p255
      %p258 = scmp.ne.s32.totalorder %s243, %s257
      %p259 = scmp.eq.s32.totalorder %s23, 0
      %p260 = por %p258, %p259
      %s261 = ssub.s32 %s17, %s24
      %p262 = scmp.eq.s32.totalorder %s261, 0
      %s264 = sadd.s32 %s263, 1
      %s265 = scalar_select %p262, %s263, %s264
      %p268 = pneg %p262
      %p269 = scmp.eq.s32.totalorder %s17, 1
      %p270 = por %p268, %p269
      %p271 = scmp.ne.s32.totalorder %s263, %s266
      %p272 = scmp.eq.s32.totalorder %s17, 0
      %p273 = por %p271, %p272
      %p274 = scmp.ne.s32.totalorder %s263, %s266
      %p275 = scmp.eq.s32.totalorder %s22, 1
      %p276 = por %p274, %p275
      %p277 = scmp.ne.s32.totalorder %s266, %s267
      %p278 = scmp.eq.s32.totalorder %s22, 0
      %p279 = por %p277, %p278
      %p280 = scmp.ne.s32.totalorder %s266, %s267
      %p281 = scmp.eq.s32.totalorder %s23, 1
      %p282 = por %p280, %p281
      %p284 = scmp.ne.s32.totalorder %s267, %s283
      %p285 = scmp.eq.s32.totalorder %s23, 0
      %p286 = por %p284, %p285
      %p287 = scmp.le.s32.totalorder 1, %s17
      %p288 = scmp.lt.s32.totalorder %s17, 3
      %p289 = pnand %p287, %p288
      %p290 = pneg %p289
      // Predicated region
      $region9: #{forward_pallas.1} parent=5 // pred_check
        _
      $region10: #{forward_pallas.1} parent=5 // pred_check_branch
        %292 = sbr.rel (%p289) target = $region12
      $region11: #{forward_pallas.1} parent=5 // pred_region
        %s293 = ssub.s32 %s17, 1
        // Predicated region
        $region13: #{forward_pallas.1} parent=11 // pred_check
          %p294 = pneg %p64
        $region14: #{forward_pallas.1} parent=11 // pred_check_branch
          %296 = sbr.rel (%p294) target = $region16
        $region15: #{forward_pallas.1} parent=11 // pred_region
          _
        $region16: #{forward_pallas.1} parent=11 // pred_fallthru
          _
        // Predicated region
        $region17: #{forward_pallas.1} parent=11 // pred_check
          %p297 = pneg %p85
        $region18: #{forward_pallas.1} parent=11 // pred_check_branch
          %299 = sbr.rel (%p297) target = $region20
        $region19: #{forward_pallas.1} parent=11 // pred_region
          _
        $region20: #{forward_pallas.1} parent=11 // pred_fallthru
          _
        // Predicated region
        $region21: #{forward_pallas.1} parent=11 // pred_check
          %p300 = pneg %p106
        $region22: #{forward_pallas.1} parent=11 // pred_check_branch
          %302 = sbr.rel (%p300) target = $region24
        $region23: #{forward_pallas.1} parent=11 // pred_region
          _
        $region24: #{forward_pallas.1} parent=11 // pred_fallthru
          _
        // Predicated region
        $region25: #{forward_pallas.1} parent=11 // pred_check
          %p303 = pneg %p127
        $region26: #{forward_pallas.1} parent=11 // pred_check_branch
          %305 = sbr.rel (%p303) target = $region28
        $region27: #{forward_pallas.1} parent=11 // pred_region
          _
        $region28: #{forward_pallas.1} parent=11 // pred_fallthru
          _
        // Predicated region
        $region29: #{forward_pallas.1} parent=11 // pred_check
          %p306 = pneg %p148
        $region30: #{forward_pallas.1} parent=11 // pred_check_branch
          %308 = sbr.rel (%p306) target = $region32
        $region31: #{forward_pallas.1} parent=11 // pred_region
          _
        $region32: #{forward_pallas.1} parent=11 // pred_fallthru
          _
        // Predicated region
        $region33: #{forward_pallas.1} parent=11 // pred_check
          %p309 = pneg %p169
        $region34: #{forward_pallas.1} parent=11 // pred_check_branch
          %311 = sbr.rel (%p309) target = $region36
        $region35: #{forward_pallas.1} parent=11 // pred_region
          _
        $region36: #{forward_pallas.1} parent=11 // pred_fallthru
          _
        // Predicated region
        $region37: #{forward_pallas.1} parent=11 // pred_check
          %p312 = pneg %p190
        $region38: #{forward_pallas.1} parent=11 // pred_check_branch
          %314 = sbr.rel (%p312) target = $region40
        $region39: #{forward_pallas.1} parent=11 // pred_region
          _
        $region40: #{forward_pallas.1} parent=11 // pred_fallthru
          _
        // Predicated region
        $region41: #{forward_pallas.1} parent=11 // pred_check
          %p315 = pneg %p211
        $region42: #{forward_pallas.1} parent=11 // pred_check_branch
          %317 = sbr.rel (%p315) target = $region44
        $region43: #{forward_pallas.1} parent=11 // pred_region
          _
        $region44: #{forward_pallas.1} parent=11 // pred_fallthru
          _
        // Predicated region
        $region45: #{forward_pallas.1} parent=11 // pred_check
          %p318 = pneg %p232
        $region46: #{forward_pallas.1} parent=11 // pred_check_branch
          %320 = sbr.rel (%p318) target = $region48
        $region47: #{forward_pallas.1} parent=11 // pred_region
          _
        $region48: #{forward_pallas.1} parent=11 // pred_fallthru
          _
        // Predicated region
        $region49: #{forward_pallas.1} parent=11 // pred_check
          %p321 = pneg %p253
        $region50: #{forward_pallas.1} parent=11 // pred_check_branch
          %323 = sbr.rel (%p321) target = $region52
        $region51: #{forward_pallas.1} parent=11 // pred_region
          _
        $region52: #{forward_pallas.1} parent=11 // pred_fallthru
          _
      $region12: #{forward_pallas.1} parent=5 // pred_fallthru
        _
      %p324 = scmp.lt.s32.totalorder %s17, 2
      // Predicated region
      $region53: #{forward_pallas.1} parent=5 // pred_check
        %p325 = pneg %p324
      $region54: #{forward_pallas.1} parent=5 // pred_check_branch
        %327 = sbr.rel (%p325) target = $region56
      $region55: #{forward_pallas.1} parent=5 // pred_region
        // Predicated region
        $region57: #{forward_pallas.1} parent=55 // pred_check
          %p328 = pneg %p37
        $region58: #{forward_pallas.1} parent=55 // pred_check_branch
          %330 = sbr.rel (%p328) target = $region60
        $region59: #{forward_pallas.1} parent=55 // pred_region
          %s331 = sand.u32 %s27, 1
          %s332 = sand.u32 %s27, 1
          %s333 = smul.addr %s332, 576
          %s334 = scalar_lea.vmem [#allocation5], %s333
          %s335 = smul.u32 2, %s17
          %s336 = smul.addr %s335, 8
          %s337 = scalar_lea.vmem %s0, %s336
          // Predicated region
          $region61: #{forward_pallas.1} parent=59 // pred_check
            _
          $region62: #{forward_pallas.1} parent=59 // pred_check_branch
            %339 = sbr.rel (0) target = $region64
          $region63: #{forward_pallas.1} parent=59 // pred_region
            // Predicated region
            $region65: #{forward_pallas.1} parent=63 // pred_check
              _
            $region66: #{forward_pallas.1} parent=63 // pred_check_branch
              %341 = sbr.rel (0) target = $region68
            $region67: #{forward_pallas.1} parent=63 // pred_region
              // Predicated region
              $region80: #{forward_pallas.1} parent=67 // pred_check
                _
              $region81: #{forward_pallas.1} parent=67 // pred_check_branch
                %498 = sbr.rel (0) target = $region83
              $region82: #{forward_pallas.1} parent=67 // pred_region
                loop: start=0, step=1, limit=1
                $region84: #{forward_pallas.1} parent=82 // loop_pre_header
                  _
                $region85: #{forward_pallas.1} parent=82 // loop_header
                  %s500 = sphi 0, %s504
                  %p501 = scmp.ge.s32.totalorder %s500, 1
                  %s505 = sphi %s337, %s337
                  %s506 = sphi %s334, %s334
                $region86: #{forward_pallas.1} parent=82 // loop_header_branch
                  %503 = sbr.rel (%p501) target = $region90
                $region87: #{forward_pallas.1} parent=82 // loop_body
                  %v507 = vld [vmem:[%s505] sm:$0xff]
                  %508 = vst [vmem:[%s506] sm:$0xff] %v507
                  %v509 = vld [vmem:[%s505 + $0x8] sm:$0xff]
                  %510 = vst [vmem:[%s506 + $0x8] sm:$0xff] %v509
                  %v511 = vld [vmem:[%s505 + $0x20] sm:$0xff]
                  %512 = vst [vmem:[%s506 + $0x10] sm:$0xff] %v511
                  %v513 = vld [vmem:[%s505 + $0x28] sm:$0xff]
                  %514 = vst [vmem:[%s506 + $0x18] sm:$0xff] %v513
                  %v515 = vld [vmem:[%s505 + $0x40] sm:$0xff]
                  %516 = vst [vmem:[%s506 + $0x20] sm:$0xff] %v515
                  %v517 = vld [vmem:[%s505 + $0x48] sm:$0xff]
                  %518 = vst [vmem:[%s506 + $0x28] sm:$0xff] %v517
                  %v519 = vld [vmem:[%s505 + $0x60] sm:$0xff]
                  %520 = vst [vmem:[%s506 + $0x30] sm:$0xff] %v519
                  %v521 = vld [vmem:[%s505 + $0x68] sm:$0xff]
                  %522 = vst [vmem:[%s506 + $0x38] sm:$0xff] %v521
                  %v523 = vld [vmem:[%s505 + $0x80] sm:$0xff]
                  %524 = vst [vmem:[%s506 + $0x40] sm:$0xff] %v523
                  %v525 = vld [vmem:[%s505 + $0x88] sm:$0xff]
                  %526 = vst [vmem:[%s506 + $0x48] sm:$0xff] %v525
                  %v527 = vld [vmem:[%s505 + $0xa0] sm:$0xff]
                  %528 = vst [vmem:[%s506 + $0x50] sm:$0xff] %v527
                  %v529 = vld [vmem:[%s505 + $0xa8] sm:$0xff]
                  %530 = vst [vmem:[%s506 + $0x58] sm:$0xff] %v529
                  %v531 = vld [vmem:[%s505 + $0xc0] sm:$0xff]
                  %532 = vst [vmem:[%s506 + $0x60] sm:$0xff] %v531
                  %v533 = vld [vmem:[%s505 + $0xc8] sm:$0xff]
                  %534 = vst [vmem:[%s506 + $0x68] sm:$0xff] %v533
                  %v535 = vld [vmem:[%s505 + $0xe0] sm:$0xff]
                  %536 = vst [vmem:[%s506 + $0x70] sm:$0xff] %v535
                  %v537 = vld [vmem:[%s505 + $0xe8] sm:$0xff]
                  %538 = vst [vmem:[%s506 + $0x78] sm:$0xff] %v537
                  %v539 = vld [vmem:[%s505 + $0x100] sm:$0xff]
                  %540 = vst [vmem:[%s506 + $0x80] sm:$0xff] %v539
                  %v541 = vld [vmem:[%s505 + $0x108] sm:$0xff]
                  %542 = vst [vmem:[%s506 + $0x88] sm:$0xff] %v541
                  %v543 = vld [vmem:[%s505 + $0x120] sm:$0xff]
                  %544 = vst [vmem:[%s506 + $0x90] sm:$0xff] %v543
                  %v545 = vld [vmem:[%s505 + $0x128] sm:$0xff]
                  %546 = vst [vmem:[%s506 + $0x98] sm:$0xff] %v545
                  %v547 = vld [vmem:[%s505 + $0x140] sm:$0xff]
                  %548 = vst [vmem:[%s506 + $0xa0] sm:$0xff] %v547
                  %v549 = vld [vmem:[%s505 + $0x148] sm:$0xff]
                  %550 = vst [vmem:[%s506 + $0xa8] sm:$0xff] %v549
                  %v551 = vld [vmem:[%s505 + $0x160] sm:$0xff]
                  %552 = vst [vmem:[%s506 + $0xb0] sm:$0xff] %v551
                  %v553 = vld [vmem:[%s505 + $0x168] sm:$0xff]
                  %554 = vst [vmem:[%s506 + $0xb8] sm:$0xff] %v553
                  %v555 = vld [vmem:[%s505 + $0x180] sm:$0xff]
                  %556 = vst [vmem:[%s506 + $0xc0] sm:$0xff] %v555
                  %v557 = vld [vmem:[%s505 + $0x188] sm:$0xff]
                  %558 = vst [vmem:[%s506 + $0xc8] sm:$0xff] %v557
                  %v559 = vld [vmem:[%s505 + $0x1a0] sm:$0xff]
                  %560 = vst [vmem:[%s506 + $0xd0] sm:$0xff] %v559
                  %v561 = vld [vmem:[%s505 + $0x1a8] sm:$0xff]
                  %562 = vst [vmem:[%s506 + $0xd8] sm:$0xff] %v561
                  %v563 = vld [vmem:[%s505 + $0x1c0] sm:$0xff]
                  %564 = vst [vmem:[%s506 + $0xe0] sm:$0xff] %v563
                  %v565 = vld [vmem:[%s505 + $0x1c8] sm:$0xff]
                  %566 = vst [vmem:[%s506 + $0xe8] sm:$0xff] %v565
                  %v567 = vld [vmem:[%s505 + $0x1e0] sm:$0xff]
                  %568 = vst [vmem:[%s506 + $0xf0] sm:$0xff] %v567
                  %v569 = vld [vmem:[%s505 + $0x1e8] sm:$0xff]
                  %570 = vst [vmem:[%s506 + $0xf8] sm:$0xff] %v569
                  %v571 = vld [vmem:[%s505 + $0x200] sm:$0xff]
                  %572 = vst [vmem:[%s506 + $0x100] sm:$0xff] %v571
                  %v573 = vld [vmem:[%s505 + $0x208] sm:$0xff]
                  %574 = vst [vmem:[%s506 + $0x108] sm:$0xff] %v573
                  %v575 = vld [vmem:[%s505 + $0x220] sm:$0xff]
                  %576 = vst [vmem:[%s506 + $0x110] sm:$0xff] %v575
                  %v577 = vld [vmem:[%s505 + $0x228] sm:$0xff]
                  %578 = vst [vmem:[%s506 + $0x118] sm:$0xff] %v577
                  %v579 = vld [vmem:[%s505 + $0x240] sm:$0xff]
                  %580 = vst [vmem:[%s506 + $0x120] sm:$0xff] %v579
                  %v581 = vld [vmem:[%s505 + $0x248] sm:$0xff]
                  %582 = vst [vmem:[%s506 + $0x128] sm:$0xff] %v581
                  %v583 = vld [vmem:[%s505 + $0x260] sm:$0xff]
                  %584 = vst [vmem:[%s506 + $0x130] sm:$0xff] %v583
                  %v585 = vld [vmem:[%s505 + $0x268] sm:$0xff]
                  %586 = vst [vmem:[%s506 + $0x138] sm:$0xff] %v585
                  %v587 = vld [vmem:[%s505 + $0x280] sm:$0xff]
                  %588 = vst [vmem:[%s506 + $0x140] sm:$0xff] %v587
                  %v589 = vld [vmem:[%s505 + $0x288] sm:$0xff]
                  %590 = vst [vmem:[%s506 + $0x148] sm:$0xff] %v589
                  %v591 = vld [vmem:[%s505 + $0x2a0] sm:$0xff]
                  %592 = vst [vmem:[%s506 + $0x150] sm:$0xff] %v591
                  %v593 = vld [vmem:[%s505 + $0x2a8] sm:$0xff]
                  %594 = vst [vmem:[%s506 + $0x158] sm:$0xff] %v593
                  %v595 = vld [vmem:[%s505 + $0x2c0] sm:$0xff]
                  %596 = vst [vmem:[%s506 + $0x160] sm:$0xff] %v595
                  %v597 = vld [vmem:[%s505 + $0x2c8] sm:$0xff]
                  %598 = vst [vmem:[%s506 + $0x168] sm:$0xff] %v597
                  %v599 = vld [vmem:[%s505 + $0x2e0] sm:$0xff]
                  %600 = vst [vmem:[%s506 + $0x170] sm:$0xff] %v599
                  %v601 = vld [vmem:[%s505 + $0x2e8] sm:$0xff]
                  %602 = vst [vmem:[%s506 + $0x178] sm:$0xff] %v601
                  %v603 = vld [vmem:[%s505 + $0x300] sm:$0xff]
                  %604 = vst [vmem:[%s506 + $0x180] sm:$0xff] %v603
                  %v605 = vld [vmem:[%s505 + $0x308] sm:$0xff]
                  %606 = vst [vmem:[%s506 + $0x188] sm:$0xff] %v605
                  %v607 = vld [vmem:[%s505 + $0x320] sm:$0xff]
                  %608 = vst [vmem:[%s506 + $0x190] sm:$0xff] %v607
                  %v609 = vld [vmem:[%s505 + $0x328] sm:$0xff]
                  %610 = vst [vmem:[%s506 + $0x198] sm:$0xff] %v609
                  %v611 = vld [vmem:[%s505 + $0x340] sm:$0xff]
                  %612 = vst [vmem:[%s506 + $0x1a0] sm:$0xff] %v611
                  %v613 = vld [vmem:[%s505 + $0x348] sm:$0xff]
                  %614 = vst [vmem:[%s506 + $0x1a8] sm:$0xff] %v613
                  %v615 = vld [vmem:[%s505 + $0x360] sm:$0xff]
                  %616 = vst [vmem:[%s506 + $0x1b0] sm:$0xff] %v615
                  %v617 = vld [vmem:[%s505 + $0x368] sm:$0xff]
                  %618 = vst [vmem:[%s506 + $0x1b8] sm:$0xff] %v617
                  %v619 = vld [vmem:[%s505 + $0x380] sm:$0xff]
                  %620 = vst [vmem:[%s506 + $0x1c0] sm:$0xff] %v619
                  %v621 = vld [vmem:[%s505 + $0x388] sm:$0xff]
                  %622 = vst [vmem:[%s506 + $0x1c8] sm:$0xff] %v621
                  %v623 = vld [vmem:[%s505 + $0x3a0] sm:$0xff]
                  %624 = vst [vmem:[%s506 + $0x1d0] sm:$0xff] %v623
                  %v625 = vld [vmem:[%s505 + $0x3a8] sm:$0xff]
                  %626 = vst [vmem:[%s506 + $0x1d8] sm:$0xff] %v625
                  %v627 = vld [vmem:[%s505 + $0x3c0] sm:$0xff]
                  %628 = vst [vmem:[%s506 + $0x1e0] sm:$0xff] %v627
                  %v629 = vld [vmem:[%s505 + $0x3c8] sm:$0xff]
                  %630 = vst [vmem:[%s506 + $0x1e8] sm:$0xff] %v629
                  %v631 = vld [vmem:[%s505 + $0x3e0] sm:$0xff]
                  %632 = vst [vmem:[%s506 + $0x1f0] sm:$0xff] %v631
                  %v633 = vld [vmem:[%s505 + $0x3e8] sm:$0xff]
                  %634 = vst [vmem:[%s506 + $0x1f8] sm:$0xff] %v633
                  %v635 = vld [vmem:[%s505 + $0x400] sm:$0xff]
                  %636 = vst [vmem:[%s506 + $0x200] sm:$0xff] %v635
                  %v637 = vld [vmem:[%s505 + $0x408] sm:$0xff]
                  %638 = vst [vmem:[%s506 + $0x208] sm:$0xff] %v637
                  %v639 = vld [vmem:[%s505 + $0x420] sm:$0xff]
                  %640 = vst [vmem:[%s506 + $0x210] sm:$0xff] %v639
                  %v641 = vld [vmem:[%s505 + $0x428] sm:$0xff]
                  %642 = vst [vmem:[%s506 + $0x218] sm:$0xff] %v641
                  %v643 = vld [vmem:[%s505 + $0x440] sm:$0xff]
                  %644 = vst [vmem:[%s506 + $0x220] sm:$0xff] %v643
                  %v645 = vld [vmem:[%s505 + $0x448] sm:$0xff]
                  %646 = vst [vmem:[%s506 + $0x228] sm:$0xff] %v645
                  %v647 = vld [vmem:[%s505 + $0x460] sm:$0xff]
                  %648 = vst [vmem:[%s506 + $0x230] sm:$0xff] %v647
                  %v649 = vld [vmem:[%s505 + $0x468] sm:$0xff]
                  %650 = vst [vmem:[%s506 + $0x238] sm:$0xff] %v649
                $region88: #{forward_pallas.1} parent=82 // loop_footer
                  %s504 = sadd.s32 1, %s500
                $region89: #{forward_pallas.1} parent=82 // loop_footer_branch
                  %499 = sbr.rel target = $region85
                $region90: #{forward_pallas.1} parent=82 // loop_exit
                  _
              $region83: #{forward_pallas.1} parent=67 // pred_fallthru
                _
              // Predicated region
              $region91: #{forward_pallas.1} parent=67 // pred_check
                _
              $region92: #{forward_pallas.1} parent=67 // pred_check_branch
                %652 = sbr.rel target = $region94
              $region93: #{forward_pallas.1} parent=67 // pred_region
                _
              $region94: #{forward_pallas.1} parent=67 // pred_fallthru
                _
            $region68: #{forward_pallas.1} parent=63 // pred_fallthru
              _
            // Predicated region
            $region69: #{forward_pallas.1} parent=63 // pred_check
              _
            $region70: #{forward_pallas.1} parent=63 // pred_check_branch
              %343 = sbr.rel target = $region72
            $region71: #{forward_pallas.1} parent=63 // pred_region
              loop: start=0, step=1, limit=1
              $region73: #{forward_pallas.1} parent=71 // loop_pre_header
                _
              $region74: #{forward_pallas.1} parent=71 // loop_header
                %s346 = sphi 0, %s350
                %p347 = scmp.ge.s32.totalorder %s346, 1
                %s351 = sphi %s337, %s337
                %s352 = sphi %s334, %s334
              $region75: #{forward_pallas.1} parent=71 // loop_header_branch
                %349 = sbr.rel (%p347) target = $region79
              $region76: #{forward_pallas.1} parent=71 // loop_body
                %v353 = vld [vmem:[%s351] sm:$0xff]
                %354 = vst [vmem:[%s352] sm:$0xff] %v353
                %v355 = vld [vmem:[%s351 + $0x8] sm:$0xff]
                %356 = vst [vmem:[%s352 + $0x8] sm:$0xff] %v355
                %v357 = vld [vmem:[%s351 + $0x20] sm:$0xff]
                %358 = vst [vmem:[%s352 + $0x10] sm:$0xff] %v357
                %v359 = vld [vmem:[%s351 + $0x28] sm:$0xff]
                %360 = vst [vmem:[%s352 + $0x18] sm:$0xff] %v359
                %v361 = vld [vmem:[%s351 + $0x40] sm:$0xff]
                %362 = vst [vmem:[%s352 + $0x20] sm:$0xff] %v361
                %v363 = vld [vmem:[%s351 + $0x48] sm:$0xff]
                %364 = vst [vmem:[%s352 + $0x28] sm:$0xff] %v363
                %v365 = vld [vmem:[%s351 + $0x60] sm:$0xff]
                %366 = vst [vmem:[%s352 + $0x30] sm:$0xff] %v365
                %v367 = vld [vmem:[%s351 + $0x68] sm:$0xff]
                %368 = vst [vmem:[%s352 + $0x38] sm:$0xff] %v367
                %v369 = vld [vmem:[%s351 + $0x80] sm:$0xff]
                %370 = vst [vmem:[%s352 + $0x40] sm:$0xff] %v369
                %v371 = vld [vmem:[%s351 + $0x88] sm:$0xff]
                %372 = vst [vmem:[%s352 + $0x48] sm:$0xff] %v371
                %v373 = vld [vmem:[%s351 + $0xa0] sm:$0xff]
                %374 = vst [vmem:[%s352 + $0x50] sm:$0xff] %v373
                %v375 = vld [vmem:[%s351 + $0xa8] sm:$0xff]
                %376 = vst [vmem:[%s352 + $0x58] sm:$0xff] %v375
                %v377 = vld [vmem:[%s351 + $0xc0] sm:$0xff]
                %378 = vst [vmem:[%s352 + $0x60] sm:$0xff] %v377
                %v379 = vld [vmem:[%s351 + $0xc8] sm:$0xff]
                %380 = vst [vmem:[%s352 + $0x68] sm:$0xff] %v379
                %v381 = vld [vmem:[%s351 + $0xe0] sm:$0xff]
                %382 = vst [vmem:[%s352 + $0x70] sm:$0xff] %v381
                %v383 = vld [vmem:[%s351 + $0xe8] sm:$0xff]
                %384 = vst [vmem:[%s352 + $0x78] sm:$0xff] %v383
                %v385 = vld [vmem:[%s351 + $0x100] sm:$0xff]
                %386 = vst [vmem:[%s352 + $0x80] sm:$0xff] %v385
                %v387 = vld [vmem:[%s351 + $0x108] sm:$0xff]
                %388 = vst [vmem:[%s352 + $0x88] sm:$0xff] %v387
                %v389 = vld [vmem:[%s351 + $0x120] sm:$0xff]
                %390 = vst [vmem:[%s352 + $0x90] sm:$0xff] %v389
                %v391 = vld [vmem:[%s351 + $0x128] sm:$0xff]
                %392 = vst [vmem:[%s352 + $0x98] sm:$0xff] %v391
                %v393 = vld [vmem:[%s351 + $0x140] sm:$0xff]
                %394 = vst [vmem:[%s352 + $0xa0] sm:$0xff] %v393
                %v395 = vld [vmem:[%s351 + $0x148] sm:$0xff]
                %396 = vst [vmem:[%s352 + $0xa8] sm:$0xff] %v395
                %v397 = vld [vmem:[%s351 + $0x160] sm:$0xff]
                %398 = vst [vmem:[%s352 + $0xb0] sm:$0xff] %v397
                %v399 = vld [vmem:[%s351 + $0x168] sm:$0xff]
                %400 = vst [vmem:[%s352 + $0xb8] sm:$0xff] %v399
                %v401 = vld [vmem:[%s351 + $0x180] sm:$0xff]
                %402 = vst [vmem:[%s352 + $0xc0] sm:$0xff] %v401
                %v403 = vld [vmem:[%s351 + $0x188] sm:$0xff]
                %404 = vst [vmem:[%s352 + $0xc8] sm:$0xff] %v403
                %v405 = vld [vmem:[%s351 + $0x1a0] sm:$0xff]
                %406 = vst [vmem:[%s352 + $0xd0] sm:$0xff] %v405
                %v407 = vld [vmem:[%s351 + $0x1a8] sm:$0xff]
                %408 = vst [vmem:[%s352 + $0xd8] sm:$0xff] %v407
                %v409 = vld [vmem:[%s351 + $0x1c0] sm:$0xff]
                %410 = vst [vmem:[%s352 + $0xe0] sm:$0xff] %v409
                %v411 = vld [vmem:[%s351 + $0x1c8] sm:$0xff]
                %412 = vst [vmem:[%s352 + $0xe8] sm:$0xff] %v411
                %v413 = vld [vmem:[%s351 + $0x1e0] sm:$0xff]
                %414 = vst [vmem:[%s352 + $0xf0] sm:$0xff] %v413
                %v415 = vld [vmem:[%s351 + $0x1e8] sm:$0xff]
                %416 = vst [vmem:[%s352 + $0xf8] sm:$0xff] %v415
                %v417 = vld [vmem:[%s351 + $0x200] sm:$0xff]
                %418 = vst [vmem:[%s352 + $0x100] sm:$0xff] %v417
                %v419 = vld [vmem:[%s351 + $0x208] sm:$0xff]
                %420 = vst [vmem:[%s352 + $0x108] sm:$0xff] %v419
                %v421 = vld [vmem:[%s351 + $0x220] sm:$0xff]
                %422 = vst [vmem:[%s352 + $0x110] sm:$0xff] %v421
                %v423 = vld [vmem:[%s351 + $0x228] sm:$0xff]
                %424 = vst [vmem:[%s352 + $0x118] sm:$0xff] %v423
                %v425 = vld [vmem:[%s351 + $0x240] sm:$0xff]
                %426 = vst [vmem:[%s352 + $0x120] sm:$0xff] %v425
                %v427 = vld [vmem:[%s351 + $0x248] sm:$0xff]
                %428 = vst [vmem:[%s352 + $0x128] sm:$0xff] %v427
                %v429 = vld [vmem:[%s351 + $0x260] sm:$0xff]
                %430 = vst [vmem:[%s352 + $0x130] sm:$0xff] %v429
                %v431 = vld [vmem:[%s351 + $0x268] sm:$0xff]
                %432 = vst [vmem:[%s352 + $0x138] sm:$0xff] %v431
                %v433 = vld [vmem:[%s351 + $0x280] sm:$0xff]
                %434 = vst [vmem:[%s352 + $0x140] sm:$0xff] %v433
                %v435 = vld [vmem:[%s351 + $0x288] sm:$0xff]
                %436 = vst [vmem:[%s352 + $0x148] sm:$0xff] %v435
                %v437 = vld [vmem:[%s351 + $0x2a0] sm:$0xff]
                %438 = vst [vmem:[%s352 + $0x150] sm:$0xff] %v437
                %v439 = vld [vmem:[%s351 + $0x2a8] sm:$0xff]
                %440 = vst [vmem:[%s352 + $0x158] sm:$0xff] %v439
                %v441 = vld [vmem:[%s351 + $0x2c0] sm:$0xff]
                %442 = vst [vmem:[%s352 + $0x160] sm:$0xff] %v441
                %v443 = vld [vmem:[%s351 + $0x2c8] sm:$0xff]
                %444 = vst [vmem:[%s352 + $0x168] sm:$0xff] %v443
                %v445 = vld [vmem:[%s351 + $0x2e0] sm:$0xff]
                %446 = vst [vmem:[%s352 + $0x170] sm:$0xff] %v445
                %v447 = vld [vmem:[%s351 + $0x2e8] sm:$0xff]
                %448 = vst [vmem:[%s352 + $0x178] sm:$0xff] %v447
                %v449 = vld [vmem:[%s351 + $0x300] sm:$0xff]
                %450 = vst [vmem:[%s352 + $0x180] sm:$0xff] %v449
                %v451 = vld [vmem:[%s351 + $0x308] sm:$0xff]
                %452 = vst [vmem:[%s352 + $0x188] sm:$0xff] %v451
                %v453 = vld [vmem:[%s351 + $0x320] sm:$0xff]
                %454 = vst [vmem:[%s352 + $0x190] sm:$0xff] %v453
                %v455 = vld [vmem:[%s351 + $0x328] sm:$0xff]
                %456 = vst [vmem:[%s352 + $0x198] sm:$0xff] %v455
                %v457 = vld [vmem:[%s351 + $0x340] sm:$0xff]
                %458 = vst [vmem:[%s352 + $0x1a0] sm:$0xff] %v457
                %v459 = vld [vmem:[%s351 + $0x348] sm:$0xff]
                %460 = vst [vmem:[%s352 + $0x1a8] sm:$0xff] %v459
                %v461 = vld [vmem:[%s351 + $0x360] sm:$0xff]
                %462 = vst [vmem:[%s352 + $0x1b0] sm:$0xff] %v461
                %v463 = vld [vmem:[%s351 + $0x368] sm:$0xff]
                %464 = vst [vmem:[%s352 + $0x1b8] sm:$0xff] %v463
                %v465 = vld [vmem:[%s351 + $0x380] sm:$0xff]
                %466 = vst [vmem:[%s352 + $0x1c0] sm:$0xff] %v465
                %v467 = vld [vmem:[%s351 + $0x388] sm:$0xff]
                %468 = vst [vmem:[%s352 + $0x1c8] sm:$0xff] %v467
                %v469 = vld [vmem:[%s351 + $0x3a0] sm:$0xff]
                %470 = vst [vmem:[%s352 + $0x1d0] sm:$0xff] %v469
                %v471 = vld [vmem:[%s351 + $0x3a8] sm:$0xff]
                %472 = vst [vmem:[%s352 + $0x1d8] sm:$0xff] %v471
                %v473 = vld [vmem:[%s351 + $0x3c0] sm:$0xff]
                %474 = vst [vmem:[%s352 + $0x1e0] sm:$0xff] %v473
                %v475 = vld [vmem:[%s351 + $0x3c8] sm:$0xff]
                %476 = vst [vmem:[%s352 + $0x1e8] sm:$0xff] %v475
                %v477 = vld [vmem:[%s351 + $0x3e0] sm:$0xff]
                %478 = vst [vmem:[%s352 + $0x1f0] sm:$0xff] %v477
                %v479 = vld [vmem:[%s351 + $0x3e8] sm:$0xff]
                %480 = vst [vmem:[%s352 + $0x1f8] sm:$0xff] %v479
                %v481 = vld [vmem:[%s351 + $0x400] sm:$0xff]
                %482 = vst [vmem:[%s352 + $0x200] sm:$0xff] %v481
                %v483 = vld [vmem:[%s351 + $0x408] sm:$0xff]
                %484 = vst [vmem:[%s352 + $0x208] sm:$0xff] %v483
                %v485 = vld [vmem:[%s351 + $0x420] sm:$0xff]
                %486 = vst [vmem:[%s352 + $0x210] sm:$0xff] %v485
                %v487 = vld [vmem:[%s351 + $0x428] sm:$0xff]
                %488 = vst [vmem:[%s352 + $0x218] sm:$0xff] %v487
                %v489 = vld [vmem:[%s351 + $0x440] sm:$0xff]
                %490 = vst [vmem:[%s352 + $0x220] sm:$0xff] %v489
                %v491 = vld [vmem:[%s351 + $0x448] sm:$0xff]
                %492 = vst [vmem:[%s352 + $0x228] sm:$0xff] %v491
                %v493 = vld [vmem:[%s351 + $0x460] sm:$0xff]
                %494 = vst [vmem:[%s352 + $0x230] sm:$0xff] %v493
                %v495 = vld [vmem:[%s351 + $0x468] sm:$0xff]
                %496 = vst [vmem:[%s352 + $0x238] sm:$0xff] %v495
              $region77: #{forward_pallas.1} parent=71 // loop_footer
                %s350 = sadd.s32 1, %s346
              $region78: #{forward_pallas.1} parent=71 // loop_footer_branch
                %345 = sbr.rel target = $region74
              $region79: #{forward_pallas.1} parent=71 // loop_exit
                _
            $region72: #{forward_pallas.1} parent=63 // pred_fallthru
              _
          $region64: #{forward_pallas.1} parent=59 // pred_fallthru
            _
          %653 = vnop
        $region60: #{forward_pallas.1} parent=55 // pred_fallthru
          _
      $region56: #{forward_pallas.1} parent=5 // pred_fallthru
        _
      %p654 = scmp.le.s32.totalorder 1, %s17
      %p655 = scmp.lt.s32.totalorder %s17, 3
      %p656 = pnand %p654, %p655
      %p657 = pneg %p656
      // Predicated region
      $region95: #{forward_pallas.1} parent=5 // pred_check
        _
      $region96: #{forward_pallas.1} parent=5 // pred_check_branch
        %659 = sbr.rel (%p656) target = $region98
      $region97: #{forward_pallas.1} parent=5 // pred_region
        %s660 = ssub.s32 %s17, 1
        %s661 = sand.u32 %s30, 1
        %s662 = sand.u32 %s30, 1
        %s663 = smul.addr %s662, 576
        %s664 = scalar_lea.vmem [#allocation5], %s663
        // Predicated region
        $region99: #{forward_pallas.1} parent=97 // pred_check
          %p665 = pneg %p43
        $region100: #{forward_pallas.1} parent=97 // pred_check_branch
          %667 = sbr.rel (%p665) target = $region102
        $region101: #{forward_pallas.1} parent=97 // pred_region
          _
        $region102: #{forward_pallas.1} parent=97 // pred_fallthru
          _
        %s668 = sand.u32 %s30, 1
        %s669 = sand.u32 %s30, 1
        %s670 = smul.addr %s669, 576
        %s671 = scalar_lea.vmem [#allocation5], %s670
        %p672 = pneg %p43
        %p673 = pneg %p40
        %p674 = pneg %p64
        %p675 = pneg %p61
        %p676 = pneg %p85
        %p677 = pneg %p82
        %p678 = pneg %p106
        %p679 = pneg %p103
        %p680 = pneg %p127
        %p681 = pneg %p124
        %p682 = pneg %p148
        %p683 = pneg %p145
        %p684 = pneg %p169
        %p685 = pneg %p166
        %p686 = pneg %p190
        %p687 = pneg %p187
        %p688 = pneg %p211
        %p689 = pneg %p208
        %p690 = pneg %p232
        %p691 = pneg %p229
        %p692 = pneg %p253
        %p693 = pneg %p250
        %p694 = pneg %p279
        %p695 = pneg %p276
        %s696 = smul.u32 2, %s22
        %p697 = scmp.lt.s32.totalorder %s696, 3
        %s698 = scalar_select %p697, %s696, 3
        %s699 = smul.addr %s698, 8
        %s700 = scalar_lea.vmem %s11, %s699
        %s701 = smul.u32 2, %s22
        %s702 = smul.u32 2, %s22
        %p703 = scmp.lt.s32.totalorder %s702, 3
        %s704 = scalar_select %p703, %s702, 3
        %s705 = smul.addr %s704, 8
        %s706 = scalar_lea.vmem %s11, %s705
        %s707 = smul.u32 2, %s22
        %709 = vst [vmem:[#allocation2] sm:$0xff] 0
        %710 = vst [vmem:[#allocation2 + $0x8] sm:$0xff] 0
        %s711 = scalar_lea.vmem [#allocation2], 304
        %712 = vst [vmem:[%s711] sm:$0xff] 0
        %713 = vst [vmem:[%s711 + $0x8] sm:$0xff] 0
        %714 = vst [vmem:[#allocation3] sm:$0xff] 0
        %s715 = scalar_lea.vmem [#allocation3], 152
        %716 = vst [vmem:[%s715] sm:$0xff] 0
        %717 = vst [vmem:[#allocation4] sm:$0xff] 0
        %718 = vst [vmem:[#allocation4 + $0x8] sm:$0xff] 0
        %s719 = scalar_lea.vmem [#allocation4], 304
        %720 = vst [vmem:[%s719] sm:$0xff] 0
        %721 = vst [vmem:[%s719 + $0x8] sm:$0xff] 0
        %v722 = vld [vmem:[%s664] sm:$0xff]
        %v723 = vld [vmem:[%s664 + $0x8] sm:$0xff]
        %v724 = vld [vmem:[%s664 + $0x10] sm:$0xff]
        %v725 = vld [vmem:[%s664 + $0x18] sm:$0xff]
        %v726 = vld [vmem:[%s664 + $0x20] sm:$0xff]
        %v727 = vld [vmem:[%s664 + $0x28] sm:$0xff]
        %v728 = vld [vmem:[%s664 + $0x30] sm:$0xff]
        %v729 = vld [vmem:[%s664 + $0x38] sm:$0xff]
        %v730 = vld [vmem:[%s664 + $0x40] sm:$0xff]
        %v731 = vld [vmem:[%s664 + $0x48] sm:$0xff]
        %v732 = vld [vmem:[%s664 + $0x50] sm:$0xff]
        %v733 = vld [vmem:[%s664 + $0x58] sm:$0xff]
        %v734 = vld [vmem:[%s664 + $0x60] sm:$0xff]
        %v735 = vld [vmem:[%s664 + $0x68] sm:$0xff]
        %v736 = vld [vmem:[%s664 + $0x70] sm:$0xff]
        %v737 = vld [vmem:[%s664 + $0x78] sm:$0xff]
        %v738 = vld [vmem:[%s664 + $0x80] sm:$0xff]
        %v739 = vld [vmem:[%s664 + $0x88] sm:$0xff]
        %v740 = vld [vmem:[%s664 + $0x90] sm:$0xff]
        %v741 = vld [vmem:[%s664 + $0x98] sm:$0xff]
        %v742 = vld [vmem:[%s664 + $0xa0] sm:$0xff]
        %v743 = vld [vmem:[%s664 + $0xa8] sm:$0xff]
        %v744 = vld [vmem:[%s664 + $0xb0] sm:$0xff]
        %v745 = vld [vmem:[%s664 + $0xb8] sm:$0xff]
        %v746 = vld [vmem:[%s664 + $0xc0] sm:$0xff]
        %v747 = vld [vmem:[%s664 + $0xc8] sm:$0xff]
        %v748 = vld [vmem:[%s664 + $0xd0] sm:$0xff]
        %v749 = vld [vmem:[%s664 + $0xd8] sm:$0xff]
        %v750 = vld [vmem:[%s664 + $0xe0] sm:$0xff]
        %v751 = vld [vmem:[%s664 + $0xe8] sm:$0xff]
        %v752 = vld [vmem:[%s664 + $0xf0] sm:$0xff]
        %v753 = vld [vmem:[%s664 + $0xf8] sm:$0xff]
        %v754 = vld [vmem:[%s664 + $0x100] sm:$0xff]
        %v755 = vld [vmem:[%s664 + $0x108] sm:$0xff]
        %v756 = vld [vmem:[%s664 + $0x110] sm:$0xff]
        %v757 = vld [vmem:[%s664 + $0x118] sm:$0xff]
        %v758 = vld [vmem:[%s664 + $0x120] sm:$0xff]
        %v759 = vld [vmem:[%s664 + $0x128] sm:$0xff]
        %v760 = vld [vmem:[%s664 + $0x130] sm:$0xff]
        %v761 = vld [vmem:[%s664 + $0x138] sm:$0xff]
        %v762 = vld [vmem:[%s664 + $0x140] sm:$0xff]
        %v763 = vld [vmem:[%s664 + $0x148] sm:$0xff]
        %v764 = vld [vmem:[%s664 + $0x150] sm:$0xff]
        %v765 = vld [vmem:[%s664 + $0x158] sm:$0xff]
        %v766 = vld [vmem:[%s664 + $0x160] sm:$0xff]
        %v767 = vld [vmem:[%s664 + $0x168] sm:$0xff]
        %v768 = vld [vmem:[%s664 + $0x170] sm:$0xff]
        %v769 = vld [vmem:[%s664 + $0x178] sm:$0xff]
        %v770 = vld [vmem:[%s664 + $0x180] sm:$0xff]
        %v771 = vld [vmem:[%s664 + $0x188] sm:$0xff]
        %v772 = vld [vmem:[%s664 + $0x190] sm:$0xff]
        %v773 = vld [vmem:[%s664 + $0x198] sm:$0xff]
        %v774 = vld [vmem:[%s664 + $0x1a0] sm:$0xff]
        %v775 = vld [vmem:[%s664 + $0x1a8] sm:$0xff]
        %v776 = vld [vmem:[%s664 + $0x1b0] sm:$0xff]
        %v777 = vld [vmem:[%s664 + $0x1b8] sm:$0xff]
        %v778 = vld [vmem:[%s664 + $0x1c0] sm:$0xff]
        %v779 = vld [vmem:[%s664 + $0x1c8] sm:$0xff]
        %v780 = vld [vmem:[%s664 + $0x1d0] sm:$0xff]
        %v781 = vld [vmem:[%s664 + $0x1d8] sm:$0xff]
        %v782 = vld [vmem:[%s664 + $0x1e0] sm:$0xff]
        %v783 = vld [vmem:[%s664 + $0x1e8] sm:$0xff]
        %v784 = vld [vmem:[%s664 + $0x1f0] sm:$0xff]
        %v785 = vld [vmem:[%s664 + $0x1f8] sm:$0xff]
        %v786 = vld [vmem:[%s664 + $0x200] sm:$0xff]
        %v787 = vld [vmem:[%s664 + $0x208] sm:$0xff]
        %v788 = vld [vmem:[%s664 + $0x210] sm:$0xff]
        %v789 = vld [vmem:[%s664 + $0x218] sm:$0xff]
        %v790 = vld [vmem:[%s664 + $0x220] sm:$0xff]
        %v791 = vld [vmem:[%s664 + $0x228] sm:$0xff]
        %v792 = vld [vmem:[%s664 + $0x230] sm:$0xff]
        %v793 = vld [vmem:[%s664 + $0x238] sm:$0xff]
        %v794 = vpack.c.bf16 %v723, %v722
        %v795 = vpack.c.bf16 %v725, %v724
        %v796 = vpack.c.bf16 %v727, %v726
        %v797 = vpack.c.bf16 %v729, %v728
        %v798 = vpack.c.bf16 %v731, %v730
        %v799 = vpack.c.bf16 %v733, %v732
        %v800 = vpack.c.bf16 %v735, %v734
        %v801 = vpack.c.bf16 %v737, %v736
        %v802 = vpack.c.bf16 %v739, %v738
        %v803 = vpack.c.bf16 %v741, %v740
        %v804 = vpack.c.bf16 %v743, %v742
        %v805 = vpack.c.bf16 %v745, %v744
        %v806 = vpack.c.bf16 %v747, %v746
        %v807 = vpack.c.bf16 %v749, %v748
        %v808 = vpack.c.bf16 %v751, %v750
        %v809 = vpack.c.bf16 %v753, %v752
        %v810 = vpack.c.bf16 %v755, %v754
        %v811 = vpack.c.bf16 %v757, %v756
        %v812 = vpack.c.bf16 %v759, %v758
        %v813 = vpack.c.bf16 %v761, %v760
        %v814 = vpack.c.bf16 %v763, %v762
        %v815 = vpack.c.bf16 %v765, %v764
        %v816 = vpack.c.bf16 %v767, %v766
        %v817 = vpack.c.bf16 %v769, %v768
        %v818 = vpack.c.bf16 %v771, %v770
        %v819 = vpack.c.bf16 %v773, %v772
        %v820 = vpack.c.bf16 %v775, %v774
        %v821 = vpack.c.bf16 %v777, %v776
        %v822 = vpack.c.bf16 %v779, %v778
        %v823 = vpack.c.bf16 %v781, %v780
        %v824 = vpack.c.bf16 %v783, %v782
        %v825 = vpack.c.bf16 %v785, %v784
        %v826 = vpack.c.bf16 %v787, %v786
        %v827 = vpack.c.bf16 %v789, %v788
        %v828 = vpack.c.bf16 %v791, %v790
        %v829 = vpack.c.bf16 %v793, %v792
        %v830 = vld [vmem:[%s1] sm:$0xf]
        %v831 = vld [vmem:[%s1 + $0x4] sm:$0xf]
        %v832 = vld [vmem:[%s1 + $0x8] sm:$0xf]
        %v833 = vld [vmem:[%s1 + $0xc] sm:$0xf]
        %v834 = vld [vmem:[%s1 + $0x10] sm:$0x3]
        %v835 = vld [vmem:[%s2] sm:$0x1]
        %v837 = vlaneseq
        %v838 = vshrl.u32 %v837, 7
        %v839 = vsub.s32 0, %v838
        %v840 = vrot.slane %v835, %v839
        %v847 = vunpack.c.l.b16 %v830
        %v848 = vunpack.c.l.b16 %v831
        %v849 = vunpack.c.l.b16 %v832
        %v850 = vunpack.c.l.b16 %v833
        %v851 = vunpack.c.l.b16 %v834
        %v852 = vpack.c.b16 %v848, %v847
        %v853 = vpack.c.b16 %v850, %v849
        %v854 = vpack.c.b16 %v851, %v851
        %vm857 = vcmask 285696
        %v859 = vsel %vm857, %v794, 0
        %v862 = vsel %vm857, %v795, 0
        %v865 = vsel %vm857, %v796, 0
        %v868 = vsel %vm857, %v797, 0
        %v871 = vsel %vm857, %v798, 0
        %v874 = vsel %vm857, %v799, 0
        %v877 = vsel %vm857, %v800, 0
        %v880 = vsel %vm857, %v801, 0
        %v883 = vsel %vm857, %v802, 0
        %v886 = vsel %vm857, %v803, 0
        %v889 = vsel %vm857, %v804, 0
        %v892 = vsel %vm857, %v805, 0
        %v895 = vsel %vm857, %v806, 0
        %v898 = vsel %vm857, %v807, 0
        %v901 = vsel %vm857, %v808, 0
        %v904 = vsel %vm857, %v809, 0
        %v907 = vsel %vm857, %v810, 0
        %v910 = vsel %vm857, %v811, 0
        %v913 = vsel %vm857, %v812, 0
        %v916 = vsel %vm857, %v813, 0
        %v919 = vsel %vm857, %v814, 0
        %v922 = vsel %vm857, %v815, 0
        %v925 = vsel %vm857, %v816, 0
        %v928 = vsel %vm857, %v817, 0
        %v931 = vsel %vm857, %v818, 0
        %v934 = vsel %vm857, %v819, 0
        %v937 = vsel %vm857, %v820, 0
        %v940 = vsel %vm857, %v821, 0
        %v943 = vsel %vm857, %v822, 0
        %v946 = vsel %vm857, %v823, 0
        %v949 = vsel %vm857, %v824, 0
        %v952 = vsel %vm857, %v825, 0
        %v955 = vsel %vm857, %v826, 0
        %v958 = vsel %vm857, %v827, 0
        %v961 = vsel %vm857, %v828, 0
        %v964 = vsel %vm857, %v829, 0
        %vm966 = vcmask 1040384
        %vm967 = vcmask 1041408
        %v968 = vsel %vm966, 4294967295, 65535
        %v969 = vsel %vm967, %v968, 0
        %v971 = vand.u32 %v854, %v969
        %973 = vmatprep.subr.bf16.mxu0 0
        %974 = vmatpush1.bf16.msra.mxu0 %v852
        %975 = vmatprep.subr.bf16.mxu0 0
        %976 = vmatpush1.bf16.msra.mxu0 %v853
        %977 = vmatprep.subr.bf16.mxu0 0
        %978 = vmatpush1.bf16.msra.mxu0 %v971
        %979 = vmatprep.subr.bf16.mxu0 0
        %980 = vmatpush1.bf16.msra.mxu0 0
        %981 = vmatprep.subr.bf16.mxu0 0
        %982 = vmatpush1.bf16.msra.mxu0 0
        %983 = vmatprep.subr.bf16.mxu0 0
        %984 = vmatpush1.bf16.msra.mxu0 0
        %985 = vmatprep.subr.bf16.mxu0 0
        %986 = vmatpush1.bf16.msra.mxu0 0
        %987 = vmatprep.subr.bf16.mxu0 0
        %988 = vmatpush1.bf16.msra.mxu0 0
        %989 = vmatprep.subr.bf16.mxu0 0
        %990 = vmatpush1.bf16.msra.mxu0 0
        %991 = vmatprep.subr.bf16.mxu0 0
        %992 = vmatpush1.bf16.msra.mxu0 0
        %993 = vmatprep.subr.bf16.mxu0 0
        %994 = vmatpush1.bf16.msra.mxu0 0
        %995 = vmatprep.subr.bf16.mxu0 0
        %996 = vmatpush1.bf16.msra.mxu0 0
        %997 = vmatprep.subr.bf16.mxu0 0
        %998 = vmatpush1.bf16.msra.mxu0 0
        %999 = vmatprep.subr.bf16.mxu0 0
        %1000 = vmatpush1.bf16.msra.mxu0 0
        %1001 = vmatprep.subr.bf16.mxu0 0
        %1002 = vmatpush1.bf16.msra.mxu0 0
        %1003 = vmatprep.subr.bf16.mxu0 0
        %1004 = vmatpush1.bf16.msra.mxu0 0
        %1005 = vmatprep.mubr.bf16.mxu0 0
        %1006 = vmatmul.mubr.bf16.gmra.mrb[0].mxu0 %v859
        %v1007 = vpop.f32.mrb[0].mxu0
        %v1008 = vadd.f32 %v840, %v1007
        %v1009 = vpop.f32.mrb[0].mxu0
        %v1010 = vpop.f32.mrb[0].mxu0
        %v1011 = vadd.f32 %v840, %v1010
        %v1012 = vpop.f32.mrb[0].mxu0
        %1013 = vmatprep.mubr.bf16.mxu0 0
        %1014 = vmatmul.mubr.bf16.gmra.mrb[0].mxu0 %v862
        %v1015 = vpop.f32.mrb[0].mxu0
        %v1016 = vadd.f32 %v840, %v1015
        %v1017 = vpop.f32.mrb[0].mxu0
        %v1018 = vpop.f32.mrb[0].mxu0
        %v1019 = vadd.f32 %v840, %v1018
        %v1020 = vpop.f32.mrb[0].mxu0
        %1021 = vmatprep.mubr.bf16.mxu0 0
        %1022 = vmatmul.mubr.bf16.gmra.mrb[0].mxu0 %v865
        %v1023 = vpop.f32.mrb[0].mxu0
        %v1024 = vadd.f32 %v840, %v1023
        %v1025 = vpop.f32.mrb[0].mxu0
        %v1026 = vpop.f32.mrb[0].mxu0
        %v1027 = vadd.f32 %v840, %v1026
        %v1028 = vpop.f32.mrb[0].mxu0
        %1029 = vmatprep.mubr.bf16.mxu0 0
        %1030 = vmatmul.mubr.bf16.gmra.mrb[0].mxu0 %v868
        %v1031 = vpop.f32.mrb[0].mxu0
        %v1032 = vadd.f32 %v840, %v1031
        %v1033 = vpop.f32.mrb[0].mxu0
        %v1034 = vpop.f32.mrb[0].mxu0
        %v1035 = vadd.f32 %v840, %v1034
        %v1036 = vpop.f32.mrb[0].mxu0
        %1037 = vmatprep.mubr.bf16.mxu0 0
        %1038 = vmatmul.mubr.bf16.gmra.mrb[0].mxu0 %v871
        %v1039 = vpop.f32.mrb[0].mxu0
        %v1040 = vadd.f32 %v840, %v1039
        %v1041 = vpop.f32.mrb[0].mxu0
        %v1042 = vpop.f32.mrb[0].mxu0
        %v1043 = vadd.f32 %v840, %v1042
        %v1044 = vpop.f32.mrb[0].mxu0
        %1045 = vmatprep.mubr.bf16.mxu0 0
        %1046 = vmatmul.mubr.bf16.gmra.mrb[0].mxu0 %v874
        %v1047 = vpop.f32.mrb[0].mxu0
        %v1048 = vadd.f32 %v840, %v1047
        %v1049 = vpop.f32.mrb[0].mxu0
        %v1050 = vpop.f32.mrb[0].mxu0
        %v1051 = vadd.f32 %v840, %v1050
        %v1052 = vpop.f32.mrb[0].mxu0
        %1053 = vmatprep.mubr.bf16.mxu0 0
        %1054 = vmatmul.mubr.bf16.gmra.mrb[0].mxu0 %v877
        %v1055 = vpop.f32.mrb[0].mxu0
        %v1056 = vadd.f32 %v840, %v1055
        %v1057 = vpop.f32.mrb[0].mxu0
        %v1058 = vpop.f32.mrb[0].mxu0
        %v1059 = vadd.f32 %v840, %v1058
        %v1060 = vpop.f32.mrb[0].mxu0
        %1061 = vmatprep.mubr.bf16.mxu0 0
        %1062 = vmatmul.mubr.bf16.gmra.mrb[0].mxu0 %v880
        %v1063 = vpop.f32.mrb[0].mxu0
        %v1064 = vadd.f32 %v840, %v1063
        %v1065 = vpop.f32.mrb[0].mxu0
        %v1066 = vpop.f32.mrb[0].mxu0
        %v1067 = vadd.f32 %v840, %v1066
        %v1068 = vpop.f32.mrb[0].mxu0
        %1069 = vmatprep.mubr.bf16.mxu0 0
        %1070 = vmatmul.mubr.bf16.gmra.mrb[0].mxu0 %v883
        %v1071 = vpop.f32.mrb[0].mxu0
        %v1072 = vadd.f32 %v840, %v1071
        %v1073 = vpop.f32.mrb[0].mxu0
        %v1074 = vpop.f32.mrb[0].mxu0
        %v1075 = vadd.f32 %v840, %v1074
        %v1076 = vpop.f32.mrb[0].mxu0
        %1077 = vmatprep.mubr.bf16.mxu0 0
        %1078 = vmatmul.mubr.bf16.gmra.mrb[0].mxu0 %v886
        %v1079 = vpop.f32.mrb[0].mxu0
        %v1080 = vadd.f32 %v840, %v1079
        %v1081 = vpop.f32.mrb[0].mxu0
        %v1082 = vpop.f32.mrb[0].mxu0
        %v1083 = vadd.f32 %v840, %v1082
        %v1084 = vpop.f32.mrb[0].mxu0
        %1085 = vmatprep.mubr.bf16.mxu0 0
        %1086 = vmatmul.mubr.bf16.gmra.mrb[0].mxu0 %v889
        %v1087 = vpop.f32.mrb[0].mxu0
        %v1088 = vadd.f32 %v840, %v1087
        %v1089 = vpop.f32.mrb[0].mxu0
        %v1090 = vpop.f32.mrb[0].mxu0
        %v1091 = vadd.f32 %v840, %v1090
        %v1092 = vpop.f32.mrb[0].mxu0
        %1093 = vmatprep.mubr.bf16.mxu0 0
        %1094 = vmatmul.mubr.bf16.gmra.mrb[0].mxu0 %v892
        %v1095 = vpop.f32.mrb[0].mxu0
        %v1096 = vadd.f32 %v840, %v1095
        %v1097 = vpop.f32.mrb[0].mxu0
        %v1098 = vpop.f32.mrb[0].mxu0
        %v1099 = vadd.f32 %v840, %v1098
        %v1100 = vpop.f32.mrb[0].mxu0
        %1101 = vmatprep.mubr.bf16.mxu0 0
        %1102 = vmatmul.mubr.bf16.gmra.mrb[0].mxu0 %v895
        %v1103 = vpop.f32.mrb[0].mxu0
        %v1104 = vadd.f32 %v840, %v1103
        %v1105 = vpop.f32.mrb[0].mxu0
        %v1106 = vpop.f32.mrb[0].mxu0
        %v1107 = vadd.f32 %v840, %v1106
        %v1108 = vpop.f32.mrb[0].mxu0
        %1109 = vmatprep.mubr.bf16.mxu0 0
        %1110 = vmatmul.mubr.bf16.gmra.mrb[0].mxu0 %v898
        %v1111 = vpop.f32.mrb[0].mxu0
        %v1112 = vadd.f32 %v840, %v1111
        %v1113 = vpop.f32.mrb[0].mxu0
        %v1114 = vpop.f32.mrb[0].mxu0
        %v1115 = vadd.f32 %v840, %v1114
        %v1116 = vpop.f32.mrb[0].mxu0
        %1117 = vmatprep.mubr.bf16.mxu0 0
        %1118 = vmatmul.mubr.bf16.gmra.mrb[0].mxu0 %v901
        %v1119 = vpop.f32.mrb[0].mxu0
        %v1120 = vadd.f32 %v840, %v1119
        %v1121 = vpop.f32.mrb[0].mxu0
        %v1122 = vpop.f32.mrb[0].mxu0
        %v1123 = vadd.f32 %v840, %v1122
        %v1124 = vpop.f32.mrb[0].mxu0
        %1125 = vmatprep.mubr.bf16.mxu0 0
        %1126 = vmatmul.mubr.bf16.gmra.mrb[0].mxu0 %v904
        %v1127 = vpop.f32.mrb[0].mxu0
        %v1128 = vadd.f32 %v840, %v1127
        %v1129 = vpop.f32.mrb[0].mxu0
        %v1130 = vpop.f32.mrb[0].mxu0
        %v1131 = vadd.f32 %v840, %v1130
        %v1132 = vpop.f32.mrb[0].mxu0
        %1133 = vmatprep.mubr.bf16.mxu0 0
        %1134 = vmatmul.mubr.bf16.gmra.mrb[0].mxu0 %v907
        %v1135 = vpop.f32.mrb[0].mxu0
        %v1136 = vadd.f32 %v840, %v1135
        %v1137 = vpop.f32.mrb[0].mxu0
        %v1138 = vpop.f32.mrb[0].mxu0
        %v1139 = vadd.f32 %v840, %v1138
        %v1140 = vpop.f32.mrb[0].mxu0
        %1141 = vmatprep.mubr.bf16.mxu0 0
        %1142 = vmatmul.mubr.bf16.gmra.mrb[0].mxu0 %v910
        %v1143 = vpop.f32.mrb[0].mxu0
        %v1144 = vadd.f32 %v840, %v1143
        %v1145 = vpop.f32.mrb[0].mxu0
        %v1146 = vpop.f32.mrb[0].mxu0
        %v1147 = vadd.f32 %v840, %v1146
        %v1148 = vpop.f32.mrb[0].mxu0
        %1149 = vmatprep.mubr.bf16.mxu0 0
        %1150 = vmatmul.mubr.bf16.gmra.mrb[0].mxu0 %v913
        %v1151 = vpop.f32.mrb[0].mxu0
        %v1152 = vadd.f32 %v840, %v1151
        %v1153 = vpop.f32.mrb[0].mxu0
        %v1154 = vpop.f32.mrb[0].mxu0
        %v1155 = vadd.f32 %v840, %v1154
        %v1156 = vpop.f32.mrb[0].mxu0
        %1157 = vmatprep.mubr.bf16.mxu0 0
        %1158 = vmatmul.mubr.bf16.gmra.mrb[0].mxu0 %v916
        %v1159 = vpop.f32.mrb[0].mxu0
        %v1160 = vadd.f32 %v840, %v1159
        %v1161 = vpop.f32.mrb[0].mxu0
        %v1162 = vpop.f32.mrb[0].mxu0
        %v1163 = vadd.f32 %v840, %v1162
        %v1164 = vpop.f32.mrb[0].mxu0
        %1165 = vmatprep.mubr.bf16.mxu0 0
        %1166 = vmatmul.mubr.bf16.gmra.mrb[0].mxu0 %v919
        %v1167 = vpop.f32.mrb[0].mxu0
        %v1168 = vadd.f32 %v840, %v1167
        %v1169 = vpop.f32.mrb[0].mxu0
        %v1170 = vpop.f32.mrb[0].mxu0
        %v1171 = vadd.f32 %v840, %v1170
        %v1172 = vpop.f32.mrb[0].mxu0
        %1173 = vmatprep.mubr.bf16.mxu0 0
        %1174 = vmatmul.mubr.bf16.gmra.mrb[0].mxu0 %v922
        %v1175 = vpop.f32.mrb[0].mxu0
        %v1176 = vadd.f32 %v840, %v1175
        %v1177 = vpop.f32.mrb[0].mxu0
        %v1178 = vpop.f32.mrb[0].mxu0
        %v1179 = vadd.f32 %v840, %v1178
        %v1180 = vpop.f32.mrb[0].mxu0
        %1181 = vmatprep.mubr.bf16.mxu0 0
        %1182 = vmatmul.mubr.bf16.gmra.mrb[0].mxu0 %v925
        %v1183 = vpop.f32.mrb[0].mxu0
        %v1184 = vadd.f32 %v840, %v1183
        %v1185 = vpop.f32.mrb[0].mxu0
        %v1186 = vpop.f32.mrb[0].mxu0
        %v1187 = vadd.f32 %v840, %v1186
        %v1188 = vpop.f32.mrb[0].mxu0
        %1189 = vmatprep.mubr.bf16.mxu0 0
        %1190 = vmatmul.mubr.bf16.gmra.mrb[0].mxu0 %v928
        %v1191 = vpop.f32.mrb[0].mxu0
        %v1192 = vadd.f32 %v840, %v1191
        %v1193 = vpop.f32.mrb[0].mxu0
        %v1194 = vpop.f32.mrb[0].mxu0
        %v1195 = vadd.f32 %v840, %v1194
        %v1196 = vpop.f32.mrb[0].mxu0
        %1197 = vmatprep.mubr.bf16.mxu0 0
        %1198 = vmatmul.mubr.bf16.gmra.mrb[0].mxu0 %v931
        %v1199 = vpop.f32.mrb[0].mxu0
        %v1200 = vadd.f32 %v840, %v1199
        %v1201 = vpop.f32.mrb[0].mxu0
        %v1202 = vpop.f32.mrb[0].mxu0
        %v1203 = vadd.f32 %v840, %v1202
        %v1204 = vpop.f32.mrb[0].mxu0
        %1205 = vmatprep.mubr.bf16.mxu0 0
        %1206 = vmatmul.mubr.bf16.gmra.mrb[0].mxu0 %v934
        %v1207 = vpop.f32.mrb[0].mxu0
        %v1208 = vadd.f32 %v840, %v1207
        %v1209 = vpop.f32.mrb[0].mxu0
        %v1210 = vpop.f32.mrb[0].mxu0
        %v1211 = vadd.f32 %v840, %v1210
        %v1212 = vpop.f32.mrb[0].mxu0
        %1213 = vmatprep.mubr.bf16.mxu0 0
        %1214 = vmatmul.mubr.bf16.gmra.mrb[0].mxu0 %v937
        %v1215 = vpop.f32.mrb[0].mxu0
        %v1216 = vadd.f32 %v840, %v1215
        %v1217 = vpop.f32.mrb[0].mxu0
        %v1218 = vpop.f32.mrb[0].mxu0
        %v1219 = vadd.f32 %v840, %v1218
        %v1220 = vpop.f32.mrb[0].mxu0
        %1221 = vmatprep.mubr.bf16.mxu0 0
        %1222 = vmatmul.mubr.bf16.gmra.mrb[0].mxu0 %v940
        %v1223 = vpop.f32.mrb[0].mxu0
        %v1224 = vadd.f32 %v840, %v1223
        %v1225 = vpop.f32.mrb[0].mxu0
        %v1226 = vpop.f32.mrb[0].mxu0
        %v1227 = vadd.f32 %v840, %v1226
        %v1228 = vpop.f32.mrb[0].mxu0
        %1229 = vmatprep.mubr.bf16.mxu0 0
        %1230 = vmatmul.mubr.bf16.gmra.mrb[0].mxu0 %v943
        %v1231 = vpop.f32.mrb[0].mxu0
        %v1232 = vadd.f32 %v840, %v1231
        %v1233 = vpop.f32.mrb[0].mxu0
        %v1234 = vpop.f32.mrb[0].mxu0
        %v1235 = vadd.f32 %v840, %v1234
        %v1236 = vpop.f32.mrb[0].mxu0
        %1237 = vmatprep.mubr.bf16.mxu0 0
        %1238 = vmatmul.mubr.bf16.gmra.mrb[0].mxu0 %v946
        %v1239 = vpop.f32.mrb[0].mxu0
        %v1240 = vadd.f32 %v840, %v1239
        %v1241 = vpop.f32.mrb[0].mxu0
        %v1242 = vpop.f32.mrb[0].mxu0
        %v1243 = vadd.f32 %v840, %v1242
        %v1244 = vpop.f32.mrb[0].mxu0
        %1245 = vmatprep.mubr.bf16.mxu0 0
        %1246 = vmatmul.mubr.bf16.gmra.mrb[0].mxu0 %v949
        %v1247 = vpop.f32.mrb[0].mxu0
        %v1248 = vadd.f32 %v840, %v1247
        %v1249 = vpop.f32.mrb[0].mxu0
        %v1250 = vpop.f32.mrb[0].mxu0
        %v1251 = vadd.f32 %v840, %v1250
        %v1252 = vpop.f32.mrb[0].mxu0
        %1253 = vmatprep.mubr.bf16.mxu0 0
        %1254 = vmatmul.mubr.bf16.gmra.mrb[0].mxu0 %v952
        %v1255 = vpop.f32.mrb[0].mxu0
        %v1256 = vadd.f32 %v840, %v1255
        %v1257 = vpop.f32.mrb[0].mxu0
        %v1258 = vpop.f32.mrb[0].mxu0
        %v1259 = vadd.f32 %v840, %v1258
        %v1260 = vpop.f32.mrb[0].mxu0
        %1261 = vmatprep.mubr.bf16.mxu0 0
        %1262 = vmatmul.mubr.bf16.gmra.mrb[0].mxu0 %v955
        %v1263 = vpop.f32.mrb[0].mxu0
        %v1264 = vadd.f32 %v840, %v1263
        %v1265 = vpop.f32.mrb[0].mxu0
        %v1266 = vpop.f32.mrb[0].mxu0
        %v1267 = vadd.f32 %v840, %v1266
        %v1268 = vpop.f32.mrb[0].mxu0
        %1269 = vmatprep.mubr.bf16.mxu0 0
        %1270 = vmatmul.mubr.bf16.gmra.mrb[0].mxu0 %v958
        %v1271 = vpop.f32.mrb[0].mxu0
        %v1272 = vadd.f32 %v840, %v1271
        %v1273 = vpop.f32.mrb[0].mxu0
        %v1274 = vpop.f32.mrb[0].mxu0
        %v1275 = vadd.f32 %v840, %v1274
        %v1276 = vpop.f32.mrb[0].mxu0
        %1277 = vmatprep.mubr.bf16.mxu0 0
        %1278 = vmatmul.mubr.bf16.gmra.mrb[0].mxu0 %v961
        %v1279 = vpop.f32.mrb[0].mxu0
        %v1280 = vadd.f32 %v840, %v1279
        %v1281 = vpop.f32.mrb[0].mxu0
        %v1282 = vpop.f32.mrb[0].mxu0
        %v1283 = vadd.f32 %v840, %v1282
        %v1284 = vpop.f32.mrb[0].mxu0
        %1285 = vmatprep.mubr.bf16.mxu0 0
        %1286 = vmatmul.mubr.bf16.gmra.mrb[0].mxu0 %v964
        %v1287 = vpop.f32.mrb[0].mxu0
        %v1288 = vadd.f32 %v840, %v1287
        %v1289 = vpop.f32.mrb[0].mxu0
        %v1290 = vpop.f32.mrb[0].mxu0
        %v1291 = vadd.f32 %v840, %v1290
        %v1292 = vpop.f32.mrb[0].mxu0
        %1293 = vdwg.mxu0
        %v1294 = vmax.f32 %v1008, 0.0
        %v1295 = vmax.f32 %v1011, 0.0
        %v1296 = vmax.f32 %v1016, 0.0
        %v1297 = vmax.f32 %v1019, 0.0
        %v1298 = vmax.f32 %v1024, 0.0
        %v1299 = vmax.f32 %v1027, 0.0
        %v1300 = vmax.f32 %v1032, 0.0
        %v1301 = vmax.f32 %v1035, 0.0
        %v1302 = vmax.f32 %v1040, 0.0
        %v1303 = vmax.f32 %v1043, 0.0
        %v1304 = vmax.f32 %v1048, 0.0
        %v1305 = vmax.f32 %v1051, 0.0
        %v1306 = vmax.f32 %v1056, 0.0
        %v1307 = vmax.f32 %v1059, 0.0
        %v1308 = vmax.f32 %v1064, 0.0
        %v1309 = vmax.f32 %v1067, 0.0
        %v1310 = vmax.f32 %v1072, 0.0
        %v1311 = vmax.f32 %v1075, 0.0
        %v1312 = vmax.f32 %v1080, 0.0
        %v1313 = vmax.f32 %v1083, 0.0
        %v1314 = vmax.f32 %v1088, 0.0
        %v1315 = vmax.f32 %v1091, 0.0
        %v1316 = vmax.f32 %v1096, 0.0
        %v1317 = vmax.f32 %v1099, 0.0
        %v1318 = vmax.f32 %v1104, 0.0
        %v1319 = vmax.f32 %v1107, 0.0
        %v1320 = vmax.f32 %v1112, 0.0
        %v1321 = vmax.f32 %v1115, 0.0
        %v1322 = vmax.f32 %v1120, 0.0
        %v1323 = vmax.f32 %v1123, 0.0
        %v1324 = vmax.f32 %v1128, 0.0
        %v1325 = vmax.f32 %v1131, 0.0
        %v1326 = vmax.f32 %v1136, 0.0
        %v1327 = vmax.f32 %v1139, 0.0
        %v1328 = vmax.f32 %v1144, 0.0
        %v1329 = vmax.f32 %v1147, 0.0
        %v1330 = vmax.f32 %v1152, 0.0
        %v1331 = vmax.f32 %v1155, 0.0
        %v1332 = vmax.f32 %v1160, 0.0
        %v1333 = vmax.f32 %v1163, 0.0
        %v1334 = vmax.f32 %v1168, 0.0
        %v1335 = vmax.f32 %v1171, 0.0
        %v1336 = vmax.f32 %v1176, 0.0
        %v1337 = vmax.f32 %v1179, 0.0
        %v1338 = vmax.f32 %v1184, 0.0
        %v1339 = vmax.f32 %v1187, 0.0
        %v1340 = vmax.f32 %v1192, 0.0
        %v1341 = vmax.f32 %v1195, 0.0
        %v1342 = vmax.f32 %v1200, 0.0
        %v1343 = vmax.f32 %v1203, 0.0
        %v1344 = vmax.f32 %v1208, 0.0
        %v1345 = vmax.f32 %v1211, 0.0
        %v1346 = vmax.f32 %v1216, 0.0
        %v1347 = vmax.f32 %v1219, 0.0
        %v1348 = vmax.f32 %v1224, 0.0
        %v1349 = vmax.f32 %v1227, 0.0
        %v1350 = vmax.f32 %v1232, 0.0
        %v1351 = vmax.f32 %v1235, 0.0
        %v1352 = vmax.f32 %v1240, 0.0
        %v1353 = vmax.f32 %v1243, 0.0
        %v1354 = vmax.f32 %v1248, 0.0
        %v1355 = vmax.f32 %v1251, 0.0
        %v1356 = vmax.f32 %v1256, 0.0
        %v1357 = vmax.f32 %v1259, 0.0
        %v1358 = vmax.f32 %v1264, 0.0
        %v1359 = vmax.f32 %v1267, 0.0
        %v1360 = vmax.f32 %v1272, 0.0
        %v1361 = vmax.f32 %v1275, 0.0
        %v1362 = vmax.f32 %v1280, 0.0
        %v1363 = vmax.f32 %v1283, 0.0
        %v1364 = vmax.f32 %v1288, 0.0
        %v1365 = vmax.f32 %v1291, 0.0
        %v1366 = vpack.c.bf16 %v1295, %v1294
        %v1367 = vpack.c.bf16 %v1297, %v1296
        %v1368 = vpack.c.bf16 %v1299, %v1298
        %v1369 = vpack.c.bf16 %v1301, %v1300
        %v1370 = vpack.c.bf16 %v1303, %v1302
        %v1371 = vpack.c.bf16 %v1305, %v1304
        %v1372 = vpack.c.bf16 %v1307, %v1306
        %v1373 = vpack.c.bf16 %v1309, %v1308
        %v1374 = vpack.c.bf16 %v1311, %v1310
        %v1375 = vpack.c.bf16 %v1313, %v1312
        %v1376 = vpack.c.bf16 %v1315, %v1314
        %v1377 = vpack.c.bf16 %v1317, %v1316
        %v1378 = vpack.c.bf16 %v1319, %v1318
        %v1379 = vpack.c.bf16 %v1321, %v1320
        %v1380 = vpack.c.bf16 %v1323, %v1322
        %v1381 = vpack.c.bf16 %v1325, %v1324
        %v1382 = vpack.c.bf16 %v1327, %v1326
        %v1383 = vpack.c.bf16 %v1329, %v1328
        %v1384 = vpack.c.bf16 %v1331, %v1330
        %v1385 = vpack.c.bf16 %v1333, %v1332
        %v1386 = vpack.c.bf16 %v1335, %v1334
        %v1387 = vpack.c.bf16 %v1337, %v1336
        %v1388 = vpack.c.bf16 %v1339, %v1338
        %v1389 = vpack.c.bf16 %v1341, %v1340
        %v1390 = vpack.c.bf16 %v1343, %v1342
        %v1391 = vpack.c.bf16 %v1345, %v1344
        %v1392 = vpack.c.bf16 %v1347, %v1346
        %v1393 = vpack.c.bf16 %v1349, %v1348
        %v1394 = vpack.c.bf16 %v1351, %v1350
        %v1395 = vpack.c.bf16 %v1353, %v1352
        %v1396 = vpack.c.bf16 %v1355, %v1354
        %v1397 = vpack.c.bf16 %v1357, %v1356
        %v1398 = vpack.c.bf16 %v1359, %v1358
        %v1399 = vpack.c.bf16 %v1361, %v1360
        %v1400 = vpack.c.bf16 %v1363, %v1362
        %v1401 = vpack.c.bf16 %v1365, %v1364
        %s1402 = scalar_lea.vmem [#allocation2], 16
        %1403 = vst [vmem:[%s1402] sm:$0xff] %v1366
        %1404 = vst [vmem:[%s1402 + $0x8] sm:$0xff] %v1367
        %1405 = vst [vmem:[%s1402 + $0x10] sm:$0xff] %v1368
        %1406 = vst [vmem:[%s1402 + $0x18] sm:$0xff] %v1369
        %1407 = vst [vmem:[%s1402 + $0x20] sm:$0xff] %v1370
        %1408 = vst [vmem:[%s1402 + $0x28] sm:$0xff] %v1371
        %1409 = vst [vmem:[%s1402 + $0x30] sm:$0xff] %v1372
        %1410 = vst [vmem:[%s1402 + $0x38] sm:$0xff] %v1373
        %1411 = vst [vmem:[%s1402 + $0x40] sm:$0xff] %v1374
        %1412 = vst [vmem:[%s1402 + $0x48] sm:$0xff] %v1375
        %1413 = vst [vmem:[%s1402 + $0x50] sm:$0xff] %v1376
        %1414 = vst [vmem:[%s1402 + $0x58] sm:$0xff] %v1377
        %1415 = vst [vmem:[%s1402 + $0x60] sm:$0xff] %v1378
        %1416 = vst [vmem:[%s1402 + $0x68] sm:$0xff] %v1379
        %1417 = vst [vmem:[%s1402 + $0x70] sm:$0xff] %v1380
        %1418 = vst [vmem:[%s1402 + $0x78] sm:$0xff] %v1381
        %1419 = vst [vmem:[%s1402 + $0x80] sm:$0xff] %v1382
        %1420 = vst [vmem:[%s1402 + $0x88] sm:$0xff] %v1383
        %1421 = vst [vmem:[%s1402 + $0x90] sm:$0xff] %v1384
        %1422 = vst [vmem:[%s1402 + $0x98] sm:$0xff] %v1385
        %1423 = vst [vmem:[%s1402 + $0xa0] sm:$0xff] %v1386
        %1424 = vst [vmem:[%s1402 + $0xa8] sm:$0xff] %v1387
        %1425 = vst [vmem:[%s1402 + $0xb0] sm:$0xff] %v1388
        %1426 = vst [vmem:[%s1402 + $0xb8] sm:$0xff] %v1389
        %1427 = vst [vmem:[%s1402 + $0xc0] sm:$0xff] %v1390
        %1428 = vst [vmem:[%s1402 + $0xc8] sm:$0xff] %v1391
        %1429 = vst [vmem:[%s1402 + $0xd0] sm:$0xff] %v1392
        %1430 = vst [vmem:[%s1402 + $0xd8] sm:$0xff] %v1393
        %1431 = vst [vmem:[%s1402 + $0xe0] sm:$0xff] %v1394
        %1432 = vst [vmem:[%s1402 + $0xe8] sm:$0xff] %v1395
        %1433 = vst [vmem:[%s1402 + $0xf0] sm:$0xff] %v1396
        %1434 = vst [vmem:[%s1402 + $0xf8] sm:$0xff] %v1397
        %1435 = vst [vmem:[%s1402 + $0x100] sm:$0xff] %v1398
        %1436 = vst [vmem:[%s1402 + $0x108] sm:$0xff] %v1399
        %1437 = vst [vmem:[%s1402 + $0x110] sm:$0xff] %v1400
        %1438 = vst [vmem:[%s1402 + $0x118] sm:$0xff] %v1401
        %v1439 = vld [vmem:[#allocation2] sm:$0xff]
        %v1440 = vld [vmem:[#allocation2 + $0x8] sm:$0xff]
        %v1441 = vld [vmem:[#allocation2 + $0x10] sm:$0xff]
        %v1442 = vld [vmem:[#allocation2 + $0x18] sm:$0xff]
        %v1443 = vld [vmem:[#allocation2 + $0x20] sm:$0xff]
        %v1444 = vld [vmem:[#allocation2 + $0x28] sm:$0xff]
        %v1445 = vld [vmem:[#allocation2 + $0x30] sm:$0xff]
        %v1446 = vld [vmem:[#allocation2 + $0x38] sm:$0xff]
        %v1447 = vld [vmem:[#allocation2 + $0x40] sm:$0xff]
        %v1448 = vld [vmem:[#allocation2 + $0x48] sm:$0xff]
        %v1449 = vld [vmem:[#allocation2 + $0x50] sm:$0xff]
        %v1450 = vld [vmem:[#allocation2 + $0x58] sm:$0xff]
        %v1451 = vld [vmem:[#allocation2 + $0x60] sm:$0xff]
        %v1452 = vld [vmem:[#allocation2 + $0x68] sm:$0xff]
        %v1453 = vld [vmem:[#allocation2 + $0x70] sm:$0xff]
        %v1454 = vld [vmem:[#allocation2 + $0x78] sm:$0xff]
        %v1455 = vld [vmem:[#allocation2 + $0x80] sm:$0xff]
        %v1456 = vld [vmem:[#allocation2 + $0x88] sm:$0xff]
        %v1457 = vld [vmem:[#allocation2 + $0x90] sm:$0xff]
        %v1458 = vld [vmem:[#allocation2 + $0x98] sm:$0xff]
        %v1459 = vld [vmem:[#allocation2 + $0xa0] sm:$0xff]
        %v1460 = vld [vmem:[#allocation2 + $0xa8] sm:$0xff]
        %v1461 = vld [vmem:[#allocation2 + $0xb0] sm:$0xff]
        %v1462 = vld [vmem:[#allocation2 + $0xb8] sm:$0xff]
        %v1463 = vld [vmem:[#allocation2 + $0xc0] sm:$0xff]
        %v1464 = vld [vmem:[#allocation2 + $0xc8] sm:$0xff]
        %v1465 = vld [vmem:[#allocation2 + $0xd0] sm:$0xff]
        %v1466 = vld [vmem:[#allocation2 + $0xd8] sm:$0xff]
        %v1467 = vld [vmem:[#allocation2 + $0xe0] sm:$0xff]
        %v1468 = vld [vmem:[#allocation2 + $0xe8] sm:$0xff]
        %v1469 = vld [vmem:[#allocation2 + $0xf0] sm:$0xff]
        %v1470 = vld [vmem:[#allocation2 + $0xf8] sm:$0xff]
        %v1471 = vld [vmem:[#allocation2 + $0x100] sm:$0xff]
        %v1472 = vld [vmem:[#allocation2 + $0x108] sm:$0xff]
        %v1473 = vld [vmem:[#allocation2 + $0x110] sm:$0xff]
        %v1474 = vld [vmem:[#allocation2 + $0x118] sm:$0xff]
        %s1475 = scalar_lea.vmem [#allocation2], 8
        %v1476 = vld [vmem:[%s1475] sm:$0xff]
        %v1477 = vld [vmem:[%s1475 + $0x8] sm:$0xff]
        %v1478 = vld [vmem:[%s1475 + $0x10] sm:$0xff]
        %v1479 = vld [vmem:[%s1475 + $0x18] sm:$0xff]
        %v1480 = vld [vmem:[%s1475 + $0x20] sm:$0xff]
        %v1481 = vld [vmem:[%s1475 + $0x28] sm:$0xff]
        %v1482 = vld [vmem:[%s1475 + $0x30] sm:$0xff]
        %v1483 = vld [vmem:[%s1475 + $0x38] sm:$0xff]
        %v1484 = vld [vmem:[%s1475 + $0x40] sm:$0xff]
        %v1485 = vld [vmem:[%s1475 + $0x48] sm:$0xff]
        %v1486 = vld [vmem:[%s1475 + $0x50] sm:$0xff]
        %v1487 = vld [vmem:[%s1475 + $0x58] sm:$0xff]
        %v1488 = vld [vmem:[%s1475 + $0x60] sm:$0xff]
        %v1489 = vld [vmem:[%s1475 + $0x68] sm:$0xff]
        %v1490 = vld [vmem:[%s1475 + $0x70] sm:$0xff]
        %v1491 = vld [vmem:[%s1475 + $0x78] sm:$0xff]
        %v1492 = vld [vmem:[%s1475 + $0x80] sm:$0xff]
        %v1493 = vld [vmem:[%s1475 + $0x88] sm:$0xff]
        %v1494 = vld [vmem:[%s1475 + $0x90] sm:$0xff]
        %v1495 = vld [vmem:[%s1475 + $0x98] sm:$0xff]
        %v1496 = vld [vmem:[%s1475 + $0xa0] sm:$0xff]
        %v1497 = vld [vmem:[%s1475 + $0xa8] sm:$0xff]
        %v1498 = vld [vmem:[%s1475 + $0xb0] sm:$0xff]
        %v1499 = vld [vmem:[%s1475 + $0xb8] sm:$0xff]
        %v1500 = vld [vmem:[%s1475 + $0xc0] sm:$0xff]
        %v1501 = vld [vmem:[%s1475 + $0xc8] sm:$0xff]
        %v1502 = vld [vmem:[%s1475 + $0xd0] sm:$0xff]
        %v1503 = vld [vmem:[%s1475 + $0xd8] sm:$0xff]
        %v1504 = vld [vmem:[%s1475 + $0xe0] sm:$0xff]
        %v1505 = vld [vmem:[%s1475 + $0xe8] sm:$0xff]
        %v1506 = vld [vmem:[%s1475 + $0xf0] sm:$0xff]
        %v1507 = vld [vmem:[%s1475 + $0xf8] sm:$0xff]
        %v1508 = vld [vmem:[%s1475 + $0x100] sm:$0xff]
        %v1509 = vld [vmem:[%s1475 + $0x108] sm:$0xff]
        %v1510 = vld [vmem:[%s1475 + $0x110] sm:$0xff]
        %v1511 = vld [vmem:[%s1475 + $0x118] sm:$0xff]
        %v1512 = vld [vmem:[%s1402] sm:$0xff]
        %v1513 = vld [vmem:[%s1402 + $0x8] sm:$0xff]
        %v1514 = vld [vmem:[%s1402 + $0x10] sm:$0xff]
        %v1515 = vld [vmem:[%s1402 + $0x18] sm:$0xff]
        %v1516 = vld [vmem:[%s1402 + $0x20] sm:$0xff]
        %v1517 = vld [vmem:[%s1402 + $0x28] sm:$0xff]
        %v1518 = vld [vmem:[%s1402 + $0x30] sm:$0xff]
        %v1519 = vld [vmem:[%s1402 + $0x38] sm:$0xff]
        %v1520 = vld [vmem:[%s1402 + $0x40] sm:$0xff]
        %v1521 = vld [vmem:[%s1402 + $0x48] sm:$0xff]
        %v1522 = vld [vmem:[%s1402 + $0x50] sm:$0xff]
        %v1523 = vld [vmem:[%s1402 + $0x58] sm:$0xff]
        %v1524 = vld [vmem:[%s1402 + $0x60] sm:$0xff]
        %v1525 = vld [vmem:[%s1402 + $0x68] sm:$0xff]
        %v1526 = vld [vmem:[%s1402 + $0x70] sm:$0xff]
        %v1527 = vld [vmem:[%s1402 + $0x78] sm:$0xff]
        %v1528 = vld [vmem:[%s1402 + $0x80] sm:$0xff]
        %v1529 = vld [vmem:[%s1402 + $0x88] sm:$0xff]
        %v1530 = vld [vmem:[%s1402 + $0x90] sm:$0xff]
        %v1531 = vld [vmem:[%s1402 + $0x98] sm:$0xff]
        %v1532 = vld [vmem:[%s1402 + $0xa0] sm:$0xff]
        %v1533 = vld [vmem:[%s1402 + $0xa8] sm:$0xff]
        %v1534 = vld [vmem:[%s1402 + $0xb0] sm:$0xff]
        %v1535 = vld [vmem:[%s1402 + $0xb8] sm:$0xff]
        %v1536 = vld [vmem:[%s1402 + $0xc0] sm:$0xff]
        %v1537 = vld [vmem:[%s1402 + $0xc8] sm:$0xff]
        %v1538 = vld [vmem:[%s1402 + $0xd0] sm:$0xff]
        %v1539 = vld [vmem:[%s1402 + $0xd8] sm:$0xff]
        %v1540 = vld [vmem:[%s1402 + $0xe0] sm:$0xff]
        %v1541 = vld [vmem:[%s1402 + $0xe8] sm:$0xff]
        %v1542 = vld [vmem:[%s1402 + $0xf0] sm:$0xff]
        %v1543 = vld [vmem:[%s1402 + $0xf8] sm:$0xff]
        %v1544 = vld [vmem:[%s1402 + $0x100] sm:$0xff]
        %v1545 = vld [vmem:[%s1402 + $0x108] sm:$0xff]
        %v1546 = vld [vmem:[%s1402 + $0x110] sm:$0xff]
        %v1547 = vld [vmem:[%s1402 + $0x118] sm:$0xff]
        %s1548 = scalar_lea.vmem [#allocation2], 24
        %v1549 = vld [vmem:[%s1548] sm:$0xff]
        %v1550 = vld [vmem:[%s1548 + $0x8] sm:$0xff]
        %v1551 = vld [vmem:[%s1548 + $0x10] sm:$0xff]
        %v1552 = vld [vmem:[%s1548 + $0x18] sm:$0xff]
        %v1553 = vld [vmem:[%s1548 + $0x20] sm:$0xff]
        %v1554 = vld [vmem:[%s1548 + $0x28] sm:$0xff]
        %v1555 = vld [vmem:[%s1548 + $0x30] sm:$0xff]
        %v1556 = vld [vmem:[%s1548 + $0x38] sm:$0xff]
        %v1557 = vld [vmem:[%s1548 + $0x40] sm:$0xff]
        %v1558 = vld [vmem:[%s1548 + $0x48] sm:$0xff]
        %v1559 = vld [vmem:[%s1548 + $0x50] sm:$0xff]
        %v1560 = vld [vmem:[%s1548 + $0x58] sm:$0xff]
        %v1561 = vld [vmem:[%s1548 + $0x60] sm:$0xff]
        %v1562 = vld [vmem:[%s1548 + $0x68] sm:$0xff]
        %v1563 = vld [vmem:[%s1548 + $0x70] sm:$0xff]
        %v1564 = vld [vmem:[%s1548 + $0x78] sm:$0xff]
        %v1565 = vld [vmem:[%s1548 + $0x80] sm:$0xff]
        %v1566 = vld [vmem:[%s1548 + $0x88] sm:$0xff]
        %v1567 = vld [vmem:[%s1548 + $0x90] sm:$0xff]
        %v1568 = vld [vmem:[%s1548 + $0x98] sm:$0xff]
        %v1569 = vld [vmem:[%s1548 + $0xa0] sm:$0xff]
        %v1570 = vld [vmem:[%s1548 + $0xa8] sm:$0xff]
        %v1571 = vld [vmem:[%s1548 + $0xb0] sm:$0xff]
        %v1572 = vld [vmem:[%s1548 + $0xb8] sm:$0xff]
        %v1573 = vld [vmem:[%s1548 + $0xc0] sm:$0xff]
        %v1574 = vld [vmem:[%s1548 + $0xc8] sm:$0xff]
        %v1575 = vld [vmem:[%s1548 + $0xd0] sm:$0xff]
        %v1576 = vld [vmem:[%s1548 + $0xd8] sm:$0xff]
        %v1577 = vld [vmem:[%s1548 + $0xe0] sm:$0xff]
        %v1578 = vld [vmem:[%s1548 + $0xe8] sm:$0xff]
        %v1579 = vld [vmem:[%s1548 + $0xf0] sm:$0xff]
        %v1580 = vld [vmem:[%s1548 + $0xf8] sm:$0xff]
        %v1581 = vld [vmem:[%s1548 + $0x100] sm:$0xff]
        %v1582 = vld [vmem:[%s1548 + $0x108] sm:$0xff]
        %v1583 = vld [vmem:[%s1548 + $0x110] sm:$0xff]
        %v1584 = vld [vmem:[%s1548 + $0x118] sm:$0xff]
        %s1585 = scalar_lea.vmem [#allocation2], 32
        %v1586 = vld [vmem:[%s1585] sm:$0xff]
        %v1587 = vld [vmem:[%s1585 + $0x8] sm:$0xff]
        %v1588 = vld [vmem:[%s1585 + $0x10] sm:$0xff]
        %v1589 = vld [vmem:[%s1585 + $0x18] sm:$0xff]
        %v1590 = vld [vmem:[%s1585 + $0x20] sm:$0xff]
        %v1591 = vld [vmem:[%s1585 + $0x28] sm:$0xff]
        %v1592 = vld [vmem:[%s1585 + $0x30] sm:$0xff]
        %v1593 = vld [vmem:[%s1585 + $0x38] sm:$0xff]
        %v1594 = vld [vmem:[%s1585 + $0x40] sm:$0xff]
        %v1595 = vld [vmem:[%s1585 + $0x48] sm:$0xff]
        %v1596 = vld [vmem:[%s1585 + $0x50] sm:$0xff]
        %v1597 = vld [vmem:[%s1585 + $0x58] sm:$0xff]
        %v1598 = vld [vmem:[%s1585 + $0x60] sm:$0xff]
        %v1599 = vld [vmem:[%s1585 + $0x68] sm:$0xff]
        %v1600 = vld [vmem:[%s1585 + $0x70] sm:$0xff]
        %v1601 = vld [vmem:[%s1585 + $0x78] sm:$0xff]
        %v1602 = vld [vmem:[%s1585 + $0x80] sm:$0xff]
        %v1603 = vld [vmem:[%s1585 + $0x88] sm:$0xff]
        %v1604 = vld [vmem:[%s1585 + $0x90] sm:$0xff]
        %v1605 = vld [vmem:[%s1585 + $0x98] sm:$0xff]
        %v1606 = vld [vmem:[%s1585 + $0xa0] sm:$0xff]
        %v1607 = vld [vmem:[%s1585 + $0xa8] sm:$0xff]
        %v1608 = vld [vmem:[%s1585 + $0xb0] sm:$0xff]
        %v1609 = vld [vmem:[%s1585 + $0xb8] sm:$0xff]
        %v1610 = vld [vmem:[%s1585 + $0xc0] sm:$0xff]
        %v1611 = vld [vmem:[%s1585 + $0xc8] sm:$0xff]
        %v1612 = vld [vmem:[%s1585 + $0xd0] sm:$0xff]
        %v1613 = vld [vmem:[%s1585 + $0xd8] sm:$0xff]
        %v1614 = vld [vmem:[%s1585 + $0xe0] sm:$0xff]
        %v1615 = vld [vmem:[%s1585 + $0xe8] sm:$0xff]
        %v1616 = vld [vmem:[%s1585 + $0xf0] sm:$0xff]
        %v1617 = vld [vmem:[%s1585 + $0xf8] sm:$0xff]
        %v1618 = vld [vmem:[%s1585 + $0x100] sm:$0xff]
        %v1619 = vld [vmem:[%s1585 + $0x108] sm:$0xff]
        %v1620 = vld [vmem:[%s1585 + $0x110] sm:$0xff]
        %v1621 = vld [vmem:[%s1585 + $0x118] sm:$0xff]
        %v1622 = vld [vmem:[%s3] sm:$0xf]
        %v1623 = vld [vmem:[%s3 + $0x4] sm:$0xf]
        %v1624 = vld [vmem:[%s3 + $0x8] sm:$0xf]
        %v1625 = vld [vmem:[%s3 + $0xc] sm:$0xf]
        %v1626 = vld [vmem:[%s3 + $0x10] sm:$0xf]
        %v1627 = vld [vmem:[%s3 + $0x14] sm:$0xf]
        %v1628 = vld [vmem:[%s3 + $0x18] sm:$0xf]
        %v1629 = vld [vmem:[%s3 + $0x1c] sm:$0xf]
        %v1630 = vld [vmem:[%s3 + $0x20] sm:$0xf]
        %v1631 = vld [vmem:[%s3 + $0x24] sm:$0xf]
        %v1632 = vld [vmem:[%s3 + $0x28] sm:$0xf]
        %v1633 = vld [vmem:[%s3 + $0x2c] sm:$0xf]
        %v1634 = vld [vmem:[%s3 + $0x30] sm:$0xf]
        %v1635 = vld [vmem:[%s3 + $0x34] sm:$0xf]
        %v1636 = vld [vmem:[%s3 + $0x38] sm:$0xf]
        %v1637 = vld [vmem:[%s3 + $0x3c] sm:$0xf]
        %v1638 = vld [vmem:[%s3 + $0x40] sm:$0xf]
        %v1639 = vld [vmem:[%s3 + $0x44] sm:$0xf]
        %v1640 = vld [vmem:[%s3 + $0x48] sm:$0xf]
        %v1641 = vld [vmem:[%s3 + $0x4c] sm:$0xf]
        %v1642 = vld [vmem:[%s3 + $0x50] sm:$0xf]
        %v1643 = vld [vmem:[%s3 + $0x54] sm:$0xf]
        %v1644 = vld [vmem:[%s3 + $0x58] sm:$0xf]
        %v1645 = vld [vmem:[%s3 + $0x5c] sm:$0xf]
        %v1646 = vld [vmem:[%s3 + $0x60] sm:$0xf]
        %v1647 = vld [vmem:[%s3 + $0x64] sm:$0xf]
        %v1648 = vld [vmem:[%s3 + $0x68] sm:$0xf]
        %v1649 = vld [vmem:[%s3 + $0x6c] sm:$0xf]
        %v1650 = vld [vmem:[%s3 + $0x70] sm:$0xf]
        %v1651 = vld [vmem:[%s3 + $0x74] sm:$0xf]
        %v1652 = vld [vmem:[%s3 + $0x78] sm:$0xf]
        %v1653 = vld [vmem:[%s3 + $0x7c] sm:$0xf]
        %v1654 = vld [vmem:[%s3 + $0x80] sm:$0xf]
        %v1655 = vld [vmem:[%s3 + $0x84] sm:$0xf]
        %v1656 = vld [vmem:[%s3 + $0x88] sm:$0xf]
        %v1657 = vld [vmem:[%s3 + $0x8c] sm:$0xf]
        %v1658 = vld [vmem:[%s3 + $0x90] sm:$0xf]
        %v1659 = vld [vmem:[%s3 + $0x94] sm:$0xf]
        %v1660 = vld [vmem:[%s3 + $0x98] sm:$0xf]
        %v1661 = vld [vmem:[%s3 + $0x9c] sm:$0xf]
        %v1662 = vld [vmem:[%s3 + $0xa0] sm:$0xf]
        %v1663 = vld [vmem:[%s3 + $0xa4] sm:$0xf]
        %v1664 = vld [vmem:[%s3 + $0xa8] sm:$0xf]
        %v1665 = vld [vmem:[%s3 + $0xac] sm:$0xf]
        %v1666 = vld [vmem:[%s3 + $0xb0] sm:$0xf]
        %v1667 = vld [vmem:[%s3 + $0xb4] sm:$0xf]
        %v1668 = vld [vmem:[%s3 + $0xb8] sm:$0xf]
        %v1669 = vld [vmem:[%s3 + $0xbc] sm:$0xf]
        %v1670 = vld [vmem:[%s3 + $0xc0] sm:$0xf]
        %v1671 = vld [vmem:[%s3 + $0xc4] sm:$0xf]
        %v1672 = vld [vmem:[%s3 + $0xc8] sm:$0xf]
        %v1673 = vld [vmem:[%s3 + $0xcc] sm:$0xf]
        %v1674 = vld [vmem:[%s3 + $0xd0] sm:$0xf]
        %v1675 = vld [vmem:[%s3 + $0xd4] sm:$0xf]
        %v1676 = vld [vmem:[%s3 + $0xd8] sm:$0xf]
        %v1677 = vld [vmem:[%s3 + $0xdc] sm:$0xf]
        %v1678 = vld [vmem:[%s3 + $0xe0] sm:$0xf]
        %v1679 = vld [vmem:[%s3 + $0xe4] sm:$0xf]
        %v1680 = vld [vmem:[%s3 + $0xe8] sm:$0xf]
        %v1681 = vld [vmem:[%s3 + $0xec] sm:$0xf]
        %v1682 = vld [vmem:[%s3 + $0xf0] sm:$0xf]
        %v1683 = vld [vmem:[%s3 + $0xf4] sm:$0xf]
        %v1684 = vld [vmem:[%s3 + $0xf8] sm:$0xf]
        %v1685 = vld [vmem:[%s3 + $0xfc] sm:$0xf]
        %v1686 = vld [vmem:[%s3 + $0x100] sm:$0xf]
        %v1687 = vld [vmem:[%s3 + $0x104] sm:$0xf]
        %v1688 = vld [vmem:[%s3 + $0x108] sm:$0xf]
        %v1689 = vld [vmem:[%s3 + $0x10c] sm:$0xf]
        %v1690 = vld [vmem:[%s3 + $0x110] sm:$0xf]
        %v1691 = vld [vmem:[%s3 + $0x114] sm:$0xf]
        %v1692 = vld [vmem:[%s3 + $0x118] sm:$0xf]
        %v1693 = vld [vmem:[%s3 + $0x11c] sm:$0xf]
        %v1694 = vld [vmem:[%s3 + $0x120] sm:$0xf]
        %v1695 = vld [vmem:[%s3 + $0x124] sm:$0xf]
        %v1696 = vld [vmem:[%s3 + $0x128] sm:$0xf]
        %v1697 = vld [vmem:[%s3 + $0x12c] sm:$0xf]
        %v1698 = vld [vmem:[%s3 + $0x130] sm:$0xf]
        %v1699 = vld [vmem:[%s3 + $0x134] sm:$0xf]
        %v1700 = vld [vmem:[%s3 + $0x138] sm:$0xf]
        %v1701 = vld [vmem:[%s3 + $0x13c] sm:$0xf]
        %v1702 = vld [vmem:[%s4] sm:$0x1]
        %v1704 = vlaneseq
        %v1705 = vshrl.u32 %v1704, 7
        %v1706 = vsub.s32 0, %v1705
        %v1707 = vrot.slane %v1702, %v1706
        %v1789 = vunpack.c.l.b16 %v1622
        %v1790 = vunpack.c.l.b16 %v1623
        %v1791 = vunpack.c.l.b16 %v1624
        %v1792 = vunpack.c.l.b16 %v1625
        %v1793 = vunpack.c.l.b16 %v1626
        %v1794 = vunpack.c.l.b16 %v1627
        %v1795 = vunpack.c.l.b16 %v1628
        %v1796 = vunpack.c.l.b16 %v1629
        %v1797 = vunpack.c.l.b16 %v1630
        %v1798 = vunpack.c.l.b16 %v1631
        %v1799 = vunpack.c.l.b16 %v1632
        %v1800 = vunpack.c.l.b16 %v1633
        %v1801 = vunpack.c.l.b16 %v1634
        %v1802 = vunpack.c.l.b16 %v1635
        %v1803 = vunpack.c.l.b16 %v1636
        %v1804 = vunpack.c.l.b16 %v1637
        %v1805 = vunpack.c.l.b16 %v1638
        %v1806 = vunpack.c.l.b16 %v1639
        %v1807 = vunpack.c.l.b16 %v1640
        %v1808 = vunpack.c.l.b16 %v1641
        %v1809 = vunpack.c.l.b16 %v1642
        %v1810 = vunpack.c.l.b16 %v1643
        %v1811 = vunpack.c.l.b16 %v1644
        %v1812 = vunpack.c.l.b16 %v1645
        %v1813 = vunpack.c.l.b16 %v1646
        %v1814 = vunpack.c.l.b16 %v1647
        %v1815 = vunpack.c.l.b16 %v1648
        %v1816 = vunpack.c.l.b16 %v1649
        %v1817 = vunpack.c.l.b16 %v1650
        %v1818 = vunpack.c.l.b16 %v1651
        %v1819 = vunpack.c.l.b16 %v1652
        %v1820 = vunpack.c.l.b16 %v1653
        %v1821 = vunpack.c.l.b16 %v1654
        %v1822 = vunpack.c.l.b16 %v1655
        %v1823 = vunpack.c.l.b16 %v1656
        %v1824 = vunpack.c.l.b16 %v1657
        %v1825 = vunpack.c.l.b16 %v1658
        %v1826 = vunpack.c.l.b16 %v1659
        %v1827 = vunpack.c.l.b16 %v1660
        %v1828 = vunpack.c.l.b16 %v1661
        %v1829 = vunpack.c.l.b16 %v1662
        %v1830 = vunpack.c.l.b16 %v1663
        %v1831 = vunpack.c.l.b16 %v1664
        %v1832 = vunpack.c.l.b16 %v1665
        %v1833 = vunpack.c.l.b16 %v1666
        %v1834 = vunpack.c.l.b16 %v1667
        %v1835 = vunpack.c.l.b16 %v1668
        %v1836 = vunpack.c.l.b16 %v1669
        %v1837 = vunpack.c.l.b16 %v1670
        %v1838 = vunpack.c.l.b16 %v1671
        %v1839 = vunpack.c.l.b16 %v1672
        %v1840 = vunpack.c.l.b16 %v1673
        %v1841 = vunpack.c.l.b16 %v1674
        %v1842 = vunpack.c.l.b16 %v1675
        %v1843 = vunpack.c.l.b16 %v1676
        %v1844 = vunpack.c.l.b16 %v1677
        %v1845 = vunpack.c.l.b16 %v1678
        %v1846 = vunpack.c.l.b16 %v1679
        %v1847 = vunpack.c.l.b16 %v1680
        %v1848 = vunpack.c.l.b16 %v1681
        %v1849 = vunpack.c.l.b16 %v1682
        %v1850 = vunpack.c.l.b16 %v1683
        %v1851 = vunpack.c.l.b16 %v1684
        %v1852 = vunpack.c.l.b16 %v1685
        %v1853 = vunpack.c.l.b16 %v1686
        %v1854 = vunpack.c.l.b16 %v1687
        %v1855 = vunpack.c.l.b16 %v1688
        %v1856 = vunpack.c.l.b16 %v1689
        %v1857 = vunpack.c.l.b16 %v1690
        %v1858 = vunpack.c.l.b16 %v1691
        %v1859 = vunpack.c.l.b16 %v1692
        %v1860 = vunpack.c.l.b16 %v1693
        %v1861 = vunpack.c.l.b16 %v1694
        %v1862 = vunpack.c.l.b16 %v1695
        %v1863 = vunpack.c.l.b16 %v1696
        %v1864 = vunpack.c.l.b16 %v1697
        %v1865 = vunpack.c.l.b16 %v1698
        %v1866 = vunpack.c.l.b16 %v1699
        %v1867 = vunpack.c.l.b16 %v1700
        %v1868 = vunpack.c.l.b16 %v1701
        %v1869 = vpack.c.b16 %v1790, %v1789
        %v1870 = vpack.c.b16 %v1792, %v1791
        %v1871 = vpack.c.b16 %v1794, %v1793
        %v1872 = vpack.c.b16 %v1796, %v1795
        %v1873 = vpack.c.b16 %v1798, %v1797
        %v1874 = vpack.c.b16 %v1800, %v1799
        %v1875 = vpack.c.b16 %v1802, %v1801
        %v1876 = vpack.c.b16 %v1804, %v1803
        %v1877 = vpack.c.b16 %v1806, %v1805
        %v1878 = vpack.c.b16 %v1808, %v1807
        %v1879 = vpack.c.b16 %v1810, %v1809
        %v1880 = vpack.c.b16 %v1812, %v1811
        %v1881 = vpack.c.b16 %v1814, %v1813
        %v1882 = vpack.c.b16 %v1816, %v1815
        %v1883 = vpack.c.b16 %v1818, %v1817
        %v1884 = vpack.c.b16 %v1820, %v1819
        %v1885 = vpack.c.b16 %v1822, %v1821
        %v1886 = vpack.c.b16 %v1824, %v1823
        %v1887 = vpack.c.b16 %v1826, %v1825
        %v1888 = vpack.c.b16 %v1828, %v1827
        %v1889 = vpack.c.b16 %v1830, %v1829
        %v1890 = vpack.c.b16 %v1832, %v1831
        %v1891 = vpack.c.b16 %v1834, %v1833
        %v1892 = vpack.c.b16 %v1836, %v1835
        %v1893 = vpack.c.b16 %v1838, %v1837
        %v1894 = vpack.c.b16 %v1840, %v1839
        %v1895 = vpack.c.b16 %v1842, %v1841
        %v1896 = vpack.c.b16 %v1844, %v1843
        %v1897 = vpack.c.b16 %v1846, %v1845
        %v1898 = vpack.c.b16 %v1848, %v1847
        %v1899 = vpack.c.b16 %v1850, %v1849
        %v1900 = vpack.c.b16 %v1852, %v1851
        %v1901 = vpack.c.b16 %v1854, %v1853
        %v1902 = vpack.c.b16 %v1856, %v1855
        %v1903 = vpack.c.b16 %v1858, %v1857
        %v1904 = vpack.c.b16 %v1860, %v1859
        %v1905 = vpack.c.b16 %v1862, %v1861
        %v1906 = vpack.c.b16 %v1864, %v1863
        %v1907 = vpack.c.b16 %v1866, %v1865
        %v1908 = vpack.c.b16 %v1868, %v1867
        %1949 = vmatprep.subr.bf16.mxu0 0
        %1950 = vmatpush1.bf16.msra.mxu0 %v1869
        %1951 = vmatprep.subr.bf16.mxu0 0
        %1952 = vmatpush1.bf16.msra.mxu0 %v1870
        %1953 = vmatprep.subr.bf16.mxu0 0
        %1954 = vmatpush1.bf16.msra.mxu0 %v1871
        %1955 = vmatprep.subr.bf16.mxu0 0
        %1956 = vmatpush1.bf16.msra.mxu0 %v1872
        %1957 = vmatprep.subr.bf16.mxu0 0
        %1958 = vmatpush1.bf16.msra.mxu0 %v1873
        %1959 = vmatprep.subr.bf16.mxu0 0
        %1960 = vmatpush1.bf16.msra.mxu0 %v1874
        %1961 = vmatprep.subr.bf16.mxu0 0
        %1962 = vmatpush1.bf16.msra.mxu0 %v1875
        %1963 = vmatprep.subr.bf16.mxu0 0
        %1964 = vmatpush1.bf16.msra.mxu0 %v1876
        %1965 = vmatprep.subr.bf16.mxu0 0
        %1966 = vmatpush1.bf16.msra.mxu0 %v1877
        %1967 = vmatprep.subr.bf16.mxu0 0
        %1968 = vmatpush1.bf16.msra.mxu0 %v1878
        %1969 = vmatprep.subr.bf16.mxu0 0
        %1970 = vmatpush1.bf16.msra.mxu0 %v1879
        %1971 = vmatprep.subr.bf16.mxu0 0
        %1972 = vmatpush1.bf16.msra.mxu0 %v1880
        %1973 = vmatprep.subr.bf16.mxu0 0
        %1974 = vmatpush1.bf16.msra.mxu0 %v1881
        %1975 = vmatprep.subr.bf16.mxu0 0
        %1976 = vmatpush1.bf16.msra.mxu0 %v1882
        %1977 = vmatprep.subr.bf16.mxu0 0
        %1978 = vmatpush1.bf16.msra.mxu0 %v1883
        %1979 = vmatprep.subr.bf16.mxu0 0
        %1980 = vmatpush1.bf16.msra.mxu0 %v1884
        %1981 = vmatprep.mubr.bf16.mxu0 %v1476
        %1982 = vmatmul.mubr.bf16.gmra.mrb[0].mxu0 %v1439
        %v1983 = vpop.f32.mrb[0].mxu0
        %v1984 = vadd.f32 %v1707, %v1983
        %v1985 = vpop.f32.mrb[0].mxu0
        %v1986 = vpop.f32.mrb[0].mxu0
        %v1987 = vadd.f32 %v1707, %v1986
        %v1988 = vpop.f32.mrb[0].mxu0
        %1989 = vmatprep.mubr.bf16.mxu0 %v1477
        %1990 = vmatmul.mubr.bf16.gmra.mrb[0].mxu0 %v1440
        %v1991 = vpop.f32.mrb[0].mxu0
        %v1992 = vadd.f32 %v1707, %v1991
        %v1993 = vpop.f32.mrb[0].mxu0
        %v1994 = vpop.f32.mrb[0].mxu0
        %v1995 = vadd.f32 %v1707, %v1994
        %v1996 = vpop.f32.mrb[0].mxu0
        %1997 = vmatprep.mubr.bf16.mxu0 %v1478
        %1998 = vmatmul.mubr.bf16.gmra.mrb[0].mxu0 %v1441
        %v1999 = vpop.f32.mrb[0].mxu0
        %v2000 = vadd.f32 %v1707, %v1999
        %v2001 = vpop.f32.mrb[0].mxu0
        %v2002 = vpop.f32.mrb[0].mxu0
        %v2003 = vadd.f32 %v1707, %v2002
        %v2004 = vpop.f32.mrb[0].mxu0
        %2005 = vmatprep.mubr.bf16.mxu0 %v1479
        %2006 = vmatmul.mubr.bf16.gmra.mrb[0].mxu0 %v1442
        %v2007 = vpop.f32.mrb[0].mxu0
        %v2008 = vadd.f32 %v1707, %v2007
        %v2009 = vpop.f32.mrb[0].mxu0
        %v2010 = vpop.f32.mrb[0].mxu0
        %v2011 = vadd.f32 %v1707, %v2010
        %v2012 = vpop.f32.mrb[0].mxu0
        %2013 = vmatprep.mubr.bf16.mxu0 %v1480
        %2014 = vmatmul.mubr.bf16.gmra.mrb[0].mxu0 %v1443
        %v2015 = vpop.f32.mrb[0].mxu0
        %v2016 = vadd.f32 %v1707, %v2015
        %v2017 = vpop.f32.mrb[0].mxu0
        %v2018 = vpop.f32.mrb[0].mxu0
        %v2019 = vadd.f32 %v1707, %v2018
        %v2020 = vpop.f32.mrb[0].mxu0
        %2021 = vmatprep.mubr.bf16.mxu0 %v1481
        %2022 = vmatmul.mubr.bf16.gmra.mrb[0].mxu0 %v1444
        %v2023 = vpop.f32.mrb[0].mxu0
        %v2024 = vadd.f32 %v1707, %v2023
        %v2025 = vpop.f32.mrb[0].mxu0
        %v2026 = vpop.f32.mrb[0].mxu0
        %v2027 = vadd.f32 %v1707, %v2026
        %v2028 = vpop.f32.mrb[0].mxu0
        %2029 = vmatprep.mubr.bf16.mxu0 %v1482
        %2030 = vmatmul.mubr.bf16.gmra.mrb[0].mxu0 %v1445
        %v2031 = vpop.f32.mrb[0].mxu0
        %v2032 = vadd.f32 %v1707, %v2031
        %v2033 = vpop.f32.mrb[0].mxu0
        %v2034 = vpop.f32.mrb[0].mxu0
        %v2035 = vadd.f32 %v1707, %v2034
        %v2036 = vpop.f32.mrb[0].mxu0
        %2037 = vmatprep.mubr.bf16.mxu0 %v1483
        %2038 = vmatmul.mubr.bf16.gmra.mrb[0].mxu0 %v1446
        %v2039 = vpop.f32.mrb[0].mxu0
        %v2040 = vadd.f32 %v1707, %v2039
        %v2041 = vpop.f32.mrb[0].mxu0
        %v2042 = vpop.f32.mrb[0].mxu0
        %v2043 = vadd.f32 %v1707, %v2042
        %v2044 = vpop.f32.mrb[0].mxu0
        %2045 = vmatprep.mubr.bf16.mxu0 %v1484
        %2046 = vmatmul.mubr.bf16.gmra.mrb[0].mxu0 %v1447
        %v2047 = vpop.f32.mrb[0].mxu0
        %v2048 = vadd.f32 %v1707, %v2047
        %v2049 = vpop.f32.mrb[0].mxu0
        %v2050 = vpop.f32.mrb[0].mxu0
        %v2051 = vadd.f32 %v1707, %v2050
        %v2052 = vpop.f32.mrb[0].mxu0
        %2053 = vmatprep.mubr.bf16.mxu0 %v1485
        %2054 = vmatmul.mubr.bf16.gmra.mrb[0].mxu0 %v1448
        %v2055 = vpop.f32.mrb[0].mxu0
        %v2056 = vadd.f32 %v1707, %v2055
        %v2057 = vpop.f32.mrb[0].mxu0
        %v2058 = vpop.f32.mrb[0].mxu0
        %v2059 = vadd.f32 %v1707, %v2058
        %v2060 = vpop.f32.mrb[0].mxu0
        %2061 = vmatprep.mubr.bf16.mxu0 %v1486
        %2062 = vmatmul.mubr.bf16.gmra.mrb[0].mxu0 %v1449
        %v2063 = vpop.f32.mrb[0].mxu0
        %v2064 = vadd.f32 %v1707, %v2063
        %v2065 = vpop.f32.mrb[0].mxu0
        %v2066 = vpop.f32.mrb[0].mxu0
        %v2067 = vadd.f32 %v1707, %v2066
        %v2068 = vpop.f32.mrb[0].mxu0
        %2069 = vmatprep.mubr.bf16.mxu0 %v1487
        %2070 = vmatmul.mubr.bf16.gmra.mrb[0].mxu0 %v1450
        %v2071 = vpop.f32.mrb[0].mxu0
        %v2072 = vadd.f32 %v1707, %v2071
        %v2073 = vpop.f32.mrb[0].mxu0
        %v2074 = vpop.f32.mrb[0].mxu0
        %v2075 = vadd.f32 %v1707, %v2074
        %v2076 = vpop.f32.mrb[0].mxu0
        %2077 = vmatprep.mubr.bf16.mxu0 %v1488
        %2078 = vmatmul.mubr.bf16.gmra.mrb[0].mxu0 %v1451
        %v2079 = vpop.f32.mrb[0].mxu0
        %v2080 = vadd.f32 %v1707, %v2079
        %v2081 = vpop.f32.mrb[0].mxu0
        %v2082 = vpop.f32.mrb[0].mxu0
        %v2083 = vadd.f32 %v1707, %v2082
        %v2084 = vpop.f32.mrb[0].mxu0
        %2085 = vmatprep.mubr.bf16.mxu0 %v1489
        %2086 = vmatmul.mubr.bf16.gmra.mrb[0].mxu0 %v1452
        %v2087 = vpop.f32.mrb[0].mxu0
        %v2088 = vadd.f32 %v1707, %v2087
        %v2089 = vpop.f32.mrb[0].mxu0
        %v2090 = vpop.f32.mrb[0].mxu0
        %v2091 = vadd.f32 %v1707, %v2090
        %v2092 = vpop.f32.mrb[0].mxu0
        %2093 = vmatprep.mubr.bf16.mxu0 %v1490
        %2094 = vmatmul.mubr.bf16.gmra.mrb[0].mxu0 %v1453
        %v2095 = vpop.f32.mrb[0].mxu0
        %v2096 = vadd.f32 %v1707, %v2095
        %v2097 = vpop.f32.mrb[0].mxu0
        %v2098 = vpop.f32.mrb[0].mxu0
        %v2099 = vadd.f32 %v1707, %v2098
        %v2100 = vpop.f32.mrb[0].mxu0
        %2101 = vmatprep.mubr.bf16.mxu0 %v1491
        %2102 = vmatmul.mubr.bf16.gmra.mrb[0].mxu0 %v1454
        %v2103 = vpop.f32.mrb[0].mxu0
        %v2104 = vadd.f32 %v1707, %v2103
        %v2105 = vpop.f32.mrb[0].mxu0
        %v2106 = vpop.f32.mrb[0].mxu0
        %v2107 = vadd.f32 %v1707, %v2106
        %v2108 = vpop.f32.mrb[0].mxu0
        %2109 = vmatprep.mubr.bf16.mxu0 %v1492
        %2110 = vmatmul.mubr.bf16.gmra.mrb[0].mxu0 %v1455
        %v2111 = vpop.f32.mrb[0].mxu0
        %v2112 = vadd.f32 %v1707, %v2111
        %v2113 = vpop.f32.mrb[0].mxu0
        %v2114 = vpop.f32.mrb[0].mxu0
        %v2115 = vadd.f32 %v1707, %v2114
        %v2116 = vpop.f32.mrb[0].mxu0
        %2117 = vmatprep.mubr.bf16.mxu0 %v1493
        %2118 = vmatmul.mubr.bf16.gmra.mrb[0].mxu0 %v1456
        %v2119 = vpop.f32.mrb[0].mxu0
        %v2120 = vadd.f32 %v1707, %v2119
        %v2121 = vpop.f32.mrb[0].mxu0
        %v2122 = vpop.f32.mrb[0].mxu0
        %v2123 = vadd.f32 %v1707, %v2122
        %v2124 = vpop.f32.mrb[0].mxu0
        %2125 = vmatprep.mubr.bf16.mxu0 %v1494
        %2126 = vmatmul.mubr.bf16.gmra.mrb[0].mxu0 %v1457
        %v2127 = vpop.f32.mrb[0].mxu0
        %v2128 = vadd.f32 %v1707, %v2127
        %v2129 = vpop.f32.mrb[0].mxu0
        %v2130 = vpop.f32.mrb[0].mxu0
        %v2131 = vadd.f32 %v1707, %v2130
        %v2132 = vpop.f32.mrb[0].mxu0
        %2133 = vmatprep.mubr.bf16.mxu0 %v1495
        %2134 = vmatmul.mubr.bf16.gmra.mrb[0].mxu0 %v1458
        %v2135 = vpop.f32.mrb[0].mxu0
        %v2136 = vadd.f32 %v1707, %v2135
        %v2137 = vpop.f32.mrb[0].mxu0
        %v2138 = vpop.f32.mrb[0].mxu0
        %v2139 = vadd.f32 %v1707, %v2138
        %v2140 = vpop.f32.mrb[0].mxu0
        %2141 = vmatprep.mubr.bf16.mxu0 %v1496
        %2142 = vmatmul.mubr.bf16.gmra.mrb[0].mxu0 %v1459
        %v2143 = vpop.f32.mrb[0].mxu0
        %v2144 = vadd.f32 %v1707, %v2143
        %v2145 = vpop.f32.mrb[0].mxu0
        %v2146 = vpop.f32.mrb[0].mxu0
        %v2147 = vadd.f32 %v1707, %v2146
        %v2148 = vpop.f32.mrb[0].mxu0
        %2149 = vmatprep.mubr.bf16.mxu0 %v1497
        %2150 = vmatmul.mubr.bf16.gmra.mrb[0].mxu0 %v1460
        %v2151 = vpop.f32.mrb[0].mxu0
        %v2152 = vadd.f32 %v1707, %v2151
        %v2153 = vpop.f32.mrb[0].mxu0
        %v2154 = vpop.f32.mrb[0].mxu0
        %v2155 = vadd.f32 %v1707, %v2154
        %v2156 = vpop.f32.mrb[0].mxu0
        %2157 = vmatprep.mubr.bf16.mxu0 %v1498
        %2158 = vmatmul.mubr.bf16.gmra.mrb[0].mxu0 %v1461
        %v2159 = vpop.f32.mrb[0].mxu0
        %v2160 = vadd.f32 %v1707, %v2159
        %v2161 = vpop.f32.mrb[0].mxu0
        %v2162 = vpop.f32.mrb[0].mxu0
        %v2163 = vadd.f32 %v1707, %v2162
        %v2164 = vpop.f32.mrb[0].mxu0
        %2165 = vmatprep.mubr.bf16.mxu0 %v1499
        %2166 = vmatmul.mubr.bf16.gmra.mrb[0].mxu0 %v1462
        %v2167 = vpop.f32.mrb[0].mxu0
        %v2168 = vadd.f32 %v1707, %v2167
        %v2169 = vpop.f32.mrb[0].mxu0
        %v2170 = vpop.f32.mrb[0].mxu0
        %v2171 = vadd.f32 %v1707, %v2170
        %v2172 = vpop.f32.mrb[0].mxu0
        %2173 = vmatprep.mubr.bf16.mxu0 %v1500
        %2174 = vmatmul.mubr.bf16.gmra.mrb[0].mxu0 %v1463
        %v2175 = vpop.f32.mrb[0].mxu0
        %v2176 = vadd.f32 %v1707, %v2175
        %v2177 = vpop.f32.mrb[0].mxu0
        %v2178 = vpop.f32.mrb[0].mxu0
        %v2179 = vadd.f32 %v1707, %v2178
        %v2180 = vpop.f32.mrb[0].mxu0
        %2181 = vmatprep.mubr.bf16.mxu0 %v1501
        %2182 = vmatmul.mubr.bf16.gmra.mrb[0].mxu0 %v1464
        %v2183 = vpop.f32.mrb[0].mxu0
        %v2184 = vadd.f32 %v1707, %v2183
        %v2185 = vpop.f32.mrb[0].mxu0
        %v2186 = vpop.f32.mrb[0].mxu0
        %v2187 = vadd.f32 %v1707, %v2186
        %v2188 = vpop.f32.mrb[0].mxu0
        %2189 = vmatprep.mubr.bf16.mxu0 %v1502
        %2190 = vmatmul.mubr.bf16.gmra.mrb[0].mxu0 %v1465
        %v2191 = vpop.f32.mrb[0].mxu0
        %v2192 = vadd.f32 %v1707, %v2191
        %v2193 = vpop.f32.mrb[0].mxu0
        %v2194 = vpop.f32.mrb[0].mxu0
        %v2195 = vadd.f32 %v1707, %v2194
        %v2196 = vpop.f32.mrb[0].mxu0
        %2197 = vmatprep.mubr.bf16.mxu0 %v1503
        %2198 = vmatmul.mubr.bf16.gmra.mrb[0].mxu0 %v1466
        %v2199 = vpop.f32.mrb[0].mxu0
        %v2200 = vadd.f32 %v1707, %v2199
        %v2201 = vpop.f32.mrb[0].mxu0
        %v2202 = vpop.f32.mrb[0].mxu0
        %v2203 = vadd.f32 %v1707, %v2202
        %v2204 = vpop.f32.mrb[0].mxu0
        %2205 = vmatprep.mubr.bf16.mxu0 %v1504
        %2206 = vmatmul.mubr.bf16.gmra.mrb[0].mxu0 %v1467
        %v2207 = vpop.f32.mrb[0].mxu0
        %v2208 = vadd.f32 %v1707, %v2207
        %v2209 = vpop.f32.mrb[0].mxu0
        %v2210 = vpop.f32.mrb[0].mxu0
        %v2211 = vadd.f32 %v1707, %v2210
        %v2212 = vpop.f32.mrb[0].mxu0
        %2213 = vmatprep.mubr.bf16.mxu0 %v1505
        %2214 = vmatmul.mubr.bf16.gmra.mrb[0].mxu0 %v1468
        %v2215 = vpop.f32.mrb[0].mxu0
        %v2216 = vadd.f32 %v1707, %v2215
        %v2217 = vpop.f32.mrb[0].mxu0
        %v2218 = vpop.f32.mrb[0].mxu0
        %v2219 = vadd.f32 %v1707, %v2218
        %v2220 = vpop.f32.mrb[0].mxu0
        %2221 = vmatprep.mubr.bf16.mxu0 %v1506
        %2222 = vmatmul.mubr.bf16.gmra.mrb[0].mxu0 %v1469
        %v2223 = vpop.f32.mrb[0].mxu0
        %v2224 = vadd.f32 %v1707, %v2223
        %v2225 = vpop.f32.mrb[0].mxu0
        %v2226 = vpop.f32.mrb[0].mxu0
        %v2227 = vadd.f32 %v1707, %v2226
        %v2228 = vpop.f32.mrb[0].mxu0
        %2229 = vmatprep.mubr.bf16.mxu0 %v1507
        %2230 = vmatmul.mubr.bf16.gmra.mrb[0].mxu0 %v1470
        %v2231 = vpop.f32.mrb[0].mxu0
        %v2232 = vadd.f32 %v1707, %v2231
        %v2233 = vpop.f32.mrb[0].mxu0
        %v2234 = vpop.f32.mrb[0].mxu0
        %v2235 = vadd.f32 %v1707, %v2234
        %v2236 = vpop.f32.mrb[0].mxu0
        %2237 = vmatprep.mubr.bf16.mxu0 %v1508
        %2238 = vmatmul.mubr.bf16.gmra.mrb[0].mxu0 %v1471
        %v2239 = vpop.f32.mrb[0].mxu0
        %v2240 = vadd.f32 %v1707, %v2239
        %v2241 = vpop.f32.mrb[0].mxu0
        %v2242 = vpop.f32.mrb[0].mxu0
        %v2243 = vadd.f32 %v1707, %v2242
        %v2244 = vpop.f32.mrb[0].mxu0
        %2245 = vmatprep.mubr.bf16.mxu0 %v1509
        %2246 = vmatmul.mubr.bf16.gmra.mrb[0].mxu0 %v1472
        %v2247 = vpop.f32.mrb[0].mxu0
        %v2248 = vadd.f32 %v1707, %v2247
        %v2249 = vpop.f32.mrb[0].mxu0
        %v2250 = vpop.f32.mrb[0].mxu0
        %v2251 = vadd.f32 %v1707, %v2250
        %v2252 = vpop.f32.mrb[0].mxu0
        %2253 = vmatprep.mubr.bf16.mxu0 %v1510
        %2254 = vmatmul.mubr.bf16.gmra.mrb[0].mxu0 %v1473
        %v2255 = vpop.f32.mrb[0].mxu0
        %v2256 = vadd.f32 %v1707, %v2255
        %v2257 = vpop.f32.mrb[0].mxu0
        %v2258 = vpop.f32.mrb[0].mxu0
        %v2259 = vadd.f32 %v1707, %v2258
        %v2260 = vpop.f32.mrb[0].mxu0
        %2261 = vmatprep.mubr.bf16.mxu0 %v1511
        %2262 = vmatmul.mubr.bf16.gmra.mrb[0].mxu0 %v1474
        %v2263 = vpop.f32.mrb[0].mxu0
        %v2264 = vadd.f32 %v1707, %v2263
        %v2265 = vpop.f32.mrb[0].mxu0
        %v2266 = vpop.f32.mrb[0].mxu0
        %v2267 = vadd.f32 %v1707, %v2266
        %v2268 = vpop.f32.mrb[0].mxu0
        %2269 = vdwg.mxu0
        %2270 = vmatprep.subr.bf16.mxu0 0
        %2271 = vmatpush1.bf16.msra.mxu0 %v1885
        %2272 = vmatprep.subr.bf16.mxu0 0
        %2273 = vmatpush1.bf16.msra.mxu0 %v1886
        %2274 = vmatprep.subr.bf16.mxu0 0
        %2275 = vmatpush1.bf16.msra.mxu0 %v1887
        %2276 = vmatprep.subr.bf16.mxu0 0
        %2277 = vmatpush1.bf16.msra.mxu0 %v1888
        %2278 = vmatprep.subr.bf16.mxu0 0
        %2279 = vmatpush1.bf16.msra.mxu0 %v1889
        %2280 = vmatprep.subr.bf16.mxu0 0
        %2281 = vmatpush1.bf16.msra.mxu0 %v1890
        %2282 = vmatprep.subr.bf16.mxu0 0
        %2283 = vmatpush1.bf16.msra.mxu0 %v1891
        %2284 = vmatprep.subr.bf16.mxu0 0
        %2285 = vmatpush1.bf16.msra.mxu0 %v1892
        %2286 = vmatprep.subr.bf16.mxu0 0
        %2287 = vmatpush1.bf16.msra.mxu0 %v1893
        %2288 = vmatprep.subr.bf16.mxu0 0
        %2289 = vmatpush1.bf16.msra.mxu0 %v1894
        %2290 = vmatprep.subr.bf16.mxu0 0
        %2291 = vmatpush1.bf16.msra.mxu0 %v1895
        %2292 = vmatprep.subr.bf16.mxu0 0
        %2293 = vmatpush1.bf16.msra.mxu0 %v1896
        %2294 = vmatprep.subr.bf16.mxu0 0
        %2295 = vmatpush1.bf16.msra.mxu0 %v1897
        %2296 = vmatprep.subr.bf16.mxu0 0
        %2297 = vmatpush1.bf16.msra.mxu0 %v1898
        %2298 = vmatprep.subr.bf16.mxu0 0
        %2299 = vmatpush1.bf16.msra.mxu0 %v1899
        %2300 = vmatprep.subr.bf16.mxu0 0
        %2301 = vmatpush1.bf16.msra.mxu0 %v1900
        %2302 = vmatprep.mubr.bf16.mxu0 %v1549
        %2303 = vmatmul.mubr.bf16.gmra.mrb[0].mxu0 %v1512
        %v2304 = vpop.f32.mrb[0].mxu0
        %v2305 = vadd.f32 %v1984, %v2304
        %v2306 = vpop.f32.mrb[0].mxu0
        %v2307 = vpop.f32.mrb[0].mxu0
        %v2308 = vadd.f32 %v1987, %v2307
        %v2309 = vpop.f32.mrb[0].mxu0
        %2310 = vmatprep.mubr.bf16.mxu0 %v1550
        %2311 = vmatmul.mubr.bf16.gmra.mrb[0].mxu0 %v1513
        %v2312 = vpop.f32.mrb[0].mxu0
        %v2313 = vadd.f32 %v1992, %v2312
        %v2314 = vpop.f32.mrb[0].mxu0
        %v2315 = vpop.f32.mrb[0].mxu0
        %v2316 = vadd.f32 %v1995, %v2315
        %v2317 = vpop.f32.mrb[0].mxu0
        %2318 = vmatprep.mubr.bf16.mxu0 %v1551
        %2319 = vmatmul.mubr.bf16.gmra.mrb[0].mxu0 %v1514
        %v2320 = vpop.f32.mrb[0].mxu0
        %v2321 = vadd.f32 %v2000, %v2320
        %v2322 = vpop.f32.mrb[0].mxu0
        %v2323 = vpop.f32.mrb[0].mxu0
        %v2324 = vadd.f32 %v2003, %v2323
        %v2325 = vpop.f32.mrb[0].mxu0
        %2326 = vmatprep.mubr.bf16.mxu0 %v1552
        %2327 = vmatmul.mubr.bf16.gmra.mrb[0].mxu0 %v1515
        %v2328 = vpop.f32.mrb[0].mxu0
        %v2329 = vadd.f32 %v2008, %v2328
        %v2330 = vpop.f32.mrb[0].mxu0
        %v2331 = vpop.f32.mrb[0].mxu0
        %v2332 = vadd.f32 %v2011, %v2331
        %v2333 = vpop.f32.mrb[0].mxu0
        %2334 = vmatprep.mubr.bf16.mxu0 %v1553
        %2335 = vmatmul.mubr.bf16.gmra.mrb[0].mxu0 %v1516
        %v2336 = vpop.f32.mrb[0].mxu0
        %v2337 = vadd.f32 %v2016, %v2336
        %v2338 = vpop.f32.mrb[0].mxu0
        %v2339 = vpop.f32.mrb[0].mxu0
        %v2340 = vadd.f32 %v2019, %v2339
        %v2341 = vpop.f32.mrb[0].mxu0
        %2342 = vmatprep.mubr.bf16.mxu0 %v1554
        %2343 = vmatmul.mubr.bf16.gmra.mrb[0].mxu0 %v1517
        %v2344 = vpop.f32.mrb[0].mxu0
        %v2345 = vadd.f32 %v2024, %v2344
        %v2346 = vpop.f32.mrb[0].mxu0
        %v2347 = vpop.f32.mrb[0].mxu0
        %v2348 = vadd.f32 %v2027, %v2347
        %v2349 = vpop.f32.mrb[0].mxu0
        %2350 = vmatprep.mubr.bf16.mxu0 %v1555
        %2351 = vmatmul.mubr.bf16.gmra.mrb[0].mxu0 %v1518
        %v2352 = vpop.f32.mrb[0].mxu0
        %v2353 = vadd.f32 %v2032, %v2352
        %v2354 = vpop.f32.mrb[0].mxu0
        %v2355 = vpop.f32.mrb[0].mxu0
        %v2356 = vadd.f32 %v2035, %v2355
        %v2357 = vpop.f32.mrb[0].mxu0
        %2358 = vmatprep.mubr.bf16.mxu0 %v1556
        %2359 = vmatmul.mubr.bf16.gmra.mrb[0].mxu0 %v1519
        %v2360 = vpop.f32.mrb[0].mxu0
        %v2361 = vadd.f32 %v2040, %v2360
        %v2362 = vpop.f32.mrb[0].mxu0
        %v2363 = vpop.f32.mrb[0].mxu0
        %v2364 = vadd.f32 %v2043, %v2363
        %v2365 = vpop.f32.mrb[0].mxu0
        %2366 = vmatprep.mubr.bf16.mxu0 %v1557
        %2367 = vmatmul.mubr.bf16.gmra.mrb[0].mxu0 %v1520
        %v2368 = vpop.f32.mrb[0].mxu0
        %v2369 = vadd.f32 %v2048, %v2368
        %v2370 = vpop.f32.mrb[0].mxu0
        %v2371 = vpop.f32.mrb[0].mxu0
        %v2372 = vadd.f32 %v2051, %v2371
        %v2373 = vpop.f32.mrb[0].mxu0
        %2374 = vmatprep.mubr.bf16.mxu0 %v1558
        %2375 = vmatmul.mubr.bf16.gmra.mrb[0].mxu0 %v1521
        %v2376 = vpop.f32.mrb[0].mxu0
        %v2377 = vadd.f32 %v2056, %v2376
        %v2378 = vpop.f32.mrb[0].mxu0
        %v2379 = vpop.f32.mrb[0].mxu0
        %v2380 = vadd.f32 %v2059, %v2379
        %v2381 = vpop.f32.mrb[0].mxu0
        %2382 = vmatprep.mubr.bf16.mxu0 %v1559
        %2383 = vmatmul.mubr.bf16.gmra.mrb[0].mxu0 %v1522
        %v2384 = vpop.f32.mrb[0].mxu0
        %v2385 = vadd.f32 %v2064, %v2384
        %v2386 = vpop.f32.mrb[0].mxu0
        %v2387 = vpop.f32.mrb[0].mxu0
        %v2388 = vadd.f32 %v2067, %v2387
        %v2389 = vpop.f32.mrb[0].mxu0
        %2390 = vmatprep.mubr.bf16.mxu0 %v1560
        %2391 = vmatmul.mubr.bf16.gmra.mrb[0].mxu0 %v1523
        %v2392 = vpop.f32.mrb[0].mxu0
        %v2393 = vadd.f32 %v2072, %v2392
        %v2394 = vpop.f32.mrb[0].mxu0
        %v2395 = vpop.f32.mrb[0].mxu0
        %v2396 = vadd.f32 %v2075, %v2395
        %v2397 = vpop.f32.mrb[0].mxu0
        %2398 = vmatprep.mubr.bf16.mxu0 %v1561
        %2399 = vmatmul.mubr.bf16.gmra.mrb[0].mxu0 %v1524
        %v2400 = vpop.f32.mrb[0].mxu0
        %v2401 = vadd.f32 %v2080, %v2400
        %v2402 = vpop.f32.mrb[0].mxu0
        %v2403 = vpop.f32.mrb[0].mxu0
        %v2404 = vadd.f32 %v2083, %v2403
        %v2405 = vpop.f32.mrb[0].mxu0
        %2406 = vmatprep.mubr.bf16.mxu0 %v1562
        %2407 = vmatmul.mubr.bf16.gmra.mrb[0].mxu0 %v1525
        %v2408 = vpop.f32.mrb[0].mxu0
        %v2409 = vadd.f32 %v2088, %v2408
        %v2410 = vpop.f32.mrb[0].mxu0
        %v2411 = vpop.f32.mrb[0].mxu0
        %v2412 = vadd.f32 %v2091, %v2411
        %v2413 = vpop.f32.mrb[0].mxu0
        %2414 = vmatprep.mubr.bf16.mxu0 %v1563
        %2415 = vmatmul.mubr.bf16.gmra.mrb[0].mxu0 %v1526
        %v2416 = vpop.f32.mrb[0].mxu0
        %v2417 = vadd.f32 %v2096, %v2416
        %v2418 = vpop.f32.mrb[0].mxu0
        %v2419 = vpop.f32.mrb[0].mxu0
        %v2420 = vadd.f32 %v2099, %v2419
        %v2421 = vpop.f32.mrb[0].mxu0
        %2422 = vmatprep.mubr.bf16.mxu0 %v1564
        %2423 = vmatmul.mubr.bf16.gmra.mrb[0].mxu0 %v1527
        %v2424 = vpop.f32.mrb[0].mxu0
        %v2425 = vadd.f32 %v2104, %v2424
        %v2426 = vpop.f32.mrb[0].mxu0
        %v2427 = vpop.f32.mrb[0].mxu0
        %v2428 = vadd.f32 %v2107, %v2427
        %v2429 = vpop.f32.mrb[0].mxu0
        %2430 = vmatprep.mubr.bf16.mxu0 %v1565
        %2431 = vmatmul.mubr.bf16.gmra.mrb[0].mxu0 %v1528
        %v2432 = vpop.f32.mrb[0].mxu0
        %v2433 = vadd.f32 %v2112, %v2432
        %v2434 = vpop.f32.mrb[0].mxu0
        %v2435 = vpop.f32.mrb[0].mxu0
        %v2436 = vadd.f32 %v2115, %v2435
        %v2437 = vpop.f32.mrb[0].mxu0
        %2438 = vmatprep.mubr.bf16.mxu0 %v1566
        %2439 = vmatmul.mubr.bf16.gmra.mrb[0].mxu0 %v1529
        %v2440 = vpop.f32.mrb[0].mxu0
        %v2441 = vadd.f32 %v2120, %v2440
        %v2442 = vpop.f32.mrb[0].mxu0
        %v2443 = vpop.f32.mrb[0].mxu0
        %v2444 = vadd.f32 %v2123, %v2443
        %v2445 = vpop.f32.mrb[0].mxu0
        %2446 = vmatprep.mubr.bf16.mxu0 %v1567
        %2447 = vmatmul.mubr.bf16.gmra.mrb[0].mxu0 %v1530
        %v2448 = vpop.f32.mrb[0].mxu0
        %v2449 = vadd.f32 %v2128, %v2448
        %v2450 = vpop.f32.mrb[0].mxu0
        %v2451 = vpop.f32.mrb[0].mxu0
        %v2452 = vadd.f32 %v2131, %v2451
        %v2453 = vpop.f32.mrb[0].mxu0
        %2454 = vmatprep.mubr.bf16.mxu0 %v1568
        %2455 = vmatmul.mubr.bf16.gmra.mrb[0].mxu0 %v1531
        %v2456 = vpop.f32.mrb[0].mxu0
        %v2457 = vadd.f32 %v2136, %v2456
        %v2458 = vpop.f32.mrb[0].mxu0
        %v2459 = vpop.f32.mrb[0].mxu0
        %v2460 = vadd.f32 %v2139, %v2459
        %v2461 = vpop.f32.mrb[0].mxu0
        %2462 = vmatprep.mubr.bf16.mxu0 %v1569
        %2463 = vmatmul.mubr.bf16.gmra.mrb[0].mxu0 %v1532
        %v2464 = vpop.f32.mrb[0].mxu0
        %v2465 = vadd.f32 %v2144, %v2464
        %v2466 = vpop.f32.mrb[0].mxu0
        %v2467 = vpop.f32.mrb[0].mxu0
        %v2468 = vadd.f32 %v2147, %v2467
        %v2469 = vpop.f32.mrb[0].mxu0
        %2470 = vmatprep.mubr.bf16.mxu0 %v1570
        %2471 = vmatmul.mubr.bf16.gmra.mrb[0].mxu0 %v1533
        %v2472 = vpop.f32.mrb[0].mxu0
        %v2473 = vadd.f32 %v2152, %v2472
        %v2474 = vpop.f32.mrb[0].mxu0
        %v2475 = vpop.f32.mrb[0].mxu0
        %v2476 = vadd.f32 %v2155, %v2475
        %v2477 = vpop.f32.mrb[0].mxu0
        %2478 = vmatprep.mubr.bf16.mxu0 %v1571
        %2479 = vmatmul.mubr.bf16.gmra.mrb[0].mxu0 %v1534
        %v2480 = vpop.f32.mrb[0].mxu0
        %v2481 = vadd.f32 %v2160, %v2480
        %v2482 = vpop.f32.mrb[0].mxu0
        %v2483 = vpop.f32.mrb[0].mxu0
        %v2484 = vadd.f32 %v2163, %v2483
        %v2485 = vpop.f32.mrb[0].mxu0
        %2486 = vmatprep.mubr.bf16.mxu0 %v1572
        %2487 = vmatmul.mubr.bf16.gmra.mrb[0].mxu0 %v1535
        %v2488 = vpop.f32.mrb[0].mxu0
        %v2489 = vadd.f32 %v2168, %v2488
        %v2490 = vpop.f32.mrb[0].mxu0
        %v2491 = vpop.f32.mrb[0].mxu0
        %v2492 = vadd.f32 %v2171, %v2491
        %v2493 = vpop.f32.mrb[0].mxu0
        %2494 = vmatprep.mubr.bf16.mxu0 %v1573
        %2495 = vmatmul.mubr.bf16.gmra.mrb[0].mxu0 %v1536
        %v2496 = vpop.f32.mrb[0].mxu0
        %v2497 = vadd.f32 %v2176, %v2496
        %v2498 = vpop.f32.mrb[0].mxu0
        %v2499 = vpop.f32.mrb[0].mxu0
        %v2500 = vadd.f32 %v2179, %v2499
        %v2501 = vpop.f32.mrb[0].mxu0
        %2502 = vmatprep.mubr.bf16.mxu0 %v1574
        %2503 = vmatmul.mubr.bf16.gmra.mrb[0].mxu0 %v1537
        %v2504 = vpop.f32.mrb[0].mxu0
        %v2505 = vadd.f32 %v2184, %v2504
        %v2506 = vpop.f32.mrb[0].mxu0
        %v2507 = vpop.f32.mrb[0].mxu0
        %v2508 = vadd.f32 %v2187, %v2507
        %v2509 = vpop.f32.mrb[0].mxu0
        %2510 = vmatprep.mubr.bf16.mxu0 %v1575
        %2511 = vmatmul.mubr.bf16.gmra.mrb[0].mxu0 %v1538
        %v2512 = vpop.f32.mrb[0].mxu0
        %v2513 = vadd.f32 %v2192, %v2512
        %v2514 = vpop.f32.mrb[0].mxu0
        %v2515 = vpop.f32.mrb[0].mxu0
        %v2516 = vadd.f32 %v2195, %v2515
        %v2517 = vpop.f32.mrb[0].mxu0
        %2518 = vmatprep.mubr.bf16.mxu0 %v1576
        %2519 = vmatmul.mubr.bf16.gmra.mrb[0].mxu0 %v1539
        %v2520 = vpop.f32.mrb[0].mxu0
        %v2521 = vadd.f32 %v2200, %v2520
        %v2522 = vpop.f32.mrb[0].mxu0
        %v2523 = vpop.f32.mrb[0].mxu0
        %v2524 = vadd.f32 %v2203, %v2523
        %v2525 = vpop.f32.mrb[0].mxu0
        %2526 = vmatprep.mubr.bf16.mxu0 %v1577
        %2527 = vmatmul.mubr.bf16.gmra.mrb[0].mxu0 %v1540
        %v2528 = vpop.f32.mrb[0].mxu0
        %v2529 = vadd.f32 %v2208, %v2528
        %v2530 = vpop.f32.mrb[0].mxu0
        %v2531 = vpop.f32.mrb[0].mxu0
        %v2532 = vadd.f32 %v2211, %v2531
        %v2533 = vpop.f32.mrb[0].mxu0
        %2534 = vmatprep.mubr.bf16.mxu0 %v1578
        %2535 = vmatmul.mubr.bf16.gmra.mrb[0].mxu0 %v1541
        %v2536 = vpop.f32.mrb[0].mxu0
        %v2537 = vadd.f32 %v2216, %v2536
        %v2538 = vpop.f32.mrb[0].mxu0
        %v2539 = vpop.f32.mrb[0].mxu0
        %v2540 = vadd.f32 %v2219, %v2539
        %v2541 = vpop.f32.mrb[0].mxu0
        %2542 = vmatprep.mubr.bf16.mxu0 %v1579
        %2543 = vmatmul.mubr.bf16.gmra.mrb[0].mxu0 %v1542
        %v2544 = vpop.f32.mrb[0].mxu0
        %v2545 = vadd.f32 %v2224, %v2544
        %v2546 = vpop.f32.mrb[0].mxu0
        %v2547 = vpop.f32.mrb[0].mxu0
        %v2548 = vadd.f32 %v2227, %v2547
        %v2549 = vpop.f32.mrb[0].mxu0
        %2550 = vmatprep.mubr.bf16.mxu0 %v1580
        %2551 = vmatmul.mubr.bf16.gmra.mrb[0].mxu0 %v1543
        %v2552 = vpop.f32.mrb[0].mxu0
        %v2553 = vadd.f32 %v2232, %v2552
        %v2554 = vpop.f32.mrb[0].mxu0
        %v2555 = vpop.f32.mrb[0].mxu0
        %v2556 = vadd.f32 %v2235, %v2555
        %v2557 = vpop.f32.mrb[0].mxu0
        %2558 = vmatprep.mubr.bf16.mxu0 %v1581
        %2559 = vmatmul.mubr.bf16.gmra.mrb[0].mxu0 %v1544
        %v2560 = vpop.f32.mrb[0].mxu0
        %v2561 = vadd.f32 %v2240, %v2560
        %v2562 = vpop.f32.mrb[0].mxu0
        %v2563 = vpop.f32.mrb[0].mxu0
        %v2564 = vadd.f32 %v2243, %v2563
        %v2565 = vpop.f32.mrb[0].mxu0
        %2566 = vmatprep.mubr.bf16.mxu0 %v1582
        %2567 = vmatmul.mubr.bf16.gmra.mrb[0].mxu0 %v1545
        %v2568 = vpop.f32.mrb[0].mxu0
        %v2569 = vadd.f32 %v2248, %v2568
        %v2570 = vpop.f32.mrb[0].mxu0
        %v2571 = vpop.f32.mrb[0].mxu0
        %v2572 = vadd.f32 %v2251, %v2571
        %v2573 = vpop.f32.mrb[0].mxu0
        %2574 = vmatprep.mubr.bf16.mxu0 %v1583
        %2575 = vmatmul.mubr.bf16.gmra.mrb[0].mxu0 %v1546
        %v2576 = vpop.f32.mrb[0].mxu0
        %v2577 = vadd.f32 %v2256, %v2576
        %v2578 = vpop.f32.mrb[0].mxu0
        %v2579 = vpop.f32.mrb[0].mxu0
        %v2580 = vadd.f32 %v2259, %v2579
        %v2581 = vpop.f32.mrb[0].mxu0
        %2582 = vmatprep.mubr.bf16.mxu0 %v1584
        %2583 = vmatmul.mubr.bf16.gmra.mrb[0].mxu0 %v1547
        %v2584 = vpop.f32.mrb[0].mxu0
        %v2585 = vadd.f32 %v2264, %v2584
        %v2586 = vpop.f32.mrb[0].mxu0
        %v2587 = vpop.f32.mrb[0].mxu0
        %v2588 = vadd.f32 %v2267, %v2587
        %v2589 = vpop.f32.mrb[0].mxu0
        %2590 = vdwg.mxu0
        %2591 = vmatprep.subr.bf16.mxu0 0
        %2592 = vmatpush1.bf16.msra.mxu0 %v1901
        %2593 = vmatprep.subr.bf16.mxu0 0
        %2594 = vmatpush1.bf16.msra.mxu0 %v1902
        %2595 = vmatprep.subr.bf16.mxu0 0
        %2596 = vmatpush1.bf16.msra.mxu0 %v1903
        %2597 = vmatprep.subr.bf16.mxu0 0
        %2598 = vmatpush1.bf16.msra.mxu0 %v1904
        %2599 = vmatprep.subr.bf16.mxu0 0
        %2600 = vmatpush1.bf16.msra.mxu0 %v1905
        %2601 = vmatprep.subr.bf16.mxu0 0
        %2602 = vmatpush1.bf16.msra.mxu0 %v1906
        %2603 = vmatprep.subr.bf16.mxu0 0
        %2604 = vmatpush1.bf16.msra.mxu0 %v1907
        %2605 = vmatprep.subr.bf16.mxu0 0
        %2606 = vmatpush1.bf16.msra.mxu0 %v1908
        %2607 = vmatprep.subr.bf16.mxu0 0
        %2608 = vmatpush1.bf16.msra.mxu0 0
        %2609 = vmatprep.subr.bf16.mxu0 0
        %2610 = vmatpush1.bf16.msra.mxu0 0
        %2611 = vmatprep.subr.bf16.mxu0 0
        %2612 = vmatpush1.bf16.msra.mxu0 0
        %2613 = vmatprep.subr.bf16.mxu0 0
        %2614 = vmatpush1.bf16.msra.mxu0 0
        %2615 = vmatprep.subr.bf16.mxu0 0
        %2616 = vmatpush1.bf16.msra.mxu0 0
        %2617 = vmatprep.subr.bf16.mxu0 0
        %2618 = vmatpush1.bf16.msra.mxu0 0
        %2619 = vmatprep.subr.bf16.mxu0 0
        %2620 = vmatpush1.bf16.msra.mxu0 0
        %2621 = vmatprep.subr.bf16.mxu0 0
        %2622 = vmatpush1.bf16.msra.mxu0 0
        %2623 = vmatprep.mubr.bf16.mxu0 0
        %2624 = vmatmul.mubr.bf16.gmra.mrb[0].mxu0 %v1586
        %v2625 = vpop.f32.mrb[0].mxu0
        %v2626 = vadd.f32 %v2305, %v2625
        %v2627 = vpop.f32.mrb[0].mxu0
        %v2628 = vpop.f32.mrb[0].mxu0
        %v2629 = vadd.f32 %v2308, %v2628
        %v2630 = vpop.f32.mrb[0].mxu0
        %2631 = vmatprep.mubr.bf16.mxu0 0
        %2632 = vmatmul.mubr.bf16.gmra.mrb[0].mxu0 %v1587
        %v2633 = vpop.f32.mrb[0].mxu0
        %v2634 = vadd.f32 %v2313, %v2633
        %v2635 = vpop.f32.mrb[0].mxu0
        %v2636 = vpop.f32.mrb[0].mxu0
        %v2637 = vadd.f32 %v2316, %v2636
        %v2638 = vpop.f32.mrb[0].mxu0
        %2639 = vmatprep.mubr.bf16.mxu0 0
        %2640 = vmatmul.mubr.bf16.gmra.mrb[0].mxu0 %v1588
        %v2641 = vpop.f32.mrb[0].mxu0
        %v2642 = vadd.f32 %v2321, %v2641
        %v2643 = vpop.f32.mrb[0].mxu0
        %v2644 = vpop.f32.mrb[0].mxu0
        %v2645 = vadd.f32 %v2324, %v2644
        %v2646 = vpop.f32.mrb[0].mxu0
        %2647 = vmatprep.mubr.bf16.mxu0 0
        %2648 = vmatmul.mubr.bf16.gmra.mrb[0].mxu0 %v1589
        %v2649 = vpop.f32.mrb[0].mxu0
        %v2650 = vadd.f32 %v2329, %v2649
        %v2651 = vpop.f32.mrb[0].mxu0
        %v2652 = vpop.f32.mrb[0].mxu0
        %v2653 = vadd.f32 %v2332, %v2652
        %v2654 = vpop.f32.mrb[0].mxu0
        %2655 = vmatprep.mubr.bf16.mxu0 0
        %2656 = vmatmul.mubr.bf16.gmra.mrb[0].mxu0 %v1590
        %v2657 = vpop.f32.mrb[0].mxu0
        %v2658 = vadd.f32 %v2337, %v2657
        %v2659 = vpop.f32.mrb[0].mxu0
        %v2660 = vpop.f32.mrb[0].mxu0
        %v2661 = vadd.f32 %v2340, %v2660
        %v2662 = vpop.f32.mrb[0].mxu0
        %2663 = vmatprep.mubr.bf16.mxu0 0
        %2664 = vmatmul.mubr.bf16.gmra.mrb[0].mxu0 %v1591
        %v2665 = vpop.f32.mrb[0].mxu0
        %v2666 = vadd.f32 %v2345, %v2665
        %v2667 = vpop.f32.mrb[0].mxu0
        %v2668 = vpop.f32.mrb[0].mxu0
        %v2669 = vadd.f32 %v2348, %v2668
        %v2670 = vpop.f32.mrb[0].mxu0
        %2671 = vmatprep.mubr.bf16.mxu0 0
        %2672 = vmatmul.mubr.bf16.gmra.mrb[0].mxu0 %v1592
        %v2673 = vpop.f32.mrb[0].mxu0
        %v2674 = vadd.f32 %v2353, %v2673
        %v2675 = vpop.f32.mrb[0].mxu0
        %v2676 = vpop.f32.mrb[0].mxu0
        %v2677 = vadd.f32 %v2356, %v2676
        %v2678 = vpop.f32.mrb[0].mxu0
        %2679 = vmatprep.mubr.bf16.mxu0 0
        %2680 = vmatmul.mubr.bf16.gmra.mrb[0].mxu0 %v1593
        %v2681 = vpop.f32.mrb[0].mxu0
        %v2682 = vadd.f32 %v2361, %v2681
        %v2683 = vpop.f32.mrb[0].mxu0
        %v2684 = vpop.f32.mrb[0].mxu0
        %v2685 = vadd.f32 %v2364, %v2684
        %v2686 = vpop.f32.mrb[0].mxu0
        %2687 = vmatprep.mubr.bf16.mxu0 0
        %2688 = vmatmul.mubr.bf16.gmra.mrb[0].mxu0 %v1594
        %v2689 = vpop.f32.mrb[0].mxu0
        %v2690 = vadd.f32 %v2369, %v2689
        %v2691 = vpop.f32.mrb[0].mxu0
        %v2692 = vpop.f32.mrb[0].mxu0
        %v2693 = vadd.f32 %v2372, %v2692
        %v2694 = vpop.f32.mrb[0].mxu0
        %2695 = vmatprep.mubr.bf16.mxu0 0
        %2696 = vmatmul.mubr.bf16.gmra.mrb[0].mxu0 %v1595
        %v2697 = vpop.f32.mrb[0].mxu0
        %v2698 = vadd.f32 %v2377, %v2697
        %v2699 = vpop.f32.mrb[0].mxu0
        %v2700 = vpop.f32.mrb[0].mxu0
        %v2701 = vadd.f32 %v2380, %v2700
        %v2702 = vpop.f32.mrb[0].mxu0
        %2703 = vmatprep.mubr.bf16.mxu0 0
        %2704 = vmatmul.mubr.bf16.gmra.mrb[0].mxu0 %v1596
        %v2705 = vpop.f32.mrb[0].mxu0
        %v2706 = vadd.f32 %v2385, %v2705
        %v2707 = vpop.f32.mrb[0].mxu0
        %v2708 = vpop.f32.mrb[0].mxu0
        %v2709 = vadd.f32 %v2388, %v2708
        %v2710 = vpop.f32.mrb[0].mxu0
        %2711 = vmatprep.mubr.bf16.mxu0 0
        %2712 = vmatmul.mubr.bf16.gmra.mrb[0].mxu0 %v1597
        %v2713 = vpop.f32.mrb[0].mxu0
        %v2714 = vadd.f32 %v2393, %v2713
        %v2715 = vpop.f32.mrb[0].mxu0
        %v2716 = vpop.f32.mrb[0].mxu0
        %v2717 = vadd.f32 %v2396, %v2716
        %v2718 = vpop.f32.mrb[0].mxu0
        %2719 = vmatprep.mubr.bf16.mxu0 0
        %2720 = vmatmul.mubr.bf16.gmra.mrb[0].mxu0 %v1598
        %v2721 = vpop.f32.mrb[0].mxu0
        %v2722 = vadd.f32 %v2401, %v2721
        %v2723 = vpop.f32.mrb[0].mxu0
        %v2724 = vpop.f32.mrb[0].mxu0
        %v2725 = vadd.f32 %v2404, %v2724
        %v2726 = vpop.f32.mrb[0].mxu0
        %2727 = vmatprep.mubr.bf16.mxu0 0
        %2728 = vmatmul.mubr.bf16.gmra.mrb[0].mxu0 %v1599
        %v2729 = vpop.f32.mrb[0].mxu0
        %v2730 = vadd.f32 %v2409, %v2729
        %v2731 = vpop.f32.mrb[0].mxu0
        %v2732 = vpop.f32.mrb[0].mxu0
        %v2733 = vadd.f32 %v2412, %v2732
        %v2734 = vpop.f32.mrb[0].mxu0
        %2735 = vmatprep.mubr.bf16.mxu0 0
        %2736 = vmatmul.mubr.bf16.gmra.mrb[0].mxu0 %v1600
        %v2737 = vpop.f32.mrb[0].mxu0
        %v2738 = vadd.f32 %v2417, %v2737
        %v2739 = vpop.f32.mrb[0].mxu0
        %v2740 = vpop.f32.mrb[0].mxu0
        %v2741 = vadd.f32 %v2420, %v2740
        %v2742 = vpop.f32.mrb[0].mxu0
        %2743 = vmatprep.mubr.bf16.mxu0 0
        %2744 = vmatmul.mubr.bf16.gmra.mrb[0].mxu0 %v1601
        %v2745 = vpop.f32.mrb[0].mxu0
        %v2746 = vadd.f32 %v2425, %v2745
        %v2747 = vpop.f32.mrb[0].mxu0
        %v2748 = vpop.f32.mrb[0].mxu0
        %v2749 = vadd.f32 %v2428, %v2748
        %v2750 = vpop.f32.mrb[0].mxu0
        %2751 = vmatprep.mubr.bf16.mxu0 0
        %2752 = vmatmul.mubr.bf16.gmra.mrb[0].mxu0 %v1602
        %v2753 = vpop.f32.mrb[0].mxu0
        %v2754 = vadd.f32 %v2433, %v2753
        %v2755 = vpop.f32.mrb[0].mxu0
        %v2756 = vpop.f32.mrb[0].mxu0
        %v2757 = vadd.f32 %v2436, %v2756
        %v2758 = vpop.f32.mrb[0].mxu0
        %2759 = vmatprep.mubr.bf16.mxu0 0
        %2760 = vmatmul.mubr.bf16.gmra.mrb[0].mxu0 %v1603
        %v2761 = vpop.f32.mrb[0].mxu0
        %v2762 = vadd.f32 %v2441, %v2761
        %v2763 = vpop.f32.mrb[0].mxu0
        %v2764 = vpop.f32.mrb[0].mxu0
        %v2765 = vadd.f32 %v2444, %v2764
        %v2766 = vpop.f32.mrb[0].mxu0
        %2767 = vmatprep.mubr.bf16.mxu0 0
        %2768 = vmatmul.mubr.bf16.gmra.mrb[0].mxu0 %v1604
        %v2769 = vpop.f32.mrb[0].mxu0
        %v2770 = vadd.f32 %v2449, %v2769
        %v2771 = vpop.f32.mrb[0].mxu0
        %v2772 = vpop.f32.mrb[0].mxu0
        %v2773 = vadd.f32 %v2452, %v2772
        %v2774 = vpop.f32.mrb[0].mxu0
        %2775 = vmatprep.mubr.bf16.mxu0 0
        %2776 = vmatmul.mubr.bf16.gmra.mrb[0].mxu0 %v1605
        %v2777 = vpop.f32.mrb[0].mxu0
        %v2778 = vadd.f32 %v2457, %v2777
        %v2779 = vpop.f32.mrb[0].mxu0
        %v2780 = vpop.f32.mrb[0].mxu0
        %v2781 = vadd.f32 %v2460, %v2780
        %v2782 = vpop.f32.mrb[0].mxu0
        %2783 = vmatprep.mubr.bf16.mxu0 0
        %2784 = vmatmul.mubr.bf16.gmra.mrb[0].mxu0 %v1606
        %v2785 = vpop.f32.mrb[0].mxu0
        %v2786 = vadd.f32 %v2465, %v2785
        %v2787 = vpop.f32.mrb[0].mxu0
        %v2788 = vpop.f32.mrb[0].mxu0
        %v2789 = vadd.f32 %v2468, %v2788
        %v2790 = vpop.f32.mrb[0].mxu0
        %2791 = vmatprep.mubr.bf16.mxu0 0
        %2792 = vmatmul.mubr.bf16.gmra.mrb[0].mxu0 %v1607
        %v2793 = vpop.f32.mrb[0].mxu0
        %v2794 = vadd.f32 %v2473, %v2793
        %v2795 = vpop.f32.mrb[0].mxu0
        %v2796 = vpop.f32.mrb[0].mxu0
        %v2797 = vadd.f32 %v2476, %v2796
        %v2798 = vpop.f32.mrb[0].mxu0
        %2799 = vmatprep.mubr.bf16.mxu0 0
        %2800 = vmatmul.mubr.bf16.gmra.mrb[0].mxu0 %v1608
        %v2801 = vpop.f32.mrb[0].mxu0
        %v2802 = vadd.f32 %v2481, %v2801
        %v2803 = vpop.f32.mrb[0].mxu0
        %v2804 = vpop.f32.mrb[0].mxu0
        %v2805 = vadd.f32 %v2484, %v2804
        %v2806 = vpop.f32.mrb[0].mxu0
        %2807 = vmatprep.mubr.bf16.mxu0 0
        %2808 = vmatmul.mubr.bf16.gmra.mrb[0].mxu0 %v1609
        %v2809 = vpop.f32.mrb[0].mxu0
        %v2810 = vadd.f32 %v2489, %v2809
        %v2811 = vpop.f32.mrb[0].mxu0
        %v2812 = vpop.f32.mrb[0].mxu0
        %v2813 = vadd.f32 %v2492, %v2812
        %v2814 = vpop.f32.mrb[0].mxu0
        %2815 = vmatprep.mubr.bf16.mxu0 0
        %2816 = vmatmul.mubr.bf16.gmra.mrb[0].mxu0 %v1610
        %v2817 = vpop.f32.mrb[0].mxu0
        %v2818 = vadd.f32 %v2497, %v2817
        %v2819 = vpop.f32.mrb[0].mxu0
        %v2820 = vpop.f32.mrb[0].mxu0
        %v2821 = vadd.f32 %v2500, %v2820
        %v2822 = vpop.f32.mrb[0].mxu0
        %2823 = vmatprep.mubr.bf16.mxu0 0
        %2824 = vmatmul.mubr.bf16.gmra.mrb[0].mxu0 %v1611
        %v2825 = vpop.f32.mrb[0].mxu0
        %v2826 = vadd.f32 %v2505, %v2825
        %v2827 = vpop.f32.mrb[0].mxu0
        %v2828 = vpop.f32.mrb[0].mxu0
        %v2829 = vadd.f32 %v2508, %v2828
        %v2830 = vpop.f32.mrb[0].mxu0
        %2831 = vmatprep.mubr.bf16.mxu0 0
        %2832 = vmatmul.mubr.bf16.gmra.mrb[0].mxu0 %v1612
        %v2833 = vpop.f32.mrb[0].mxu0
        %v2834 = vadd.f32 %v2513, %v2833
        %v2835 = vpop.f32.mrb[0].mxu0
        %v2836 = vpop.f32.mrb[0].mxu0
        %v2837 = vadd.f32 %v2516, %v2836
        %v2838 = vpop.f32.mrb[0].mxu0
        %2839 = vmatprep.mubr.bf16.mxu0 0
        %2840 = vmatmul.mubr.bf16.gmra.mrb[0].mxu0 %v1613
        %v2841 = vpop.f32.mrb[0].mxu0
        %v2842 = vadd.f32 %v2521, %v2841
        %v2843 = vpop.f32.mrb[0].mxu0
        %v2844 = vpop.f32.mrb[0].mxu0
        %v2845 = vadd.f32 %v2524, %v2844
        %v2846 = vpop.f32.mrb[0].mxu0
        %2847 = vmatprep.mubr.bf16.mxu0 0
        %2848 = vmatmul.mubr.bf16.gmra.mrb[0].mxu0 %v1614
        %v2849 = vpop.f32.mrb[0].mxu0
        %v2850 = vadd.f32 %v2529, %v2849
        %v2851 = vpop.f32.mrb[0].mxu0
        %v2852 = vpop.f32.mrb[0].mxu0
        %v2853 = vadd.f32 %v2532, %v2852
        %v2854 = vpop.f32.mrb[0].mxu0
        %2855 = vmatprep.mubr.bf16.mxu0 0
        %2856 = vmatmul.mubr.bf16.gmra.mrb[0].mxu0 %v1615
        %v2857 = vpop.f32.mrb[0].mxu0
        %v2858 = vadd.f32 %v2537, %v2857
        %v2859 = vpop.f32.mrb[0].mxu0
        %v2860 = vpop.f32.mrb[0].mxu0
        %v2861 = vadd.f32 %v2540, %v2860
        %v2862 = vpop.f32.mrb[0].mxu0
        %2863 = vmatprep.mubr.bf16.mxu0 0
        %2864 = vmatmul.mubr.bf16.gmra.mrb[0].mxu0 %v1616
        %v2865 = vpop.f32.mrb[0].mxu0
        %v2866 = vadd.f32 %v2545, %v2865
        %v2867 = vpop.f32.mrb[0].mxu0
        %v2868 = vpop.f32.mrb[0].mxu0
        %v2869 = vadd.f32 %v2548, %v2868
        %v2870 = vpop.f32.mrb[0].mxu0
        %2871 = vmatprep.mubr.bf16.mxu0 0
        %2872 = vmatmul.mubr.bf16.gmra.mrb[0].mxu0 %v1617
        %v2873 = vpop.f32.mrb[0].mxu0
        %v2874 = vadd.f32 %v2553, %v2873
        %v2875 = vpop.f32.mrb[0].mxu0
        %v2876 = vpop.f32.mrb[0].mxu0
        %v2877 = vadd.f32 %v2556, %v2876
        %v2878 = vpop.f32.mrb[0].mxu0
        %2879 = vmatprep.mubr.bf16.mxu0 0
        %2880 = vmatmul.mubr.bf16.gmra.mrb[0].mxu0 %v1618
        %v2881 = vpop.f32.mrb[0].mxu0
        %v2882 = vadd.f32 %v2561, %v2881
        %v2883 = vpop.f32.mrb[0].mxu0
        %v2884 = vpop.f32.mrb[0].mxu0
        %v2885 = vadd.f32 %v2564, %v2884
        %v2886 = vpop.f32.mrb[0].mxu0
        %2887 = vmatprep.mubr.bf16.mxu0 0
        %2888 = vmatmul.mubr.bf16.gmra.mrb[0].mxu0 %v1619
        %v2889 = vpop.f32.mrb[0].mxu0
        %v2890 = vadd.f32 %v2569, %v2889
        %v2891 = vpop.f32.mrb[0].mxu0
        %v2892 = vpop.f32.mrb[0].mxu0
        %v2893 = vadd.f32 %v2572, %v2892
        %v2894 = vpop.f32.mrb[0].mxu0
        %2895 = vmatprep.mubr.bf16.mxu0 0
        %2896 = vmatmul.mubr.bf16.gmra.mrb[0].mxu0 %v1620
        %v2897 = vpop.f32.mrb[0].mxu0
        %v2898 = vadd.f32 %v2577, %v2897
        %v2899 = vpop.f32.mrb[0].mxu0
        %v2900 = vpop.f32.mrb[0].mxu0
        %v2901 = vadd.f32 %v2580, %v2900
        %v2902 = vpop.f32.mrb[0].mxu0
        %2903 = vmatprep.mubr.bf16.mxu0 0
        %2904 = vmatmul.mubr.bf16.gmra.mrb[0].mxu0 %v1621
        %v2905 = vpop.f32.mrb[0].mxu0
        %v2906 = vadd.f32 %v2585, %v2905
        %v2907 = vpop.f32.mrb[0].mxu0
        %v2908 = vpop.f32.mrb[0].mxu0
        %v2909 = vadd.f32 %v2588, %v2908
        %v2910 = vpop.f32.mrb[0].mxu0
        %2911 = vdwg.mxu0
        %v2912 = vmax.f32 %v2626, 0.0
        %v2913 = vmax.f32 %v2629, 0.0
        %v2914 = vmax.f32 %v2634, 0.0
        %v2915 = vmax.f32 %v2637, 0.0
        %v2916 = vmax.f32 %v2642, 0.0
        %v2917 = vmax.f32 %v2645, 0.0
        %v2918 = vmax.f32 %v2650, 0.0
        %v2919 = vmax.f32 %v2653, 0.0
        %v2920 = vmax.f32 %v2658, 0.0
        %v2921 = vmax.f32 %v2661, 0.0
        %v2922 = vmax.f32 %v2666, 0.0
        %v2923 = vmax.f32 %v2669, 0.0
        %v2924 = vmax.f32 %v2674, 0.0
        %v2925 = vmax.f32 %v2677, 0.0
        %v2926 = vmax.f32 %v2682, 0.0
        %v2927 = vmax.f32 %v2685, 0.0
        %v2928 = vmax.f32 %v2690, 0.0
        %v2929 = vmax.f32 %v2693, 0.0
        %v2930 = vmax.f32 %v2698, 0.0
        %v2931 = vmax.f32 %v2701, 0.0
        %v2932 = vmax.f32 %v2706, 0.0
        %v2933 = vmax.f32 %v2709, 0.0
        %v2934 = vmax.f32 %v2714, 0.0
        %v2935 = vmax.f32 %v2717, 0.0
        %v2936 = vmax.f32 %v2722, 0.0
        %v2937 = vmax.f32 %v2725, 0.0
        %v2938 = vmax.f32 %v2730, 0.0
        %v2939 = vmax.f32 %v2733, 0.0
        %v2940 = vmax.f32 %v2738, 0.0
        %v2941 = vmax.f32 %v2741, 0.0
        %v2942 = vmax.f32 %v2746, 0.0
        %v2943 = vmax.f32 %v2749, 0.0
        %v2944 = vmax.f32 %v2754, 0.0
        %v2945 = vmax.f32 %v2757, 0.0
        %v2946 = vmax.f32 %v2762, 0.0
        %v2947 = vmax.f32 %v2765, 0.0
        %v2948 = vmax.f32 %v2770, 0.0
        %v2949 = vmax.f32 %v2773, 0.0
        %v2950 = vmax.f32 %v2778, 0.0
        %v2951 = vmax.f32 %v2781, 0.0
        %v2952 = vmax.f32 %v2786, 0.0
        %v2953 = vmax.f32 %v2789, 0.0
        %v2954 = vmax.f32 %v2794, 0.0
        %v2955 = vmax.f32 %v2797, 0.0
        %v2956 = vmax.f32 %v2802, 0.0
        %v2957 = vmax.f32 %v2805, 0.0
        %v2958 = vmax.f32 %v2810, 0.0
        %v2959 = vmax.f32 %v2813, 0.0
        %v2960 = vmax.f32 %v2818, 0.0
        %v2961 = vmax.f32 %v2821, 0.0
        %v2962 = vmax.f32 %v2826, 0.0
        %v2963 = vmax.f32 %v2829, 0.0
        %v2964 = vmax.f32 %v2834, 0.0
        %v2965 = vmax.f32 %v2837, 0.0
        %v2966 = vmax.f32 %v2842, 0.0
        %v2967 = vmax.f32 %v2845, 0.0
        %v2968 = vmax.f32 %v2850, 0.0
        %v2969 = vmax.f32 %v2853, 0.0
        %v2970 = vmax.f32 %v2858, 0.0
        %v2971 = vmax.f32 %v2861, 0.0
        %v2972 = vmax.f32 %v2866, 0.0
        %v2973 = vmax.f32 %v2869, 0.0
        %v2974 = vmax.f32 %v2874, 0.0
        %v2975 = vmax.f32 %v2877, 0.0
        %v2976 = vmax.f32 %v2882, 0.0
        %v2977 = vmax.f32 %v2885, 0.0
        %v2978 = vmax.f32 %v2890, 0.0
        %v2979 = vmax.f32 %v2893, 0.0
        %v2980 = vmax.f32 %v2898, 0.0
        %v2981 = vmax.f32 %v2901, 0.0
        %v2982 = vmax.f32 %v2906, 0.0
        %v2983 = vmax.f32 %v2909, 0.0
        %v2984 = vmax.f32 %v2912, %v2914
        %v2985 = vmax.f32 %v2913, %v2915
        %v2986 = vmax.f32 %v2916, %v2918
        %v2987 = vmax.f32 %v2917, %v2919
        %v2988 = vmax.f32 %v2920, %v2922
        %v2989 = vmax.f32 %v2921, %v2923
        %v2990 = vmax.f32 %v2924, %v2926
        %v2991 = vmax.f32 %v2925, %v2927
        %v2992 = vmax.f32 %v2928, %v2930
        %v2993 = vmax.f32 %v2929, %v2931
        %v2994 = vmax.f32 %v2932, %v2934
        %v2995 = vmax.f32 %v2933, %v2935
        %v2996 = vmax.f32 %v2936, %v2938
        %v2997 = vmax.f32 %v2937, %v2939
        %v2998 = vmax.f32 %v2940, %v2942
        %v2999 = vmax.f32 %v2941, %v2943
        %v3000 = vmax.f32 %v2944, %v2946
        %v3001 = vmax.f32 %v2945, %v2947
        %v3002 = vmax.f32 %v2948, %v2950
        %v3003 = vmax.f32 %v2949, %v2951
        %v3004 = vmax.f32 %v2952, %v2954
        %v3005 = vmax.f32 %v2953, %v2955
        %v3006 = vmax.f32 %v2956, %v2958
        %v3007 = vmax.f32 %v2957, %v2959
        %v3008 = vmax.f32 %v2960, %v2962
        %v3009 = vmax.f32 %v2961, %v2963
        %v3010 = vmax.f32 %v2964, %v2966
        %v3011 = vmax.f32 %v2965, %v2967
        %v3012 = vmax.f32 %v2968, %v2970
        %v3013 = vmax.f32 %v2969, %v2971
        %v3014 = vmax.f32 %v2972, %v2974
        %v3015 = vmax.f32 %v2973, %v2975
        %v3016 = vmax.f32 %v2976, %v2978
        %v3017 = vmax.f32 %v2977, %v2979
        %v3018 = vmax.f32 %v2980, %v2982
        %v3019 = vmax.f32 %v2981, %v2983
        %v3020 = vpack.c.bf16 %v2985, %v2984
        %v3021 = vpack.c.bf16 %v2987, %v2986
        %v3022 = vpack.c.bf16 %v2989, %v2988
        %v3023 = vpack.c.bf16 %v2991, %v2990
        %v3024 = vpack.c.bf16 %v2993, %v2992
        %v3025 = vpack.c.bf16 %v2995, %v2994
        %v3026 = vpack.c.bf16 %v2997, %v2996
        %v3027 = vpack.c.bf16 %v2999, %v2998
        %v3028 = vpack.c.bf16 %v3001, %v3000
        %v3029 = vpack.c.bf16 %v3003, %v3002
        %v3030 = vpack.c.bf16 %v3005, %v3004
        %v3031 = vpack.c.bf16 %v3007, %v3006
        %v3032 = vpack.c.bf16 %v3009, %v3008
        %v3033 = vpack.c.bf16 %v3011, %v3010
        %v3034 = vpack.c.bf16 %v3013, %v3012
        %v3035 = vpack.c.bf16 %v3015, %v3014
        %v3036 = vpack.c.bf16 %v3017, %v3016
        %v3037 = vpack.c.bf16 %v3019, %v3018
        %s3038 = scalar_lea.vmem [#allocation3], 8
        %3039 = vst [vmem:[%s3038] sm:$0xff] %v3020
        %3040 = vst [vmem:[%s3038 + $0x8] sm:$0xff] %v3021
        %3041 = vst [vmem:[%s3038 + $0x10] sm:$0xff] %v3022
        %3042 = vst [vmem:[%s3038 + $0x18] sm:$0xff] %v3023
        %3043 = vst [vmem:[%s3038 + $0x20] sm:$0xff] %v3024
        %3044 = vst [vmem:[%s3038 + $0x28] sm:$0xff] %v3025
        %3045 = vst [vmem:[%s3038 + $0x30] sm:$0xff] %v3026
        %3046 = vst [vmem:[%s3038 + $0x38] sm:$0xff] %v3027
        %3047 = vst [vmem:[%s3038 + $0x40] sm:$0xff] %v3028
        %3048 = vst [vmem:[%s3038 + $0x48] sm:$0xff] %v3029
        %3049 = vst [vmem:[%s3038 + $0x50] sm:$0xff] %v3030
        %3050 = vst [vmem:[%s3038 + $0x58] sm:$0xff] %v3031
        %3051 = vst [vmem:[%s3038 + $0x60] sm:$0xff] %v3032
        %3052 = vst [vmem:[%s3038 + $0x68] sm:$0xff] %v3033
        %3053 = vst [vmem:[%s3038 + $0x70] sm:$0xff] %v3034
        %3054 = vst [vmem:[%s3038 + $0x78] sm:$0xff] %v3035
        %3055 = vst [vmem:[%s3038 + $0x80] sm:$0xff] %v3036
        %3056 = vst [vmem:[%s3038 + $0x88] sm:$0xff] %v3037
        %v3057 = vld [vmem:[#allocation3] sm:$0xff]
        %v3058 = vld [vmem:[#allocation3 + $0x8] sm:$0xff]
        %v3059 = vld [vmem:[#allocation3 + $0x10] sm:$0xff]
        %v3060 = vld [vmem:[#allocation3 + $0x18] sm:$0xff]
        %v3061 = vld [vmem:[#allocation3 + $0x20] sm:$0xff]
        %v3062 = vld [vmem:[#allocation3 + $0x28] sm:$0xff]
        %v3063 = vld [vmem:[#allocation3 + $0x30] sm:$0xff]
        %v3064 = vld [vmem:[#allocation3 + $0x38] sm:$0xff]
        %v3065 = vld [vmem:[#allocation3 + $0x40] sm:$0xff]
        %v3066 = vld [vmem:[#allocation3 + $0x48] sm:$0xff]
        %v3067 = vld [vmem:[#allocation3 + $0x50] sm:$0xff]
        %v3068 = vld [vmem:[#allocation3 + $0x58] sm:$0xff]
        %v3069 = vld [vmem:[#allocation3 + $0x60] sm:$0xff]
        %v3070 = vld [vmem:[#allocation3 + $0x68] sm:$0xff]
        %v3071 = vld [vmem:[#allocation3 + $0x70] sm:$0xff]
        %v3072 = vld [vmem:[#allocation3 + $0x78] sm:$0xff]
        %v3073 = vld [vmem:[#allocation3 + $0x80] sm:$0xff]
        %v3074 = vld [vmem:[#allocation3 + $0x88] sm:$0xff]
        %v3075 = vld [vmem:[%s3038] sm:$0xff]
        %v3076 = vld [vmem:[%s3038 + $0x8] sm:$0xff]
        %v3077 = vld [vmem:[%s3038 + $0x10] sm:$0xff]
        %v3078 = vld [vmem:[%s3038 + $0x18] sm:$0xff]
        %v3079 = vld [vmem:[%s3038 + $0x20] sm:$0xff]
        %v3080 = vld [vmem:[%s3038 + $0x28] sm:$0xff]
        %v3081 = vld [vmem:[%s3038 + $0x30] sm:$0xff]
        %v3082 = vld [vmem:[%s3038 + $0x38] sm:$0xff]
        %v3083 = vld [vmem:[%s3038 + $0x40] sm:$0xff]
        %v3084 = vld [vmem:[%s3038 + $0x48] sm:$0xff]
        %v3085 = vld [vmem:[%s3038 + $0x50] sm:$0xff]
        %v3086 = vld [vmem:[%s3038 + $0x58] sm:$0xff]
        %v3087 = vld [vmem:[%s3038 + $0x60] sm:$0xff]
        %v3088 = vld [vmem:[%s3038 + $0x68] sm:$0xff]
        %v3089 = vld [vmem:[%s3038 + $0x70] sm:$0xff]
        %v3090 = vld [vmem:[%s3038 + $0x78] sm:$0xff]
        %v3091 = vld [vmem:[%s3038 + $0x80] sm:$0xff]
        %v3092 = vld [vmem:[%s3038 + $0x88] sm:$0xff]
        %s3093 = scalar_lea.vmem [#allocation3], 16
        %v3094 = vld [vmem:[%s3093] sm:$0xff]
        %v3095 = vld [vmem:[%s3093 + $0x8] sm:$0xff]
        %v3096 = vld [vmem:[%s3093 + $0x10] sm:$0xff]
        %v3097 = vld [vmem:[%s3093 + $0x18] sm:$0xff]
        %v3098 = vld [vmem:[%s3093 + $0x20] sm:$0xff]
        %v3099 = vld [vmem:[%s3093 + $0x28] sm:$0xff]
        %v3100 = vld [vmem:[%s3093 + $0x30] sm:$0xff]
        %v3101 = vld [vmem:[%s3093 + $0x38] sm:$0xff]
        %v3102 = vld [vmem:[%s3093 + $0x40] sm:$0xff]
        %v3103 = vld [vmem:[%s3093 + $0x48] sm:$0xff]
        %v3104 = vld [vmem:[%s3093 + $0x50] sm:$0xff]
        %v3105 = vld [vmem:[%s3093 + $0x58] sm:$0xff]
        %v3106 = vld [vmem:[%s3093 + $0x60] sm:$0xff]
        %v3107 = vld [vmem:[%s3093 + $0x68] sm:$0xff]
        %v3108 = vld [vmem:[%s3093 + $0x70] sm:$0xff]
        %v3109 = vld [vmem:[%s3093 + $0x78] sm:$0xff]
        %v3110 = vld [vmem:[%s3093 + $0x80] sm:$0xff]
        %v3111 = vld [vmem:[%s3093 + $0x88] sm:$0xff]
        %v3112 = vld [vmem:[%s5] sm:$0xff]
        %v3113 = vld [vmem:[%s5 + $0x8] sm:$0xff]
        %v3114 = vld [vmem:[%s5 + $0x10] sm:$0xff]
        %v3115 = vld [vmem:[%s5 + $0x18] sm:$0xff]
        %v3116 = vld [vmem:[%s5 + $0x20] sm:$0xff]
        %v3117 = vld [vmem:[%s5 + $0x28] sm:$0xff]
        %v3118 = vld [vmem:[%s5 + $0x30] sm:$0xff]
        %v3119 = vld [vmem:[%s5 + $0x38] sm:$0xff]
        %v3120 = vld [vmem:[%s5 + $0x40] sm:$0xff]
        %v3121 = vld [vmem:[%s5 + $0x48] sm:$0xff]
        %v3122 = vld [vmem:[%s5 + $0x50] sm:$0xff]
        %v3123 = vld [vmem:[%s5 + $0x58] sm:$0xff]
        %v3124 = vld [vmem:[%s5 + $0x60] sm:$0xff]
        %v3125 = vld [vmem:[%s5 + $0x68] sm:$0xff]
        %v3126 = vld [vmem:[%s5 + $0x70] sm:$0xff]
        %v3127 = vld [vmem:[%s5 + $0x78] sm:$0xff]
        %v3128 = vld [vmem:[%s5 + $0x80] sm:$0xff]
        %v3129 = vld [vmem:[%s5 + $0x88] sm:$0xff]
        %v3130 = vld [vmem:[%s5 + $0x90] sm:$0xff]
        %v3131 = vld [vmem:[%s5 + $0x98] sm:$0xff]
        %v3132 = vld [vmem:[%s5 + $0xa0] sm:$0xff]
        %v3133 = vld [vmem:[%s5 + $0xa8] sm:$0xff]
        %v3134 = vld [vmem:[%s5 + $0xb0] sm:$0xff]
        %v3135 = vld [vmem:[%s5 + $0xb8] sm:$0xff]
        %v3136 = vld [vmem:[%s5 + $0xc0] sm:$0xff]
        %v3137 = vld [vmem:[%s5 + $0xc8] sm:$0xff]
        %v3138 = vld [vmem:[%s5 + $0xd0] sm:$0xff]
        %v3139 = vld [vmem:[%s5 + $0xd8] sm:$0xff]
        %v3140 = vld [vmem:[%s5 + $0xe0] sm:$0xff]
        %v3141 = vld [vmem:[%s5 + $0xe8] sm:$0xff]
        %v3142 = vld [vmem:[%s5 + $0xf0] sm:$0xff]
        %v3143 = vld [vmem:[%s5 + $0xf8] sm:$0xff]
        %v3144 = vld [vmem:[%s5 + $0x100] sm:$0xff]
        %v3145 = vld [vmem:[%s5 + $0x108] sm:$0xff]
        %v3146 = vld [vmem:[%s5 + $0x110] sm:$0xff]
        %v3147 = vld [vmem:[%s5 + $0x118] sm:$0xff]
        %v3148 = vld [vmem:[%s5 + $0x120] sm:$0xff]
        %v3149 = vld [vmem:[%s5 + $0x128] sm:$0xff]
        %v3150 = vld [vmem:[%s5 + $0x130] sm:$0xff]
        %v3151 = vld [vmem:[%s5 + $0x138] sm:$0xff]
        %v3152 = vld [vmem:[%s5 + $0x140] sm:$0xff]
        %v3153 = vld [vmem:[%s5 + $0x148] sm:$0xff]
        %v3154 = vld [vmem:[%s5 + $0x150] sm:$0xff]
        %v3155 = vld [vmem:[%s5 + $0x158] sm:$0xff]
        %v3156 = vld [vmem:[%s5 + $0x160] sm:$0xff]
        %v3157 = vld [vmem:[%s5 + $0x168] sm:$0xff]
        %v3158 = vld [vmem:[%s5 + $0x170] sm:$0xff]
        %v3159 = vld [vmem:[%s5 + $0x178] sm:$0xff]
        %v3160 = vld [vmem:[%s6] sm:$0x3]
        %v3162 = vlaneseq
        %v3163 = vshrl.u32 %v3162, 7
        %v3164 = vsub.s32 0, %v3163
        %v3165 = vrot.slane %v3160, %v3164
        %v3166 = vlaneseq
        %v3167 = vshrl.u32 %v3166, 7
        %v3168 = vsub.s32 1, %v3167
        %v3169 = vrot.slane %v3160, %v3168
        %v3220 = vunpack.c.l.b16 %v3112
        %v3221 = vunpack.c.h.b16 %v3112
        %v3222 = vunpack.c.l.b16 %v3113
        %v3223 = vunpack.c.h.b16 %v3113
        %v3224 = vunpack.c.l.b16 %v3114
        %v3225 = vunpack.c.h.b16 %v3114
        %v3226 = vunpack.c.l.b16 %v3115
        %v3227 = vunpack.c.h.b16 %v3115
        %v3228 = vunpack.c.l.b16 %v3116
        %v3229 = vunpack.c.h.b16 %v3116
        %v3230 = vunpack.c.l.b16 %v3117
        %v3231 = vunpack.c.h.b16 %v3117
        %v3232 = vunpack.c.l.b16 %v3118
        %v3233 = vunpack.c.h.b16 %v3118
        %v3234 = vunpack.c.l.b16 %v3119
        %v3235 = vunpack.c.h.b16 %v3119
        %v3236 = vunpack.c.l.b16 %v3120
        %v3237 = vunpack.c.h.b16 %v3120
        %v3238 = vunpack.c.l.b16 %v3121
        %v3239 = vunpack.c.h.b16 %v3121
        %v3240 = vunpack.c.l.b16 %v3122
        %v3241 = vunpack.c.h.b16 %v3122
        %v3242 = vunpack.c.l.b16 %v3123
        %v3243 = vunpack.c.h.b16 %v3123
        %v3244 = vunpack.c.l.b16 %v3124
        %v3245 = vunpack.c.h.b16 %v3124
        %v3246 = vunpack.c.l.b16 %v3125
        %v3247 = vunpack.c.h.b16 %v3125
        %v3248 = vunpack.c.l.b16 %v3126
        %v3249 = vunpack.c.h.b16 %v3126
        %v3250 = vunpack.c.l.b16 %v3127
        %v3251 = vunpack.c.h.b16 %v3127
        %v3252 = vunpack.c.l.b16 %v3128
        %v3253 = vunpack.c.h.b16 %v3128
        %v3254 = vunpack.c.l.b16 %v3129
        %v3255 = vunpack.c.h.b16 %v3129
        %v3256 = vunpack.c.l.b16 %v3130
        %v3257 = vunpack.c.h.b16 %v3130
        %v3258 = vunpack.c.l.b16 %v3131
        %v3259 = vunpack.c.h.b16 %v3131
        %v3260 = vunpack.c.l.b16 %v3132
        %v3261 = vunpack.c.h.b16 %v3132
        %v3262 = vunpack.c.l.b16 %v3133
        %v3263 = vunpack.c.h.b16 %v3133
        %v3264 = vunpack.c.l.b16 %v3134
        %v3265 = vunpack.c.h.b16 %v3134
        %v3266 = vunpack.c.l.b16 %v3135
        %v3267 = vunpack.c.h.b16 %v3135
        %v3268 = vunpack.c.l.b16 %v3136
        %v3269 = vunpack.c.h.b16 %v3136
        %v3270 = vunpack.c.l.b16 %v3137
        %v3271 = vunpack.c.h.b16 %v3137
        %v3272 = vunpack.c.l.b16 %v3138
        %v3273 = vunpack.c.h.b16 %v3138
        %v3274 = vunpack.c.l.b16 %v3139
        %v3275 = vunpack.c.h.b16 %v3139
        %v3276 = vunpack.c.l.b16 %v3140
        %v3277 = vunpack.c.h.b16 %v3140
        %v3278 = vunpack.c.l.b16 %v3141
        %v3279 = vunpack.c.h.b16 %v3141
        %v3280 = vunpack.c.l.b16 %v3142
        %v3281 = vunpack.c.h.b16 %v3142
        %v3282 = vunpack.c.l.b16 %v3143
        %v3283 = vunpack.c.h.b16 %v3143
        %v3284 = vunpack.c.l.b16 %v3144
        %v3285 = vunpack.c.h.b16 %v3144
        %v3286 = vunpack.c.l.b16 %v3145
        %v3287 = vunpack.c.h.b16 %v3145
        %v3288 = vunpack.c.l.b16 %v3146
        %v3289 = vunpack.c.h.b16 %v3146
        %v3290 = vunpack.c.l.b16 %v3147
        %v3291 = vunpack.c.h.b16 %v3147
        %v3292 = vunpack.c.l.b16 %v3148
        %v3293 = vunpack.c.h.b16 %v3148
        %v3294 = vunpack.c.l.b16 %v3149
        %v3295 = vunpack.c.h.b16 %v3149
        %v3296 = vunpack.c.l.b16 %v3150
        %v3297 = vunpack.c.h.b16 %v3150
        %v3298 = vunpack.c.l.b16 %v3151
        %v3299 = vunpack.c.h.b16 %v3151
        %v3300 = vunpack.c.l.b16 %v3152
        %v3301 = vunpack.c.h.b16 %v3152
        %v3302 = vunpack.c.l.b16 %v3153
        %v3303 = vunpack.c.h.b16 %v3153
        %v3304 = vunpack.c.l.b16 %v3154
        %v3305 = vunpack.c.h.b16 %v3154
        %v3306 = vunpack.c.l.b16 %v3155
        %v3307 = vunpack.c.h.b16 %v3155
        %v3308 = vunpack.c.l.b16 %v3156
        %v3309 = vunpack.c.h.b16 %v3156
        %v3310 = vunpack.c.l.b16 %v3157
        %v3311 = vunpack.c.h.b16 %v3157
        %v3312 = vunpack.c.l.b16 %v3158
        %v3313 = vunpack.c.h.b16 %v3158
        %v3314 = vunpack.c.l.b16 %v3159
        %v3315 = vunpack.c.h.b16 %v3159
        %v3316 = vpack.c.b16 %v3222, %v3220
        %v3317 = vpack.c.b16 %v3223, %v3221
        %v3318 = vpack.c.b16 %v3226, %v3224
        %v3319 = vpack.c.b16 %v3227, %v3225
        %v3320 = vpack.c.b16 %v3230, %v3228
        %v3321 = vpack.c.b16 %v3231, %v3229
        %v3322 = vpack.c.b16 %v3234, %v3232
        %v3323 = vpack.c.b16 %v3235, %v3233
        %v3324 = vpack.c.b16 %v3238, %v3236
        %v3325 = vpack.c.b16 %v3239, %v3237
        %v3326 = vpack.c.b16 %v3242, %v3240
        %v3327 = vpack.c.b16 %v3243, %v3241
        %v3328 = vpack.c.b16 %v3246, %v3244
        %v3329 = vpack.c.b16 %v3247, %v3245
        %v3330 = vpack.c.b16 %v3250, %v3248
        %v3331 = vpack.c.b16 %v3251, %v3249
        %v3332 = vpack.c.b16 %v3254, %v3252
        %v3333 = vpack.c.b16 %v3255, %v3253
        %v3334 = vpack.c.b16 %v3258, %v3256
        %v3335 = vpack.c.b16 %v3259, %v3257
        %v3336 = vpack.c.b16 %v3262, %v3260
        %v3337 = vpack.c.b16 %v3263, %v3261
        %v3338 = vpack.c.b16 %v3266, %v3264
        %v3339 = vpack.c.b16 %v3267, %v3265
        %v3340 = vpack.c.b16 %v3270, %v3268
        %v3341 = vpack.c.b16 %v3271, %v3269
        %v3342 = vpack.c.b16 %v3274, %v3272
        %v3343 = vpack.c.b16 %v3275, %v3273
        %v3344 = vpack.c.b16 %v3278, %v3276
        %v3345 = vpack.c.b16 %v3279, %v3277
        %v3346 = vpack.c.b16 %v3282, %v3280
        %v3347 = vpack.c.b16 %v3283, %v3281
        %v3348 = vpack.c.b16 %v3286, %v3284
        %v3349 = vpack.c.b16 %v3287, %v3285
        %v3350 = vpack.c.b16 %v3290, %v3288
        %v3351 = vpack.c.b16 %v3291, %v3289
        %v3352 = vpack.c.b16 %v3294, %v3292
        %v3353 = vpack.c.b16 %v3295, %v3293
        %v3354 = vpack.c.b16 %v3298, %v3296
        %v3355 = vpack.c.b16 %v3299, %v3297
        %v3356 = vpack.c.b16 %v3302, %v3300
        %v3357 = vpack.c.b16 %v3303, %v3301
        %v3358 = vpack.c.b16 %v3306, %v3304
        %v3359 = vpack.c.b16 %v3307, %v3305
        %v3360 = vpack.c.b16 %v3310, %v3308
        %v3361 = vpack.c.b16 %v3311, %v3309
        %v3362 = vpack.c.b16 %v3314, %v3312
        %v3363 = vpack.c.b16 %v3315, %v3313
        %3412 = vmatprep.subr.bf16.mxu0 %v3317
        %3413 = vmatpush1.bf16.msra.mxu0 %v3316
        %3414 = vmatprep.subr.bf16.mxu0 %v3319
        %3415 = vmatpush1.bf16.msra.mxu0 %v3318
        %3416 = vmatprep.subr.bf16.mxu0 %v3321
        %3417 = vmatpush1.bf16.msra.mxu0 %v3320
        %3418 = vmatprep.subr.bf16.mxu0 %v3323
        %3419 = vmatpush1.bf16.msra.mxu0 %v3322
        %3420 = vmatprep.subr.bf16.mxu0 %v3325
        %3421 = vmatpush1.bf16.msra.mxu0 %v3324
        %3422 = vmatprep.subr.bf16.mxu0 %v3327
        %3423 = vmatpush1.bf16.msra.mxu0 %v3326
        %3424 = vmatprep.subr.bf16.mxu0 %v3329
        %3425 = vmatpush1.bf16.msra.mxu0 %v3328
        %3426 = vmatprep.subr.bf16.mxu0 %v3331
        %3427 = vmatpush1.bf16.msra.mxu0 %v3330
        %3428 = vmatprep.subr.bf16.mxu0 %v3333
        %3429 = vmatpush1.bf16.msra.mxu0 %v3332
        %3430 = vmatprep.subr.bf16.mxu0 %v3335
        %3431 = vmatpush1.bf16.msra.mxu0 %v3334
        %3432 = vmatprep.subr.bf16.mxu0 %v3337
        %3433 = vmatpush1.bf16.msra.mxu0 %v3336
        %3434 = vmatprep.subr.bf16.mxu0 %v3339
        %3435 = vmatpush1.bf16.msra.mxu0 %v3338
        %3436 = vmatprep.subr.bf16.mxu0 %v3341
        %3437 = vmatpush1.bf16.msra.mxu0 %v3340
        %3438 = vmatprep.subr.bf16.mxu0 %v3343
        %3439 = vmatpush1.bf16.msra.mxu0 %v3342
        %3440 = vmatprep.subr.bf16.mxu0 %v3345
        %3441 = vmatpush1.bf16.msra.mxu0 %v3344
        %3442 = vmatprep.subr.bf16.mxu0 %v3347
        %3443 = vmatpush1.bf16.msra.mxu0 %v3346
        %3444 = vmatprep.mubr.bf16.mxu0 %v3075
        %3445 = vmatmul.mubr.bf16.gmra.mrb[0].mxu0 %v3057
        %v3446 = vpop.f32.mrb[0].mxu0
        %v3447 = vadd.f32 %v3165, %v3446
        %v3448 = vpop.f32.mrb[0].mxu0
        %v3449 = vadd.f32 %v3169, %v3448
        %v3450 = vpop.f32.mrb[0].mxu0
        %v3451 = vadd.f32 %v3165, %v3450
        %v3452 = vpop.f32.mrb[0].mxu0
        %v3453 = vadd.f32 %v3169, %v3452
        %3454 = vmatprep.mubr.bf16.mxu0 %v3076
        %3455 = vmatmul.mubr.bf16.gmra.mrb[0].mxu0 %v3058
        %v3456 = vpop.f32.mrb[0].mxu0
        %v3457 = vadd.f32 %v3165, %v3456
        %v3458 = vpop.f32.mrb[0].mxu0
        %v3459 = vadd.f32 %v3169, %v3458
        %v3460 = vpop.f32.mrb[0].mxu0
        %v3461 = vadd.f32 %v3165, %v3460
        %v3462 = vpop.f32.mrb[0].mxu0
        %v3463 = vadd.f32 %v3169, %v3462
        %3464 = vmatprep.mubr.bf16.mxu0 %v3077
        %3465 = vmatmul.mubr.bf16.gmra.mrb[0].mxu0 %v3059
        %v3466 = vpop.f32.mrb[0].mxu0
        %v3467 = vadd.f32 %v3165, %v3466
        %v3468 = vpop.f32.mrb[0].mxu0
        %v3469 = vadd.f32 %v3169, %v3468
        %v3470 = vpop.f32.mrb[0].mxu0
        %v3471 = vadd.f32 %v3165, %v3470
        %v3472 = vpop.f32.mrb[0].mxu0
        %v3473 = vadd.f32 %v3169, %v3472
        %3474 = vmatprep.mubr.bf16.mxu0 %v3078
        %3475 = vmatmul.mubr.bf16.gmra.mrb[0].mxu0 %v3060
        %v3476 = vpop.f32.mrb[0].mxu0
        %v3477 = vadd.f32 %v3165, %v3476
        %v3478 = vpop.f32.mrb[0].mxu0
        %v3479 = vadd.f32 %v3169, %v3478
        %v3480 = vpop.f32.mrb[0].mxu0
        %v3481 = vadd.f32 %v3165, %v3480
        %v3482 = vpop.f32.mrb[0].mxu0
        %v3483 = vadd.f32 %v3169, %v3482
        %3484 = vmatprep.mubr.bf16.mxu0 %v3079
        %3485 = vmatmul.mubr.bf16.gmra.mrb[0].mxu0 %v3061
        %v3486 = vpop.f32.mrb[0].mxu0
        %v3487 = vadd.f32 %v3165, %v3486
        %v3488 = vpop.f32.mrb[0].mxu0
        %v3489 = vadd.f32 %v3169, %v3488
        %v3490 = vpop.f32.mrb[0].mxu0
        %v3491 = vadd.f32 %v3165, %v3490
        %v3492 = vpop.f32.mrb[0].mxu0
        %v3493 = vadd.f32 %v3169, %v3492
        %3494 = vmatprep.mubr.bf16.mxu0 %v3080
        %3495 = vmatmul.mubr.bf16.gmra.mrb[0].mxu0 %v3062
        %v3496 = vpop.f32.mrb[0].mxu0
        %v3497 = vadd.f32 %v3165, %v3496
        %v3498 = vpop.f32.mrb[0].mxu0
        %v3499 = vadd.f32 %v3169, %v3498
        %v3500 = vpop.f32.mrb[0].mxu0
        %v3501 = vadd.f32 %v3165, %v3500
        %v3502 = vpop.f32.mrb[0].mxu0
        %v3503 = vadd.f32 %v3169, %v3502
        %3504 = vmatprep.mubr.bf16.mxu0 %v3081
        %3505 = vmatmul.mubr.bf16.gmra.mrb[0].mxu0 %v3063
        %v3506 = vpop.f32.mrb[0].mxu0
        %v3507 = vadd.f32 %v3165, %v3506
        %v3508 = vpop.f32.mrb[0].mxu0
        %v3509 = vadd.f32 %v3169, %v3508
        %v3510 = vpop.f32.mrb[0].mxu0
        %v3511 = vadd.f32 %v3165, %v3510
        %v3512 = vpop.f32.mrb[0].mxu0
        %v3513 = vadd.f32 %v3169, %v3512
        %3514 = vmatprep.mubr.bf16.mxu0 %v3082
        %3515 = vmatmul.mubr.bf16.gmra.mrb[0].mxu0 %v3064
        %v3516 = vpop.f32.mrb[0].mxu0
        %v3517 = vadd.f32 %v3165, %v3516
        %v3518 = vpop.f32.mrb[0].mxu0
        %v3519 = vadd.f32 %v3169, %v3518
        %v3520 = vpop.f32.mrb[0].mxu0
        %v3521 = vadd.f32 %v3165, %v3520
        %v3522 = vpop.f32.mrb[0].mxu0
        %v3523 = vadd.f32 %v3169, %v3522
        %3524 = vmatprep.mubr.bf16.mxu0 %v3083
        %3525 = vmatmul.mubr.bf16.gmra.mrb[0].mxu0 %v3065
        %v3526 = vpop.f32.mrb[0].mxu0
        %v3527 = vadd.f32 %v3165, %v3526
        %v3528 = vpop.f32.mrb[0].mxu0
        %v3529 = vadd.f32 %v3169, %v3528
        %v3530 = vpop.f32.mrb[0].mxu0
        %v3531 = vadd.f32 %v3165, %v3530
        %v3532 = vpop.f32.mrb[0].mxu0
        %v3533 = vadd.f32 %v3169, %v3532
        %3534 = vmatprep.mubr.bf16.mxu0 %v3084
        %3535 = vmatmul.mubr.bf16.gmra.mrb[0].mxu0 %v3066
        %v3536 = vpop.f32.mrb[0].mxu0
        %v3537 = vadd.f32 %v3165, %v3536
        %v3538 = vpop.f32.mrb[0].mxu0
        %v3539 = vadd.f32 %v3169, %v3538
        %v3540 = vpop.f32.mrb[0].mxu0
        %v3541 = vadd.f32 %v3165, %v3540
        %v3542 = vpop.f32.mrb[0].mxu0
        %v3543 = vadd.f32 %v3169, %v3542
        %3544 = vmatprep.mubr.bf16.mxu0 %v3085
        %3545 = vmatmul.mubr.bf16.gmra.mrb[0].mxu0 %v3067
        %v3546 = vpop.f32.mrb[0].mxu0
        %v3547 = vadd.f32 %v3165, %v3546
        %v3548 = vpop.f32.mrb[0].mxu0
        %v3549 = vadd.f32 %v3169, %v3548
        %v3550 = vpop.f32.mrb[0].mxu0
        %v3551 = vadd.f32 %v3165, %v3550
        %v3552 = vpop.f32.mrb[0].mxu0
        %v3553 = vadd.f32 %v3169, %v3552
        %3554 = vmatprep.mubr.bf16.mxu0 %v3086
        %3555 = vmatmul.mubr.bf16.gmra.mrb[0].mxu0 %v3068
        %v3556 = vpop.f32.mrb[0].mxu0
        %v3557 = vadd.f32 %v3165, %v3556
        %v3558 = vpop.f32.mrb[0].mxu0
        %v3559 = vadd.f32 %v3169, %v3558
        %v3560 = vpop.f32.mrb[0].mxu0
        %v3561 = vadd.f32 %v3165, %v3560
        %v3562 = vpop.f32.mrb[0].mxu0
        %v3563 = vadd.f32 %v3169, %v3562
        %3564 = vmatprep.mubr.bf16.mxu0 %v3087
        %3565 = vmatmul.mubr.bf16.gmra.mrb[0].mxu0 %v3069
        %v3566 = vpop.f32.mrb[0].mxu0
        %v3567 = vadd.f32 %v3165, %v3566
        %v3568 = vpop.f32.mrb[0].mxu0
        %v3569 = vadd.f32 %v3169, %v3568
        %v3570 = vpop.f32.mrb[0].mxu0
        %v3571 = vadd.f32 %v3165, %v3570
        %v3572 = vpop.f32.mrb[0].mxu0
        %v3573 = vadd.f32 %v3169, %v3572
        %3574 = vmatprep.mubr.bf16.mxu0 %v3088
        %3575 = vmatmul.mubr.bf16.gmra.mrb[0].mxu0 %v3070
        %v3576 = vpop.f32.mrb[0].mxu0
        %v3577 = vadd.f32 %v3165, %v3576
        %v3578 = vpop.f32.mrb[0].mxu0
        %v3579 = vadd.f32 %v3169, %v3578
        %v3580 = vpop.f32.mrb[0].mxu0
        %v3581 = vadd.f32 %v3165, %v3580
        %v3582 = vpop.f32.mrb[0].mxu0
        %v3583 = vadd.f32 %v3169, %v3582
        %3584 = vmatprep.mubr.bf16.mxu0 %v3089
        %3585 = vmatmul.mubr.bf16.gmra.mrb[0].mxu0 %v3071
        %v3586 = vpop.f32.mrb[0].mxu0
        %v3587 = vadd.f32 %v3165, %v3586
        %v3588 = vpop.f32.mrb[0].mxu0
        %v3589 = vadd.f32 %v3169, %v3588
        %v3590 = vpop.f32.mrb[0].mxu0
        %v3591 = vadd.f32 %v3165, %v3590
        %v3592 = vpop.f32.mrb[0].mxu0
        %v3593 = vadd.f32 %v3169, %v3592
        %3594 = vmatprep.mubr.bf16.mxu0 %v3090
        %3595 = vmatmul.mubr.bf16.gmra.mrb[0].mxu0 %v3072
        %v3596 = vpop.f32.mrb[0].mxu0
        %v3597 = vadd.f32 %v3165, %v3596
        %v3598 = vpop.f32.mrb[0].mxu0
        %v3599 = vadd.f32 %v3169, %v3598
        %v3600 = vpop.f32.mrb[0].mxu0
        %v3601 = vadd.f32 %v3165, %v3600
        %v3602 = vpop.f32.mrb[0].mxu0
        %v3603 = vadd.f32 %v3169, %v3602
        %3604 = vmatprep.mubr.bf16.mxu0 %v3091
        %3605 = vmatmul.mubr.bf16.gmra.mrb[0].mxu0 %v3073
        %v3606 = vpop.f32.mrb[0].mxu0
        %v3607 = vadd.f32 %v3165, %v3606
        %v3608 = vpop.f32.mrb[0].mxu0
        %v3609 = vadd.f32 %v3169, %v3608
        %v3610 = vpop.f32.mrb[0].mxu0
        %v3611 = vadd.f32 %v3165, %v3610
        %v3612 = vpop.f32.mrb[0].mxu0
        %v3613 = vadd.f32 %v3169, %v3612
        %3614 = vmatprep.mubr.bf16.mxu0 %v3092
        %3615 = vmatmul.mubr.bf16.gmra.mrb[0].mxu0 %v3074
        %v3616 = vpop.f32.mrb[0].mxu0
        %v3617 = vadd.f32 %v3165, %v3616
        %v3618 = vpop.f32.mrb[0].mxu0
        %v3619 = vadd.f32 %v3169, %v3618
        %v3620 = vpop.f32.mrb[0].mxu0
        %v3621 = vadd.f32 %v3165, %v3620
        %v3622 = vpop.f32.mrb[0].mxu0
        %v3623 = vadd.f32 %v3169, %v3622
        %3624 = vdwg.mxu0
        %3625 = vmatprep.subr.bf16.mxu0 %v3349
        %3626 = vmatpush1.bf16.msra.mxu0 %v3348
        %3627 = vmatprep.subr.bf16.mxu0 %v3351
        %3628 = vmatpush1.bf16.msra.mxu0 %v3350
        %3629 = vmatprep.subr.bf16.mxu0 %v3353
        %3630 = vmatpush1.bf16.msra.mxu0 %v3352
        %3631 = vmatprep.subr.bf16.mxu0 %v3355
        %3632 = vmatpush1.bf16.msra.mxu0 %v3354
        %3633 = vmatprep.subr.bf16.mxu0 %v3357
        %3634 = vmatpush1.bf16.msra.mxu0 %v3356
        %3635 = vmatprep.subr.bf16.mxu0 %v3359
        %3636 = vmatpush1.bf16.msra.mxu0 %v3358
        %3637 = vmatprep.subr.bf16.mxu0 %v3361
        %3638 = vmatpush1.bf16.msra.mxu0 %v3360
        %3639 = vmatprep.subr.bf16.mxu0 %v3363
        %3640 = vmatpush1.bf16.msra.mxu0 %v3362
        %3641 = vmatprep.subr.bf16.mxu0 0
        %3642 = vmatpush1.bf16.msra.mxu0 0
        %3643 = vmatprep.subr.bf16.mxu0 0
        %3644 = vmatpush1.bf16.msra.mxu0 0
        %3645 = vmatprep.subr.bf16.mxu0 0
        %3646 = vmatpush1.bf16.msra.mxu0 0
        %3647 = vmatprep.subr.bf16.mxu0 0
        %3648 = vmatpush1.bf16.msra.mxu0 0
        %3649 = vmatprep.subr.bf16.mxu0 0
        %3650 = vmatpush1.bf16.msra.mxu0 0
        %3651 = vmatprep.subr.bf16.mxu0 0
        %3652 = vmatpush1.bf16.msra.mxu0 0
        %3653 = vmatprep.subr.bf16.mxu0 0
        %3654 = vmatpush1.bf16.msra.mxu0 0
        %3655 = vmatprep.subr.bf16.mxu0 0
        %3656 = vmatpush1.bf16.msra.mxu0 0
        %3657 = vmatprep.mubr.bf16.mxu0 0
        %3658 = vmatmul.mubr.bf16.gmra.mrb[0].mxu0 %v3094
        %v3659 = vpop.f32.mrb[0].mxu0
        %v3660 = vadd.f32 %v3447, %v3659
        %v3661 = vpop.f32.mrb[0].mxu0
        %v3662 = vadd.f32 %v3449, %v3661
        %v3663 = vpop.f32.mrb[0].mxu0
        %v3664 = vadd.f32 %v3451, %v3663
        %v3665 = vpop.f32.mrb[0].mxu0
        %v3666 = vadd.f32 %v3453, %v3665
        %3667 = vmatprep.mubr.bf16.mxu0 0
        %3668 = vmatmul.mubr.bf16.gmra.mrb[0].mxu0 %v3095
        %v3669 = vpop.f32.mrb[0].mxu0
        %v3670 = vadd.f32 %v3457, %v3669
        %v3671 = vpop.f32.mrb[0].mxu0
        %v3672 = vadd.f32 %v3459, %v3671
        %v3673 = vpop.f32.mrb[0].mxu0
        %v3674 = vadd.f32 %v3461, %v3673
        %v3675 = vpop.f32.mrb[0].mxu0
        %v3676 = vadd.f32 %v3463, %v3675
        %3677 = vmatprep.mubr.bf16.mxu0 0
        %3678 = vmatmul.mubr.bf16.gmra.mrb[0].mxu0 %v3096
        %v3679 = vpop.f32.mrb[0].mxu0
        %v3680 = vadd.f32 %v3467, %v3679
        %v3681 = vpop.f32.mrb[0].mxu0
        %v3682 = vadd.f32 %v3469, %v3681
        %v3683 = vpop.f32.mrb[0].mxu0
        %v3684 = vadd.f32 %v3471, %v3683
        %v3685 = vpop.f32.mrb[0].mxu0
        %v3686 = vadd.f32 %v3473, %v3685
        %3687 = vmatprep.mubr.bf16.mxu0 0
        %3688 = vmatmul.mubr.bf16.gmra.mrb[0].mxu0 %v3097
        %v3689 = vpop.f32.mrb[0].mxu0
        %v3690 = vadd.f32 %v3477, %v3689
        %v3691 = vpop.f32.mrb[0].mxu0
        %v3692 = vadd.f32 %v3479, %v3691
        %v3693 = vpop.f32.mrb[0].mxu0
        %v3694 = vadd.f32 %v3481, %v3693
        %v3695 = vpop.f32.mrb[0].mxu0
        %v3696 = vadd.f32 %v3483, %v3695
        %3697 = vmatprep.mubr.bf16.mxu0 0
        %3698 = vmatmul.mubr.bf16.gmra.mrb[0].mxu0 %v3098
        %v3699 = vpop.f32.mrb[0].mxu0
        %v3700 = vadd.f32 %v3487, %v3699
        %v3701 = vpop.f32.mrb[0].mxu0
        %v3702 = vadd.f32 %v3489, %v3701
        %v3703 = vpop.f32.mrb[0].mxu0
        %v3704 = vadd.f32 %v3491, %v3703
        %v3705 = vpop.f32.mrb[0].mxu0
        %v3706 = vadd.f32 %v3493, %v3705
        %3707 = vmatprep.mubr.bf16.mxu0 0
        %3708 = vmatmul.mubr.bf16.gmra.mrb[0].mxu0 %v3099
        %v3709 = vpop.f32.mrb[0].mxu0
        %v3710 = vadd.f32 %v3497, %v3709
        %v3711 = vpop.f32.mrb[0].mxu0
        %v3712 = vadd.f32 %v3499, %v3711
        %v3713 = vpop.f32.mrb[0].mxu0
        %v3714 = vadd.f32 %v3501, %v3713
        %v3715 = vpop.f32.mrb[0].mxu0
        %v3716 = vadd.f32 %v3503, %v3715
        %3717 = vmatprep.mubr.bf16.mxu0 0
        %3718 = vmatmul.mubr.bf16.gmra.mrb[0].mxu0 %v3100
        %v3719 = vpop.f32.mrb[0].mxu0
        %v3720 = vadd.f32 %v3507, %v3719
        %v3721 = vpop.f32.mrb[0].mxu0
        %v3722 = vadd.f32 %v3509, %v3721
        %v3723 = vpop.f32.mrb[0].mxu0
        %v3724 = vadd.f32 %v3511, %v3723
        %v3725 = vpop.f32.mrb[0].mxu0
        %v3726 = vadd.f32 %v3513, %v3725
        %3727 = vmatprep.mubr.bf16.mxu0 0
        %3728 = vmatmul.mubr.bf16.gmra.mrb[0].mxu0 %v3101
        %v3729 = vpop.f32.mrb[0].mxu0
        %v3730 = vadd.f32 %v3517, %v3729
        %v3731 = vpop.f32.mrb[0].mxu0
        %v3732 = vadd.f32 %v3519, %v3731
        %v3733 = vpop.f32.mrb[0].mxu0
        %v3734 = vadd.f32 %v3521, %v3733
        %v3735 = vpop.f32.mrb[0].mxu0
        %v3736 = vadd.f32 %v3523, %v3735
        %3737 = vmatprep.mubr.bf16.mxu0 0
        %3738 = vmatmul.mubr.bf16.gmra.mrb[0].mxu0 %v3102
        %v3739 = vpop.f32.mrb[0].mxu0
        %v3740 = vadd.f32 %v3527, %v3739
        %v3741 = vpop.f32.mrb[0].mxu0
        %v3742 = vadd.f32 %v3529, %v3741
        %v3743 = vpop.f32.mrb[0].mxu0
        %v3744 = vadd.f32 %v3531, %v3743
        %v3745 = vpop.f32.mrb[0].mxu0
        %v3746 = vadd.f32 %v3533, %v3745
        %3747 = vmatprep.mubr.bf16.mxu0 0
        %3748 = vmatmul.mubr.bf16.gmra.mrb[0].mxu0 %v3103
        %v3749 = vpop.f32.mrb[0].mxu0
        %v3750 = vadd.f32 %v3537, %v3749
        %v3751 = vpop.f32.mrb[0].mxu0
        %v3752 = vadd.f32 %v3539, %v3751
        %v3753 = vpop.f32.mrb[0].mxu0
        %v3754 = vadd.f32 %v3541, %v3753
        %v3755 = vpop.f32.mrb[0].mxu0
        %v3756 = vadd.f32 %v3543, %v3755
        %3757 = vmatprep.mubr.bf16.mxu0 0
        %3758 = vmatmul.mubr.bf16.gmra.mrb[0].mxu0 %v3104
        %v3759 = vpop.f32.mrb[0].mxu0
        %v3760 = vadd.f32 %v3547, %v3759
        %v3761 = vpop.f32.mrb[0].mxu0
        %v3762 = vadd.f32 %v3549, %v3761
        %v3763 = vpop.f32.mrb[0].mxu0
        %v3764 = vadd.f32 %v3551, %v3763
        %v3765 = vpop.f32.mrb[0].mxu0
        %v3766 = vadd.f32 %v3553, %v3765
        %3767 = vmatprep.mubr.bf16.mxu0 0
        %3768 = vmatmul.mubr.bf16.gmra.mrb[0].mxu0 %v3105
        %v3769 = vpop.f32.mrb[0].mxu0
        %v3770 = vadd.f32 %v3557, %v3769
        %v3771 = vpop.f32.mrb[0].mxu0
        %v3772 = vadd.f32 %v3559, %v3771
        %v3773 = vpop.f32.mrb[0].mxu0
        %v3774 = vadd.f32 %v3561, %v3773
        %v3775 = vpop.f32.mrb[0].mxu0
        %v3776 = vadd.f32 %v3563, %v3775
        %3777 = vmatprep.mubr.bf16.mxu0 0
        %3778 = vmatmul.mubr.bf16.gmra.mrb[0].mxu0 %v3106
        %v3779 = vpop.f32.mrb[0].mxu0
        %v3780 = vadd.f32 %v3567, %v3779
        %v3781 = vpop.f32.mrb[0].mxu0
        %v3782 = vadd.f32 %v3569, %v3781
        %v3783 = vpop.f32.mrb[0].mxu0
        %v3784 = vadd.f32 %v3571, %v3783
        %v3785 = vpop.f32.mrb[0].mxu0
        %v3786 = vadd.f32 %v3573, %v3785
        %3787 = vmatprep.mubr.bf16.mxu0 0
        %3788 = vmatmul.mubr.bf16.gmra.mrb[0].mxu0 %v3107
        %v3789 = vpop.f32.mrb[0].mxu0
        %v3790 = vadd.f32 %v3577, %v3789
        %v3791 = vpop.f32.mrb[0].mxu0
        %v3792 = vadd.f32 %v3579, %v3791
        %v3793 = vpop.f32.mrb[0].mxu0
        %v3794 = vadd.f32 %v3581, %v3793
        %v3795 = vpop.f32.mrb[0].mxu0
        %v3796 = vadd.f32 %v3583, %v3795
        %3797 = vmatprep.mubr.bf16.mxu0 0
        %3798 = vmatmul.mubr.bf16.gmra.mrb[0].mxu0 %v3108
        %v3799 = vpop.f32.mrb[0].mxu0
        %v3800 = vadd.f32 %v3587, %v3799
        %v3801 = vpop.f32.mrb[0].mxu0
        %v3802 = vadd.f32 %v3589, %v3801
        %v3803 = vpop.f32.mrb[0].mxu0
        %v3804 = vadd.f32 %v3591, %v3803
        %v3805 = vpop.f32.mrb[0].mxu0
        %v3806 = vadd.f32 %v3593, %v3805
        %3807 = vmatprep.mubr.bf16.mxu0 0
        %3808 = vmatmul.mubr.bf16.gmra.mrb[0].mxu0 %v3109
        %v3809 = vpop.f32.mrb[0].mxu0
        %v3810 = vadd.f32 %v3597, %v3809
        %v3811 = vpop.f32.mrb[0].mxu0
        %v3812 = vadd.f32 %v3599, %v3811
        %v3813 = vpop.f32.mrb[0].mxu0
        %v3814 = vadd.f32 %v3601, %v3813
        %v3815 = vpop.f32.mrb[0].mxu0
        %v3816 = vadd.f32 %v3603, %v3815
        %3817 = vmatprep.mubr.bf16.mxu0 0
        %3818 = vmatmul.mubr.bf16.gmra.mrb[0].mxu0 %v3110
        %v3819 = vpop.f32.mrb[0].mxu0
        %v3820 = vadd.f32 %v3607, %v3819
        %v3821 = vpop.f32.mrb[0].mxu0
        %v3822 = vadd.f32 %v3609, %v3821
        %v3823 = vpop.f32.mrb[0].mxu0
        %v3824 = vadd.f32 %v3611, %v3823
        %v3825 = vpop.f32.mrb[0].mxu0
        %v3826 = vadd.f32 %v3613, %v3825
        %3827 = vmatprep.mubr.bf16.mxu0 0
        %3828 = vmatmul.mubr.bf16.gmra.mrb[0].mxu0 %v3111
        %v3829 = vpop.f32.mrb[0].mxu0
        %v3830 = vadd.f32 %v3617, %v3829
        %v3831 = vpop.f32.mrb[0].mxu0
        %v3832 = vadd.f32 %v3619, %v3831
        %v3833 = vpop.f32.mrb[0].mxu0
        %v3834 = vadd.f32 %v3621, %v3833
        %v3835 = vpop.f32.mrb[0].mxu0
        %v3836 = vadd.f32 %v3623, %v3835
        %3837 = vdwg.mxu0
        %v3838 = vmax.f32 %v3660, 0.0
        %v3839 = vmax.f32 %v3662, 0.0
        %v3840 = vmax.f32 %v3664, 0.0
        %v3841 = vmax.f32 %v3666, 0.0
        %v3842 = vmax.f32 %v3670, 0.0
        %v3843 = vmax.f32 %v3672, 0.0
        %v3844 = vmax.f32 %v3674, 0.0
        %v3845 = vmax.f32 %v3676, 0.0
        %v3846 = vmax.f32 %v3680, 0.0
        %v3847 = vmax.f32 %v3682, 0.0
        %v3848 = vmax.f32 %v3684, 0.0
        %v3849 = vmax.f32 %v3686, 0.0
        %v3850 = vmax.f32 %v3690, 0.0
        %v3851 = vmax.f32 %v3692, 0.0
        %v3852 = vmax.f32 %v3694, 0.0
        %v3853 = vmax.f32 %v3696, 0.0
        %v3854 = vmax.f32 %v3700, 0.0
        %v3855 = vmax.f32 %v3702, 0.0
        %v3856 = vmax.f32 %v3704, 0.0
        %v3857 = vmax.f32 %v3706, 0.0
        %v3858 = vmax.f32 %v3710, 0.0
        %v3859 = vmax.f32 %v3712, 0.0
        %v3860 = vmax.f32 %v3714, 0.0
        %v3861 = vmax.f32 %v3716, 0.0
        %v3862 = vmax.f32 %v3720, 0.0
        %v3863 = vmax.f32 %v3722, 0.0
        %v3864 = vmax.f32 %v3724, 0.0
        %v3865 = vmax.f32 %v3726, 0.0
        %v3866 = vmax.f32 %v3730, 0.0
        %v3867 = vmax.f32 %v3732, 0.0
        %v3868 = vmax.f32 %v3734, 0.0
        %v3869 = vmax.f32 %v3736, 0.0
        %v3870 = vmax.f32 %v3740, 0.0
        %v3871 = vmax.f32 %v3742, 0.0
        %v3872 = vmax.f32 %v3744, 0.0
        %v3873 = vmax.f32 %v3746, 0.0
        %v3874 = vmax.f32 %v3750, 0.0
        %v3875 = vmax.f32 %v3752, 0.0
        %v3876 = vmax.f32 %v3754, 0.0
        %v3877 = vmax.f32 %v3756, 0.0
        %v3878 = vmax.f32 %v3760, 0.0
        %v3879 = vmax.f32 %v3762, 0.0
        %v3880 = vmax.f32 %v3764, 0.0
        %v3881 = vmax.f32 %v3766, 0.0
        %v3882 = vmax.f32 %v3770, 0.0
        %v3883 = vmax.f32 %v3772, 0.0
        %v3884 = vmax.f32 %v3774, 0.0
        %v3885 = vmax.f32 %v3776, 0.0
        %v3886 = vmax.f32 %v3780, 0.0
        %v3887 = vmax.f32 %v3782, 0.0
        %v3888 = vmax.f32 %v3784, 0.0
        %v3889 = vmax.f32 %v3786, 0.0
        %v3890 = vmax.f32 %v3790, 0.0
        %v3891 = vmax.f32 %v3792, 0.0
        %v3892 = vmax.f32 %v3794, 0.0
        %v3893 = vmax.f32 %v3796, 0.0
        %v3894 = vmax.f32 %v3800, 0.0
        %v3895 = vmax.f32 %v3802, 0.0
        %v3896 = vmax.f32 %v3804, 0.0
        %v3897 = vmax.f32 %v3806, 0.0
        %v3898 = vmax.f32 %v3810, 0.0
        %v3899 = vmax.f32 %v3812, 0.0
        %v3900 = vmax.f32 %v3814, 0.0
        %v3901 = vmax.f32 %v3816, 0.0
        %v3902 = vmax.f32 %v3820, 0.0
        %v3903 = vmax.f32 %v3822, 0.0
        %v3904 = vmax.f32 %v3824, 0.0
        %v3905 = vmax.f32 %v3826, 0.0
        %v3906 = vmax.f32 %v3830, 0.0
        %v3907 = vmax.f32 %v3832, 0.0
        %v3908 = vmax.f32 %v3834, 0.0
        %v3909 = vmax.f32 %v3836, 0.0
        %v3910 = vpack.c.bf16 %v3840, %v3838
        %v3911 = vpack.c.bf16 %v3841, %v3839
        %v3912 = vpack.c.bf16 %v3844, %v3842
        %v3913 = vpack.c.bf16 %v3845, %v3843
        %v3914 = vpack.c.bf16 %v3848, %v3846
        %v3915 = vpack.c.bf16 %v3849, %v3847
        %v3916 = vpack.c.bf16 %v3852, %v3850
        %v3917 = vpack.c.bf16 %v3853, %v3851
        %v3918 = vpack.c.bf16 %v3856, %v3854
        %v3919 = vpack.c.bf16 %v3857, %v3855
        %v3920 = vpack.c.bf16 %v3860, %v3858
        %v3921 = vpack.c.bf16 %v3861, %v3859
        %v3922 = vpack.c.bf16 %v3864, %v3862
        %v3923 = vpack.c.bf16 %v3865, %v3863
        %v3924 = vpack.c.bf16 %v3868, %v3866
        %v3925 = vpack.c.bf16 %v3869, %v3867
        %v3926 = vpack.c.bf16 %v3872, %v3870
        %v3927 = vpack.c.bf16 %v3873, %v3871
        %v3928 = vpack.c.bf16 %v3876, %v3874
        %v3929 = vpack.c.bf16 %v3877, %v3875
        %v3930 = vpack.c.bf16 %v3880, %v3878
        %v3931 = vpack.c.bf16 %v3881, %v3879
        %v3932 = vpack.c.bf16 %v3884, %v3882
        %v3933 = vpack.c.bf16 %v3885, %v3883
        %v3934 = vpack.c.bf16 %v3888, %v3886
        %v3935 = vpack.c.bf16 %v3889, %v3887
        %v3936 = vpack.c.bf16 %v3892, %v3890
        %v3937 = vpack.c.bf16 %v3893, %v3891
        %v3938 = vpack.c.bf16 %v3896, %v3894
        %v3939 = vpack.c.bf16 %v3897, %v3895
        %v3940 = vpack.c.bf16 %v3900, %v3898
        %v3941 = vpack.c.bf16 %v3901, %v3899
        %v3942 = vpack.c.bf16 %v3904, %v3902
        %v3943 = vpack.c.bf16 %v3905, %v3903
        %v3944 = vpack.c.bf16 %v3908, %v3906
        %v3945 = vpack.c.bf16 %v3909, %v3907
        %s3946 = scalar_lea.vmem [#allocation4], 16
        %3947 = vst [vmem:[%s3946] sm:$0xff] %v3910
        %3948 = vst [vmem:[%s3946 + $0x8] sm:$0xff] %v3911
        %3949 = vst [vmem:[%s3946 + $0x10] sm:$0xff] %v3912
        %3950 = vst [vmem:[%s3946 + $0x18] sm:$0xff] %v3913
        %3951 = vst [vmem:[%s3946 + $0x20] sm:$0xff] %v3914
        %3952 = vst [vmem:[%s3946 + $0x28] sm:$0xff] %v3915
        %3953 = vst [vmem:[%s3946 + $0x30] sm:$0xff] %v3916
        %3954 = vst [vmem:[%s3946 + $0x38] sm:$0xff] %v3917
        %3955 = vst [vmem:[%s3946 + $0x40] sm:$0xff] %v3918
        %3956 = vst [vmem:[%s3946 + $0x48] sm:$0xff] %v3919
        %3957 = vst [vmem:[%s3946 + $0x50] sm:$0xff] %v3920
        %3958 = vst [vmem:[%s3946 + $0x58] sm:$0xff] %v3921
        %3959 = vst [vmem:[%s3946 + $0x60] sm:$0xff] %v3922
        %3960 = vst [vmem:[%s3946 + $0x68] sm:$0xff] %v3923
        %3961 = vst [vmem:[%s3946 + $0x70] sm:$0xff] %v3924
        %3962 = vst [vmem:[%s3946 + $0x78] sm:$0xff] %v3925
        %3963 = vst [vmem:[%s3946 + $0x80] sm:$0xff] %v3926
        %3964 = vst [vmem:[%s3946 + $0x88] sm:$0xff] %v3927
        %3965 = vst [vmem:[%s3946 + $0x90] sm:$0xff] %v3928
        %3966 = vst [vmem:[%s3946 + $0x98] sm:$0xff] %v3929
        %3967 = vst [vmem:[%s3946 + $0xa0] sm:$0xff] %v3930
        %3968 = vst [vmem:[%s3946 + $0xa8] sm:$0xff] %v3931
        %3969 = vst [vmem:[%s3946 + $0xb0] sm:$0xff] %v3932
        %3970 = vst [vmem:[%s3946 + $0xb8] sm:$0xff] %v3933
        %3971 = vst [vmem:[%s3946 + $0xc0] sm:$0xff] %v3934
        %3972 = vst [vmem:[%s3946 + $0xc8] sm:$0xff] %v3935
        %3973 = vst [vmem:[%s3946 + $0xd0] sm:$0xff] %v3936
        %3974 = vst [vmem:[%s3946 + $0xd8] sm:$0xff] %v3937
        %3975 = vst [vmem:[%s3946 + $0xe0] sm:$0xff] %v3938
        %3976 = vst [vmem:[%s3946 + $0xe8] sm:$0xff] %v3939
        %3977 = vst [vmem:[%s3946 + $0xf0] sm:$0xff] %v3940
        %3978 = vst [vmem:[%s3946 + $0xf8] sm:$0xff] %v3941
        %3979 = vst [vmem:[%s3946 + $0x100] sm:$0xff] %v3942
        %3980 = vst [vmem:[%s3946 + $0x108] sm:$0xff] %v3943
        %3981 = vst [vmem:[%s3946 + $0x110] sm:$0xff] %v3944
        %3982 = vst [vmem:[%s3946 + $0x118] sm:$0xff] %v3945
        %v3983 = vld [vmem:[#allocation4] sm:$0xff]
        %v3984 = vld [vmem:[#allocation4 + $0x8] sm:$0xff]
        %v3985 = vld [vmem:[#allocation4 + $0x10] sm:$0xff]
        %v3986 = vld [vmem:[#allocation4 + $0x18] sm:$0xff]
        %v3987 = vld [vmem:[#allocation4 + $0x20] sm:$0xff]
        %v3988 = vld [vmem:[#allocation4 + $0x28] sm:$0xff]
        %v3989 = vld [vmem:[#allocation4 + $0x30] sm:$0xff]
        %v3990 = vld [vmem:[#allocation4 + $0x38] sm:$0xff]
        %v3991 = vld [vmem:[#allocation4 + $0x40] sm:$0xff]
        %v3992 = vld [vmem:[#allocation4 + $0x48] sm:$0xff]
        %v3993 = vld [vmem:[#allocation4 + $0x50] sm:$0xff]
        %v3994 = vld [vmem:[#allocation4 + $0x58] sm:$0xff]
        %v3995 = vld [vmem:[#allocation4 + $0x60] sm:$0xff]
        %v3996 = vld [vmem:[#allocation4 + $0x68] sm:$0xff]
        %v3997 = vld [vmem:[#allocation4 + $0x70] sm:$0xff]
        %v3998 = vld [vmem:[#allocation4 + $0x78] sm:$0xff]
        %v3999 = vld [vmem:[#allocation4 + $0x80] sm:$0xff]
        %v4000 = vld [vmem:[#allocation4 + $0x88] sm:$0xff]
        %v4001 = vld [vmem:[#allocation4 + $0x90] sm:$0xff]
        %v4002 = vld [vmem:[#allocation4 + $0x98] sm:$0xff]
        %v4003 = vld [vmem:[#allocation4 + $0xa0] sm:$0xff]
        %v4004 = vld [vmem:[#allocation4 + $0xa8] sm:$0xff]
        %v4005 = vld [vmem:[#allocation4 + $0xb0] sm:$0xff]
        %v4006 = vld [vmem:[#allocation4 + $0xb8] sm:$0xff]
        %v4007 = vld [vmem:[#allocation4 + $0xc0] sm:$0xff]
        %v4008 = vld [vmem:[#allocation4 + $0xc8] sm:$0xff]
        %v4009 = vld [vmem:[#allocation4 + $0xd0] sm:$0xff]
        %v4010 = vld [vmem:[#allocation4 + $0xd8] sm:$0xff]
        %v4011 = vld [vmem:[#allocation4 + $0xe0] sm:$0xff]
        %v4012 = vld [vmem:[#allocation4 + $0xe8] sm:$0xff]
        %v4013 = vld [vmem:[#allocation4 + $0xf0] sm:$0xff]
        %v4014 = vld [vmem:[#allocation4 + $0xf8] sm:$0xff]
        %v4015 = vld [vmem:[#allocation4 + $0x100] sm:$0xff]
        %v4016 = vld [vmem:[#allocation4 + $0x108] sm:$0xff]
        %v4017 = vld [vmem:[#allocation4 + $0x110] sm:$0xff]
        %v4018 = vld [vmem:[#allocation4 + $0x118] sm:$0xff]
        %v4019 = vld [vmem:[%s3946] sm:$0xff]
        %v4020 = vld [vmem:[%s3946 + $0x8] sm:$0xff]
        %v4021 = vld [vmem:[%s3946 + $0x10] sm:$0xff]
        %v4022 = vld [vmem:[%s3946 + $0x18] sm:$0xff]
        %v4023 = vld [vmem:[%s3946 + $0x20] sm:$0xff]
        %v4024 = vld [vmem:[%s3946 + $0x28] sm:$0xff]
        %v4025 = vld [vmem:[%s3946 + $0x30] sm:$0xff]
        %v4026 = vld [vmem:[%s3946 + $0x38] sm:$0xff]
        %v4027 = vld [vmem:[%s3946 + $0x40] sm:$0xff]
        %v4028 = vld [vmem:[%s3946 + $0x48] sm:$0xff]
        %v4029 = vld [vmem:[%s3946 + $0x50] sm:$0xff]
        %v4030 = vld [vmem:[%s3946 + $0x58] sm:$0xff]
        %v4031 = vld [vmem:[%s3946 + $0x60] sm:$0xff]
        %v4032 = vld [vmem:[%s3946 + $0x68] sm:$0xff]
        %v4033 = vld [vmem:[%s3946 + $0x70] sm:$0xff]
        %v4034 = vld [vmem:[%s3946 + $0x78] sm:$0xff]
        %v4035 = vld [vmem:[%s3946 + $0x80] sm:$0xff]
        %v4036 = vld [vmem:[%s3946 + $0x88] sm:$0xff]
        %v4037 = vld [vmem:[%s3946 + $0x90] sm:$0xff]
        %v4038 = vld [vmem:[%s3946 + $0x98] sm:$0xff]
        %v4039 = vld [vmem:[%s3946 + $0xa0] sm:$0xff]
        %v4040 = vld [vmem:[%s3946 + $0xa8] sm:$0xff]
        %v4041 = vld [vmem:[%s3946 + $0xb0] sm:$0xff]
        %v4042 = vld [vmem:[%s3946 + $0xb8] sm:$0xff]
        %v4043 = vld [vmem:[%s3946 + $0xc0] sm:$0xff]
        %v4044 = vld [vmem:[%s3946 + $0xc8] sm:$0xff]
        %v4045 = vld [vmem:[%s3946 + $0xd0] sm:$0xff]
        %v4046 = vld [vmem:[%s3946 + $0xd8] sm:$0xff]
        %v4047 = vld [vmem:[%s3946 + $0xe0] sm:$0xff]
        %v4048 = vld [vmem:[%s3946 + $0xe8] sm:$0xff]
        %v4049 = vld [vmem:[%s3946 + $0xf0] sm:$0xff]
        %v4050 = vld [vmem:[%s3946 + $0xf8] sm:$0xff]
        %v4051 = vld [vmem:[%s3946 + $0x100] sm:$0xff]
        %v4052 = vld [vmem:[%s3946 + $0x108] sm:$0xff]
        %v4053 = vld [vmem:[%s3946 + $0x110] sm:$0xff]
        %v4054 = vld [vmem:[%s3946 + $0x118] sm:$0xff]
        %s4055 = scalar_lea.vmem [#allocation4], 32
        %v4056 = vld [vmem:[%s4055] sm:$0xff]
        %v4057 = vld [vmem:[%s4055 + $0x8] sm:$0xff]
        %v4058 = vld [vmem:[%s4055 + $0x10] sm:$0xff]
        %v4059 = vld [vmem:[%s4055 + $0x18] sm:$0xff]
        %v4060 = vld [vmem:[%s4055 + $0x20] sm:$0xff]
        %v4061 = vld [vmem:[%s4055 + $0x28] sm:$0xff]
        %v4062 = vld [vmem:[%s4055 + $0x30] sm:$0xff]
        %v4063 = vld [vmem:[%s4055 + $0x38] sm:$0xff]
        %v4064 = vld [vmem:[%s4055 + $0x40] sm:$0xff]
        %v4065 = vld [vmem:[%s4055 + $0x48] sm:$0xff]
        %v4066 = vld [vmem:[%s4055 + $0x50] sm:$0xff]
        %v4067 = vld [vmem:[%s4055 + $0x58] sm:$0xff]
        %v4068 = vld [vmem:[%s4055 + $0x60] sm:$0xff]
        %v4069 = vld [vmem:[%s4055 + $0x68] sm:$0xff]
        %v4070 = vld [vmem:[%s4055 + $0x70] sm:$0xff]
        %v4071 = vld [vmem:[%s4055 + $0x78] sm:$0xff]
        %v4072 = vld [vmem:[%s4055 + $0x80] sm:$0xff]
        %v4073 = vld [vmem:[%s4055 + $0x88] sm:$0xff]
        %v4074 = vld [vmem:[%s4055 + $0x90] sm:$0xff]
        %v4075 = vld [vmem:[%s4055 + $0x98] sm:$0xff]
        %v4076 = vld [vmem:[%s4055 + $0xa0] sm:$0xff]
        %v4077 = vld [vmem:[%s4055 + $0xa8] sm:$0xff]
        %v4078 = vld [vmem:[%s4055 + $0xb0] sm:$0xff]
        %v4079 = vld [vmem:[%s4055 + $0xb8] sm:$0xff]
        %v4080 = vld [vmem:[%s4055 + $0xc0] sm:$0xff]
        %v4081 = vld [vmem:[%s4055 + $0xc8] sm:$0xff]
        %v4082 = vld [vmem:[%s4055 + $0xd0] sm:$0xff]
        %v4083 = vld [vmem:[%s4055 + $0xd8] sm:$0xff]
        %v4084 = vld [vmem:[%s4055 + $0xe0] sm:$0xff]
        %v4085 = vld [vmem:[%s4055 + $0xe8] sm:$0xff]
        %v4086 = vld [vmem:[%s4055 + $0xf0] sm:$0xff]
        %v4087 = vld [vmem:[%s4055 + $0xf8] sm:$0xff]
        %v4088 = vld [vmem:[%s4055 + $0x100] sm:$0xff]
        %v4089 = vld [vmem:[%s4055 + $0x108] sm:$0xff]
        %v4090 = vld [vmem:[%s4055 + $0x110] sm:$0xff]
        %v4091 = vld [vmem:[%s4055 + $0x118] sm:$0xff]
        %v4092 = vld [vmem:[%s7] sm:$0xff]
        %v4093 = vld [vmem:[%s7 + $0x8] sm:$0xff]
        %v4094 = vld [vmem:[%s7 + $0x10] sm:$0xff]
        %v4095 = vld [vmem:[%s7 + $0x18] sm:$0xff]
        %v4096 = vld [vmem:[%s7 + $0x20] sm:$0xff]
        %v4097 = vld [vmem:[%s7 + $0x28] sm:$0xff]
        %v4098 = vld [vmem:[%s7 + $0x30] sm:$0xff]
        %v4099 = vld [vmem:[%s7 + $0x38] sm:$0xff]
        %v4100 = vld [vmem:[%s7 + $0x40] sm:$0xff]
        %v4101 = vld [vmem:[%s7 + $0x48] sm:$0xff]
        %v4102 = vld [vmem:[%s7 + $0x50] sm:$0xff]
        %v4103 = vld [vmem:[%s7 + $0x58] sm:$0xff]
        %v4104 = vld [vmem:[%s7 + $0x60] sm:$0xff]
        %v4105 = vld [vmem:[%s7 + $0x68] sm:$0xff]
        %v4106 = vld [vmem:[%s7 + $0x70] sm:$0xff]
        %v4107 = vld [vmem:[%s7 + $0x78] sm:$0xff]
        %v4108 = vld [vmem:[%s7 + $0x80] sm:$0xff]
        %v4109 = vld [vmem:[%s7 + $0x88] sm:$0xff]
        %v4110 = vld [vmem:[%s7 + $0x90] sm:$0xff]
        %v4111 = vld [vmem:[%s7 + $0x98] sm:$0xff]
        %v4112 = vld [vmem:[%s7 + $0xa0] sm:$0xff]
        %v4113 = vld [vmem:[%s7 + $0xa8] sm:$0xff]
        %v4114 = vld [vmem:[%s7 + $0xb0] sm:$0xff]
        %v4115 = vld [vmem:[%s7 + $0xb8] sm:$0xff]
        %v4116 = vld [vmem:[%s7 + $0xc0] sm:$0xff]
        %v4117 = vld [vmem:[%s7 + $0xc8] sm:$0xff]
        %v4118 = vld [vmem:[%s7 + $0xd0] sm:$0xff]
        %v4119 = vld [vmem:[%s7 + $0xd8] sm:$0xff]
        %v4120 = vld [vmem:[%s7 + $0xe0] sm:$0xff]
        %v4121 = vld [vmem:[%s7 + $0xe8] sm:$0xff]
        %v4122 = vld [vmem:[%s7 + $0xf0] sm:$0xff]
        %v4123 = vld [vmem:[%s7 + $0xf8] sm:$0xff]
        %v4124 = vld [vmem:[%s7 + $0x100] sm:$0xff]
        %v4125 = vld [vmem:[%s7 + $0x108] sm:$0xff]
        %v4126 = vld [vmem:[%s7 + $0x110] sm:$0xff]
        %v4127 = vld [vmem:[%s7 + $0x118] sm:$0xff]
        %v4128 = vld [vmem:[%s7 + $0x120] sm:$0xff]
        %v4129 = vld [vmem:[%s7 + $0x128] sm:$0xff]
        %v4130 = vld [vmem:[%s7 + $0x130] sm:$0xff]
        %v4131 = vld [vmem:[%s7 + $0x138] sm:$0xff]
        %v4132 = vld [vmem:[%s7 + $0x140] sm:$0xff]
        %v4133 = vld [vmem:[%s7 + $0x148] sm:$0xff]
        %v4134 = vld [vmem:[%s7 + $0x150] sm:$0xff]
        %v4135 = vld [vmem:[%s7 + $0x158] sm:$0xff]
        %v4136 = vld [vmem:[%s7 + $0x160] sm:$0xff]
        %v4137 = vld [vmem:[%s7 + $0x168] sm:$0xff]
        %v4138 = vld [vmem:[%s7 + $0x170] sm:$0xff]
        %v4139 = vld [vmem:[%s7 + $0x178] sm:$0xff]
        %v4140 = vld [vmem:[%s7 + $0x180] sm:$0xff]
        %v4141 = vld [vmem:[%s7 + $0x188] sm:$0xff]
        %v4142 = vld [vmem:[%s7 + $0x190] sm:$0xff]
        %v4143 = vld [vmem:[%s7 + $0x198] sm:$0xff]
        %v4144 = vld [vmem:[%s7 + $0x1a0] sm:$0xff]
        %v4145 = vld [vmem:[%s7 + $0x1a8] sm:$0xff]
        %v4146 = vld [vmem:[%s7 + $0x1b0] sm:$0xff]
        %v4147 = vld [vmem:[%s7 + $0x1b8] sm:$0xff]
        %v4148 = vld [vmem:[%s7 + $0x1c0] sm:$0xff]
        %v4149 = vld [vmem:[%s7 + $0x1c8] sm:$0xff]
        %v4150 = vld [vmem:[%s7 + $0x1d0] sm:$0xff]
        %v4151 = vld [vmem:[%s7 + $0x1d8] sm:$0xff]
        %v4152 = vld [vmem:[%s7 + $0x1e0] sm:$0xff]
        %v4153 = vld [vmem:[%s7 + $0x1e8] sm:$0xff]
        %v4154 = vld [vmem:[%s7 + $0x1f0] sm:$0xff]
        %v4155 = vld [vmem:[%s7 + $0x1f8] sm:$0xff]
        %v4156 = vld [vmem:[%s7 + $0x200] sm:$0xff]
        %v4157 = vld [vmem:[%s7 + $0x208] sm:$0xff]
        %v4158 = vld [vmem:[%s7 + $0x210] sm:$0xff]
        %v4159 = vld [vmem:[%s7 + $0x218] sm:$0xff]
        %v4160 = vld [vmem:[%s7 + $0x220] sm:$0xff]
        %v4161 = vld [vmem:[%s7 + $0x228] sm:$0xff]
        %v4162 = vld [vmem:[%s7 + $0x230] sm:$0xff]
        %v4163 = vld [vmem:[%s7 + $0x238] sm:$0xff]
        %v4164 = vld [vmem:[%s7 + $0x240] sm:$0xff]
        %v4165 = vld [vmem:[%s7 + $0x248] sm:$0xff]
        %v4166 = vld [vmem:[%s7 + $0x250] sm:$0xff]
        %v4167 = vld [vmem:[%s7 + $0x258] sm:$0xff]
        %v4168 = vld [vmem:[%s7 + $0x260] sm:$0xff]
        %v4169 = vld [vmem:[%s7 + $0x268] sm:$0xff]
        %v4170 = vld [vmem:[%s7 + $0x270] sm:$0xff]
        %v4171 = vld [vmem:[%s7 + $0x278] sm:$0xff]
        %v4172 = vld [vmem:[%s7 + $0x280] sm:$0xff]
        %v4173 = vld [vmem:[%s7 + $0x288] sm:$0xff]
        %v4174 = vld [vmem:[%s7 + $0x290] sm:$0xff]
        %v4175 = vld [vmem:[%s7 + $0x298] sm:$0xff]
        %v4176 = vld [vmem:[%s7 + $0x2a0] sm:$0xff]
        %v4177 = vld [vmem:[%s7 + $0x2a8] sm:$0xff]
        %v4178 = vld [vmem:[%s7 + $0x2b0] sm:$0xff]
        %v4179 = vld [vmem:[%s7 + $0x2b8] sm:$0xff]
        %v4180 = vld [vmem:[%s7 + $0x2c0] sm:$0xff]
        %v4181 = vld [vmem:[%s7 + $0x2c8] sm:$0xff]
        %v4182 = vld [vmem:[%s7 + $0x2d0] sm:$0xff]
        %v4183 = vld [vmem:[%s7 + $0x2d8] sm:$0xff]
        %v4184 = vld [vmem:[%s7 + $0x2e0] sm:$0xff]
        %v4185 = vld [vmem:[%s7 + $0x2e8] sm:$0xff]
        %v4186 = vld [vmem:[%s7 + $0x2f0] sm:$0xff]
        %v4187 = vld [vmem:[%s7 + $0x2f8] sm:$0xff]
        %v4188 = vld [vmem:[%s8] sm:$0x3]
        %v4190 = vlaneseq
        %v4191 = vshrl.u32 %v4190, 7
        %v4192 = vsub.s32 0, %v4191
        %v4193 = vrot.slane %v4188, %v4192
        %v4194 = vlaneseq
        %v4195 = vshrl.u32 %v4194, 7
        %v4196 = vsub.s32 1, %v4195
        %v4197 = vrot.slane %v4188, %v4196
        %v4296 = vunpack.c.l.b16 %v4092
        %v4297 = vunpack.c.h.b16 %v4092
        %v4298 = vunpack.c.l.b16 %v4093
        %v4299 = vunpack.c.h.b16 %v4093
        %v4300 = vunpack.c.l.b16 %v4094
        %v4301 = vunpack.c.h.b16 %v4094
        %v4302 = vunpack.c.l.b16 %v4095
        %v4303 = vunpack.c.h.b16 %v4095
        %v4304 = vunpack.c.l.b16 %v4096
        %v4305 = vunpack.c.h.b16 %v4096
        %v4306 = vunpack.c.l.b16 %v4097
        %v4307 = vunpack.c.h.b16 %v4097
        %v4308 = vunpack.c.l.b16 %v4098
        %v4309 = vunpack.c.h.b16 %v4098
        %v4310 = vunpack.c.l.b16 %v4099
        %v4311 = vunpack.c.h.b16 %v4099
        %v4312 = vunpack.c.l.b16 %v4100
        %v4313 = vunpack.c.h.b16 %v4100
        %v4314 = vunpack.c.l.b16 %v4101
        %v4315 = vunpack.c.h.b16 %v4101
        %v4316 = vunpack.c.l.b16 %v4102
        %v4317 = vunpack.c.h.b16 %v4102
        %v4318 = vunpack.c.l.b16 %v4103
        %v4319 = vunpack.c.h.b16 %v4103
        %v4320 = vunpack.c.l.b16 %v4104
        %v4321 = vunpack.c.h.b16 %v4104
        %v4322 = vunpack.c.l.b16 %v4105
        %v4323 = vunpack.c.h.b16 %v4105
        %v4324 = vunpack.c.l.b16 %v4106
        %v4325 = vunpack.c.h.b16 %v4106
        %v4326 = vunpack.c.l.b16 %v4107
        %v4327 = vunpack.c.h.b16 %v4107
        %v4328 = vunpack.c.l.b16 %v4108
        %v4329 = vunpack.c.h.b16 %v4108
        %v4330 = vunpack.c.l.b16 %v4109
        %v4331 = vunpack.c.h.b16 %v4109
        %v4332 = vunpack.c.l.b16 %v4110
        %v4333 = vunpack.c.h.b16 %v4110
        %v4334 = vunpack.c.l.b16 %v4111
        %v4335 = vunpack.c.h.b16 %v4111
        %v4336 = vunpack.c.l.b16 %v4112
        %v4337 = vunpack.c.h.b16 %v4112
        %v4338 = vunpack.c.l.b16 %v4113
        %v4339 = vunpack.c.h.b16 %v4113
        %v4340 = vunpack.c.l.b16 %v4114
        %v4341 = vunpack.c.h.b16 %v4114
        %v4342 = vunpack.c.l.b16 %v4115
        %v4343 = vunpack.c.h.b16 %v4115
        %v4344 = vunpack.c.l.b16 %v4116
        %v4345 = vunpack.c.h.b16 %v4116
        %v4346 = vunpack.c.l.b16 %v4117
        %v4347 = vunpack.c.h.b16 %v4117
        %v4348 = vunpack.c.l.b16 %v4118
        %v4349 = vunpack.c.h.b16 %v4118
        %v4350 = vunpack.c.l.b16 %v4119
        %v4351 = vunpack.c.h.b16 %v4119
        %v4352 = vunpack.c.l.b16 %v4120
        %v4353 = vunpack.c.h.b16 %v4120
        %v4354 = vunpack.c.l.b16 %v4121
        %v4355 = vunpack.c.h.b16 %v4121
        %v4356 = vunpack.c.l.b16 %v4122
        %v4357 = vunpack.c.h.b16 %v4122
        %v4358 = vunpack.c.l.b16 %v4123
        %v4359 = vunpack.c.h.b16 %v4123
        %v4360 = vunpack.c.l.b16 %v4124
        %v4361 = vunpack.c.h.b16 %v4124
        %v4362 = vunpack.c.l.b16 %v4125
        %v4363 = vunpack.c.h.b16 %v4125
        %v4364 = vunpack.c.l.b16 %v4126
        %v4365 = vunpack.c.h.b16 %v4126
        %v4366 = vunpack.c.l.b16 %v4127
        %v4367 = vunpack.c.h.b16 %v4127
        %v4368 = vunpack.c.l.b16 %v4128
        %v4369 = vunpack.c.h.b16 %v4128
        %v4370 = vunpack.c.l.b16 %v4129
        %v4371 = vunpack.c.h.b16 %v4129
        %v4372 = vunpack.c.l.b16 %v4130
        %v4373 = vunpack.c.h.b16 %v4130
        %v4374 = vunpack.c.l.b16 %v4131
        %v4375 = vunpack.c.h.b16 %v4131
        %v4376 = vunpack.c.l.b16 %v4132
        %v4377 = vunpack.c.h.b16 %v4132
        %v4378 = vunpack.c.l.b16 %v4133
        %v4379 = vunpack.c.h.b16 %v4133
        %v4380 = vunpack.c.l.b16 %v4134
        %v4381 = vunpack.c.h.b16 %v4134
        %v4382 = vunpack.c.l.b16 %v4135
        %v4383 = vunpack.c.h.b16 %v4135
        %v4384 = vunpack.c.l.b16 %v4136
        %v4385 = vunpack.c.h.b16 %v4136
        %v4386 = vunpack.c.l.b16 %v4137
        %v4387 = vunpack.c.h.b16 %v4137
        %v4388 = vunpack.c.l.b16 %v4138
        %v4389 = vunpack.c.h.b16 %v4138
        %v4390 = vunpack.c.l.b16 %v4139
        %v4391 = vunpack.c.h.b16 %v4139
        %v4392 = vunpack.c.l.b16 %v4140
        %v4393 = vunpack.c.h.b16 %v4140
        %v4394 = vunpack.c.l.b16 %v4141
        %v4395 = vunpack.c.h.b16 %v4141
        %v4396 = vunpack.c.l.b16 %v4142
        %v4397 = vunpack.c.h.b16 %v4142
        %v4398 = vunpack.c.l.b16 %v4143
        %v4399 = vunpack.c.h.b16 %v4143
        %v4400 = vunpack.c.l.b16 %v4144
        %v4401 = vunpack.c.h.b16 %v4144
        %v4402 = vunpack.c.l.b16 %v4145
        %v4403 = vunpack.c.h.b16 %v4145
        %v4404 = vunpack.c.l.b16 %v4146
        %v4405 = vunpack.c.h.b16 %v4146
        %v4406 = vunpack.c.l.b16 %v4147
        %v4407 = vunpack.c.h.b16 %v4147
        %v4408 = vunpack.c.l.b16 %v4148
        %v4409 = vunpack.c.h.b16 %v4148
        %v4410 = vunpack.c.l.b16 %v4149
        %v4411 = vunpack.c.h.b16 %v4149
        %v4412 = vunpack.c.l.b16 %v4150
        %v4413 = vunpack.c.h.b16 %v4150
        %v4414 = vunpack.c.l.b16 %v4151
        %v4415 = vunpack.c.h.b16 %v4151
        %v4416 = vunpack.c.l.b16 %v4152
        %v4417 = vunpack.c.h.b16 %v4152
        %v4418 = vunpack.c.l.b16 %v4153
        %v4419 = vunpack.c.h.b16 %v4153
        %v4420 = vunpack.c.l.b16 %v4154
        %v4421 = vunpack.c.h.b16 %v4154
        %v4422 = vunpack.c.l.b16 %v4155
        %v4423 = vunpack.c.h.b16 %v4155
        %v4424 = vunpack.c.l.b16 %v4156
        %v4425 = vunpack.c.h.b16 %v4156
        %v4426 = vunpack.c.l.b16 %v4157
        %v4427 = vunpack.c.h.b16 %v4157
        %v4428 = vunpack.c.l.b16 %v4158
        %v4429 = vunpack.c.h.b16 %v4158
        %v4430 = vunpack.c.l.b16 %v4159
        %v4431 = vunpack.c.h.b16 %v4159
        %v4432 = vunpack.c.l.b16 %v4160
        %v4433 = vunpack.c.h.b16 %v4160
        %v4434 = vunpack.c.l.b16 %v4161
        %v4435 = vunpack.c.h.b16 %v4161
        %v4436 = vunpack.c.l.b16 %v4162
        %v4437 = vunpack.c.h.b16 %v4162
        %v4438 = vunpack.c.l.b16 %v4163
        %v4439 = vunpack.c.h.b16 %v4163
        %v4440 = vunpack.c.l.b16 %v4164
        %v4441 = vunpack.c.h.b16 %v4164
        %v4442 = vunpack.c.l.b16 %v4165
        %v4443 = vunpack.c.h.b16 %v4165
        %v4444 = vunpack.c.l.b16 %v4166
        %v4445 = vunpack.c.h.b16 %v4166
        %v4446 = vunpack.c.l.b16 %v4167
        %v4447 = vunpack.c.h.b16 %v4167
        %v4448 = vunpack.c.l.b16 %v4168
        %v4449 = vunpack.c.h.b16 %v4168
        %v4450 = vunpack.c.l.b16 %v4169
        %v4451 = vunpack.c.h.b16 %v4169
        %v4452 = vunpack.c.l.b16 %v4170
        %v4453 = vunpack.c.h.b16 %v4170
        %v4454 = vunpack.c.l.b16 %v4171
        %v4455 = vunpack.c.h.b16 %v4171
        %v4456 = vunpack.c.l.b16 %v4172
        %v4457 = vunpack.c.h.b16 %v4172
        %v4458 = vunpack.c.l.b16 %v4173
        %v4459 = vunpack.c.h.b16 %v4173
        %v4460 = vunpack.c.l.b16 %v4174
        %v4461 = vunpack.c.h.b16 %v4174
        %v4462 = vunpack.c.l.b16 %v4175
        %v4463 = vunpack.c.h.b16 %v4175
        %v4464 = vunpack.c.l.b16 %v4176
        %v4465 = vunpack.c.h.b16 %v4176
        %v4466 = vunpack.c.l.b16 %v4177
        %v4467 = vunpack.c.h.b16 %v4177
        %v4468 = vunpack.c.l.b16 %v4178
        %v4469 = vunpack.c.h.b16 %v4178
        %v4470 = vunpack.c.l.b16 %v4179
        %v4471 = vunpack.c.h.b16 %v4179
        %v4472 = vunpack.c.l.b16 %v4180
        %v4473 = vunpack.c.h.b16 %v4180
        %v4474 = vunpack.c.l.b16 %v4181
        %v4475 = vunpack.c.h.b16 %v4181
        %v4476 = vunpack.c.l.b16 %v4182
        %v4477 = vunpack.c.h.b16 %v4182
        %v4478 = vunpack.c.l.b16 %v4183
        %v4479 = vunpack.c.h.b16 %v4183
        %v4480 = vunpack.c.l.b16 %v4184
        %v4481 = vunpack.c.h.b16 %v4184
        %v4482 = vunpack.c.l.b16 %v4185
        %v4483 = vunpack.c.h.b16 %v4185
        %v4484 = vunpack.c.l.b16 %v4186
        %v4485 = vunpack.c.h.b16 %v4186
        %v4486 = vunpack.c.l.b16 %v4187
        %v4487 = vunpack.c.h.b16 %v4187
        %v4488 = vpack.c.b16 %v4298, %v4296
        %v4489 = vpack.c.b16 %v4299, %v4297
        %v4490 = vpack.c.b16 %v4302, %v4300
        %v4491 = vpack.c.b16 %v4303, %v4301
        %v4492 = vpack.c.b16 %v4306, %v4304
        %v4493 = vpack.c.b16 %v4307, %v4305
        %v4494 = vpack.c.b16 %v4310, %v4308
        %v4495 = vpack.c.b16 %v4311, %v4309
        %v4496 = vpack.c.b16 %v4314, %v4312
        %v4497 = vpack.c.b16 %v4315, %v4313
        %v4498 = vpack.c.b16 %v4318, %v4316
        %v4499 = vpack.c.b16 %v4319, %v4317
        %v4500 = vpack.c.b16 %v4322, %v4320
        %v4501 = vpack.c.b16 %v4323, %v4321
        %v4502 = vpack.c.b16 %v4326, %v4324
        %v4503 = vpack.c.b16 %v4327, %v4325
        %v4504 = vpack.c.b16 %v4330, %v4328
        %v4505 = vpack.c.b16 %v4331, %v4329
        %v4506 = vpack.c.b16 %v4334, %v4332
        %v4507 = vpack.c.b16 %v4335, %v4333
        %v4508 = vpack.c.b16 %v4338, %v4336
        %v4509 = vpack.c.b16 %v4339, %v4337
        %v4510 = vpack.c.b16 %v4342, %v4340
        %v4511 = vpack.c.b16 %v4343, %v4341
        %v4512 = vpack.c.b16 %v4346, %v4344
        %v4513 = vpack.c.b16 %v4347, %v4345
        %v4514 = vpack.c.b16 %v4350, %v4348
        %v4515 = vpack.c.b16 %v4351, %v4349
        %v4516 = vpack.c.b16 %v4354, %v4352
        %v4517 = vpack.c.b16 %v4355, %v4353
        %v4518 = vpack.c.b16 %v4358, %v4356
        %v4519 = vpack.c.b16 %v4359, %v4357
        %v4520 = vpack.c.b16 %v4362, %v4360
        %v4521 = vpack.c.b16 %v4363, %v4361
        %v4522 = vpack.c.b16 %v4366, %v4364
        %v4523 = vpack.c.b16 %v4367, %v4365
        %v4524 = vpack.c.b16 %v4370, %v4368
        %v4525 = vpack.c.b16 %v4371, %v4369
        %v4526 = vpack.c.b16 %v4374, %v4372
        %v4527 = vpack.c.b16 %v4375, %v4373
        %v4528 = vpack.c.b16 %v4378, %v4376
        %v4529 = vpack.c.b16 %v4379, %v4377
        %v4530 = vpack.c.b16 %v4382, %v4380
        %v4531 = vpack.c.b16 %v4383, %v4381
        %v4532 = vpack.c.b16 %v4386, %v4384
        %v4533 = vpack.c.b16 %v4387, %v4385
        %v4534 = vpack.c.b16 %v4390, %v4388
        %v4535 = vpack.c.b16 %v4391, %v4389
        %v4536 = vpack.c.b16 %v4394, %v4392
        %v4537 = vpack.c.b16 %v4395, %v4393
        %v4538 = vpack.c.b16 %v4398, %v4396
        %v4539 = vpack.c.b16 %v4399, %v4397
        %v4540 = vpack.c.b16 %v4402, %v4400
        %v4541 = vpack.c.b16 %v4403, %v4401
        %v4542 = vpack.c.b16 %v4406, %v4404
        %v4543 = vpack.c.b16 %v4407, %v4405
        %v4544 = vpack.c.b16 %v4410, %v4408
        %v4545 = vpack.c.b16 %v4411, %v4409
        %v4546 = vpack.c.b16 %v4414, %v4412
        %v4547 = vpack.c.b16 %v4415, %v4413
        %v4548 = vpack.c.b16 %v4418, %v4416
        %v4549 = vpack.c.b16 %v4419, %v4417
        %v4550 = vpack.c.b16 %v4422, %v4420
        %v4551 = vpack.c.b16 %v4423, %v4421
        %v4552 = vpack.c.b16 %v4426, %v4424
        %v4553 = vpack.c.b16 %v4427, %v4425
        %v4554 = vpack.c.b16 %v4430, %v4428
        %v4555 = vpack.c.b16 %v4431, %v4429
        %v4556 = vpack.c.b16 %v4434, %v4432
        %v4557 = vpack.c.b16 %v4435, %v4433
        %v4558 = vpack.c.b16 %v4438, %v4436
        %v4559 = vpack.c.b16 %v4439, %v4437
        %v4560 = vpack.c.b16 %v4442, %v4440
        %v4561 = vpack.c.b16 %v4443, %v4441
        %v4562 = vpack.c.b16 %v4446, %v4444
        %v4563 = vpack.c.b16 %v4447, %v4445
        %v4564 = vpack.c.b16 %v4450, %v4448
        %v4565 = vpack.c.b16 %v4451, %v4449
        %v4566 = vpack.c.b16 %v4454, %v4452
        %v4567 = vpack.c.b16 %v4455, %v4453
        %v4568 = vpack.c.b16 %v4458, %v4456
        %v4569 = vpack.c.b16 %v4459, %v4457
        %v4570 = vpack.c.b16 %v4462, %v4460
        %v4571 = vpack.c.b16 %v4463, %v4461
        %v4572 = vpack.c.b16 %v4466, %v4464
        %v4573 = vpack.c.b16 %v4467, %v4465
        %v4574 = vpack.c.b16 %v4470, %v4468
        %v4575 = vpack.c.b16 %v4471, %v4469
        %v4576 = vpack.c.b16 %v4474, %v4472
        %v4577 = vpack.c.b16 %v4475, %v4473
        %v4578 = vpack.c.b16 %v4478, %v4476
        %v4579 = vpack.c.b16 %v4479, %v4477
        %v4580 = vpack.c.b16 %v4482, %v4480
        %v4581 = vpack.c.b16 %v4483, %v4481
        %v4582 = vpack.c.b16 %v4486, %v4484
        %v4583 = vpack.c.b16 %v4487, %v4485
        %4680 = vmatprep.subr.bf16.mxu0 %v4489
        %4681 = vmatpush1.bf16.msra.mxu0 %v4488
        %4682 = vmatprep.subr.bf16.mxu0 %v4491
        %4683 = vmatpush1.bf16.msra.mxu0 %v4490
        %4684 = vmatprep.subr.bf16.mxu0 %v4493
        %4685 = vmatpush1.bf16.msra.mxu0 %v4492
        %4686 = vmatprep.subr.bf16.mxu0 %v4495
        %4687 = vmatpush1.bf16.msra.mxu0 %v4494
        %4688 = vmatprep.subr.bf16.mxu0 %v4497
        %4689 = vmatpush1.bf16.msra.mxu0 %v4496
        %4690 = vmatprep.subr.bf16.mxu0 %v4499
        %4691 = vmatpush1.bf16.msra.mxu0 %v4498
        %4692 = vmatprep.subr.bf16.mxu0 %v4501
        %4693 = vmatpush1.bf16.msra.mxu0 %v4500
        %4694 = vmatprep.subr.bf16.mxu0 %v4503
        %4695 = vmatpush1.bf16.msra.mxu0 %v4502
        %4696 = vmatprep.subr.bf16.mxu0 %v4505
        %4697 = vmatpush1.bf16.msra.mxu0 %v4504
        %4698 = vmatprep.subr.bf16.mxu0 %v4507
        %4699 = vmatpush1.bf16.msra.mxu0 %v4506
        %4700 = vmatprep.subr.bf16.mxu0 %v4509
        %4701 = vmatpush1.bf16.msra.mxu0 %v4508
        %4702 = vmatprep.subr.bf16.mxu0 %v4511
        %4703 = vmatpush1.bf16.msra.mxu0 %v4510
        %4704 = vmatprep.subr.bf16.mxu0 %v4513
        %4705 = vmatpush1.bf16.msra.mxu0 %v4512
        %4706 = vmatprep.subr.bf16.mxu0 %v4515
        %4707 = vmatpush1.bf16.msra.mxu0 %v4514
        %4708 = vmatprep.subr.bf16.mxu0 %v4517
        %4709 = vmatpush1.bf16.msra.mxu0 %v4516
        %4710 = vmatprep.subr.bf16.mxu0 %v4519
        %4711 = vmatpush1.bf16.msra.mxu0 %v4518
        %4712 = vmatprep.mubr.bf16.mxu0 %v3984
        %4713 = vmatmul.mubr.bf16.gmra.mrb[0].mxu0 %v3983
        %v4714 = vpop.f32.mrb[0].mxu0
        %v4715 = vadd.f32 %v4193, %v4714
        %v4716 = vpop.f32.mrb[0].mxu0
        %v4717 = vadd.f32 %v4197, %v4716
        %v4718 = vpop.f32.mrb[0].mxu0
        %v4719 = vadd.f32 %v4193, %v4718
        %v4720 = vpop.f32.mrb[0].mxu0
        %v4721 = vadd.f32 %v4197, %v4720
        %4722 = vmatprep.mubr.bf16.mxu0 %v3986
        %4723 = vmatmul.mubr.bf16.gmra.mrb[0].mxu0 %v3985
        %v4724 = vpop.f32.mrb[0].mxu0
        %v4725 = vadd.f32 %v4193, %v4724
        %v4726 = vpop.f32.mrb[0].mxu0
        %v4727 = vadd.f32 %v4197, %v4726
        %v4728 = vpop.f32.mrb[0].mxu0
        %v4729 = vadd.f32 %v4193, %v4728
        %v4730 = vpop.f32.mrb[0].mxu0
        %v4731 = vadd.f32 %v4197, %v4730
        %4732 = vmatprep.mubr.bf16.mxu0 %v3988
        %4733 = vmatmul.mubr.bf16.gmra.mrb[0].mxu0 %v3987
        %v4734 = vpop.f32.mrb[0].mxu0
        %v4735 = vadd.f32 %v4193, %v4734
        %v4736 = vpop.f32.mrb[0].mxu0
        %v4737 = vadd.f32 %v4197, %v4736
        %v4738 = vpop.f32.mrb[0].mxu0
        %v4739 = vadd.f32 %v4193, %v4738
        %v4740 = vpop.f32.mrb[0].mxu0
        %v4741 = vadd.f32 %v4197, %v4740
        %4742 = vmatprep.mubr.bf16.mxu0 %v3990
        %4743 = vmatmul.mubr.bf16.gmra.mrb[0].mxu0 %v3989
        %v4744 = vpop.f32.mrb[0].mxu0
        %v4745 = vadd.f32 %v4193, %v4744
        %v4746 = vpop.f32.mrb[0].mxu0
        %v4747 = vadd.f32 %v4197, %v4746
        %v4748 = vpop.f32.mrb[0].mxu0
        %v4749 = vadd.f32 %v4193, %v4748
        %v4750 = vpop.f32.mrb[0].mxu0
        %v4751 = vadd.f32 %v4197, %v4750
        %4752 = vmatprep.mubr.bf16.mxu0 %v3992
        %4753 = vmatmul.mubr.bf16.gmra.mrb[0].mxu0 %v3991
        %v4754 = vpop.f32.mrb[0].mxu0
        %v4755 = vadd.f32 %v4193, %v4754
        %v4756 = vpop.f32.mrb[0].mxu0
        %v4757 = vadd.f32 %v4197, %v4756
        %v4758 = vpop.f32.mrb[0].mxu0
        %v4759 = vadd.f32 %v4193, %v4758
        %v4760 = vpop.f32.mrb[0].mxu0
        %v4761 = vadd.f32 %v4197, %v4760
        %4762 = vmatprep.mubr.bf16.mxu0 %v3994
        %4763 = vmatmul.mubr.bf16.gmra.mrb[0].mxu0 %v3993
        %v4764 = vpop.f32.mrb[0].mxu0
        %v4765 = vadd.f32 %v4193, %v4764
        %v4766 = vpop.f32.mrb[0].mxu0
        %v4767 = vadd.f32 %v4197, %v4766
        %v4768 = vpop.f32.mrb[0].mxu0
        %v4769 = vadd.f32 %v4193, %v4768
        %v4770 = vpop.f32.mrb[0].mxu0
        %v4771 = vadd.f32 %v4197, %v4770
        %4772 = vmatprep.mubr.bf16.mxu0 %v3996
        %4773 = vmatmul.mubr.bf16.gmra.mrb[0].mxu0 %v3995
        %v4774 = vpop.f32.mrb[0].mxu0
        %v4775 = vadd.f32 %v4193, %v4774
        %v4776 = vpop.f32.mrb[0].mxu0
        %v4777 = vadd.f32 %v4197, %v4776
        %v4778 = vpop.f32.mrb[0].mxu0
        %v4779 = vadd.f32 %v4193, %v4778
        %v4780 = vpop.f32.mrb[0].mxu0
        %v4781 = vadd.f32 %v4197, %v4780
        %4782 = vmatprep.mubr.bf16.mxu0 %v3998
        %4783 = vmatmul.mubr.bf16.gmra.mrb[0].mxu0 %v3997
        %v4784 = vpop.f32.mrb[0].mxu0
        %v4785 = vadd.f32 %v4193, %v4784
        %v4786 = vpop.f32.mrb[0].mxu0
        %v4787 = vadd.f32 %v4197, %v4786
        %v4788 = vpop.f32.mrb[0].mxu0
        %v4789 = vadd.f32 %v4193, %v4788
        %v4790 = vpop.f32.mrb[0].mxu0
        %v4791 = vadd.f32 %v4197, %v4790
        %4792 = vmatprep.mubr.bf16.mxu0 %v4000
        %4793 = vmatmul.mubr.bf16.gmra.mrb[0].mxu0 %v3999
        %v4794 = vpop.f32.mrb[0].mxu0
        %v4795 = vadd.f32 %v4193, %v4794
        %v4796 = vpop.f32.mrb[0].mxu0
        %v4797 = vadd.f32 %v4197, %v4796
        %v4798 = vpop.f32.mrb[0].mxu0
        %v4799 = vadd.f32 %v4193, %v4798
        %v4800 = vpop.f32.mrb[0].mxu0
        %v4801 = vadd.f32 %v4197, %v4800
        %4802 = vmatprep.mubr.bf16.mxu0 %v4002
        %4803 = vmatmul.mubr.bf16.gmra.mrb[0].mxu0 %v4001
        %v4804 = vpop.f32.mrb[0].mxu0
        %v4805 = vadd.f32 %v4193, %v4804
        %v4806 = vpop.f32.mrb[0].mxu0
        %v4807 = vadd.f32 %v4197, %v4806
        %v4808 = vpop.f32.mrb[0].mxu0
        %v4809 = vadd.f32 %v4193, %v4808
        %v4810 = vpop.f32.mrb[0].mxu0
        %v4811 = vadd.f32 %v4197, %v4810
        %4812 = vmatprep.mubr.bf16.mxu0 %v4004
        %4813 = vmatmul.mubr.bf16.gmra.mrb[0].mxu0 %v4003
        %v4814 = vpop.f32.mrb[0].mxu0
        %v4815 = vadd.f32 %v4193, %v4814
        %v4816 = vpop.f32.mrb[0].mxu0
        %v4817 = vadd.f32 %v4197, %v4816
        %v4818 = vpop.f32.mrb[0].mxu0
        %v4819 = vadd.f32 %v4193, %v4818
        %v4820 = vpop.f32.mrb[0].mxu0
        %v4821 = vadd.f32 %v4197, %v4820
        %4822 = vmatprep.mubr.bf16.mxu0 %v4006
        %4823 = vmatmul.mubr.bf16.gmra.mrb[0].mxu0 %v4005
        %v4824 = vpop.f32.mrb[0].mxu0
        %v4825 = vadd.f32 %v4193, %v4824
        %v4826 = vpop.f32.mrb[0].mxu0
        %v4827 = vadd.f32 %v4197, %v4826
        %v4828 = vpop.f32.mrb[0].mxu0
        %v4829 = vadd.f32 %v4193, %v4828
        %v4830 = vpop.f32.mrb[0].mxu0
        %v4831 = vadd.f32 %v4197, %v4830
        %4832 = vmatprep.mubr.bf16.mxu0 %v4008
        %4833 = vmatmul.mubr.bf16.gmra.mrb[0].mxu0 %v4007
        %v4834 = vpop.f32.mrb[0].mxu0
        %v4835 = vadd.f32 %v4193, %v4834
        %v4836 = vpop.f32.mrb[0].mxu0
        %v4837 = vadd.f32 %v4197, %v4836
        %v4838 = vpop.f32.mrb[0].mxu0
        %v4839 = vadd.f32 %v4193, %v4838
        %v4840 = vpop.f32.mrb[0].mxu0
        %v4841 = vadd.f32 %v4197, %v4840
        %4842 = vmatprep.mubr.bf16.mxu0 %v4010
        %4843 = vmatmul.mubr.bf16.gmra.mrb[0].mxu0 %v4009
        %v4844 = vpop.f32.mrb[0].mxu0
        %v4845 = vadd.f32 %v4193, %v4844
        %v4846 = vpop.f32.mrb[0].mxu0
        %v4847 = vadd.f32 %v4197, %v4846
        %v4848 = vpop.f32.mrb[0].mxu0
        %v4849 = vadd.f32 %v4193, %v4848
        %v4850 = vpop.f32.mrb[0].mxu0
        %v4851 = vadd.f32 %v4197, %v4850
        %4852 = vmatprep.mubr.bf16.mxu0 %v4012
        %4853 = vmatmul.mubr.bf16.gmra.mrb[0].mxu0 %v4011
        %v4854 = vpop.f32.mrb[0].mxu0
        %v4855 = vadd.f32 %v4193, %v4854
        %v4856 = vpop.f32.mrb[0].mxu0
        %v4857 = vadd.f32 %v4197, %v4856
        %v4858 = vpop.f32.mrb[0].mxu0
        %v4859 = vadd.f32 %v4193, %v4858
        %v4860 = vpop.f32.mrb[0].mxu0
        %v4861 = vadd.f32 %v4197, %v4860
        %4862 = vmatprep.mubr.bf16.mxu0 %v4014
        %4863 = vmatmul.mubr.bf16.gmra.mrb[0].mxu0 %v4013
        %v4864 = vpop.f32.mrb[0].mxu0
        %v4865 = vadd.f32 %v4193, %v4864
        %v4866 = vpop.f32.mrb[0].mxu0
        %v4867 = vadd.f32 %v4197, %v4866
        %v4868 = vpop.f32.mrb[0].mxu0
        %v4869 = vadd.f32 %v4193, %v4868
        %v4870 = vpop.f32.mrb[0].mxu0
        %v4871 = vadd.f32 %v4197, %v4870
        %4872 = vmatprep.mubr.bf16.mxu0 %v4016
        %4873 = vmatmul.mubr.bf16.gmra.mrb[0].mxu0 %v4015
        %v4874 = vpop.f32.mrb[0].mxu0
        %v4875 = vadd.f32 %v4193, %v4874
        %v4876 = vpop.f32.mrb[0].mxu0
        %v4877 = vadd.f32 %v4197, %v4876
        %v4878 = vpop.f32.mrb[0].mxu0
        %v4879 = vadd.f32 %v4193, %v4878
        %v4880 = vpop.f32.mrb[0].mxu0
        %v4881 = vadd.f32 %v4197, %v4880
        %4882 = vmatprep.mubr.bf16.mxu0 %v4018
        %4883 = vmatmul.mubr.bf16.gmra.mrb[0].mxu0 %v4017
        %v4884 = vpop.f32.mrb[0].mxu0
        %v4885 = vadd.f32 %v4193, %v4884
        %v4886 = vpop.f32.mrb[0].mxu0
        %v4887 = vadd.f32 %v4197, %v4886
        %v4888 = vpop.f32.mrb[0].mxu0
        %v4889 = vadd.f32 %v4193, %v4888
        %v4890 = vpop.f32.mrb[0].mxu0
        %v4891 = vadd.f32 %v4197, %v4890
        %4892 = vdwg.mxu0
        %4893 = vmatprep.subr.bf16.mxu0 %v4521
        %4894 = vmatpush1.bf16.msra.mxu0 %v4520
        %4895 = vmatprep.subr.bf16.mxu0 %v4523
        %4896 = vmatpush1.bf16.msra.mxu0 %v4522
        %4897 = vmatprep.subr.bf16.mxu0 %v4525
        %4898 = vmatpush1.bf16.msra.mxu0 %v4524
        %4899 = vmatprep.subr.bf16.mxu0 %v4527
        %4900 = vmatpush1.bf16.msra.mxu0 %v4526
        %4901 = vmatprep.subr.bf16.mxu0 %v4529
        %4902 = vmatpush1.bf16.msra.mxu0 %v4528
        %4903 = vmatprep.subr.bf16.mxu0 %v4531
        %4904 = vmatpush1.bf16.msra.mxu0 %v4530
        %4905 = vmatprep.subr.bf16.mxu0 %v4533
        %4906 = vmatpush1.bf16.msra.mxu0 %v4532
        %4907 = vmatprep.subr.bf16.mxu0 %v4535
        %4908 = vmatpush1.bf16.msra.mxu0 %v4534
        %4909 = vmatprep.subr.bf16.mxu0 %v4537
        %4910 = vmatpush1.bf16.msra.mxu0 %v4536
        %4911 = vmatprep.subr.bf16.mxu0 %v4539
        %4912 = vmatpush1.bf16.msra.mxu0 %v4538
        %4913 = vmatprep.subr.bf16.mxu0 %v4541
        %4914 = vmatpush1.bf16.msra.mxu0 %v4540
        %4915 = vmatprep.subr.bf16.mxu0 %v4543
        %4916 = vmatpush1.bf16.msra.mxu0 %v4542
        %4917 = vmatprep.subr.bf16.mxu0 %v4545
        %4918 = vmatpush1.bf16.msra.mxu0 %v4544
        %4919 = vmatprep.subr.bf16.mxu0 %v4547
        %4920 = vmatpush1.bf16.msra.mxu0 %v4546
        %4921 = vmatprep.subr.bf16.mxu0 %v4549
        %4922 = vmatpush1.bf16.msra.mxu0 %v4548
        %4923 = vmatprep.subr.bf16.mxu0 %v4551
        %4924 = vmatpush1.bf16.msra.mxu0 %v4550
        %4925 = vmatprep.mubr.bf16.mxu0 %v4020
        %4926 = vmatmul.mubr.bf16.gmra.mrb[0].mxu0 %v4019
        %v4927 = vpop.f32.mrb[0].mxu0
        %v4928 = vadd.f32 %v4715, %v4927
        %v4929 = vpop.f32.mrb[0].mxu0
        %v4930 = vadd.f32 %v4717, %v4929
        %v4931 = vpop.f32.mrb[0].mxu0
        %v4932 = vadd.f32 %v4719, %v4931
        %v4933 = vpop.f32.mrb[0].mxu0
        %v4934 = vadd.f32 %v4721, %v4933
        %4935 = vmatprep.mubr.bf16.mxu0 %v4022
        %4936 = vmatmul.mubr.bf16.gmra.mrb[0].mxu0 %v4021
        %v4937 = vpop.f32.mrb[0].mxu0
        %v4938 = vadd.f32 %v4725, %v4937
        %v4939 = vpop.f32.mrb[0].mxu0
        %v4940 = vadd.f32 %v4727, %v4939
        %v4941 = vpop.f32.mrb[0].mxu0
        %v4942 = vadd.f32 %v4729, %v4941
        %v4943 = vpop.f32.mrb[0].mxu0
        %v4944 = vadd.f32 %v4731, %v4943
        %4945 = vmatprep.mubr.bf16.mxu0 %v4024
        %4946 = vmatmul.mubr.bf16.gmra.mrb[0].mxu0 %v4023
        %v4947 = vpop.f32.mrb[0].mxu0
        %v4948 = vadd.f32 %v4735, %v4947
        %v4949 = vpop.f32.mrb[0].mxu0
        %v4950 = vadd.f32 %v4737, %v4949
        %v4951 = vpop.f32.mrb[0].mxu0
        %v4952 = vadd.f32 %v4739, %v4951
        %v4953 = vpop.f32.mrb[0].mxu0
        %v4954 = vadd.f32 %v4741, %v4953
        %4955 = vmatprep.mubr.bf16.mxu0 %v4026
        %4956 = vmatmul.mubr.bf16.gmra.mrb[0].mxu0 %v4025
        %v4957 = vpop.f32.mrb[0].mxu0
        %v4958 = vadd.f32 %v4745, %v4957
        %v4959 = vpop.f32.mrb[0].mxu0
        %v4960 = vadd.f32 %v4747, %v4959
        %v4961 = vpop.f32.mrb[0].mxu0
        %v4962 = vadd.f32 %v4749, %v4961
        %v4963 = vpop.f32.mrb[0].mxu0
        %v4964 = vadd.f32 %v4751, %v4963
        %4965 = vmatprep.mubr.bf16.mxu0 %v4028
        %4966 = vmatmul.mubr.bf16.gmra.mrb[0].mxu0 %v4027
        %v4967 = vpop.f32.mrb[0].mxu0
        %v4968 = vadd.f32 %v4755, %v4967
        %v4969 = vpop.f32.mrb[0].mxu0
        %v4970 = vadd.f32 %v4757, %v4969
        %v4971 = vpop.f32.mrb[0].mxu0
        %v4972 = vadd.f32 %v4759, %v4971
        %v4973 = vpop.f32.mrb[0].mxu0
        %v4974 = vadd.f32 %v4761, %v4973
        %4975 = vmatprep.mubr.bf16.mxu0 %v4030
        %4976 = vmatmul.mubr.bf16.gmra.mrb[0].mxu0 %v4029
        %v4977 = vpop.f32.mrb[0].mxu0
        %v4978 = vadd.f32 %v4765, %v4977
        %v4979 = vpop.f32.mrb[0].mxu0
        %v4980 = vadd.f32 %v4767, %v4979
        %v4981 = vpop.f32.mrb[0].mxu0
        %v4982 = vadd.f32 %v4769, %v4981
        %v4983 = vpop.f32.mrb[0].mxu0
        %v4984 = vadd.f32 %v4771, %v4983
        %4985 = vmatprep.mubr.bf16.mxu0 %v4032
        %4986 = vmatmul.mubr.bf16.gmra.mrb[0].mxu0 %v4031
        %v4987 = vpop.f32.mrb[0].mxu0
        %v4988 = vadd.f32 %v4775, %v4987
        %v4989 = vpop.f32.mrb[0].mxu0
        %v4990 = vadd.f32 %v4777, %v4989
        %v4991 = vpop.f32.mrb[0].mxu0
        %v4992 = vadd.f32 %v4779, %v4991
        %v4993 = vpop.f32.mrb[0].mxu0
        %v4994 = vadd.f32 %v4781, %v4993
        %4995 = vmatprep.mubr.bf16.mxu0 %v4034
        %4996 = vmatmul.mubr.bf16.gmra.mrb[0].mxu0 %v4033
        %v4997 = vpop.f32.mrb[0].mxu0
        %v4998 = vadd.f32 %v4785, %v4997
        %v4999 = vpop.f32.mrb[0].mxu0
        %v5000 = vadd.f32 %v4787, %v4999
        %v5001 = vpop.f32.mrb[0].mxu0
        %v5002 = vadd.f32 %v4789, %v5001
        %v5003 = vpop.f32.mrb[0].mxu0
        %v5004 = vadd.f32 %v4791, %v5003
        %5005 = vmatprep.mubr.bf16.mxu0 %v4036
        %5006 = vmatmul.mubr.bf16.gmra.mrb[0].mxu0 %v4035
        %v5007 = vpop.f32.mrb[0].mxu0
        %v5008 = vadd.f32 %v4795, %v5007
        %v5009 = vpop.f32.mrb[0].mxu0
        %v5010 = vadd.f32 %v4797, %v5009
        %v5011 = vpop.f32.mrb[0].mxu0
        %v5012 = vadd.f32 %v4799, %v5011
        %v5013 = vpop.f32.mrb[0].mxu0
        %v5014 = vadd.f32 %v4801, %v5013
        %5015 = vmatprep.mubr.bf16.mxu0 %v4038
        %5016 = vmatmul.mubr.bf16.gmra.mrb[0].mxu0 %v4037
        %v5017 = vpop.f32.mrb[0].mxu0
        %v5018 = vadd.f32 %v4805, %v5017
        %v5019 = vpop.f32.mrb[0].mxu0
        %v5020 = vadd.f32 %v4807, %v5019
        %v5021 = vpop.f32.mrb[0].mxu0
        %v5022 = vadd.f32 %v4809, %v5021
        %v5023 = vpop.f32.mrb[0].mxu0
        %v5024 = vadd.f32 %v4811, %v5023
        %5025 = vmatprep.mubr.bf16.mxu0 %v4040
        %5026 = vmatmul.mubr.bf16.gmra.mrb[0].mxu0 %v4039
        %v5027 = vpop.f32.mrb[0].mxu0
        %v5028 = vadd.f32 %v4815, %v5027
        %v5029 = vpop.f32.mrb[0].mxu0
        %v5030 = vadd.f32 %v4817, %v5029
        %v5031 = vpop.f32.mrb[0].mxu0
        %v5032 = vadd.f32 %v4819, %v5031
        %v5033 = vpop.f32.mrb[0].mxu0
        %v5034 = vadd.f32 %v4821, %v5033
        %5035 = vmatprep.mubr.bf16.mxu0 %v4042
        %5036 = vmatmul.mubr.bf16.gmra.mrb[0].mxu0 %v4041
        %v5037 = vpop.f32.mrb[0].mxu0
        %v5038 = vadd.f32 %v4825, %v5037
        %v5039 = vpop.f32.mrb[0].mxu0
        %v5040 = vadd.f32 %v4827, %v5039
        %v5041 = vpop.f32.mrb[0].mxu0
        %v5042 = vadd.f32 %v4829, %v5041
        %v5043 = vpop.f32.mrb[0].mxu0
        %v5044 = vadd.f32 %v4831, %v5043
        %5045 = vmatprep.mubr.bf16.mxu0 %v4044
        %5046 = vmatmul.mubr.bf16.gmra.mrb[0].mxu0 %v4043
        %v5047 = vpop.f32.mrb[0].mxu0
        %v5048 = vadd.f32 %v4835, %v5047
        %v5049 = vpop.f32.mrb[0].mxu0
        %v5050 = vadd.f32 %v4837, %v5049
        %v5051 = vpop.f32.mrb[0].mxu0
        %v5052 = vadd.f32 %v4839, %v5051
        %v5053 = vpop.f32.mrb[0].mxu0
        %v5054 = vadd.f32 %v4841, %v5053
        %5055 = vmatprep.mubr.bf16.mxu0 %v4046
        %5056 = vmatmul.mubr.bf16.gmra.mrb[0].mxu0 %v4045
        %v5057 = vpop.f32.mrb[0].mxu0
        %v5058 = vadd.f32 %v4845, %v5057
        %v5059 = vpop.f32.mrb[0].mxu0
        %v5060 = vadd.f32 %v4847, %v5059
        %v5061 = vpop.f32.mrb[0].mxu0
        %v5062 = vadd.f32 %v4849, %v5061
        %v5063 = vpop.f32.mrb[0].mxu0
        %v5064 = vadd.f32 %v4851, %v5063
        %5065 = vmatprep.mubr.bf16.mxu0 %v4048
        %5066 = vmatmul.mubr.bf16.gmra.mrb[0].mxu0 %v4047
        %v5067 = vpop.f32.mrb[0].mxu0
        %v5068 = vadd.f32 %v4855, %v5067
        %v5069 = vpop.f32.mrb[0].mxu0
        %v5070 = vadd.f32 %v4857, %v5069
        %v5071 = vpop.f32.mrb[0].mxu0
        %v5072 = vadd.f32 %v4859, %v5071
        %v5073 = vpop.f32.mrb[0].mxu0
        %v5074 = vadd.f32 %v4861, %v5073
        %5075 = vmatprep.mubr.bf16.mxu0 %v4050
        %5076 = vmatmul.mubr.bf16.gmra.mrb[0].mxu0 %v4049
        %v5077 = vpop.f32.mrb[0].mxu0
        %v5078 = vadd.f32 %v4865, %v5077
        %v5079 = vpop.f32.mrb[0].mxu0
        %v5080 = vadd.f32 %v4867, %v5079
        %v5081 = vpop.f32.mrb[0].mxu0
        %v5082 = vadd.f32 %v4869, %v5081
        %v5083 = vpop.f32.mrb[0].mxu0
        %v5084 = vadd.f32 %v4871, %v5083
        %5085 = vmatprep.mubr.bf16.mxu0 %v4052
        %5086 = vmatmul.mubr.bf16.gmra.mrb[0].mxu0 %v4051
        %v5087 = vpop.f32.mrb[0].mxu0
        %v5088 = vadd.f32 %v4875, %v5087
        %v5089 = vpop.f32.mrb[0].mxu0
        %v5090 = vadd.f32 %v4877, %v5089
        %v5091 = vpop.f32.mrb[0].mxu0
        %v5092 = vadd.f32 %v4879, %v5091
        %v5093 = vpop.f32.mrb[0].mxu0
        %v5094 = vadd.f32 %v4881, %v5093
        %5095 = vmatprep.mubr.bf16.mxu0 %v4054
        %5096 = vmatmul.mubr.bf16.gmra.mrb[0].mxu0 %v4053
        %v5097 = vpop.f32.mrb[0].mxu0
        %v5098 = vadd.f32 %v4885, %v5097
        %v5099 = vpop.f32.mrb[0].mxu0
        %v5100 = vadd.f32 %v4887, %v5099
        %v5101 = vpop.f32.mrb[0].mxu0
        %v5102 = vadd.f32 %v4889, %v5101
        %v5103 = vpop.f32.mrb[0].mxu0
        %v5104 = vadd.f32 %v4891, %v5103
        %5105 = vdwg.mxu0
        %5106 = vmatprep.subr.bf16.mxu0 %v4553
        %5107 = vmatpush1.bf16.msra.mxu0 %v4552
        %5108 = vmatprep.subr.bf16.mxu0 %v4555
        %5109 = vmatpush1.bf16.msra.mxu0 %v4554
        %5110 = vmatprep.subr.bf16.mxu0 %v4557
        %5111 = vmatpush1.bf16.msra.mxu0 %v4556
        %5112 = vmatprep.subr.bf16.mxu0 %v4559
        %5113 = vmatpush1.bf16.msra.mxu0 %v4558
        %5114 = vmatprep.subr.bf16.mxu0 %v4561
        %5115 = vmatpush1.bf16.msra.mxu0 %v4560
        %5116 = vmatprep.subr.bf16.mxu0 %v4563
        %5117 = vmatpush1.bf16.msra.mxu0 %v4562
        %5118 = vmatprep.subr.bf16.mxu0 %v4565
        %5119 = vmatpush1.bf16.msra.mxu0 %v4564
        %5120 = vmatprep.subr.bf16.mxu0 %v4567
        %5121 = vmatpush1.bf16.msra.mxu0 %v4566
        %5122 = vmatprep.subr.bf16.mxu0 %v4569
        %5123 = vmatpush1.bf16.msra.mxu0 %v4568
        %5124 = vmatprep.subr.bf16.mxu0 %v4571
        %5125 = vmatpush1.bf16.msra.mxu0 %v4570
        %5126 = vmatprep.subr.bf16.mxu0 %v4573
        %5127 = vmatpush1.bf16.msra.mxu0 %v4572
        %5128 = vmatprep.subr.bf16.mxu0 %v4575
        %5129 = vmatpush1.bf16.msra.mxu0 %v4574
        %5130 = vmatprep.subr.bf16.mxu0 %v4577
        %5131 = vmatpush1.bf16.msra.mxu0 %v4576
        %5132 = vmatprep.subr.bf16.mxu0 %v4579
        %5133 = vmatpush1.bf16.msra.mxu0 %v4578
        %5134 = vmatprep.subr.bf16.mxu0 %v4581
        %5135 = vmatpush1.bf16.msra.mxu0 %v4580
        %5136 = vmatprep.subr.bf16.mxu0 %v4583
        %5137 = vmatpush1.bf16.msra.mxu0 %v4582
        %5138 = vmatprep.mubr.bf16.mxu0 %v4057
        %5139 = vmatmul.mubr.bf16.gmra.mrb[0].mxu0 %v4056
        %v5140 = vpop.f32.mrb[0].mxu0
        %v5141 = vadd.f32 %v4928, %v5140
        %v5142 = vpop.f32.mrb[0].mxu0
        %v5143 = vadd.f32 %v4930, %v5142
        %v5144 = vpop.f32.mrb[0].mxu0
        %v5145 = vadd.f32 %v4932, %v5144
        %v5146 = vpop.f32.mrb[0].mxu0
        %v5147 = vadd.f32 %v4934, %v5146
        %5148 = vmatprep.mubr.bf16.mxu0 %v4059
        %5149 = vmatmul.mubr.bf16.gmra.mrb[0].mxu0 %v4058
        %v5150 = vpop.f32.mrb[0].mxu0
        %v5151 = vadd.f32 %v4938, %v5150
        %v5152 = vpop.f32.mrb[0].mxu0
        %v5153 = vadd.f32 %v4940, %v5152
        %v5154 = vpop.f32.mrb[0].mxu0
        %v5155 = vadd.f32 %v4942, %v5154
        %v5156 = vpop.f32.mrb[0].mxu0
        %v5157 = vadd.f32 %v4944, %v5156
        %5158 = vmatprep.mubr.bf16.mxu0 %v4061
        %5159 = vmatmul.mubr.bf16.gmra.mrb[0].mxu0 %v4060
        %v5160 = vpop.f32.mrb[0].mxu0
        %v5161 = vadd.f32 %v4948, %v5160
        %v5162 = vpop.f32.mrb[0].mxu0
        %v5163 = vadd.f32 %v4950, %v5162
        %v5164 = vpop.f32.mrb[0].mxu0
        %v5165 = vadd.f32 %v4952, %v5164
        %v5166 = vpop.f32.mrb[0].mxu0
        %v5167 = vadd.f32 %v4954, %v5166
        %5168 = vmatprep.mubr.bf16.mxu0 %v4063
        %5169 = vmatmul.mubr.bf16.gmra.mrb[0].mxu0 %v4062
        %v5170 = vpop.f32.mrb[0].mxu0
        %v5171 = vadd.f32 %v4958, %v5170
        %v5172 = vpop.f32.mrb[0].mxu0
        %v5173 = vadd.f32 %v4960, %v5172
        %v5174 = vpop.f32.mrb[0].mxu0
        %v5175 = vadd.f32 %v4962, %v5174
        %v5176 = vpop.f32.mrb[0].mxu0
        %v5177 = vadd.f32 %v4964, %v5176
        %5178 = vmatprep.mubr.bf16.mxu0 %v4065
        %5179 = vmatmul.mubr.bf16.gmra.mrb[0].mxu0 %v4064
        %v5180 = vpop.f32.mrb[0].mxu0
        %v5181 = vadd.f32 %v4968, %v5180
        %v5182 = vpop.f32.mrb[0].mxu0
        %v5183 = vadd.f32 %v4970, %v5182
        %v5184 = vpop.f32.mrb[0].mxu0
        %v5185 = vadd.f32 %v4972, %v5184
        %v5186 = vpop.f32.mrb[0].mxu0
        %v5187 = vadd.f32 %v4974, %v5186
        %5188 = vmatprep.mubr.bf16.mxu0 %v4067
        %5189 = vmatmul.mubr.bf16.gmra.mrb[0].mxu0 %v4066
        %v5190 = vpop.f32.mrb[0].mxu0
        %v5191 = vadd.f32 %v4978, %v5190
        %v5192 = vpop.f32.mrb[0].mxu0
        %v5193 = vadd.f32 %v4980, %v5192
        %v5194 = vpop.f32.mrb[0].mxu0
        %v5195 = vadd.f32 %v4982, %v5194
        %v5196 = vpop.f32.mrb[0].mxu0
        %v5197 = vadd.f32 %v4984, %v5196
        %5198 = vmatprep.mubr.bf16.mxu0 %v4069
        %5199 = vmatmul.mubr.bf16.gmra.mrb[0].mxu0 %v4068
        %v5200 = vpop.f32.mrb[0].mxu0
        %v5201 = vadd.f32 %v4988, %v5200
        %v5202 = vpop.f32.mrb[0].mxu0
        %v5203 = vadd.f32 %v4990, %v5202
        %v5204 = vpop.f32.mrb[0].mxu0
        %v5205 = vadd.f32 %v4992, %v5204
        %v5206 = vpop.f32.mrb[0].mxu0
        %v5207 = vadd.f32 %v4994, %v5206
        %5208 = vmatprep.mubr.bf16.mxu0 %v4071
        %5209 = vmatmul.mubr.bf16.gmra.mrb[0].mxu0 %v4070
        %v5210 = vpop.f32.mrb[0].mxu0
        %v5211 = vadd.f32 %v4998, %v5210
        %v5212 = vpop.f32.mrb[0].mxu0
        %v5213 = vadd.f32 %v5000, %v5212
        %v5214 = vpop.f32.mrb[0].mxu0
        %v5215 = vadd.f32 %v5002, %v5214
        %v5216 = vpop.f32.mrb[0].mxu0
        %v5217 = vadd.f32 %v5004, %v5216
        %5218 = vmatprep.mubr.bf16.mxu0 %v4073
        %5219 = vmatmul.mubr.bf16.gmra.mrb[0].mxu0 %v4072
        %v5220 = vpop.f32.mrb[0].mxu0
        %v5221 = vadd.f32 %v5008, %v5220
        %v5222 = vpop.f32.mrb[0].mxu0
        %v5223 = vadd.f32 %v5010, %v5222
        %v5224 = vpop.f32.mrb[0].mxu0
        %v5225 = vadd.f32 %v5012, %v5224
        %v5226 = vpop.f32.mrb[0].mxu0
        %v5227 = vadd.f32 %v5014, %v5226
        %5228 = vmatprep.mubr.bf16.mxu0 %v4075
        %5229 = vmatmul.mubr.bf16.gmra.mrb[0].mxu0 %v4074
        %v5230 = vpop.f32.mrb[0].mxu0
        %v5231 = vadd.f32 %v5018, %v5230
        %v5232 = vpop.f32.mrb[0].mxu0
        %v5233 = vadd.f32 %v5020, %v5232
        %v5234 = vpop.f32.mrb[0].mxu0
        %v5235 = vadd.f32 %v5022, %v5234
        %v5236 = vpop.f32.mrb[0].mxu0
        %v5237 = vadd.f32 %v5024, %v5236
        %5238 = vmatprep.mubr.bf16.mxu0 %v4077
        %5239 = vmatmul.mubr.bf16.gmra.mrb[0].mxu0 %v4076
        %v5240 = vpop.f32.mrb[0].mxu0
        %v5241 = vadd.f32 %v5028, %v5240
        %v5242 = vpop.f32.mrb[0].mxu0
        %v5243 = vadd.f32 %v5030, %v5242
        %v5244 = vpop.f32.mrb[0].mxu0
        %v5245 = vadd.f32 %v5032, %v5244
        %v5246 = vpop.f32.mrb[0].mxu0
        %v5247 = vadd.f32 %v5034, %v5246
        %5248 = vmatprep.mubr.bf16.mxu0 %v4079
        %5249 = vmatmul.mubr.bf16.gmra.mrb[0].mxu0 %v4078
        %v5250 = vpop.f32.mrb[0].mxu0
        %v5251 = vadd.f32 %v5038, %v5250
        %v5252 = vpop.f32.mrb[0].mxu0
        %v5253 = vadd.f32 %v5040, %v5252
        %v5254 = vpop.f32.mrb[0].mxu0
        %v5255 = vadd.f32 %v5042, %v5254
        %v5256 = vpop.f32.mrb[0].mxu0
        %v5257 = vadd.f32 %v5044, %v5256
        %5258 = vmatprep.mubr.bf16.mxu0 %v4081
        %5259 = vmatmul.mubr.bf16.gmra.mrb[0].mxu0 %v4080
        %v5260 = vpop.f32.mrb[0].mxu0
        %v5261 = vadd.f32 %v5048, %v5260
        %v5262 = vpop.f32.mrb[0].mxu0
        %v5263 = vadd.f32 %v5050, %v5262
        %v5264 = vpop.f32.mrb[0].mxu0
        %v5265 = vadd.f32 %v5052, %v5264
        %v5266 = vpop.f32.mrb[0].mxu0
        %v5267 = vadd.f32 %v5054, %v5266
        %5268 = vmatprep.mubr.bf16.mxu0 %v4083
        %5269 = vmatmul.mubr.bf16.gmra.mrb[0].mxu0 %v4082
        %v5270 = vpop.f32.mrb[0].mxu0
        %v5271 = vadd.f32 %v5058, %v5270
        %v5272 = vpop.f32.mrb[0].mxu0
        %v5273 = vadd.f32 %v5060, %v5272
        %v5274 = vpop.f32.mrb[0].mxu0
        %v5275 = vadd.f32 %v5062, %v5274
        %v5276 = vpop.f32.mrb[0].mxu0
        %v5277 = vadd.f32 %v5064, %v5276
        %5278 = vmatprep.mubr.bf16.mxu0 %v4085
        %5279 = vmatmul.mubr.bf16.gmra.mrb[0].mxu0 %v4084
        %v5280 = vpop.f32.mrb[0].mxu0
        %v5281 = vadd.f32 %v5068, %v5280
        %v5282 = vpop.f32.mrb[0].mxu0
        %v5283 = vadd.f32 %v5070, %v5282
        %v5284 = vpop.f32.mrb[0].mxu0
        %v5285 = vadd.f32 %v5072, %v5284
        %v5286 = vpop.f32.mrb[0].mxu0
        %v5287 = vadd.f32 %v5074, %v5286
        %5288 = vmatprep.mubr.bf16.mxu0 %v4087
        %5289 = vmatmul.mubr.bf16.gmra.mrb[0].mxu0 %v4086
        %v5290 = vpop.f32.mrb[0].mxu0
        %v5291 = vadd.f32 %v5078, %v5290
        %v5292 = vpop.f32.mrb[0].mxu0
        %v5293 = vadd.f32 %v5080, %v5292
        %v5294 = vpop.f32.mrb[0].mxu0
        %v5295 = vadd.f32 %v5082, %v5294
        %v5296 = vpop.f32.mrb[0].mxu0
        %v5297 = vadd.f32 %v5084, %v5296
        %5298 = vmatprep.mubr.bf16.mxu0 %v4089
        %5299 = vmatmul.mubr.bf16.gmra.mrb[0].mxu0 %v4088
        %v5300 = vpop.f32.mrb[0].mxu0
        %v5301 = vadd.f32 %v5088, %v5300
        %v5302 = vpop.f32.mrb[0].mxu0
        %v5303 = vadd.f32 %v5090, %v5302
        %v5304 = vpop.f32.mrb[0].mxu0
        %v5305 = vadd.f32 %v5092, %v5304
        %v5306 = vpop.f32.mrb[0].mxu0
        %v5307 = vadd.f32 %v5094, %v5306
        %5308 = vmatprep.mubr.bf16.mxu0 %v4091
        %5309 = vmatmul.mubr.bf16.gmra.mrb[0].mxu0 %v4090
        %v5310 = vpop.f32.mrb[0].mxu0
        %v5311 = vadd.f32 %v5098, %v5310
        %v5312 = vpop.f32.mrb[0].mxu0
        %v5313 = vadd.f32 %v5100, %v5312
        %v5314 = vpop.f32.mrb[0].mxu0
        %v5315 = vadd.f32 %v5102, %v5314
        %v5316 = vpop.f32.mrb[0].mxu0
        %v5317 = vadd.f32 %v5104, %v5316
        %5318 = vdwg.mxu0
        %v5319 = vmax.f32 %v5141, 0.0
        %v5320 = vmax.f32 %v5143, 0.0
        %v5321 = vmax.f32 %v5145, 0.0
        %v5322 = vmax.f32 %v5147, 0.0
        %v5323 = vmax.f32 %v5151, 0.0
        %v5324 = vmax.f32 %v5153, 0.0
        %v5325 = vmax.f32 %v5155, 0.0
        %v5326 = vmax.f32 %v5157, 0.0
        %v5327 = vmax.f32 %v5161, 0.0
        %v5328 = vmax.f32 %v5163, 0.0
        %v5329 = vmax.f32 %v5165, 0.0
        %v5330 = vmax.f32 %v5167, 0.0
        %v5331 = vmax.f32 %v5171, 0.0
        %v5332 = vmax.f32 %v5173, 0.0
        %v5333 = vmax.f32 %v5175, 0.0
        %v5334 = vmax.f32 %v5177, 0.0
        %v5335 = vmax.f32 %v5181, 0.0
        %v5336 = vmax.f32 %v5183, 0.0
        %v5337 = vmax.f32 %v5185, 0.0
        %v5338 = vmax.f32 %v5187, 0.0
        %v5339 = vmax.f32 %v5191, 0.0
        %v5340 = vmax.f32 %v5193, 0.0
        %v5341 = vmax.f32 %v5195, 0.0
        %v5342 = vmax.f32 %v5197, 0.0
        %v5343 = vmax.f32 %v5201, 0.0
        %v5344 = vmax.f32 %v5203, 0.0
        %v5345 = vmax.f32 %v5205, 0.0
        %v5346 = vmax.f32 %v5207, 0.0
        %v5347 = vmax.f32 %v5211, 0.0
        %v5348 = vmax.f32 %v5213, 0.0
        %v5349 = vmax.f32 %v5215, 0.0
        %v5350 = vmax.f32 %v5217, 0.0
        %v5351 = vmax.f32 %v5221, 0.0
        %v5352 = vmax.f32 %v5223, 0.0
        %v5353 = vmax.f32 %v5225, 0.0
        %v5354 = vmax.f32 %v5227, 0.0
        %v5355 = vmax.f32 %v5231, 0.0
        %v5356 = vmax.f32 %v5233, 0.0
        %v5357 = vmax.f32 %v5235, 0.0
        %v5358 = vmax.f32 %v5237, 0.0
        %v5359 = vmax.f32 %v5241, 0.0
        %v5360 = vmax.f32 %v5243, 0.0
        %v5361 = vmax.f32 %v5245, 0.0
        %v5362 = vmax.f32 %v5247, 0.0
        %v5363 = vmax.f32 %v5251, 0.0
        %v5364 = vmax.f32 %v5253, 0.0
        %v5365 = vmax.f32 %v5255, 0.0
        %v5366 = vmax.f32 %v5257, 0.0
        %v5367 = vmax.f32 %v5261, 0.0
        %v5368 = vmax.f32 %v5263, 0.0
        %v5369 = vmax.f32 %v5265, 0.0
        %v5370 = vmax.f32 %v5267, 0.0
        %v5371 = vmax.f32 %v5271, 0.0
        %v5372 = vmax.f32 %v5273, 0.0
        %v5373 = vmax.f32 %v5275, 0.0
        %v5374 = vmax.f32 %v5277, 0.0
        %v5375 = vmax.f32 %v5281, 0.0
        %v5376 = vmax.f32 %v5283, 0.0
        %v5377 = vmax.f32 %v5285, 0.0
        %v5378 = vmax.f32 %v5287, 0.0
        %v5379 = vmax.f32 %v5291, 0.0
        %v5380 = vmax.f32 %v5293, 0.0
        %v5381 = vmax.f32 %v5295, 0.0
        %v5382 = vmax.f32 %v5297, 0.0
        %v5383 = vmax.f32 %v5301, 0.0
        %v5384 = vmax.f32 %v5303, 0.0
        %v5385 = vmax.f32 %v5305, 0.0
        %v5386 = vmax.f32 %v5307, 0.0
        %v5387 = vmax.f32 %v5311, 0.0
        %v5388 = vmax.f32 %v5313, 0.0
        %v5389 = vmax.f32 %v5315, 0.0
        %v5390 = vmax.f32 %v5317, 0.0
        %v5391 = vmax.f32 %v5319, %v5323
        %v5392 = vmax.f32 %v5320, %v5324
        %v5393 = vmax.f32 %v5321, %v5325
        %v5394 = vmax.f32 %v5322, %v5326
        %v5395 = vmax.f32 %v5327, %v5331
        %v5396 = vmax.f32 %v5328, %v5332
        %v5397 = vmax.f32 %v5329, %v5333
        %v5398 = vmax.f32 %v5330, %v5334
        %v5399 = vmax.f32 %v5335, %v5339
        %v5400 = vmax.f32 %v5336, %v5340
        %v5401 = vmax.f32 %v5337, %v5341
        %v5402 = vmax.f32 %v5338, %v5342
        %v5403 = vmax.f32 %v5343, %v5347
        %v5404 = vmax.f32 %v5344, %v5348
        %v5405 = vmax.f32 %v5345, %v5349
        %v5406 = vmax.f32 %v5346, %v5350
        %v5407 = vmax.f32 %v5351, %v5355
        %v5408 = vmax.f32 %v5352, %v5356
        %v5409 = vmax.f32 %v5353, %v5357
        %v5410 = vmax.f32 %v5354, %v5358
        %v5411 = vmax.f32 %v5359, %v5363
        %v5412 = vmax.f32 %v5360, %v5364
        %v5413 = vmax.f32 %v5361, %v5365
        %v5414 = vmax.f32 %v5362, %v5366
        %v5415 = vmax.f32 %v5367, %v5371
        %v5416 = vmax.f32 %v5368, %v5372
        %v5417 = vmax.f32 %v5369, %v5373
        %v5418 = vmax.f32 %v5370, %v5374
        %v5419 = vmax.f32 %v5375, %v5379
        %v5420 = vmax.f32 %v5376, %v5380
        %v5421 = vmax.f32 %v5377, %v5381
        %v5422 = vmax.f32 %v5378, %v5382
        %v5423 = vmax.f32 %v5383, %v5387
        %v5424 = vmax.f32 %v5384, %v5388
        %v5425 = vmax.f32 %v5385, %v5389
        %v5426 = vmax.f32 %v5386, %v5390
        %v5427 = vpack.c.bf16 %v5393, %v5391
        %v5428 = vpack.c.bf16 %v5394, %v5392
        %v5429 = vpack.c.bf16 %v5397, %v5395
        %v5430 = vpack.c.bf16 %v5398, %v5396
        %v5431 = vpack.c.bf16 %v5401, %v5399
        %v5432 = vpack.c.bf16 %v5402, %v5400
        %v5433 = vpack.c.bf16 %v5405, %v5403
        %v5434 = vpack.c.bf16 %v5406, %v5404
        %v5435 = vpack.c.bf16 %v5409, %v5407
        %v5436 = vpack.c.bf16 %v5410, %v5408
        %v5437 = vpack.c.bf16 %v5413, %v5411
        %v5438 = vpack.c.bf16 %v5414, %v5412
        %v5439 = vpack.c.bf16 %v5417, %v5415
        %v5440 = vpack.c.bf16 %v5418, %v5416
        %v5441 = vpack.c.bf16 %v5421, %v5419
        %v5442 = vpack.c.bf16 %v5422, %v5420
        %v5443 = vpack.c.bf16 %v5425, %v5423
        %v5444 = vpack.c.bf16 %v5426, %v5424
        %v5445 = vld [vmem:[%s9] sm:$0xf]
        %v5446 = vld [vmem:[%s9 + $0x4] sm:$0xf]
        %v5447 = vld [vmem:[%s9 + $0x8] sm:$0xf]
        %v5448 = vld [vmem:[%s9 + $0xc] sm:$0xf]
        %v5449 = vld [vmem:[%s9 + $0x10] sm:$0xf]
        %v5450 = vld [vmem:[%s9 + $0x14] sm:$0xf]
        %v5451 = vld [vmem:[%s9 + $0x18] sm:$0xf]
        %v5452 = vld [vmem:[%s9 + $0x1c] sm:$0xf]
        %v5453 = vld [vmem:[%s9 + $0x20] sm:$0xf]
        %v5454 = vld [vmem:[%s9 + $0x24] sm:$0xf]
        %v5455 = vld [vmem:[%s9 + $0x28] sm:$0xf]
        %v5456 = vld [vmem:[%s9 + $0x2c] sm:$0xf]
        %v5457 = vld [vmem:[%s9 + $0x30] sm:$0xf]
        %v5458 = vld [vmem:[%s9 + $0x34] sm:$0xf]
        %v5459 = vld [vmem:[%s9 + $0x38] sm:$0xf]
        %v5460 = vld [vmem:[%s9 + $0x3c] sm:$0xf]
        %v5461 = vld [vmem:[%s9 + $0x40] sm:$0xf]
        %v5462 = vld [vmem:[%s9 + $0x44] sm:$0xf]
        %v5463 = vld [vmem:[%s9 + $0x48] sm:$0xf]
        %v5464 = vld [vmem:[%s9 + $0x4c] sm:$0xf]
        %v5465 = vld [vmem:[%s9 + $0x50] sm:$0xf]
        %v5466 = vld [vmem:[%s9 + $0x54] sm:$0xf]
        %v5467 = vld [vmem:[%s9 + $0x58] sm:$0xf]
        %v5468 = vld [vmem:[%s9 + $0x5c] sm:$0xf]
        %v5469 = vld [vmem:[%s9 + $0x60] sm:$0xf]
        %v5470 = vld [vmem:[%s9 + $0x64] sm:$0xf]
        %v5471 = vld [vmem:[%s9 + $0x68] sm:$0xf]
        %v5472 = vld [vmem:[%s9 + $0x6c] sm:$0xf]
        %v5473 = vld [vmem:[%s9 + $0x70] sm:$0xf]
        %v5474 = vld [vmem:[%s9 + $0x74] sm:$0xf]
        %v5475 = vld [vmem:[%s9 + $0x78] sm:$0xf]
        %v5476 = vld [vmem:[%s9 + $0x7c] sm:$0xf]
        %v5477 = vld [vmem:[%s9 + $0x80] sm:$0xf]
        %v5478 = vld [vmem:[%s9 + $0x84] sm:$0xf]
        %v5479 = vld [vmem:[%s9 + $0x88] sm:$0xf]
        %v5480 = vld [vmem:[%s9 + $0x8c] sm:$0xf]
        %v5481 = vld [vmem:[%s9 + $0x90] sm:$0xf]
        %v5482 = vld [vmem:[%s9 + $0x94] sm:$0xf]
        %v5483 = vld [vmem:[%s9 + $0x98] sm:$0xf]
        %v5484 = vld [vmem:[%s9 + $0x9c] sm:$0xf]
        %v5485 = vld [vmem:[%s9 + $0xa0] sm:$0xf]
        %v5486 = vld [vmem:[%s9 + $0xa4] sm:$0xf]
        %v5487 = vld [vmem:[%s9 + $0xa8] sm:$0xf]
        %v5488 = vld [vmem:[%s9 + $0xac] sm:$0xf]
        %v5489 = vld [vmem:[%s9 + $0xb0] sm:$0xf]
        %v5490 = vld [vmem:[%s9 + $0xb4] sm:$0xf]
        %v5491 = vld [vmem:[%s9 + $0xb8] sm:$0xf]
        %v5492 = vld [vmem:[%s9 + $0xbc] sm:$0xf]
        %v5493 = vld [vmem:[%s9 + $0xc0] sm:$0xf]
        %v5494 = vld [vmem:[%s9 + $0xc4] sm:$0xf]
        %v5495 = vld [vmem:[%s9 + $0xc8] sm:$0xf]
        %v5496 = vld [vmem:[%s9 + $0xcc] sm:$0xf]
        %v5497 = vld [vmem:[%s9 + $0xd0] sm:$0xf]
        %v5498 = vld [vmem:[%s9 + $0xd4] sm:$0xf]
        %v5499 = vld [vmem:[%s9 + $0xd8] sm:$0xf]
        %v5500 = vld [vmem:[%s9 + $0xdc] sm:$0xf]
        %v5501 = vld [vmem:[%s9 + $0xe0] sm:$0xf]
        %v5502 = vld [vmem:[%s9 + $0xe4] sm:$0xf]
        %v5503 = vld [vmem:[%s9 + $0xe8] sm:$0xf]
        %v5504 = vld [vmem:[%s9 + $0xec] sm:$0xf]
        %v5505 = vld [vmem:[%s9 + $0xf0] sm:$0xf]
        %v5506 = vld [vmem:[%s9 + $0xf4] sm:$0xf]
        %v5507 = vld [vmem:[%s9 + $0xf8] sm:$0xf]
        %v5508 = vld [vmem:[%s9 + $0xfc] sm:$0xf]
        %v5509 = vld [vmem:[%s9 + $0x100] sm:$0xf]
        %v5510 = vld [vmem:[%s9 + $0x104] sm:$0xf]
        %v5511 = vld [vmem:[%s9 + $0x108] sm:$0xf]
        %v5512 = vld [vmem:[%s9 + $0x10c] sm:$0xf]
        %v5513 = vld [vmem:[%s9 + $0x110] sm:$0xf]
        %v5514 = vld [vmem:[%s9 + $0x114] sm:$0xf]
        %v5515 = vld [vmem:[%s9 + $0x118] sm:$0xf]
        %v5516 = vld [vmem:[%s9 + $0x11c] sm:$0xf]
        %v5517 = vld [vmem:[%s9 + $0x120] sm:$0xf]
        %v5518 = vld [vmem:[%s9 + $0x124] sm:$0xf]
        %v5519 = vld [vmem:[%s9 + $0x128] sm:$0xf]
        %v5520 = vld [vmem:[%s9 + $0x12c] sm:$0xf]
        %v5521 = vld [vmem:[%s9 + $0x130] sm:$0xf]
        %v5522 = vld [vmem:[%s9 + $0x134] sm:$0xf]
        %v5523 = vld [vmem:[%s9 + $0x138] sm:$0xf]
        %v5524 = vld [vmem:[%s9 + $0x13c] sm:$0xf]
        %v5525 = vld [vmem:[%s9 + $0x140] sm:$0xf]
        %v5526 = vld [vmem:[%s9 + $0x144] sm:$0xf]
        %v5527 = vld [vmem:[%s9 + $0x148] sm:$0xf]
        %v5528 = vld [vmem:[%s9 + $0x14c] sm:$0xf]
        %v5529 = vld [vmem:[%s9 + $0x150] sm:$0xf]
        %v5530 = vld [vmem:[%s9 + $0x154] sm:$0xf]
        %v5531 = vld [vmem:[%s9 + $0x158] sm:$0xf]
        %v5532 = vld [vmem:[%s9 + $0x15c] sm:$0xf]
        %v5533 = vld [vmem:[%s9 + $0x160] sm:$0xf]
        %v5534 = vld [vmem:[%s9 + $0x164] sm:$0xf]
        %v5535 = vld [vmem:[%s9 + $0x168] sm:$0xf]
        %v5536 = vld [vmem:[%s9 + $0x16c] sm:$0xf]
        %v5537 = vld [vmem:[%s9 + $0x170] sm:$0xf]
        %v5538 = vld [vmem:[%s9 + $0x174] sm:$0xf]
        %v5539 = vld [vmem:[%s9 + $0x178] sm:$0xf]
        %v5540 = vld [vmem:[%s9 + $0x17c] sm:$0xf]
        %v5541 = vld [vmem:[%s9 + $0x180] sm:$0xf]
        %v5542 = vld [vmem:[%s9 + $0x184] sm:$0xf]
        %v5543 = vld [vmem:[%s9 + $0x188] sm:$0xf]
        %v5544 = vld [vmem:[%s9 + $0x18c] sm:$0xf]
        %v5545 = vld [vmem:[%s9 + $0x190] sm:$0xf]
        %v5546 = vld [vmem:[%s9 + $0x194] sm:$0xf]
        %v5547 = vld [vmem:[%s9 + $0x198] sm:$0xf]
        %v5548 = vld [vmem:[%s9 + $0x19c] sm:$0xf]
        %v5549 = vld [vmem:[%s9 + $0x1a0] sm:$0xf]
        %v5550 = vld [vmem:[%s9 + $0x1a4] sm:$0xf]
        %v5551 = vld [vmem:[%s9 + $0x1a8] sm:$0xf]
        %v5552 = vld [vmem:[%s9 + $0x1ac] sm:$0xf]
        %v5553 = vld [vmem:[%s9 + $0x1b0] sm:$0xf]
        %v5554 = vld [vmem:[%s9 + $0x1b4] sm:$0xf]
        %v5555 = vld [vmem:[%s9 + $0x1b8] sm:$0xf]
        %v5556 = vld [vmem:[%s9 + $0x1bc] sm:$0xf]
        %v5557 = vld [vmem:[%s9 + $0x1c0] sm:$0xf]
        %v5558 = vld [vmem:[%s9 + $0x1c4] sm:$0xf]
        %v5559 = vld [vmem:[%s9 + $0x1c8] sm:$0xf]
        %v5560 = vld [vmem:[%s9 + $0x1cc] sm:$0xf]
        %v5561 = vld [vmem:[%s9 + $0x1d0] sm:$0xf]
        %v5562 = vld [vmem:[%s9 + $0x1d4] sm:$0xf]
        %v5563 = vld [vmem:[%s9 + $0x1d8] sm:$0xf]
        %v5564 = vld [vmem:[%s9 + $0x1dc] sm:$0xf]
        %v5565 = vld [vmem:[%s9 + $0x1e0] sm:$0xf]
        %v5566 = vld [vmem:[%s9 + $0x1e4] sm:$0xf]
        %v5567 = vld [vmem:[%s9 + $0x1e8] sm:$0xf]
        %v5568 = vld [vmem:[%s9 + $0x1ec] sm:$0xf]
        %v5569 = vld [vmem:[%s9 + $0x1f0] sm:$0xf]
        %v5570 = vld [vmem:[%s9 + $0x1f4] sm:$0xf]
        %v5571 = vld [vmem:[%s9 + $0x1f8] sm:$0xf]
        %v5572 = vld [vmem:[%s9 + $0x1fc] sm:$0xf]
        %v5573 = vld [vmem:[%s9 + $0x200] sm:$0xf]
        %v5574 = vld [vmem:[%s9 + $0x204] sm:$0xf]
        %v5575 = vld [vmem:[%s9 + $0x208] sm:$0xf]
        %v5576 = vld [vmem:[%s9 + $0x20c] sm:$0xf]
        %v5577 = vld [vmem:[%s9 + $0x210] sm:$0xf]
        %v5578 = vld [vmem:[%s9 + $0x214] sm:$0xf]
        %v5579 = vld [vmem:[%s9 + $0x218] sm:$0xf]
        %v5580 = vld [vmem:[%s9 + $0x21c] sm:$0xf]
        %v5581 = vld [vmem:[%s9 + $0x220] sm:$0xf]
        %v5582 = vld [vmem:[%s9 + $0x224] sm:$0xf]
        %v5583 = vld [vmem:[%s9 + $0x228] sm:$0xf]
        %v5584 = vld [vmem:[%s9 + $0x22c] sm:$0xf]
        %v5585 = vld [vmem:[%s9 + $0x230] sm:$0xf]
        %v5586 = vld [vmem:[%s9 + $0x234] sm:$0xf]
        %v5587 = vld [vmem:[%s9 + $0x238] sm:$0xf]
        %v5588 = vld [vmem:[%s9 + $0x23c] sm:$0xf]
        %v5589 = vld [vmem:[%s9 + $0x240] sm:$0xf]
        %v5590 = vld [vmem:[%s9 + $0x244] sm:$0xf]
        %v5591 = vld [vmem:[%s9 + $0x248] sm:$0xf]
        %v5592 = vld [vmem:[%s9 + $0x24c] sm:$0xf]
        %v5593 = vld [vmem:[%s9 + $0x250] sm:$0xf]
        %v5594 = vld [vmem:[%s9 + $0x254] sm:$0xf]
        %v5595 = vld [vmem:[%s9 + $0x258] sm:$0xf]
        %v5596 = vld [vmem:[%s9 + $0x25c] sm:$0xf]
        %v5597 = vld [vmem:[%s9 + $0x260] sm:$0xf]
        %v5598 = vld [vmem:[%s9 + $0x264] sm:$0xf]
        %v5599 = vld [vmem:[%s9 + $0x268] sm:$0xf]
        %v5600 = vld [vmem:[%s9 + $0x26c] sm:$0xf]
        %v5601 = vld [vmem:[%s9 + $0x270] sm:$0xf]
        %v5602 = vld [vmem:[%s9 + $0x274] sm:$0xf]
        %v5603 = vld [vmem:[%s9 + $0x278] sm:$0xf]
        %v5604 = vld [vmem:[%s9 + $0x27c] sm:$0xf]
        %v5605 = vld [vmem:[%s9 + $0x280] sm:$0xf]
        %v5606 = vld [vmem:[%s9 + $0x284] sm:$0xf]
        %v5607 = vld [vmem:[%s9 + $0x288] sm:$0xf]
        %v5608 = vld [vmem:[%s9 + $0x28c] sm:$0xf]
        %v5609 = vld [vmem:[%s9 + $0x290] sm:$0xf]
        %v5610 = vld [vmem:[%s9 + $0x294] sm:$0xf]
        %v5611 = vld [vmem:[%s9 + $0x298] sm:$0xf]
        %v5612 = vld [vmem:[%s9 + $0x29c] sm:$0xf]
        %v5613 = vld [vmem:[%s9 + $0x2a0] sm:$0xf]
        %v5614 = vld [vmem:[%s9 + $0x2a4] sm:$0xf]
        %v5615 = vld [vmem:[%s9 + $0x2a8] sm:$0xf]
        %v5616 = vld [vmem:[%s9 + $0x2ac] sm:$0xf]
        %v5617 = vld [vmem:[%s9 + $0x2b0] sm:$0xf]
        %v5618 = vld [vmem:[%s9 + $0x2b4] sm:$0xf]
        %v5619 = vld [vmem:[%s9 + $0x2b8] sm:$0xf]
        %v5620 = vld [vmem:[%s9 + $0x2bc] sm:$0xf]
        %v5621 = vld [vmem:[%s9 + $0x2c0] sm:$0xf]
        %v5622 = vld [vmem:[%s9 + $0x2c4] sm:$0xf]
        %v5623 = vld [vmem:[%s9 + $0x2c8] sm:$0xf]
        %v5624 = vld [vmem:[%s9 + $0x2cc] sm:$0xf]
        %v5625 = vld [vmem:[%s9 + $0x2d0] sm:$0xf]
        %v5626 = vld [vmem:[%s9 + $0x2d4] sm:$0xf]
        %v5627 = vld [vmem:[%s9 + $0x2d8] sm:$0xf]
        %v5628 = vld [vmem:[%s9 + $0x2dc] sm:$0xf]
        %v5629 = vld [vmem:[%s9 + $0x2e0] sm:$0xf]
        %v5630 = vld [vmem:[%s9 + $0x2e4] sm:$0xf]
        %v5631 = vld [vmem:[%s9 + $0x2e8] sm:$0xf]
        %v5632 = vld [vmem:[%s9 + $0x2ec] sm:$0xf]
        %v5633 = vld [vmem:[%s9 + $0x2f0] sm:$0xf]
        %v5634 = vld [vmem:[%s9 + $0x2f4] sm:$0xf]
        %v5635 = vld [vmem:[%s9 + $0x2f8] sm:$0xf]
        %v5636 = vld [vmem:[%s9 + $0x2fc] sm:$0xf]
        %v5637 = vld [vmem:[%s9 + $0x300] sm:$0xf]
        %v5638 = vld [vmem:[%s9 + $0x304] sm:$0xf]
        %v5639 = vld [vmem:[%s9 + $0x308] sm:$0xf]
        %v5640 = vld [vmem:[%s9 + $0x30c] sm:$0xf]
        %v5641 = vld [vmem:[%s9 + $0x310] sm:$0xf]
        %v5642 = vld [vmem:[%s9 + $0x314] sm:$0xf]
        %v5643 = vld [vmem:[%s9 + $0x318] sm:$0xf]
        %v5644 = vld [vmem:[%s9 + $0x31c] sm:$0xf]
        %v5645 = vld [vmem:[%s9 + $0x320] sm:$0xf]
        %v5646 = vld [vmem:[%s9 + $0x324] sm:$0xf]
        %v5647 = vld [vmem:[%s9 + $0x328] sm:$0xf]
        %v5648 = vld [vmem:[%s9 + $0x32c] sm:$0xf]
        %v5649 = vld [vmem:[%s9 + $0x330] sm:$0xf]
        %v5650 = vld [vmem:[%s9 + $0x334] sm:$0xf]
        %v5651 = vld [vmem:[%s9 + $0x338] sm:$0xf]
        %v5652 = vld [vmem:[%s9 + $0x33c] sm:$0xf]
        %v5653 = vld [vmem:[%s9 + $0x340] sm:$0xf]
        %v5654 = vld [vmem:[%s9 + $0x344] sm:$0xf]
        %v5655 = vld [vmem:[%s9 + $0x348] sm:$0xf]
        %v5656 = vld [vmem:[%s9 + $0x34c] sm:$0xf]
        %v5657 = vld [vmem:[%s9 + $0x350] sm:$0xf]
        %v5658 = vld [vmem:[%s9 + $0x354] sm:$0xf]
        %v5659 = vld [vmem:[%s9 + $0x358] sm:$0xf]
        %v5660 = vld [vmem:[%s9 + $0x35c] sm:$0xf]
        %v5661 = vld [vmem:[%s9 + $0x360] sm:$0xf]
        %v5662 = vld [vmem:[%s9 + $0x364] sm:$0xf]
        %v5663 = vld [vmem:[%s9 + $0x368] sm:$0xf]
        %v5664 = vld [vmem:[%s9 + $0x36c] sm:$0xf]
        %v5665 = vld [vmem:[%s9 + $0x370] sm:$0xf]
        %v5666 = vld [vmem:[%s9 + $0x374] sm:$0xf]
        %v5667 = vld [vmem:[%s9 + $0x378] sm:$0xf]
        %v5668 = vld [vmem:[%s9 + $0x37c] sm:$0xf]
        %v5669 = vld [vmem:[%s9 + $0x380] sm:$0xf]
        %v5670 = vld [vmem:[%s9 + $0x384] sm:$0xf]
        %v5671 = vld [vmem:[%s9 + $0x388] sm:$0xf]
        %v5672 = vld [vmem:[%s9 + $0x38c] sm:$0xf]
        %v5673 = vld [vmem:[%s9 + $0x390] sm:$0xf]
        %v5674 = vld [vmem:[%s9 + $0x394] sm:$0xf]
        %v5675 = vld [vmem:[%s9 + $0x398] sm:$0xf]
        %v5676 = vld [vmem:[%s9 + $0x39c] sm:$0xf]
        %v5677 = vld [vmem:[%s9 + $0x3a0] sm:$0xf]
        %v5678 = vld [vmem:[%s9 + $0x3a4] sm:$0xf]
        %v5679 = vld [vmem:[%s9 + $0x3a8] sm:$0xf]
        %v5680 = vld [vmem:[%s9 + $0x3ac] sm:$0xf]
        %v5681 = vld [vmem:[%s9 + $0x3b0] sm:$0xf]
        %v5682 = vld [vmem:[%s9 + $0x3b4] sm:$0xf]
        %v5683 = vld [vmem:[%s9 + $0x3b8] sm:$0xf]
        %v5684 = vld [vmem:[%s9 + $0x3bc] sm:$0xf]
        %v5685 = vld [vmem:[%s9 + $0x3c0] sm:$0xf]
        %v5686 = vld [vmem:[%s9 + $0x3c4] sm:$0xf]
        %v5687 = vld [vmem:[%s9 + $0x3c8] sm:$0xf]
        %v5688 = vld [vmem:[%s9 + $0x3cc] sm:$0xf]
        %v5689 = vld [vmem:[%s9 + $0x3d0] sm:$0xf]
        %v5690 = vld [vmem:[%s9 + $0x3d4] sm:$0xf]
        %v5691 = vld [vmem:[%s9 + $0x3d8] sm:$0xf]
        %v5692 = vld [vmem:[%s9 + $0x3dc] sm:$0xf]
        %v5693 = vld [vmem:[%s9 + $0x3e0] sm:$0xf]
        %v5694 = vld [vmem:[%s9 + $0x3e4] sm:$0xf]
        %v5695 = vld [vmem:[%s9 + $0x3e8] sm:$0xf]
        %v5696 = vld [vmem:[%s9 + $0x3ec] sm:$0xf]
        %v5697 = vld [vmem:[%s9 + $0x3f0] sm:$0xf]
        %v5698 = vld [vmem:[%s9 + $0x3f4] sm:$0xf]
        %v5699 = vld [vmem:[%s9 + $0x3f8] sm:$0xf]
        %v5700 = vld [vmem:[%s9 + $0x3fc] sm:$0xf]
        %v5701 = vld [vmem:[%s9 + $0x400] sm:$0xf]
        %v5702 = vld [vmem:[%s9 + $0x404] sm:$0xf]
        %v5703 = vld [vmem:[%s9 + $0x408] sm:$0xf]
        %v5704 = vld [vmem:[%s9 + $0x40c] sm:$0xf]
        %v5705 = vld [vmem:[%s9 + $0x410] sm:$0xf]
        %v5706 = vld [vmem:[%s9 + $0x414] sm:$0xf]
        %v5707 = vld [vmem:[%s9 + $0x418] sm:$0xf]
        %v5708 = vld [vmem:[%s9 + $0x41c] sm:$0xf]
        %v5709 = vld [vmem:[%s9 + $0x420] sm:$0xf]
        %v5710 = vld [vmem:[%s9 + $0x424] sm:$0xf]
        %v5711 = vld [vmem:[%s9 + $0x428] sm:$0xf]
        %v5712 = vld [vmem:[%s9 + $0x42c] sm:$0xf]
        %v5713 = vld [vmem:[%s9 + $0x430] sm:$0xf]
        %v5714 = vld [vmem:[%s9 + $0x434] sm:$0xf]
        %v5715 = vld [vmem:[%s9 + $0x438] sm:$0xf]
        %v5716 = vld [vmem:[%s9 + $0x43c] sm:$0xf]
        %v5717 = vld [vmem:[%s9 + $0x440] sm:$0xf]
        %v5718 = vld [vmem:[%s9 + $0x444] sm:$0xf]
        %v5719 = vld [vmem:[%s9 + $0x448] sm:$0xf]
        %v5720 = vld [vmem:[%s9 + $0x44c] sm:$0xf]
        %v5721 = vld [vmem:[%s9 + $0x450] sm:$0xf]
        %v5722 = vld [vmem:[%s9 + $0x454] sm:$0xf]
        %v5723 = vld [vmem:[%s9 + $0x458] sm:$0xf]
        %v5724 = vld [vmem:[%s9 + $0x45c] sm:$0xf]
        %v5725 = vld [vmem:[%s9 + $0x460] sm:$0xf]
        %v5726 = vld [vmem:[%s9 + $0x464] sm:$0xf]
        %v5727 = vld [vmem:[%s9 + $0x468] sm:$0xf]
        %v5728 = vld [vmem:[%s9 + $0x46c] sm:$0xf]
        %v5729 = vld [vmem:[%s9 + $0x470] sm:$0xf]
        %v5730 = vld [vmem:[%s9 + $0x474] sm:$0xf]
        %v5731 = vld [vmem:[%s9 + $0x478] sm:$0xf]
        %v5732 = vld [vmem:[%s9 + $0x47c] sm:$0xf]
        %v5733 = vld [vmem:[%s10] sm:$0x1]
        %v5735 = vlaneseq
        %v5736 = vshrl.u32 %v5735, 7
        %v5737 = vsub.s32 0, %v5736
        %v5738 = vrot.slane %v5733, %v5737
        %v6028 = vunpack.c.l.b16 %v5445
        %v6029 = vunpack.c.l.b16 %v5446
        %v6030 = vunpack.c.l.b16 %v5447
        %v6031 = vunpack.c.l.b16 %v5448
        %v6032 = vunpack.c.l.b16 %v5449
        %v6033 = vunpack.c.l.b16 %v5450
        %v6034 = vunpack.c.l.b16 %v5451
        %v6035 = vunpack.c.l.b16 %v5452
        %v6036 = vunpack.c.l.b16 %v5453
        %v6037 = vunpack.c.l.b16 %v5454
        %v6038 = vunpack.c.l.b16 %v5455
        %v6039 = vunpack.c.l.b16 %v5456
        %v6040 = vunpack.c.l.b16 %v5457
        %v6041 = vunpack.c.l.b16 %v5458
        %v6042 = vunpack.c.l.b16 %v5459
        %v6043 = vunpack.c.l.b16 %v5460
        %v6044 = vunpack.c.l.b16 %v5461
        %v6045 = vunpack.c.l.b16 %v5462
        %v6046 = vunpack.c.l.b16 %v5463
        %v6047 = vunpack.c.l.b16 %v5464
        %v6048 = vunpack.c.l.b16 %v5465
        %v6049 = vunpack.c.l.b16 %v5466
        %v6050 = vunpack.c.l.b16 %v5467
        %v6051 = vunpack.c.l.b16 %v5468
        %v6052 = vunpack.c.l.b16 %v5469
        %v6053 = vunpack.c.l.b16 %v5470
        %v6054 = vunpack.c.l.b16 %v5471
        %v6055 = vunpack.c.l.b16 %v5472
        %v6056 = vunpack.c.l.b16 %v5473
        %v6057 = vunpack.c.l.b16 %v5474
        %v6058 = vunpack.c.l.b16 %v5475
        %v6059 = vunpack.c.l.b16 %v5476
        %v6060 = vunpack.c.l.b16 %v5477
        %v6061 = vunpack.c.l.b16 %v5478
        %v6062 = vunpack.c.l.b16 %v5479
        %v6063 = vunpack.c.l.b16 %v5480
        %v6064 = vunpack.c.l.b16 %v5481
        %v6065 = vunpack.c.l.b16 %v5482
        %v6066 = vunpack.c.l.b16 %v5483
        %v6067 = vunpack.c.l.b16 %v5484
        %v6068 = vunpack.c.l.b16 %v5485
        %v6069 = vunpack.c.l.b16 %v5486
        %v6070 = vunpack.c.l.b16 %v5487
        %v6071 = vunpack.c.l.b16 %v5488
        %v6072 = vunpack.c.l.b16 %v5489
        %v6073 = vunpack.c.l.b16 %v5490
        %v6074 = vunpack.c.l.b16 %v5491
        %v6075 = vunpack.c.l.b16 %v5492
        %v6076 = vunpack.c.l.b16 %v5493
        %v6077 = vunpack.c.l.b16 %v5494
        %v6078 = vunpack.c.l.b16 %v5495
        %v6079 = vunpack.c.l.b16 %v5496
        %v6080 = vunpack.c.l.b16 %v5497
        %v6081 = vunpack.c.l.b16 %v5498
        %v6082 = vunpack.c.l.b16 %v5499
        %v6083 = vunpack.c.l.b16 %v5500
        %v6084 = vunpack.c.l.b16 %v5501
        %v6085 = vunpack.c.l.b16 %v5502
        %v6086 = vunpack.c.l.b16 %v5503
        %v6087 = vunpack.c.l.b16 %v5504
        %v6088 = vunpack.c.l.b16 %v5505
        %v6089 = vunpack.c.l.b16 %v5506
        %v6090 = vunpack.c.l.b16 %v5507
        %v6091 = vunpack.c.l.b16 %v5508
        %v6092 = vunpack.c.l.b16 %v5509
        %v6093 = vunpack.c.l.b16 %v5510
        %v6094 = vunpack.c.l.b16 %v5511
        %v6095 = vunpack.c.l.b16 %v5512
        %v6096 = vunpack.c.l.b16 %v5513
        %v6097 = vunpack.c.l.b16 %v5514
        %v6098 = vunpack.c.l.b16 %v5515
        %v6099 = vunpack.c.l.b16 %v5516
        %v6100 = vunpack.c.l.b16 %v5517
        %v6101 = vunpack.c.l.b16 %v5518
        %v6102 = vunpack.c.l.b16 %v5519
        %v6103 = vunpack.c.l.b16 %v5520
        %v6104 = vunpack.c.l.b16 %v5521
        %v6105 = vunpack.c.l.b16 %v5522
        %v6106 = vunpack.c.l.b16 %v5523
        %v6107 = vunpack.c.l.b16 %v5524
        %v6108 = vunpack.c.l.b16 %v5525
        %v6109 = vunpack.c.l.b16 %v5526
        %v6110 = vunpack.c.l.b16 %v5527
        %v6111 = vunpack.c.l.b16 %v5528
        %v6112 = vunpack.c.l.b16 %v5529
        %v6113 = vunpack.c.l.b16 %v5530
        %v6114 = vunpack.c.l.b16 %v5531
        %v6115 = vunpack.c.l.b16 %v5532
        %v6116 = vunpack.c.l.b16 %v5533
        %v6117 = vunpack.c.l.b16 %v5534
        %v6118 = vunpack.c.l.b16 %v5535
        %v6119 = vunpack.c.l.b16 %v5536
        %v6120 = vunpack.c.l.b16 %v5537
        %v6121 = vunpack.c.l.b16 %v5538
        %v6122 = vunpack.c.l.b16 %v5539
        %v6123 = vunpack.c.l.b16 %v5540
        %v6124 = vunpack.c.l.b16 %v5541
        %v6125 = vunpack.c.l.b16 %v5542
        %v6126 = vunpack.c.l.b16 %v5543
        %v6127 = vunpack.c.l.b16 %v5544
        %v6128 = vunpack.c.l.b16 %v5545
        %v6129 = vunpack.c.l.b16 %v5546
        %v6130 = vunpack.c.l.b16 %v5547
        %v6131 = vunpack.c.l.b16 %v5548
        %v6132 = vunpack.c.l.b16 %v5549
        %v6133 = vunpack.c.l.b16 %v5550
        %v6134 = vunpack.c.l.b16 %v5551
        %v6135 = vunpack.c.l.b16 %v5552
        %v6136 = vunpack.c.l.b16 %v5553
        %v6137 = vunpack.c.l.b16 %v5554
        %v6138 = vunpack.c.l.b16 %v5555
        %v6139 = vunpack.c.l.b16 %v5556
        %v6140 = vunpack.c.l.b16 %v5557
        %v6141 = vunpack.c.l.b16 %v5558
        %v6142 = vunpack.c.l.b16 %v5559
        %v6143 = vunpack.c.l.b16 %v5560
        %v6144 = vunpack.c.l.b16 %v5561
        %v6145 = vunpack.c.l.b16 %v5562
        %v6146 = vunpack.c.l.b16 %v5563
        %v6147 = vunpack.c.l.b16 %v5564
        %v6148 = vunpack.c.l.b16 %v5565
        %v6149 = vunpack.c.l.b16 %v5566
        %v6150 = vunpack.c.l.b16 %v5567
        %v6151 = vunpack.c.l.b16 %v5568
        %v6152 = vunpack.c.l.b16 %v5569
        %v6153 = vunpack.c.l.b16 %v5570
        %v6154 = vunpack.c.l.b16 %v5571
        %v6155 = vunpack.c.l.b16 %v5572
        %v6156 = vunpack.c.l.b16 %v5573
        %v6157 = vunpack.c.l.b16 %v5574
        %v6158 = vunpack.c.l.b16 %v5575
        %v6159 = vunpack.c.l.b16 %v5576
        %v6160 = vunpack.c.l.b16 %v5577
        %v6161 = vunpack.c.l.b16 %v5578
        %v6162 = vunpack.c.l.b16 %v5579
        %v6163 = vunpack.c.l.b16 %v5580
        %v6164 = vunpack.c.l.b16 %v5581
        %v6165 = vunpack.c.l.b16 %v5582
        %v6166 = vunpack.c.l.b16 %v5583
        %v6167 = vunpack.c.l.b16 %v5584
        %v6168 = vunpack.c.l.b16 %v5585
        %v6169 = vunpack.c.l.b16 %v5586
        %v6170 = vunpack.c.l.b16 %v5587
        %v6171 = vunpack.c.l.b16 %v5588
        %v6172 = vunpack.c.l.b16 %v5589
        %v6173 = vunpack.c.l.b16 %v5590
        %v6174 = vunpack.c.l.b16 %v5591
        %v6175 = vunpack.c.l.b16 %v5592
        %v6176 = vunpack.c.l.b16 %v5593
        %v6177 = vunpack.c.l.b16 %v5594
        %v6178 = vunpack.c.l.b16 %v5595
        %v6179 = vunpack.c.l.b16 %v5596
        %v6180 = vunpack.c.l.b16 %v5597
        %v6181 = vunpack.c.l.b16 %v5598
        %v6182 = vunpack.c.l.b16 %v5599
        %v6183 = vunpack.c.l.b16 %v5600
        %v6184 = vunpack.c.l.b16 %v5601
        %v6185 = vunpack.c.l.b16 %v5602
        %v6186 = vunpack.c.l.b16 %v5603
        %v6187 = vunpack.c.l.b16 %v5604
        %v6188 = vunpack.c.l.b16 %v5605
        %v6189 = vunpack.c.l.b16 %v5606
        %v6190 = vunpack.c.l.b16 %v5607
        %v6191 = vunpack.c.l.b16 %v5608
        %v6192 = vunpack.c.l.b16 %v5609
        %v6193 = vunpack.c.l.b16 %v5610
        %v6194 = vunpack.c.l.b16 %v5611
        %v6195 = vunpack.c.l.b16 %v5612
        %v6196 = vunpack.c.l.b16 %v5613
        %v6197 = vunpack.c.l.b16 %v5614
        %v6198 = vunpack.c.l.b16 %v5615
        %v6199 = vunpack.c.l.b16 %v5616
        %v6200 = vunpack.c.l.b16 %v5617
        %v6201 = vunpack.c.l.b16 %v5618
        %v6202 = vunpack.c.l.b16 %v5619
        %v6203 = vunpack.c.l.b16 %v5620
        %v6204 = vunpack.c.l.b16 %v5621
        %v6205 = vunpack.c.l.b16 %v5622
        %v6206 = vunpack.c.l.b16 %v5623
        %v6207 = vunpack.c.l.b16 %v5624
        %v6208 = vunpack.c.l.b16 %v5625
        %v6209 = vunpack.c.l.b16 %v5626
        %v6210 = vunpack.c.l.b16 %v5627
        %v6211 = vunpack.c.l.b16 %v5628
        %v6212 = vunpack.c.l.b16 %v5629
        %v6213 = vunpack.c.l.b16 %v5630
        %v6214 = vunpack.c.l.b16 %v5631
        %v6215 = vunpack.c.l.b16 %v5632
        %v6216 = vunpack.c.l.b16 %v5633
        %v6217 = vunpack.c.l.b16 %v5634
        %v6218 = vunpack.c.l.b16 %v5635
        %v6219 = vunpack.c.l.b16 %v5636
        %v6220 = vunpack.c.l.b16 %v5637
        %v6221 = vunpack.c.l.b16 %v5638
        %v6222 = vunpack.c.l.b16 %v5639
        %v6223 = vunpack.c.l.b16 %v5640
        %v6224 = vunpack.c.l.b16 %v5641
        %v6225 = vunpack.c.l.b16 %v5642
        %v6226 = vunpack.c.l.b16 %v5643
        %v6227 = vunpack.c.l.b16 %v5644
        %v6228 = vunpack.c.l.b16 %v5645
        %v6229 = vunpack.c.l.b16 %v5646
        %v6230 = vunpack.c.l.b16 %v5647
        %v6231 = vunpack.c.l.b16 %v5648
        %v6232 = vunpack.c.l.b16 %v5649
        %v6233 = vunpack.c.l.b16 %v5650
        %v6234 = vunpack.c.l.b16 %v5651
        %v6235 = vunpack.c.l.b16 %v5652
        %v6236 = vunpack.c.l.b16 %v5653
        %v6237 = vunpack.c.l.b16 %v5654
        %v6238 = vunpack.c.l.b16 %v5655
        %v6239 = vunpack.c.l.b16 %v5656
        %v6240 = vunpack.c.l.b16 %v5657
        %v6241 = vunpack.c.l.b16 %v5658
        %v6242 = vunpack.c.l.b16 %v5659
        %v6243 = vunpack.c.l.b16 %v5660
        %v6244 = vunpack.c.l.b16 %v5661
        %v6245 = vunpack.c.l.b16 %v5662
        %v6246 = vunpack.c.l.b16 %v5663
        %v6247 = vunpack.c.l.b16 %v5664
        %v6248 = vunpack.c.l.b16 %v5665
        %v6249 = vunpack.c.l.b16 %v5666
        %v6250 = vunpack.c.l.b16 %v5667
        %v6251 = vunpack.c.l.b16 %v5668
        %v6252 = vunpack.c.l.b16 %v5669
        %v6253 = vunpack.c.l.b16 %v5670
        %v6254 = vunpack.c.l.b16 %v5671
        %v6255 = vunpack.c.l.b16 %v5672
        %v6256 = vunpack.c.l.b16 %v5673
        %v6257 = vunpack.c.l.b16 %v5674
        %v6258 = vunpack.c.l.b16 %v5675
        %v6259 = vunpack.c.l.b16 %v5676
        %v6260 = vunpack.c.l.b16 %v5677
        %v6261 = vunpack.c.l.b16 %v5678
        %v6262 = vunpack.c.l.b16 %v5679
        %v6263 = vunpack.c.l.b16 %v5680
        %v6264 = vunpack.c.l.b16 %v5681
        %v6265 = vunpack.c.l.b16 %v5682
        %v6266 = vunpack.c.l.b16 %v5683
        %v6267 = vunpack.c.l.b16 %v5684
        %v6268 = vunpack.c.l.b16 %v5685
        %v6269 = vunpack.c.l.b16 %v5686
        %v6270 = vunpack.c.l.b16 %v5687
        %v6271 = vunpack.c.l.b16 %v5688
        %v6272 = vunpack.c.l.b16 %v5689
        %v6273 = vunpack.c.l.b16 %v5690
        %v6274 = vunpack.c.l.b16 %v5691
        %v6275 = vunpack.c.l.b16 %v5692
        %v6276 = vunpack.c.l.b16 %v5693
        %v6277 = vunpack.c.l.b16 %v5694
        %v6278 = vunpack.c.l.b16 %v5695
        %v6279 = vunpack.c.l.b16 %v5696
        %v6280 = vunpack.c.l.b16 %v5697
        %v6281 = vunpack.c.l.b16 %v5698
        %v6282 = vunpack.c.l.b16 %v5699
        %v6283 = vunpack.c.l.b16 %v5700
        %v6284 = vunpack.c.l.b16 %v5701
        %v6285 = vunpack.c.l.b16 %v5702
        %v6286 = vunpack.c.l.b16 %v5703
        %v6287 = vunpack.c.l.b16 %v5704
        %v6288 = vunpack.c.l.b16 %v5705
        %v6289 = vunpack.c.l.b16 %v5706
        %v6290 = vunpack.c.l.b16 %v5707
        %v6291 = vunpack.c.l.b16 %v5708
        %v6292 = vunpack.c.l.b16 %v5709
        %v6293 = vunpack.c.l.b16 %v5710
        %v6294 = vunpack.c.l.b16 %v5711
        %v6295 = vunpack.c.l.b16 %v5712
        %v6296 = vunpack.c.l.b16 %v5713
        %v6297 = vunpack.c.l.b16 %v5714
        %v6298 = vunpack.c.l.b16 %v5715
        %v6299 = vunpack.c.l.b16 %v5716
        %v6300 = vunpack.c.l.b16 %v5717
        %v6301 = vunpack.c.l.b16 %v5718
        %v6302 = vunpack.c.l.b16 %v5719
        %v6303 = vunpack.c.l.b16 %v5720
        %v6304 = vunpack.c.l.b16 %v5721
        %v6305 = vunpack.c.l.b16 %v5722
        %v6306 = vunpack.c.l.b16 %v5723
        %v6307 = vunpack.c.l.b16 %v5724
        %v6308 = vunpack.c.l.b16 %v5725
        %v6309 = vunpack.c.l.b16 %v5726
        %v6310 = vunpack.c.l.b16 %v5727
        %v6311 = vunpack.c.l.b16 %v5728
        %v6312 = vunpack.c.l.b16 %v5729
        %v6313 = vunpack.c.l.b16 %v5730
        %v6314 = vunpack.c.l.b16 %v5731
        %v6315 = vunpack.c.l.b16 %v5732
        %v6316 = vpack.c.b16 %v6029, %v6028
        %v6317 = vpack.c.b16 %v6031, %v6030
        %v6318 = vpack.c.b16 %v6033, %v6032
        %v6319 = vpack.c.b16 %v6035, %v6034
        %v6320 = vpack.c.b16 %v6037, %v6036
        %v6321 = vpack.c.b16 %v6039, %v6038
        %v6322 = vpack.c.b16 %v6041, %v6040
        %v6323 = vpack.c.b16 %v6043, %v6042
        %v6324 = vpack.c.b16 %v6045, %v6044
        %v6325 = vpack.c.b16 %v6047, %v6046
        %v6326 = vpack.c.b16 %v6049, %v6048
        %v6327 = vpack.c.b16 %v6051, %v6050
        %v6328 = vpack.c.b16 %v6053, %v6052
        %v6329 = vpack.c.b16 %v6055, %v6054
        %v6330 = vpack.c.b16 %v6057, %v6056
        %v6331 = vpack.c.b16 %v6059, %v6058
        %v6332 = vpack.c.b16 %v6061, %v6060
        %v6333 = vpack.c.b16 %v6063, %v6062
        %v6334 = vpack.c.b16 %v6065, %v6064
        %v6335 = vpack.c.b16 %v6067, %v6066
        %v6336 = vpack.c.b16 %v6069, %v6068
        %v6337 = vpack.c.b16 %v6071, %v6070
        %v6338 = vpack.c.b16 %v6073, %v6072
        %v6339 = vpack.c.b16 %v6075, %v6074
        %v6340 = vpack.c.b16 %v6077, %v6076
        %v6341 = vpack.c.b16 %v6079, %v6078
        %v6342 = vpack.c.b16 %v6081, %v6080
        %v6343 = vpack.c.b16 %v6083, %v6082
        %v6344 = vpack.c.b16 %v6085, %v6084
        %v6345 = vpack.c.b16 %v6087, %v6086
        %v6346 = vpack.c.b16 %v6089, %v6088
        %v6347 = vpack.c.b16 %v6091, %v6090
        %v6348 = vpack.c.b16 %v6093, %v6092
        %v6349 = vpack.c.b16 %v6095, %v6094
        %v6350 = vpack.c.b16 %v6097, %v6096
        %v6351 = vpack.c.b16 %v6099, %v6098
        %v6352 = vpack.c.b16 %v6101, %v6100
        %v6353 = vpack.c.b16 %v6103, %v6102
        %v6354 = vpack.c.b16 %v6105, %v6104
        %v6355 = vpack.c.b16 %v6107, %v6106
        %v6356 = vpack.c.b16 %v6109, %v6108
        %v6357 = vpack.c.b16 %v6111, %v6110
        %v6358 = vpack.c.b16 %v6113, %v6112
        %v6359 = vpack.c.b16 %v6115, %v6114
        %v6360 = vpack.c.b16 %v6117, %v6116
        %v6361 = vpack.c.b16 %v6119, %v6118
        %v6362 = vpack.c.b16 %v6121, %v6120
        %v6363 = vpack.c.b16 %v6123, %v6122
        %v6364 = vpack.c.b16 %v6125, %v6124
        %v6365 = vpack.c.b16 %v6127, %v6126
        %v6366 = vpack.c.b16 %v6129, %v6128
        %v6367 = vpack.c.b16 %v6131, %v6130
        %v6368 = vpack.c.b16 %v6133, %v6132
        %v6369 = vpack.c.b16 %v6135, %v6134
        %v6370 = vpack.c.b16 %v6137, %v6136
        %v6371 = vpack.c.b16 %v6139, %v6138
        %v6372 = vpack.c.b16 %v6141, %v6140
        %v6373 = vpack.c.b16 %v6143, %v6142
        %v6374 = vpack.c.b16 %v6145, %v6144
        %v6375 = vpack.c.b16 %v6147, %v6146
        %v6376 = vpack.c.b16 %v6149, %v6148
        %v6377 = vpack.c.b16 %v6151, %v6150
        %v6378 = vpack.c.b16 %v6153, %v6152
        %v6379 = vpack.c.b16 %v6155, %v6154
        %v6380 = vpack.c.b16 %v6157, %v6156
        %v6381 = vpack.c.b16 %v6159, %v6158
        %v6382 = vpack.c.b16 %v6161, %v6160
        %v6383 = vpack.c.b16 %v6163, %v6162
        %v6384 = vpack.c.b16 %v6165, %v6164
        %v6385 = vpack.c.b16 %v6167, %v6166
        %v6386 = vpack.c.b16 %v6169, %v6168
        %v6387 = vpack.c.b16 %v6171, %v6170
        %v6388 = vpack.c.b16 %v6173, %v6172
        %v6389 = vpack.c.b16 %v6175, %v6174
        %v6390 = vpack.c.b16 %v6177, %v6176
        %v6391 = vpack.c.b16 %v6179, %v6178
        %v6392 = vpack.c.b16 %v6181, %v6180
        %v6393 = vpack.c.b16 %v6183, %v6182
        %v6394 = vpack.c.b16 %v6185, %v6184
        %v6395 = vpack.c.b16 %v6187, %v6186
        %v6396 = vpack.c.b16 %v6189, %v6188
        %v6397 = vpack.c.b16 %v6191, %v6190
        %v6398 = vpack.c.b16 %v6193, %v6192
        %v6399 = vpack.c.b16 %v6195, %v6194
        %v6400 = vpack.c.b16 %v6197, %v6196
        %v6401 = vpack.c.b16 %v6199, %v6198
        %v6402 = vpack.c.b16 %v6201, %v6200
        %v6403 = vpack.c.b16 %v6203, %v6202
        %v6404 = vpack.c.b16 %v6205, %v6204
        %v6405 = vpack.c.b16 %v6207, %v6206
        %v6406 = vpack.c.b16 %v6209, %v6208
        %v6407 = vpack.c.b16 %v6211, %v6210
        %v6408 = vpack.c.b16 %v6213, %v6212
        %v6409 = vpack.c.b16 %v6215, %v6214
        %v6410 = vpack.c.b16 %v6217, %v6216
        %v6411 = vpack.c.b16 %v6219, %v6218
        %v6412 = vpack.c.b16 %v6221, %v6220
        %v6413 = vpack.c.b16 %v6223, %v6222
        %v6414 = vpack.c.b16 %v6225, %v6224
        %v6415 = vpack.c.b16 %v6227, %v6226
        %v6416 = vpack.c.b16 %v6229, %v6228
        %v6417 = vpack.c.b16 %v6231, %v6230
        %v6418 = vpack.c.b16 %v6233, %v6232
        %v6419 = vpack.c.b16 %v6235, %v6234
        %v6420 = vpack.c.b16 %v6237, %v6236
        %v6421 = vpack.c.b16 %v6239, %v6238
        %v6422 = vpack.c.b16 %v6241, %v6240
        %v6423 = vpack.c.b16 %v6243, %v6242
        %v6424 = vpack.c.b16 %v6245, %v6244
        %v6425 = vpack.c.b16 %v6247, %v6246
        %v6426 = vpack.c.b16 %v6249, %v6248
        %v6427 = vpack.c.b16 %v6251, %v6250
        %v6428 = vpack.c.b16 %v6253, %v6252
        %v6429 = vpack.c.b16 %v6255, %v6254
        %v6430 = vpack.c.b16 %v6257, %v6256
        %v6431 = vpack.c.b16 %v6259, %v6258
        %v6432 = vpack.c.b16 %v6261, %v6260
        %v6433 = vpack.c.b16 %v6263, %v6262
        %v6434 = vpack.c.b16 %v6265, %v6264
        %v6435 = vpack.c.b16 %v6267, %v6266
        %v6436 = vpack.c.b16 %v6269, %v6268
        %v6437 = vpack.c.b16 %v6271, %v6270
        %v6438 = vpack.c.b16 %v6273, %v6272
        %v6439 = vpack.c.b16 %v6275, %v6274
        %v6440 = vpack.c.b16 %v6277, %v6276
        %v6441 = vpack.c.b16 %v6279, %v6278
        %v6442 = vpack.c.b16 %v6281, %v6280
        %v6443 = vpack.c.b16 %v6283, %v6282
        %v6444 = vpack.c.b16 %v6285, %v6284
        %v6445 = vpack.c.b16 %v6287, %v6286
        %v6446 = vpack.c.b16 %v6289, %v6288
        %v6447 = vpack.c.b16 %v6291, %v6290
        %v6448 = vpack.c.b16 %v6293, %v6292
        %v6449 = vpack.c.b16 %v6295, %v6294
        %v6450 = vpack.c.b16 %v6297, %v6296
        %v6451 = vpack.c.b16 %v6299, %v6298
        %v6452 = vpack.c.b16 %v6301, %v6300
        %v6453 = vpack.c.b16 %v6303, %v6302
        %v6454 = vpack.c.b16 %v6305, %v6304
        %v6455 = vpack.c.b16 %v6307, %v6306
        %v6456 = vpack.c.b16 %v6309, %v6308
        %v6457 = vpack.c.b16 %v6311, %v6310
        %v6458 = vpack.c.b16 %v6313, %v6312
        %v6459 = vpack.c.b16 %v6315, %v6314
        %6604 = vmatprep.subr.bf16.mxu0 0
        %6605 = vmatpush1.bf16.msra.mxu0 %v6316
        %6606 = vmatprep.subr.bf16.mxu0 0
        %6607 = vmatpush1.bf16.msra.mxu0 %v6317
        %6608 = vmatprep.subr.bf16.mxu0 0
        %6609 = vmatpush1.bf16.msra.mxu0 %v6318
        %6610 = vmatprep.subr.bf16.mxu0 0
        %6611 = vmatpush1.bf16.msra.mxu0 %v6319
        %6612 = vmatprep.subr.bf16.mxu0 0
        %6613 = vmatpush1.bf16.msra.mxu0 %v6320
        %6614 = vmatprep.subr.bf16.mxu0 0
        %6615 = vmatpush1.bf16.msra.mxu0 %v6321
        %6616 = vmatprep.subr.bf16.mxu0 0
        %6617 = vmatpush1.bf16.msra.mxu0 %v6322
        %6618 = vmatprep.subr.bf16.mxu0 0
        %6619 = vmatpush1.bf16.msra.mxu0 %v6323
        %6620 = vmatprep.subr.bf16.mxu0 0
        %6621 = vmatpush1.bf16.msra.mxu0 %v6324
        %6622 = vmatprep.subr.bf16.mxu0 0
        %6623 = vmatpush1.bf16.msra.mxu0 %v6325
        %6624 = vmatprep.subr.bf16.mxu0 0
        %6625 = vmatpush1.bf16.msra.mxu0 %v6326
        %6626 = vmatprep.subr.bf16.mxu0 0
        %6627 = vmatpush1.bf16.msra.mxu0 %v6327
        %6628 = vmatprep.subr.bf16.mxu0 0
        %6629 = vmatpush1.bf16.msra.mxu0 %v6328
        %6630 = vmatprep.subr.bf16.mxu0 0
        %6631 = vmatpush1.bf16.msra.mxu0 %v6329
        %6632 = vmatprep.subr.bf16.mxu0 0
        %6633 = vmatpush1.bf16.msra.mxu0 %v6330
        %6634 = vmatprep.subr.bf16.mxu0 0
        %6635 = vmatpush1.bf16.msra.mxu0 %v6331
        %6636 = vmatprep.mubr.bf16.mxu0 %v5428
        %6637 = vmatmul.mubr.bf16.gmra.mrb[0].mxu0 %v5427
        %v6638 = vpop.f32.mrb[0].mxu0
        %v6639 = vadd.f32 %v5738, %v6638
        %v6640 = vpop.f32.mrb[0].mxu0
        %v6641 = vpop.f32.mrb[0].mxu0
        %v6642 = vadd.f32 %v5738, %v6641
        %v6643 = vpop.f32.mrb[0].mxu0
        %6644 = vdwg.mxu0
        %6645 = vmatprep.subr.bf16.mxu0 0
        %6646 = vmatpush1.bf16.msra.mxu0 %v6332
        %6647 = vmatprep.subr.bf16.mxu0 0
        %6648 = vmatpush1.bf16.msra.mxu0 %v6333
        %6649 = vmatprep.subr.bf16.mxu0 0
        %6650 = vmatpush1.bf16.msra.mxu0 %v6334
        %6651 = vmatprep.subr.bf16.mxu0 0
        %6652 = vmatpush1.bf16.msra.mxu0 %v6335
        %6653 = vmatprep.subr.bf16.mxu0 0
        %6654 = vmatpush1.bf16.msra.mxu0 %v6336
        %6655 = vmatprep.subr.bf16.mxu0 0
        %6656 = vmatpush1.bf16.msra.mxu0 %v6337
        %6657 = vmatprep.subr.bf16.mxu0 0
        %6658 = vmatpush1.bf16.msra.mxu0 %v6338
        %6659 = vmatprep.subr.bf16.mxu0 0
        %6660 = vmatpush1.bf16.msra.mxu0 %v6339
        %6661 = vmatprep.subr.bf16.mxu0 0
        %6662 = vmatpush1.bf16.msra.mxu0 %v6340
        %6663 = vmatprep.subr.bf16.mxu0 0
        %6664 = vmatpush1.bf16.msra.mxu0 %v6341
        %6665 = vmatprep.subr.bf16.mxu0 0
        %6666 = vmatpush1.bf16.msra.mxu0 %v6342
        %6667 = vmatprep.subr.bf16.mxu0 0
        %6668 = vmatpush1.bf16.msra.mxu0 %v6343
        %6669 = vmatprep.subr.bf16.mxu0 0
        %6670 = vmatpush1.bf16.msra.mxu0 %v6344
        %6671 = vmatprep.subr.bf16.mxu0 0
        %6672 = vmatpush1.bf16.msra.mxu0 %v6345
        %6673 = vmatprep.subr.bf16.mxu0 0
        %6674 = vmatpush1.bf16.msra.mxu0 %v6346
        %6675 = vmatprep.subr.bf16.mxu0 0
        %6676 = vmatpush1.bf16.msra.mxu0 %v6347
        %6677 = vmatprep.mubr.bf16.mxu0 %v5430
        %6678 = vmatmul.mubr.bf16.gmra.mrb[0].mxu0 %v5429
        %v6679 = vpop.f32.mrb[0].mxu0
        %v6680 = vadd.f32 %v6639, %v6679
        %v6681 = vpop.f32.mrb[0].mxu0
        %v6682 = vpop.f32.mrb[0].mxu0
        %v6683 = vadd.f32 %v6642, %v6682
        %v6684 = vpop.f32.mrb[0].mxu0
        %6685 = vdwg.mxu0
        %6686 = vmatprep.subr.bf16.mxu0 0
        %6687 = vmatpush1.bf16.msra.mxu0 %v6348
        %6688 = vmatprep.subr.bf16.mxu0 0
        %6689 = vmatpush1.bf16.msra.mxu0 %v6349
        %6690 = vmatprep.subr.bf16.mxu0 0
        %6691 = vmatpush1.bf16.msra.mxu0 %v6350
        %6692 = vmatprep.subr.bf16.mxu0 0
        %6693 = vmatpush1.bf16.msra.mxu0 %v6351
        %6694 = vmatprep.subr.bf16.mxu0 0
        %6695 = vmatpush1.bf16.msra.mxu0 %v6352
        %6696 = vmatprep.subr.bf16.mxu0 0
        %6697 = vmatpush1.bf16.msra.mxu0 %v6353
        %6698 = vmatprep.subr.bf16.mxu0 0
        %6699 = vmatpush1.bf16.msra.mxu0 %v6354
        %6700 = vmatprep.subr.bf16.mxu0 0
        %6701 = vmatpush1.bf16.msra.mxu0 %v6355
        %6702 = vmatprep.subr.bf16.mxu0 0
        %6703 = vmatpush1.bf16.msra.mxu0 %v6356
        %6704 = vmatprep.subr.bf16.mxu0 0
        %6705 = vmatpush1.bf16.msra.mxu0 %v6357
        %6706 = vmatprep.subr.bf16.mxu0 0
        %6707 = vmatpush1.bf16.msra.mxu0 %v6358
        %6708 = vmatprep.subr.bf16.mxu0 0
        %6709 = vmatpush1.bf16.msra.mxu0 %v6359
        %6710 = vmatprep.subr.bf16.mxu0 0
        %6711 = vmatpush1.bf16.msra.mxu0 %v6360
        %6712 = vmatprep.subr.bf16.mxu0 0
        %6713 = vmatpush1.bf16.msra.mxu0 %v6361
        %6714 = vmatprep.subr.bf16.mxu0 0
        %6715 = vmatpush1.bf16.msra.mxu0 %v6362
        %6716 = vmatprep.subr.bf16.mxu0 0
        %6717 = vmatpush1.bf16.msra.mxu0 %v6363
        %6718 = vmatprep.mubr.bf16.mxu0 %v5432
        %6719 = vmatmul.mubr.bf16.gmra.mrb[0].mxu0 %v5431
        %v6720 = vpop.f32.mrb[0].mxu0
        %v6721 = vadd.f32 %v6680, %v6720
        %v6722 = vpop.f32.mrb[0].mxu0
        %v6723 = vpop.f32.mrb[0].mxu0
        %v6724 = vadd.f32 %v6683, %v6723
        %v6725 = vpop.f32.mrb[0].mxu0
        %6726 = vdwg.mxu0
        %6727 = vmatprep.subr.bf16.mxu0 0
        %6728 = vmatpush1.bf16.msra.mxu0 %v6364
        %6729 = vmatprep.subr.bf16.mxu0 0
        %6730 = vmatpush1.bf16.msra.mxu0 %v6365
        %6731 = vmatprep.subr.bf16.mxu0 0
        %6732 = vmatpush1.bf16.msra.mxu0 %v6366
        %6733 = vmatprep.subr.bf16.mxu0 0
        %6734 = vmatpush1.bf16.msra.mxu0 %v6367
        %6735 = vmatprep.subr.bf16.mxu0 0
        %6736 = vmatpush1.bf16.msra.mxu0 %v6368
        %6737 = vmatprep.subr.bf16.mxu0 0
        %6738 = vmatpush1.bf16.msra.mxu0 %v6369
        %6739 = vmatprep.subr.bf16.mxu0 0
        %6740 = vmatpush1.bf16.msra.mxu0 %v6370
        %6741 = vmatprep.subr.bf16.mxu0 0
        %6742 = vmatpush1.bf16.msra.mxu0 %v6371
        %6743 = vmatprep.subr.bf16.mxu0 0
        %6744 = vmatpush1.bf16.msra.mxu0 %v6372
        %6745 = vmatprep.subr.bf16.mxu0 0
        %6746 = vmatpush1.bf16.msra.mxu0 %v6373
        %6747 = vmatprep.subr.bf16.mxu0 0
        %6748 = vmatpush1.bf16.msra.mxu0 %v6374
        %6749 = vmatprep.subr.bf16.mxu0 0
        %6750 = vmatpush1.bf16.msra.mxu0 %v6375
        %6751 = vmatprep.subr.bf16.mxu0 0
        %6752 = vmatpush1.bf16.msra.mxu0 %v6376
        %6753 = vmatprep.subr.bf16.mxu0 0
        %6754 = vmatpush1.bf16.msra.mxu0 %v6377
        %6755 = vmatprep.subr.bf16.mxu0 0
        %6756 = vmatpush1.bf16.msra.mxu0 %v6378
        %6757 = vmatprep.subr.bf16.mxu0 0
        %6758 = vmatpush1.bf16.msra.mxu0 %v6379
        %6759 = vmatprep.mubr.bf16.mxu0 %v5434
        %6760 = vmatmul.mubr.bf16.gmra.mrb[0].mxu0 %v5433
        %v6761 = vpop.f32.mrb[0].mxu0
        %v6762 = vadd.f32 %v6721, %v6761
        %v6763 = vpop.f32.mrb[0].mxu0
        %v6764 = vpop.f32.mrb[0].mxu0
        %v6765 = vadd.f32 %v6724, %v6764
        %v6766 = vpop.f32.mrb[0].mxu0
        %6767 = vdwg.mxu0
        %6768 = vmatprep.subr.bf16.mxu0 0
        %6769 = vmatpush1.bf16.msra.mxu0 %v6380
        %6770 = vmatprep.subr.bf16.mxu0 0
        %6771 = vmatpush1.bf16.msra.mxu0 %v6381
        %6772 = vmatprep.subr.bf16.mxu0 0
        %6773 = vmatpush1.bf16.msra.mxu0 %v6382
        %6774 = vmatprep.subr.bf16.mxu0 0
        %6775 = vmatpush1.bf16.msra.mxu0 %v6383
        %6776 = vmatprep.subr.bf16.mxu0 0
        %6777 = vmatpush1.bf16.msra.mxu0 %v6384
        %6778 = vmatprep.subr.bf16.mxu0 0
        %6779 = vmatpush1.bf16.msra.mxu0 %v6385
        %6780 = vmatprep.subr.bf16.mxu0 0
        %6781 = vmatpush1.bf16.msra.mxu0 %v6386
        %6782 = vmatprep.subr.bf16.mxu0 0
        %6783 = vmatpush1.bf16.msra.mxu0 %v6387
        %6784 = vmatprep.subr.bf16.mxu0 0
        %6785 = vmatpush1.bf16.msra.mxu0 %v6388
        %6786 = vmatprep.subr.bf16.mxu0 0
        %6787 = vmatpush1.bf16.msra.mxu0 %v6389
        %6788 = vmatprep.subr.bf16.mxu0 0
        %6789 = vmatpush1.bf16.msra.mxu0 %v6390
        %6790 = vmatprep.subr.bf16.mxu0 0
        %6791 = vmatpush1.bf16.msra.mxu0 %v6391
        %6792 = vmatprep.subr.bf16.mxu0 0
        %6793 = vmatpush1.bf16.msra.mxu0 %v6392
        %6794 = vmatprep.subr.bf16.mxu0 0
        %6795 = vmatpush1.bf16.msra.mxu0 %v6393
        %6796 = vmatprep.subr.bf16.mxu0 0
        %6797 = vmatpush1.bf16.msra.mxu0 %v6394
        %6798 = vmatprep.subr.bf16.mxu0 0
        %6799 = vmatpush1.bf16.msra.mxu0 %v6395
        %6800 = vmatprep.mubr.bf16.mxu0 %v5436
        %6801 = vmatmul.mubr.bf16.gmra.mrb[0].mxu0 %v5435
        %v6802 = vpop.f32.mrb[0].mxu0
        %v6803 = vadd.f32 %v6762, %v6802
        %v6804 = vpop.f32.mrb[0].mxu0
        %v6805 = vpop.f32.mrb[0].mxu0
        %v6806 = vadd.f32 %v6765, %v6805
        %v6807 = vpop.f32.mrb[0].mxu0
        %6808 = vdwg.mxu0
        %6809 = vmatprep.subr.bf16.mxu0 0
        %6810 = vmatpush1.bf16.msra.mxu0 %v6396
        %6811 = vmatprep.subr.bf16.mxu0 0
        %6812 = vmatpush1.bf16.msra.mxu0 %v6397
        %6813 = vmatprep.subr.bf16.mxu0 0
        %6814 = vmatpush1.bf16.msra.mxu0 %v6398
        %6815 = vmatprep.subr.bf16.mxu0 0
        %6816 = vmatpush1.bf16.msra.mxu0 %v6399
        %6817 = vmatprep.subr.bf16.mxu0 0
        %6818 = vmatpush1.bf16.msra.mxu0 %v6400
        %6819 = vmatprep.subr.bf16.mxu0 0
        %6820 = vmatpush1.bf16.msra.mxu0 %v6401
        %6821 = vmatprep.subr.bf16.mxu0 0
        %6822 = vmatpush1.bf16.msra.mxu0 %v6402
        %6823 = vmatprep.subr.bf16.mxu0 0
        %6824 = vmatpush1.bf16.msra.mxu0 %v6403
        %6825 = vmatprep.subr.bf16.mxu0 0
        %6826 = vmatpush1.bf16.msra.mxu0 %v6404
        %6827 = vmatprep.subr.bf16.mxu0 0
        %6828 = vmatpush1.bf16.msra.mxu0 %v6405
        %6829 = vmatprep.subr.bf16.mxu0 0
        %6830 = vmatpush1.bf16.msra.mxu0 %v6406
        %6831 = vmatprep.subr.bf16.mxu0 0
        %6832 = vmatpush1.bf16.msra.mxu0 %v6407
        %6833 = vmatprep.subr.bf16.mxu0 0
        %6834 = vmatpush1.bf16.msra.mxu0 %v6408
        %6835 = vmatprep.subr.bf16.mxu0 0
        %6836 = vmatpush1.bf16.msra.mxu0 %v6409
        %6837 = vmatprep.subr.bf16.mxu0 0
        %6838 = vmatpush1.bf16.msra.mxu0 %v6410
        %6839 = vmatprep.subr.bf16.mxu0 0
        %6840 = vmatpush1.bf16.msra.mxu0 %v6411
        %6841 = vmatprep.mubr.bf16.mxu0 %v5438
        %6842 = vmatmul.mubr.bf16.gmra.mrb[0].mxu0 %v5437
        %v6843 = vpop.f32.mrb[0].mxu0
        %v6844 = vadd.f32 %v6803, %v6843
        %v6845 = vpop.f32.mrb[0].mxu0
        %v6846 = vpop.f32.mrb[0].mxu0
        %v6847 = vadd.f32 %v6806, %v6846
        %v6848 = vpop.f32.mrb[0].mxu0
        %6849 = vdwg.mxu0
        %6850 = vmatprep.subr.bf16.mxu0 0
        %6851 = vmatpush1.bf16.msra.mxu0 %v6412
        %6852 = vmatprep.subr.bf16.mxu0 0
        %6853 = vmatpush1.bf16.msra.mxu0 %v6413
        %6854 = vmatprep.subr.bf16.mxu0 0
        %6855 = vmatpush1.bf16.msra.mxu0 %v6414
        %6856 = vmatprep.subr.bf16.mxu0 0
        %6857 = vmatpush1.bf16.msra.mxu0 %v6415
        %6858 = vmatprep.subr.bf16.mxu0 0
        %6859 = vmatpush1.bf16.msra.mxu0 %v6416
        %6860 = vmatprep.subr.bf16.mxu0 0
        %6861 = vmatpush1.bf16.msra.mxu0 %v6417
        %6862 = vmatprep.subr.bf16.mxu0 0
        %6863 = vmatpush1.bf16.msra.mxu0 %v6418
        %6864 = vmatprep.subr.bf16.mxu0 0
        %6865 = vmatpush1.bf16.msra.mxu0 %v6419
        %6866 = vmatprep.subr.bf16.mxu0 0
        %6867 = vmatpush1.bf16.msra.mxu0 %v6420
        %6868 = vmatprep.subr.bf16.mxu0 0
        %6869 = vmatpush1.bf16.msra.mxu0 %v6421
        %6870 = vmatprep.subr.bf16.mxu0 0
        %6871 = vmatpush1.bf16.msra.mxu0 %v6422
        %6872 = vmatprep.subr.bf16.mxu0 0
        %6873 = vmatpush1.bf16.msra.mxu0 %v6423
        %6874 = vmatprep.subr.bf16.mxu0 0
        %6875 = vmatpush1.bf16.msra.mxu0 %v6424
        %6876 = vmatprep.subr.bf16.mxu0 0
        %6877 = vmatpush1.bf16.msra.mxu0 %v6425
        %6878 = vmatprep.subr.bf16.mxu0 0
        %6879 = vmatpush1.bf16.msra.mxu0 %v6426
        %6880 = vmatprep.subr.bf16.mxu0 0
        %6881 = vmatpush1.bf16.msra.mxu0 %v6427
        %6882 = vmatprep.mubr.bf16.mxu0 %v5440
        %6883 = vmatmul.mubr.bf16.gmra.mrb[0].mxu0 %v5439
        %v6884 = vpop.f32.mrb[0].mxu0
        %v6885 = vadd.f32 %v6844, %v6884
        %v6886 = vpop.f32.mrb[0].mxu0
        %v6887 = vpop.f32.mrb[0].mxu0
        %v6888 = vadd.f32 %v6847, %v6887
        %v6889 = vpop.f32.mrb[0].mxu0
        %6890 = vdwg.mxu0
        %6891 = vmatprep.subr.bf16.mxu0 0
        %6892 = vmatpush1.bf16.msra.mxu0 %v6428
        %6893 = vmatprep.subr.bf16.mxu0 0
        %6894 = vmatpush1.bf16.msra.mxu0 %v6429
        %6895 = vmatprep.subr.bf16.mxu0 0
        %6896 = vmatpush1.bf16.msra.mxu0 %v6430
        %6897 = vmatprep.subr.bf16.mxu0 0
        %6898 = vmatpush1.bf16.msra.mxu0 %v6431
        %6899 = vmatprep.subr.bf16.mxu0 0
        %6900 = vmatpush1.bf16.msra.mxu0 %v6432
        %6901 = vmatprep.subr.bf16.mxu0 0
        %6902 = vmatpush1.bf16.msra.mxu0 %v6433
        %6903 = vmatprep.subr.bf16.mxu0 0
        %6904 = vmatpush1.bf16.msra.mxu0 %v6434
        %6905 = vmatprep.subr.bf16.mxu0 0
        %6906 = vmatpush1.bf16.msra.mxu0 %v6435
        %6907 = vmatprep.subr.bf16.mxu0 0
        %6908 = vmatpush1.bf16.msra.mxu0 %v6436
        %6909 = vmatprep.subr.bf16.mxu0 0
        %6910 = vmatpush1.bf16.msra.mxu0 %v6437
        %6911 = vmatprep.subr.bf16.mxu0 0
        %6912 = vmatpush1.bf16.msra.mxu0 %v6438
        %6913 = vmatprep.subr.bf16.mxu0 0
        %6914 = vmatpush1.bf16.msra.mxu0 %v6439
        %6915 = vmatprep.subr.bf16.mxu0 0
        %6916 = vmatpush1.bf16.msra.mxu0 %v6440
        %6917 = vmatprep.subr.bf16.mxu0 0
        %6918 = vmatpush1.bf16.msra.mxu0 %v6441
        %6919 = vmatprep.subr.bf16.mxu0 0
        %6920 = vmatpush1.bf16.msra.mxu0 %v6442
        %6921 = vmatprep.subr.bf16.mxu0 0
        %6922 = vmatpush1.bf16.msra.mxu0 %v6443
        %6923 = vmatprep.mubr.bf16.mxu0 %v5442
        %6924 = vmatmul.mubr.bf16.gmra.mrb[0].mxu0 %v5441
        %v6925 = vpop.f32.mrb[0].mxu0
        %v6926 = vadd.f32 %v6885, %v6925
        %v6927 = vpop.f32.mrb[0].mxu0
        %v6928 = vpop.f32.mrb[0].mxu0
        %v6929 = vadd.f32 %v6888, %v6928
        %v6930 = vpop.f32.mrb[0].mxu0
        %6931 = vdwg.mxu0
        %6932 = vmatprep.subr.bf16.mxu0 0
        %6933 = vmatpush1.bf16.msra.mxu0 %v6444
        %6934 = vmatprep.subr.bf16.mxu0 0
        %6935 = vmatpush1.bf16.msra.mxu0 %v6445
        %6936 = vmatprep.subr.bf16.mxu0 0
        %6937 = vmatpush1.bf16.msra.mxu0 %v6446
        %6938 = vmatprep.subr.bf16.mxu0 0
        %6939 = vmatpush1.bf16.msra.mxu0 %v6447
        %6940 = vmatprep.subr.bf16.mxu0 0
        %6941 = vmatpush1.bf16.msra.mxu0 %v6448
        %6942 = vmatprep.subr.bf16.mxu0 0
        %6943 = vmatpush1.bf16.msra.mxu0 %v6449
        %6944 = vmatprep.subr.bf16.mxu0 0
        %6945 = vmatpush1.bf16.msra.mxu0 %v6450
        %6946 = vmatprep.subr.bf16.mxu0 0
        %6947 = vmatpush1.bf16.msra.mxu0 %v6451
        %6948 = vmatprep.subr.bf16.mxu0 0
        %6949 = vmatpush1.bf16.msra.mxu0 %v6452
        %6950 = vmatprep.subr.bf16.mxu0 0
        %6951 = vmatpush1.bf16.msra.mxu0 %v6453
        %6952 = vmatprep.subr.bf16.mxu0 0
        %6953 = vmatpush1.bf16.msra.mxu0 %v6454
        %6954 = vmatprep.subr.bf16.mxu0 0
        %6955 = vmatpush1.bf16.msra.mxu0 %v6455
        %6956 = vmatprep.subr.bf16.mxu0 0
        %6957 = vmatpush1.bf16.msra.mxu0 %v6456
        %6958 = vmatprep.subr.bf16.mxu0 0
        %6959 = vmatpush1.bf16.msra.mxu0 %v6457
        %6960 = vmatprep.subr.bf16.mxu0 0
        %6961 = vmatpush1.bf16.msra.mxu0 %v6458
        %6962 = vmatprep.subr.bf16.mxu0 0
        %6963 = vmatpush1.bf16.msra.mxu0 %v6459
        %6964 = vmatprep.mubr.bf16.mxu0 %v5444
        %6965 = vmatmul.mubr.bf16.gmra.mrb[0].mxu0 %v5443
        %v6966 = vpop.f32.mrb[0].mxu0
        %v6967 = vadd.f32 %v6926, %v6966
        %v6968 = vpop.f32.mrb[0].mxu0
        %v6969 = vpop.f32.mrb[0].mxu0
        %v6970 = vadd.f32 %v6929, %v6969
        %v6971 = vpop.f32.mrb[0].mxu0
        %6972 = vdwg.mxu0
        %6973 = vst [vmem:[%s706] sm:$0xff] %v6967
        %6974 = vst [vmem:[%s706 + $0x8] sm:$0xff] %v6970
        %s6975 = smul.u32 2, %s22
        %p6976 = scmp.lt.s32.totalorder %s6975, 3
        %s6977 = scalar_select %p6976, %s6975, 3
        %s6978 = smul.addr %s6977, 8
        %s6979 = scalar_lea.vmem %s11, %s6978
        // Predicated region
        $region103: #{forward_pallas.1} parent=97 // pred_check
          %p6980 = pneg %p276
        $region104: #{forward_pallas.1} parent=97 // pred_check_branch
          %6982 = sbr.rel (%p6980) target = $region106
        $region105: #{forward_pallas.1} parent=97 // pred_region
          %s6983 = smul.u32 2, %s22
        $region106: #{forward_pallas.1} parent=97 // pred_fallthru
          _
      $region98: #{forward_pallas.1} parent=5 // pred_fallthru
        _
      %p6984 = scmp.le.s32.totalorder 2, %s17
      // Predicated region
      $region107: #{forward_pallas.1} parent=5 // pred_check
        %p6985 = pneg %p6984
      $region108: #{forward_pallas.1} parent=5 // pred_check_branch
        %6987 = sbr.rel (%p6985) target = $region110
      $region109: #{forward_pallas.1} parent=5 // pred_region
        %s6988 = ssub.s32 %s17, 2
        // Predicated region
        $region111: #{forward_pallas.1} parent=109 // pred_check
          %p6989 = pneg %p282
        $region112: #{forward_pallas.1} parent=109 // pred_check_branch
          %6991 = sbr.rel (%p6989) target = $region114
        $region113: #{forward_pallas.1} parent=109 // pred_region
          %s6992 = smul.u32 2, %s23
          %p6993 = scmp.lt.s32.totalorder %s6992, 3
          %s6994 = scalar_select %p6993, %s6992, 3
          %s6995 = smul.addr %s6994, 8
          %s6996 = scalar_lea.vmem %s11, %s6995
        $region114: #{forward_pallas.1} parent=109 // pred_fallthru
          _
      $region110: #{forward_pallas.1} parent=5 // pred_fallthru
        _
    $region6: #{forward_pallas.1} parent=1 // loop_footer
      %s21 = sadd.s32 1, %s17
    $region7: #{forward_pallas.1} parent=1 // loop_footer_branch
      %16 = sbr.rel target = $region3
    $region8: #{forward_pallas.1} parent=1 // loop_exit
      _

</llo_original>
